<compile_context>
chip_gen: v5e
topology: v5e:2x2
jax: 0.10.0
libtpu: 0.0.40
codegen_flags: <defaults>
</compile_context>

<pallas_src>
import functools

import jax
import jax.numpy as jnp
import numpy as np
from jax import lax
from jax.experimental import pallas as pl
from jax.experimental.pallas import tpu as pltpu


# ---------------------------------------------------------------------------
# Fused Pallas kernel (one batch image per grid step)
# ---------------------------------------------------------------------------

def _lka_fused_kernel(x_ref, w5p_ref, b5p_ref, w7p_ref, b7p_ref,
                      rc_w_ref, rc_b_ref, pw_w_ref, pw_b_ref,
                      o_ref,
                      xr_pad_ref, y1_pad_ref, y2_pk_ref, shift_ref,
                      *, H, W, Cin, C, G, NG, S):
    f32 = jnp.float32
    LW = G * S            # logical packed row width (channel slots of stride S)
    LWE = LW + 18         # physical width of padded buffers (+18 slack lanes so
                          # every lane-offset window below stays in bounds)

    # ---- zero only the halo borders of the shared y1 buffer (every step) ----
    y1_pad_ref[0:9, :] = jnp.zeros((9, LWE), f32)
    y1_pad_ref[9 + H:18 + H, :] = jnp.zeros((9, LWE), f32)
    y1_pad_ref[9:9 + H, 0:9] = jnp.zeros((H, 9), f32)
    y1_pad_ref[9:9 + H, 9 + LW:LWE] = jnp.zeros((H, 9), f32)

    for gc in range(NG):
        # ---- Stage 1: reduceChannels 1x1 conv + ReLU, written lane-packed ----
        xr_pad_ref[gc, 0:2, :] = jnp.zeros((2, LWE), f32)
        xr_pad_ref[gc, 2 + H:4 + H, :] = jnp.zeros((2, LWE), f32)
        # interior rows: the zero lanes between channel slots ARE the 5x5 conv's
        # zero padding (not redundant); the W data lanes are overwritten below.
        xr_pad_ref[gc, 2:2 + H, :] = jnp.zeros((H, LWE), f32)
        for g in range(G):
            c = gc * G + g
            if c >= C:
                continue
            acc = jnp.full((H, W), rc_b_ref[c], f32)
            for ci in range(Cin):
                acc = acc + x_ref[0, ci] * rc_w_ref[ci * C + c]
            off = g * S + 18
            xr_pad_ref[gc, 2:2 + H, off:off + W] = jnp.maximum(acc, 0.0)

        # ---- Stage 2: depthwise 5x5 (pad 2), G channels per lane row ---------
        acc2 = jnp.zeros((H, LW), f32)
        for kx in range(5):
            # hoisted lane shift: one lane-offset copy per kx, reused over ky
            shift_ref[0:H + 4, :] = xr_pad_ref[gc, :, 7 + kx:7 + kx + LW]
            for ky in range(5):
                acc2 = acc2 + shift_ref[ky:ky + H, :] * w5p_ref[gc, ky * 5 + kx, :]
        acc2 = acc2 + b5p_ref[gc, :]
        # packed weights/bias are exactly zero on pad lanes -> acc2 is exactly
        # zero there, so this dense store keeps y1's in-row zero padding intact.
        y1_pad_ref[9:9 + H, 9:9 + LW] = acc2

        # ---- Stage 3: depthwise 7x7, dilation 3 (pad 9), lane packed ---------
        acc3 = jnp.zeros((H, LW), f32)
        for kx in range(7):
            shift_ref[...] = y1_pad_ref[:, 3 * kx:3 * kx + LW]
            for ky in range(7):
                acc3 = acc3 + (shift_ref[3 * ky:3 * ky + H, :]
                               * w7p_ref[gc, ky * 7 + kx, :])
        acc3 = acc3 + b7p_ref[gc, :]
        y2_pk_ref[gc, :, :] = acc3

    # ---- Stage 4: pwconv (1x1, C->C) + gating, lane-dense flat output --------
    wacc = [jnp.full((H, W), pw_b_ref[co], f32) for co in range(C)]
    for ci in range(C):
        gci, gi = divmod(ci, G)
        off = gi * S + 9
        y2c = y2_pk_ref[gci, :, off:off + W]
        for co in range(C):
            wacc[co] = wacc[co] + y2c * pw_w_ref[ci * C + co]
    for co in range(C):
        gco, go = divmod(co, G)
        off = go * S + 18
        out2d = xr_pad_ref[gco, 2:2 + H, off:off + W] * wacc[co]
        # row-by-row stores into the flat (H*W) block: same number of short
        # stores as the NCHW layout, but the out block / writeback DMA is dense.
        for i in range(H):
            o_ref[0, co:co + 1, i * W:(i + 1) * W] = out2d[i:i + 1, :]


# ---------------------------------------------------------------------------
# Wrapper helpers
# ---------------------------------------------------------------------------

def _vmem_bytes(shape, itemsize=4):
    """Approximate VMEM footprint of an array, incl. (8, 128) tile padding."""
    if len(shape) < 2:
        return max(int(np.prod(shape)) * itemsize, 8 * 128 * itemsize)
    *lead, s, l = shape
    n = 1
    for d in lead:
        n *= int(d)
    return n * (-(-int(s) // 8) * 8) * (-(-int(l) // 128) * 128) * itemsize


def _pack_channel_scalars(vals, C, G, NG, S, W):
    """(C, K) per-channel scalars -> (NG, K, G*S) per-lane rows.

    Per channel slot the row is [0]*9 + [v]*W + [0]*9; the zeros double as the
    conv zero padding / slot separation used by the packed conv planes."""
    K = vals.shape[1]
    v = jnp.pad(vals, ((0, NG * G - C), (0, 0))).reshape(NG, G, K)
    pat = jnp.zeros((S,), vals.dtype).at[9:9 + W].set(1.0)
    out = v[:, :, :, None] * pat[None, None, None, :]      # (NG, G, K, S)
    return out.transpose(0, 2, 1, 3).reshape(NG, K, G * S)


def large_kernel_attn(x_nchw, p):
    """LargeKernelAttn forward. Input/output are NCHW float32 (PyTorch layout)."""
    N, Cin, H, W = x_nchw.shape
    C = p["rc_w"].shape[1]

    # Channel lane-packing geometry: slot stride = W + 2*9 halo (the dilated 7x7
    # needs +-9 lanes of zero padding, which also separates adjacent channels).
    S = W + 18
    G = max(1, min(C, 128 // S))
    NG = -(-C // G)
    G = -(-C // NG)                       # rebalance slots across groups
    NG = -(-C // G)
    LW = G * S
    LWE = LW + 18

    w5p = _pack_channel_scalars(p["dw_w"].reshape(C, 25), C, G, NG, S, W)
    b5p = _pack_channel_scalars(p["dw_b"].reshape(C, 1), C, G, NG, S, W)[:, 0, :]
    w7p = _pack_channel_scalars(p["dwd_w"].reshape(C, 49), C, G, NG, S, W)
    b7p = _pack_channel_scalars(p["dwd_b"].reshape(C, 1), C, G, NG, S, W)[:, 0, :]

    kernel = functools.partial(_lka_fused_kernel, H=H, W=W, Cin=Cin, C=C,
                               G=G, NG=NG, S=S)
    smem = pl.BlockSpec(memory_space=pltpu.MemorySpace.SMEM)

    scratch = [
        pltpu.VMEM((NG, H + 4, LWE), jnp.float32),   # packed, padded xr
        pltpu.VMEM((H + 18, LWE), jnp.float32),      # packed, padded y1 (reused per group)
        pltpu.VMEM((NG, H, LW), jnp.float32),        # packed y2
        pltpu.VMEM((H + 18, LW), jnp.float32),       # hoisted lane-shift staging
    ]

    # VMEM budget: I/O and weight blocks are double-buffered by the pipeline.
    vmem_need = (2 * _vmem_bytes((Cin, H, W)) + 2 * _vmem_bytes((C, H * W))
                 + 2 * (_vmem_bytes((NG, 25, LW)) + _vmem_bytes((NG, 49, LW))
                        + 2 * _vmem_bytes((NG, LW)))
                 + _vmem_bytes((NG, H + 4, LWE)) + _vmem_bytes((H + 18, LWE))
                 + _vmem_bytes((NG, H, LW)) + _vmem_bytes((H + 18, LW)))
    try:
        vmem_cap = int(pltpu.get_tpu_info().vmem_capacity_bytes)
    except Exception:
        vmem_cap = 64 * 2 ** 20
    vmem_limit = int(min(max(2 * vmem_need, 32 * 2 ** 20), int(0.70 * vmem_cap)))
    vmem_limit = int(max(vmem_limit, vmem_need))

    flops = N * H * W * C * (2 * Cin + 2 * 25 + 2 * 49 + 2 * C + 1)
    param_bytes = 4 * (int(w5p.size) + int(b5p.size) + int(w7p.size)
                       + int(b7p.size) + Cin * C + C + C * C + C)
    bytes_accessed = 4 * (N * Cin * H * W + N * C * H * W) + param_bytes

    out_flat = pl.pallas_call(
        kernel,
        out_shape=jax.ShapeDtypeStruct((N, C, H * W), jnp.float32),
        grid=(N,),
        in_specs=[
            pl.BlockSpec((1, Cin, H, W), lambda n: (n, 0, 0, 0)),   # x
            pl.BlockSpec((NG, 25, LW), lambda n: (0, 0, 0)),        # packed 5x5 taps
            pl.BlockSpec((NG, LW), lambda n: (0, 0)),               # packed 5x5 bias
            pl.BlockSpec((NG, 49, LW), lambda n: (0, 0, 0)),        # packed 7x7 taps
            pl.BlockSpec((NG, LW), lambda n: (0, 0)),               # packed 7x7 bias
            smem, smem, smem, smem,                                 # 1x1-conv params
        ],
        out_specs=pl.BlockSpec((1, C, H * W), lambda n: (n, 0, 0)),
        scratch_shapes=scratch,
        compiler_params=pltpu.CompilerParams(
            dimension_semantics=("parallel",),
            vmem_limit_bytes=vmem_limit),
        cost_estimate=pl.CostEstimate(flops=flops, transcendentals=0,
                                      bytes_accessed=bytes_accessed),
    )(x_nchw, w5p, b5p, w7p, b7p,
      p["rc_w"].reshape(-1), p["rc_b"].reshape(-1),
      p["pw_w"].reshape(-1), p["pw_b"].reshape(-1))

    return out_flat.reshape(N, C, H, W)


# ---------------------------------------------------------------------------
# Deterministic parameter init (synthetic; no checkpoint load)
# ---------------------------------------------------------------------------

def init_params(key, in_channels, channels):
    ks = jax.random.split(key, 8)
    f = lambda k, shape: (0.1 * jax.random.normal(k, shape)).astype(jnp.float32)
    return {
        # reduceChannels 1x1 conv: (Cin, C) weight (ci, co) + (C,) bias
        "rc_w": f(ks[0], (in_channels, channels)),
        "rc_b": f(ks[1], (channels,)),
        # dwconv 5x5 depthwise: (C, 5, 5) taps + (C,) bias
        "dw_w": f(ks[2], (channels, 5, 5)),
        "dw_b": f(ks[3], (channels,)),
        # dwdconv 7x7 dilated depthwise: (C, 7, 7) + (C,)
        "dwd_w": f(ks[4], (channels, 7, 7)),
        "dwd_b": f(ks[5], (channels,)),
        # pwconv 1x1: (C, C) weight (ci, co) + (C,) bias
        "pw_w": f(ks[6], (channels, channels)),
        "pw_b": f(ks[7], (channels,)),
    }


# ---------------------------------------------------------------------------
# Pure-JAX reference (lax.conv_general_dilated, NCHW like PyTorch)
# ---------------------------------------------------------------------------

def ref_forward(x_nchw, p):
    C = p["pw_w"].shape[1]
    Cin = p["rc_w"].shape[0]
    dn = ("NCHW", "OIHW", "NCHW")

    def conv(x, w, b, padding, dilation=1, groups=1):
        y = lax.conv_general_dilated(
            x, w, window_strides=(1, 1),
            padding=((padding, padding), (padding, padding)),
            rhs_dilation=(dilation, dilation),
            dimension_numbers=dn, feature_group_count=groups)
        return y + b.reshape(1, -1, 1, 1)

    rc_w = p["rc_w"].T.reshape(C, Cin, 1, 1)
    xr = jnp.maximum(conv(x_nchw, rc_w, p["rc_b"], 0), 0.0)
    dw_w = p["dw_w"].reshape(C, 1, 5, 5)
    y1 = conv(xr, dw_w, p["dw_b"], 2, 1, C)
    dwd_w = p["dwd_w"].reshape(C, 1, 7, 7)
    y2 = conv(y1, dwd_w, p["dwd_b"], 9, 3, C)
    pw_w = p["pw_w"].T.reshape(C, C, 1, 1)
    weight = conv(y2, pw_w, p["pw_b"], 0)
    return xr * weight


# ---------------------------------------------------------------------------

if __name__ == "__main__":
    N, Cin, C, H, W = 2, 8, 4, 16, 16
    key = jax.random.PRNGKey(0)
    kx_, kp = jax.random.split(key)
    x = jax.random.normal(kx_, (N, Cin, H, W), dtype=jnp.float32)
    params = init_params(kp, Cin, C)

    out = jax.block_until_ready(large_kernel_attn(x, params))
    ref = jax.block_until_ready(ref_forward(x, params))
    np.testing.assert_allclose(np.asarray(out), np.asarray(ref),
                               rtol=1e-4, atol=1e-4)

    print("KERNEL_OK")
</pallas_src>

<mosaic_0001>
module attributes {stable_mosaic.version = 11 : i64} {
  func.func @_lka_fused_kernel(%arg0: i32, %arg1: memref<1x8x16x16xf32, #tpu.memory_space<vmem>>, %arg2: memref<2x25x68xf32, #tpu.memory_space<vmem>>, %arg3: memref<2x68xf32, #tpu.memory_space<vmem>>, %arg4: memref<2x49x68xf32, #tpu.memory_space<vmem>>, %arg5: memref<2x68xf32, #tpu.memory_space<vmem>>, %arg6: memref<32xf32, #tpu.memory_space<smem>>, %arg7: memref<4xf32, #tpu.memory_space<smem>>, %arg8: memref<16xf32, #tpu.memory_space<smem>>, %arg9: memref<4xf32, #tpu.memory_space<smem>>, %arg10: memref<1x4x256xf32, #tpu.memory_space<vmem>>, %arg11: memref<2x20x86xf32, #tpu.memory_space<vmem>>, %arg12: memref<34x86xf32, #tpu.memory_space<vmem>>, %arg13: memref<2x16x68xf32, #tpu.memory_space<vmem>>, %arg14: memref<34x68xf32, #tpu.memory_space<vmem>>) attributes {dimension_semantics = [#tpu.dimension_semantics<parallel>], iteration_bounds = array<i64: 2>, scalar_prefetch = 0 : i64, scratch_operands = 4 : i64, tpu.core_type = #tpu.core_type<tc>, window_params = [{transform_indices = @transform_0, window_bounds = array<i64: 1, 8, 16, 16>}, {pipeline_mode = #tpu.pipeline_mode<synchronous>, transform_indices = @transform_1, window_bounds = array<i64: 2, 25, 68>}, {pipeline_mode = #tpu.pipeline_mode<synchronous>, transform_indices = @transform_2, window_bounds = array<i64: 2, 68>}, {pipeline_mode = #tpu.pipeline_mode<synchronous>, transform_indices = @transform_3, window_bounds = array<i64: 2, 49, 68>}, {pipeline_mode = #tpu.pipeline_mode<synchronous>, transform_indices = @transform_4, window_bounds = array<i64: 2, 68>}, {transform_indices = @transform_5, window_bounds = array<i64: 32>}, {transform_indices = @transform_6, window_bounds = array<i64: 4>}, {transform_indices = @transform_7, window_bounds = array<i64: 16>}, {transform_indices = @transform_8, window_bounds = array<i64: 4>}, {transform_indices = @transform_9, window_bounds = array<i64: 1, 4, 256>}]} {
    %cst = arith.constant 0.000000e+00 : f32
    %0 = vector.broadcast %cst : f32 to vector<9x86xf32>
    %c0 = arith.constant 0 : index
    %c0_0 = arith.constant 0 : index
    %1 = vector.load %arg12[%c0, %c0_0] : memref<34x86xf32, #tpu.memory_space<vmem>>, vector<9x86xf32>
    tpu.vector_store %arg12[%c0, %c0_0], %0 {strides = array<i32>} : memref<34x86xf32, #tpu.memory_space<vmem>>, vector<9x86xf32>,
    %cst_1 = arith.constant 0.000000e+00 : f32
    %2 = vector.broadcast %cst_1 : f32 to vector<9x86xf32>
    %c25 = arith.constant 25 : index
    %c0_2 = arith.constant 0 : index
    %3 = vector.load %arg12[%c25, %c0_2] : memref<34x86xf32, #tpu.memory_space<vmem>>, vector<9x86xf32>
    tpu.vector_store %arg12[%c25, %c0_2], %2 {strides = array<i32>} : memref<34x86xf32, #tpu.memory_space<vmem>>, vector<9x86xf32>,
    %cst_3 = arith.constant 0.000000e+00 : f32
    %4 = vector.broadcast %cst_3 : f32 to vector<16x9xf32>
    %c9 = arith.constant 9 : index
    %c0_4 = arith.constant 0 : index
    %5 = vector.load %arg12[%c9, %c0_4] : memref<34x86xf32, #tpu.memory_space<vmem>>, vector<16x9xf32>
    tpu.vector_store %arg12[%c9, %c0_4], %4 {strides = array<i32>} : memref<34x86xf32, #tpu.memory_space<vmem>>, vector<16x9xf32>,
    %cst_5 = arith.constant 0.000000e+00 : f32
    %6 = vector.broadcast %cst_5 : f32 to vector<16x9xf32>
    %c9_6 = arith.constant 9 : index
    %c77 = arith.constant 77 : index
    %7 = vector.load %arg12[%c9_6, %c77] : memref<34x86xf32, #tpu.memory_space<vmem>>, vector<16x9xf32>
    tpu.vector_store %arg12[%c9_6, %c77], %6 {strides = array<i32>} : memref<34x86xf32, #tpu.memory_space<vmem>>, vector<16x9xf32>,
    %cst_7 = arith.constant 0.000000e+00 : f32
    %8 = vector.broadcast %cst_7 : f32 to vector<2x86xf32>
    %c0_8 = arith.constant 0 : index
    %c0_9 = arith.constant 0 : index
    %c0_10 = arith.constant 0 : index
    %9 = vector.load %arg11[%c0_8, %c0_9, %c0_10] : memref<2x20x86xf32, #tpu.memory_space<vmem>>, vector<1x2x86xf32>
    %10 = vector.shape_cast %9 : vector<1x2x86xf32> to vector<2x86xf32>
    %11 = vector.shape_cast %8 : vector<2x86xf32> to vector<1x2x86xf32>
    tpu.vector_store %arg11[%c0_8, %c0_9, %c0_10], %11 {strides = array<i32>} : memref<2x20x86xf32, #tpu.memory_space<vmem>>, vector<1x2x86xf32>,
    %cst_11 = arith.constant 0.000000e+00 : f32
    %12 = vector.broadcast %cst_11 : f32 to vector<2x86xf32>
    %c0_12 = arith.constant 0 : index
    %c18 = arith.constant 18 : index
    %c0_13 = arith.constant 0 : index
    %13 = vector.load %arg11[%c0_12, %c18, %c0_13] : memref<2x20x86xf32, #tpu.memory_space<vmem>>, vector<1x2x86xf32>
    %14 = vector.shape_cast %13 : vector<1x2x86xf32> to vector<2x86xf32>
    %15 = vector.shape_cast %12 : vector<2x86xf32> to vector<1x2x86xf32>
    tpu.vector_store %arg11[%c0_12, %c18, %c0_13], %15 {strides = array<i32>} : memref<2x20x86xf32, #tpu.memory_space<vmem>>, vector<1x2x86xf32>,
    %cst_14 = arith.constant 0.000000e+00 : f32
    %16 = vector.broadcast %cst_14 : f32 to vector<16x86xf32>
    %c0_15 = arith.constant 0 : index
    %c2 = arith.constant 2 : index
    %c0_16 = arith.constant 0 : index
    %17 = vector.load %arg11[%c0_15, %c2, %c0_16] : memref<2x20x86xf32, #tpu.memory_space<vmem>>, vector<1x16x86xf32>
    %18 = vector.shape_cast %17 : vector<1x16x86xf32> to vector<16x86xf32>
    %19 = vector.shape_cast %16 : vector<16x86xf32> to vector<1x16x86xf32>
    tpu.vector_store %arg11[%c0_15, %c2, %c0_16], %19 {strides = array<i32>} : memref<2x20x86xf32, #tpu.memory_space<vmem>>, vector<1x16x86xf32>,
    %c0_17 = arith.constant 0 : index
    %20 = memref.load %arg7[%c0_17] : memref<4xf32, #tpu.memory_space<smem>>
    %21 = vector.broadcast %20 : f32 to vector<16x16xf32>
    %c0_18 = arith.constant 0 : index
    %c0_19 = arith.constant 0 : index
    %c0_20 = arith.constant 0 : index
    %c0_21 = arith.constant 0 : index
    %22 = vector.load %arg1[%c0_18, %c0_19, %c0_20, %c0_21] : memref<1x8x16x16xf32, #tpu.memory_space<vmem>>, vector<1x1x16x16xf32>
    %23 = vector.shape_cast %22 : vector<1x1x16x16xf32> to vector<16x16xf32>
    %c0_22 = arith.constant 0 : index
    %24 = memref.load %arg6[%c0_22] : memref<32xf32, #tpu.memory_space<smem>>
    %25 = vector.broadcast %24 : f32 to vector<16x16xf32>
    %26 = arith.mulf %23, %25 : vector<16x16xf32>
    %27 = arith.addf %21, %26 : vector<16x16xf32>
    %c0_23 = arith.constant 0 : index
    %c1 = arith.constant 1 : index
    %c0_24 = arith.constant 0 : index
    %c0_25 = arith.constant 0 : index
    %28 = vector.load %arg1[%c0_23, %c1, %c0_24, %c0_25] : memref<1x8x16x16xf32, #tpu.memory_space<vmem>>, vector<1x1x16x16xf32>
    %29 = vector.shape_cast %28 : vector<1x1x16x16xf32> to vector<16x16xf32>
    %c4 = arith.constant 4 : index
    %30 = memref.load %arg6[%c4] : memref<32xf32, #tpu.memory_space<smem>>
    %31 = vector.broadcast %30 : f32 to vector<16x16xf32>
    %32 = arith.mulf %29, %31 : vector<16x16xf32>
    %33 = arith.addf %27, %32 : vector<16x16xf32>
    %c0_26 = arith.constant 0 : index
    %c2_27 = arith.constant 2 : index
    %c0_28 = arith.constant 0 : index
    %c0_29 = arith.constant 0 : index
    %34 = vector.load %arg1[%c0_26, %c2_27, %c0_28, %c0_29] : memref<1x8x16x16xf32, #tpu.memory_space<vmem>>, vector<1x1x16x16xf32>
    %35 = vector.shape_cast %34 : vector<1x1x16x16xf32> to vector<16x16xf32>
    %c8 = arith.constant 8 : index
    %36 = memref.load %arg6[%c8] : memref<32xf32, #tpu.memory_space<smem>>
    %37 = vector.broadcast %36 : f32 to vector<16x16xf32>
    %38 = arith.mulf %35, %37 : vector<16x16xf32>
    %39 = arith.addf %33, %38 : vector<16x16xf32>
    %c0_30 = arith.constant 0 : index
    %c3 = arith.constant 3 : index
    %c0_31 = arith.constant 0 : index
    %c0_32 = arith.constant 0 : index
    %40 = vector.load %arg1[%c0_30, %c3, %c0_31, %c0_32] : memref<1x8x16x16xf32, #tpu.memory_space<vmem>>, vector<1x1x16x16xf32>
    %41 = vector.shape_cast %40 : vector<1x1x16x16xf32> to vector<16x16xf32>
    %c12 = arith.constant 12 : index
    %42 = memref.load %arg6[%c12] : memref<32xf32, #tpu.memory_space<smem>>
    %43 = vector.broadcast %42 : f32 to vector<16x16xf32>
    %44 = arith.mulf %41, %43 : vector<16x16xf32>
    %45 = arith.addf %39, %44 : vector<16x16xf32>
    %c0_33 = arith.constant 0 : index
    %c4_34 = arith.constant 4 : index
    %c0_35 = arith.constant 0 : index
    %c0_36 = arith.constant 0 : index
    %46 = vector.load %arg1[%c0_33, %c4_34, %c0_35, %c0_36] : memref<1x8x16x16xf32, #tpu.memory_space<vmem>>, vector<1x1x16x16xf32>
    %47 = vector.shape_cast %46 : vector<1x1x16x16xf32> to vector<16x16xf32>
    %c16 = arith.constant 16 : index
    %48 = memref.load %arg6[%c16] : memref<32xf32, #tpu.memory_space<smem>>
    %49 = vector.broadcast %48 : f32 to vector<16x16xf32>
    %50 = arith.mulf %47, %49 : vector<16x16xf32>
    %51 = arith.addf %45, %50 : vector<16x16xf32>
    %c0_37 = arith.constant 0 : index
    %c5 = arith.constant 5 : index
    %c0_38 = arith.constant 0 : index
    %c0_39 = arith.constant 0 : index
    %52 = vector.load %arg1[%c0_37, %c5, %c0_38, %c0_39] : memref<1x8x16x16xf32, #tpu.memory_space<vmem>>, vector<1x1x16x16xf32>
    %53 = vector.shape_cast %52 : vector<1x1x16x16xf32> to vector<16x16xf32>
    %c20 = arith.constant 20 : index
    %54 = memref.load %arg6[%c20] : memref<32xf32, #tpu.memory_space<smem>>
    %55 = vector.broadcast %54 : f32 to vector<16x16xf32>
    %56 = arith.mulf %53, %55 : vector<16x16xf32>
    %57 = arith.addf %51, %56 : vector<16x16xf32>
    %c0_40 = arith.constant 0 : index
    %c6 = arith.constant 6 : index
    %c0_41 = arith.constant 0 : index
    %c0_42 = arith.constant 0 : index
    %58 = vector.load %arg1[%c0_40, %c6, %c0_41, %c0_42] : memref<1x8x16x16xf32, #tpu.memory_space<vmem>>, vector<1x1x16x16xf32>
    %59 = vector.shape_cast %58 : vector<1x1x16x16xf32> to vector<16x16xf32>
    %c24 = arith.constant 24 : index
    %60 = memref.load %arg6[%c24] : memref<32xf32, #tpu.memory_space<smem>>
    %61 = vector.broadcast %60 : f32 to vector<16x16xf32>
    %62 = arith.mulf %59, %61 : vector<16x16xf32>
    %63 = arith.addf %57, %62 : vector<16x16xf32>
    %c0_43 = arith.constant 0 : index
    %c7 = arith.constant 7 : index
    %c0_44 = arith.constant 0 : index
    %c0_45 = arith.constant 0 : index
    %64 = vector.load %arg1[%c0_43, %c7, %c0_44, %c0_45] : memref<1x8x16x16xf32, #tpu.memory_space<vmem>>, vector<1x1x16x16xf32>
    %65 = vector.shape_cast %64 : vector<1x1x16x16xf32> to vector<16x16xf32>
    %c28 = arith.constant 28 : index
    %66 = memref.load %arg6[%c28] : memref<32xf32, #tpu.memory_space<smem>>
    %67 = vector.broadcast %66 : f32 to vector<16x16xf32>
    %68 = arith.mulf %65, %67 : vector<16x16xf32>
    %69 = arith.addf %63, %68 : vector<16x16xf32>
    %cst_46 = arith.constant 0.000000e+00 : f32
    %70 = vector.broadcast %cst_46 : f32 to vector<16x16xf32>
    %71 = arith.maximumf %69, %70 : vector<16x16xf32>
    %c0_47 = arith.constant 0 : index
    %c2_48 = arith.constant 2 : index
    %c18_49 = arith.constant 18 : index
    %72 = vector.load %arg11[%c0_47, %c2_48, %c18_49] : memref<2x20x86xf32, #tpu.memory_space<vmem>>, vector<1x16x16xf32>
    %73 = vector.shape_cast %72 : vector<1x16x16xf32> to vector<16x16xf32>
    %74 = vector.shape_cast %71 : vector<16x16xf32> to vector<1x16x16xf32>
    tpu.vector_store %arg11[%c0_47, %c2_48, %c18_49], %74 {strides = array<i32>} : memref<2x20x86xf32, #tpu.memory_space<vmem>>, vector<1x16x16xf32>,
    %c1_50 = arith.constant 1 : index
    %75 = memref.load %arg7[%c1_50] : memref<4xf32, #tpu.memory_space<smem>>
    %76 = vector.broadcast %75 : f32 to vector<16x16xf32>
    %c0_51 = arith.constant 0 : index
    %c0_52 = arith.constant 0 : index
    %c0_53 = arith.constant 0 : index
    %c0_54 = arith.constant 0 : index
    %77 = vector.load %arg1[%c0_51, %c0_52, %c0_53, %c0_54] : memref<1x8x16x16xf32, #tpu.memory_space<vmem>>, vector<1x1x16x16xf32>
    %78 = vector.shape_cast %77 : vector<1x1x16x16xf32> to vector<16x16xf32>
    %c1_55 = arith.constant 1 : index
    %79 = memref.load %arg6[%c1_55] : memref<32xf32, #tpu.memory_space<smem>>
    %80 = vector.broadcast %79 : f32 to vector<16x16xf32>
    %81 = arith.mulf %78, %80 : vector<16x16xf32>
    %82 = arith.addf %76, %81 : vector<16x16xf32>
    %c0_56 = arith.constant 0 : index
    %c1_57 = arith.constant 1 : index
    %c0_58 = arith.constant 0 : index
    %c0_59 = arith.constant 0 : index
    %83 = vector.load %arg1[%c0_56, %c1_57, %c0_58, %c0_59] : memref<1x8x16x16xf32, #tpu.memory_space<vmem>>, vector<1x1x16x16xf32>
    %84 = vector.shape_cast %83 : vector<1x1x16x16xf32> to vector<16x16xf32>
    %c5_60 = arith.constant 5 : index
    %85 = memref.load %arg6[%c5_60] : memref<32xf32, #tpu.memory_space<smem>>
    %86 = vector.broadcast %85 : f32 to vector<16x16xf32>
    %87 = arith.mulf %84, %86 : vector<16x16xf32>
    %88 = arith.addf %82, %87 : vector<16x16xf32>
    %c0_61 = arith.constant 0 : index
    %c2_62 = arith.constant 2 : index
    %c0_63 = arith.constant 0 : index
    %c0_64 = arith.constant 0 : index
    %89 = vector.load %arg1[%c0_61, %c2_62, %c0_63, %c0_64] : memref<1x8x16x16xf32, #tpu.memory_space<vmem>>, vector<1x1x16x16xf32>
    %90 = vector.shape_cast %89 : vector<1x1x16x16xf32> to vector<16x16xf32>
    %c9_65 = arith.constant 9 : index
    %91 = memref.load %arg6[%c9_65] : memref<32xf32, #tpu.memory_space<smem>>
    %92 = vector.broadcast %91 : f32 to vector<16x16xf32>
    %93 = arith.mulf %90, %92 : vector<16x16xf32>
    %94 = arith.addf %88, %93 : vector<16x16xf32>
    %c0_66 = arith.constant 0 : index
    %c3_67 = arith.constant 3 : index
    %c0_68 = arith.constant 0 : index
    %c0_69 = arith.constant 0 : index
    %95 = vector.load %arg1[%c0_66, %c3_67, %c0_68, %c0_69] : memref<1x8x16x16xf32, #tpu.memory_space<vmem>>, vector<1x1x16x16xf32>
    %96 = vector.shape_cast %95 : vector<1x1x16x16xf32> to vector<16x16xf32>
    %c13 = arith.constant 13 : index
    %97 = memref.load %arg6[%c13] : memref<32xf32, #tpu.memory_space<smem>>
    %98 = vector.broadcast %97 : f32 to vector<16x16xf32>
    %99 = arith.mulf %96, %98 : vector<16x16xf32>
    %100 = arith.addf %94, %99 : vector<16x16xf32>
    %c0_70 = arith.constant 0 : index
    %c4_71 = arith.constant 4 : index
    %c0_72 = arith.constant 0 : index
    %c0_73 = arith.constant 0 : index
    %101 = vector.load %arg1[%c0_70, %c4_71, %c0_72, %c0_73] : memref<1x8x16x16xf32, #tpu.memory_space<vmem>>, vector<1x1x16x16xf32>
    %102 = vector.shape_cast %101 : vector<1x1x16x16xf32> to vector<16x16xf32>
    %c17 = arith.constant 17 : index
    %103 = memref.load %arg6[%c17] : memref<32xf32, #tpu.memory_space<smem>>
    %104 = vector.broadcast %103 : f32 to vector<16x16xf32>
    %105 = arith.mulf %102, %104 : vector<16x16xf32>
    %106 = arith.addf %100, %105 : vector<16x16xf32>
    %c0_74 = arith.constant 0 : index
    %c5_75 = arith.constant 5 : index
    %c0_76 = arith.constant 0 : index
    %c0_77 = arith.constant 0 : index
    %107 = vector.load %arg1[%c0_74, %c5_75, %c0_76, %c0_77] : memref<1x8x16x16xf32, #tpu.memory_space<vmem>>, vector<1x1x16x16xf32>
    %108 = vector.shape_cast %107 : vector<1x1x16x16xf32> to vector<16x16xf32>
    %c21 = arith.constant 21 : index
    %109 = memref.load %arg6[%c21] : memref<32xf32, #tpu.memory_space<smem>>
    %110 = vector.broadcast %109 : f32 to vector<16x16xf32>
    %111 = arith.mulf %108, %110 : vector<16x16xf32>
    %112 = arith.addf %106, %111 : vector<16x16xf32>
    %c0_78 = arith.constant 0 : index
    %c6_79 = arith.constant 6 : index
    %c0_80 = arith.constant 0 : index
    %c0_81 = arith.constant 0 : index
    %113 = vector.load %arg1[%c0_78, %c6_79, %c0_80, %c0_81] : memref<1x8x16x16xf32, #tpu.memory_space<vmem>>, vector<1x1x16x16xf32>
    %114 = vector.shape_cast %113 : vector<1x1x16x16xf32> to vector<16x16xf32>
    %c25_82 = arith.constant 25 : index
    %115 = memref.load %arg6[%c25_82] : memref<32xf32, #tpu.memory_space<smem>>
    %116 = vector.broadcast %115 : f32 to vector<16x16xf32>
    %117 = arith.mulf %114, %116 : vector<16x16xf32>
    %118 = arith.addf %112, %117 : vector<16x16xf32>
    %c0_83 = arith.constant 0 : index
    %c7_84 = arith.constant 7 : index
    %c0_85 = arith.constant 0 : index
    %c0_86 = arith.constant 0 : index
    %119 = vector.load %arg1[%c0_83, %c7_84, %c0_85, %c0_86] : memref<1x8x16x16xf32, #tpu.memory_space<vmem>>, vector<1x1x16x16xf32>
    %120 = vector.shape_cast %119 : vector<1x1x16x16xf32> to vector<16x16xf32>
    %c29 = arith.constant 29 : index
    %121 = memref.load %arg6[%c29] : memref<32xf32, #tpu.memory_space<smem>>
    %122 = vector.broadcast %121 : f32 to vector<16x16xf32>
    %123 = arith.mulf %120, %122 : vector<16x16xf32>
    %124 = arith.addf %118, %123 : vector<16x16xf32>
    %cst_87 = arith.constant 0.000000e+00 : f32
    %125 = vector.broadcast %cst_87 : f32 to vector<16x16xf32>
    %126 = arith.maximumf %124, %125 : vector<16x16xf32>
    %c0_88 = arith.constant 0 : index
    %c2_89 = arith.constant 2 : index
    %c52 = arith.constant 52 : index
    %127 = vector.load %arg11[%c0_88, %c2_89, %c52] : memref<2x20x86xf32, #tpu.memory_space<vmem>>, vector<1x16x16xf32>
    %128 = vector.shape_cast %127 : vector<1x16x16xf32> to vector<16x16xf32>
    %129 = vector.shape_cast %126 : vector<16x16xf32> to vector<1x16x16xf32>
    tpu.vector_store %arg11[%c0_88, %c2_89, %c52], %129 {strides = array<i32>} : memref<2x20x86xf32, #tpu.memory_space<vmem>>, vector<1x16x16xf32>,
    %cst_90 = arith.constant 0.000000e+00 : f32
    %130 = vector.broadcast %cst_90 : f32 to vector<16x68xf32>
    %c0_91 = arith.constant 0 : index
    %c0_92 = arith.constant 0 : index
    %c7_93 = arith.constant 7 : index
    %131 = vector.load %arg11[%c0_91, %c0_92, %c7_93] : memref<2x20x86xf32, #tpu.memory_space<vmem>>, vector<1x20x68xf32>
    %132 = vector.shape_cast %131 : vector<1x20x68xf32> to vector<20x68xf32>
    %c0_94 = arith.constant 0 : index
    %c0_95 = arith.constant 0 : index
    %133 = vector.load %arg14[%c0_94, %c0_95] : memref<34x68xf32, #tpu.memory_space<vmem>>, vector<20x68xf32>
    tpu.vector_store %arg14[%c0_94, %c0_95], %132 {strides = array<i32>} : memref<34x68xf32, #tpu.memory_space<vmem>>, vector<20x68xf32>,
    %c0_96 = arith.constant 0 : index
    %c0_97 = arith.constant 0 : index
    %134 = vector.load %arg14[%c0_96, %c0_97] : memref<34x68xf32, #tpu.memory_space<vmem>>, vector<16x68xf32>
    %c0_98 = arith.constant 0 : index
    %c0_99 = arith.constant 0 : index
    %c0_100 = arith.constant 0 : index
    %135 = vector.load %arg2[%c0_98, %c0_99, %c0_100] : memref<2x25x68xf32, #tpu.memory_space<vmem>>, vector<1x1x68xf32>
    %136 = vector.shape_cast %135 : vector<1x1x68xf32> to vector<68xf32>
    %137 = vector.shape_cast %136 : vector<68xf32> to vector<1x68xf32>
    %138 = vector.broadcast %137 : vector<1x68xf32> to vector<16x68xf32>
    %139 = arith.mulf %134, %138 : vector<16x68xf32>
    %140 = arith.addf %130, %139 : vector<16x68xf32>
    %c1_101 = arith.constant 1 : index
    %c0_102 = arith.constant 0 : index
    %141 = vector.load %arg14[%c1_101, %c0_102] : memref<34x68xf32, #tpu.memory_space<vmem>>, vector<16x68xf32>
    %c0_103 = arith.constant 0 : index
    %c5_104 = arith.constant 5 : index
    %c0_105 = arith.constant 0 : index
    %142 = vector.load %arg2[%c0_103, %c5_104, %c0_105] : memref<2x25x68xf32, #tpu.memory_space<vmem>>, vector<1x1x68xf32>
    %143 = vector.shape_cast %142 : vector<1x1x68xf32> to vector<68xf32>
    %144 = vector.shape_cast %143 : vector<68xf32> to vector<1x68xf32>
    %145 = vector.broadcast %144 : vector<1x68xf32> to vector<16x68xf32>
    %146 = arith.mulf %141, %145 : vector<16x68xf32>
    %147 = arith.addf %140, %146 : vector<16x68xf32>
    %c2_106 = arith.constant 2 : index
    %c0_107 = arith.constant 0 : index
    %148 = vector.load %arg14[%c2_106, %c0_107] : memref<34x68xf32, #tpu.memory_space<vmem>>, vector<16x68xf32>
    %c0_108 = arith.constant 0 : index
    %c10 = arith.constant 10 : index
    %c0_109 = arith.constant 0 : index
    %149 = vector.load %arg2[%c0_108, %c10, %c0_109] : memref<2x25x68xf32, #tpu.memory_space<vmem>>, vector<1x1x68xf32>
    %150 = vector.shape_cast %149 : vector<1x1x68xf32> to vector<68xf32>
    %151 = vector.shape_cast %150 : vector<68xf32> to vector<1x68xf32>
    %152 = vector.broadcast %151 : vector<1x68xf32> to vector<16x68xf32>
    %153 = arith.mulf %148, %152 : vector<16x68xf32>
    %154 = arith.addf %147, %153 : vector<16x68xf32>
    %c3_110 = arith.constant 3 : index
    %c0_111 = arith.constant 0 : index
    %155 = vector.load %arg14[%c3_110, %c0_111] : memref<34x68xf32, #tpu.memory_space<vmem>>, vector<16x68xf32>
    %c0_112 = arith.constant 0 : index
    %c15 = arith.constant 15 : index
    %c0_113 = arith.constant 0 : index
    %156 = vector.load %arg2[%c0_112, %c15, %c0_113] : memref<2x25x68xf32, #tpu.memory_space<vmem>>, vector<1x1x68xf32>
    %157 = vector.shape_cast %156 : vector<1x1x68xf32> to vector<68xf32>
    %158 = vector.shape_cast %157 : vector<68xf32> to vector<1x68xf32>
    %159 = vector.broadcast %158 : vector<1x68xf32> to vector<16x68xf32>
    %160 = arith.mulf %155, %159 : vector<16x68xf32>
    %161 = arith.addf %154, %160 : vector<16x68xf32>
    %c4_114 = arith.constant 4 : index
    %c0_115 = arith.constant 0 : index
    %162 = vector.load %arg14[%c4_114, %c0_115] : memref<34x68xf32, #tpu.memory_space<vmem>>, vector<16x68xf32>
    %c0_116 = arith.constant 0 : index
    %c20_117 = arith.constant 20 : index
    %c0_118 = arith.constant 0 : index
    %163 = vector.load %arg2[%c0_116, %c20_117, %c0_118] : memref<2x25x68xf32, #tpu.memory_space<vmem>>, vector<1x1x68xf32>
    %164 = vector.shape_cast %163 : vector<1x1x68xf32> to vector<68xf32>
    %165 = vector.shape_cast %164 : vector<68xf32> to vector<1x68xf32>
    %166 = vector.broadcast %165 : vector<1x68xf32> to vector<16x68xf32>
    %167 = arith.mulf %162, %166 : vector<16x68xf32>
    %168 = arith.addf %161, %167 : vector<16x68xf32>
    %c0_119 = arith.constant 0 : index
    %c0_120 = arith.constant 0 : index
    %c8_121 = arith.constant 8 : index
    %169 = vector.load %arg11[%c0_119, %c0_120, %c8_121] : memref<2x20x86xf32, #tpu.memory_space<vmem>>, vector<1x20x68xf32>
    %170 = vector.shape_cast %169 : vector<1x20x68xf32> to vector<20x68xf32>
    %c0_122 = arith.constant 0 : index
    %c0_123 = arith.constant 0 : index
    %171 = vector.load %arg14[%c0_122, %c0_123] : memref<34x68xf32, #tpu.memory_space<vmem>>, vector<20x68xf32>
    tpu.vector_store %arg14[%c0_122, %c0_123], %170 {strides = array<i32>} : memref<34x68xf32, #tpu.memory_space<vmem>>, vector<20x68xf32>,
    %c0_124 = arith.constant 0 : index
    %c0_125 = arith.constant 0 : index
    %172 = vector.load %arg14[%c0_124, %c0_125] : memref<34x68xf32, #tpu.memory_space<vmem>>, vector<16x68xf32>
    %c0_126 = arith.constant 0 : index
    %c1_127 = arith.constant 1 : index
    %c0_128 = arith.constant 0 : index
    %173 = vector.load %arg2[%c0_126, %c1_127, %c0_128] : memref<2x25x68xf32, #tpu.memory_space<vmem>>, vector<1x1x68xf32>
    %174 = vector.shape_cast %173 : vector<1x1x68xf32> to vector<68xf32>
    %175 = vector.shape_cast %174 : vector<68xf32> to vector<1x68xf32>
    %176 = vector.broadcast %175 : vector<1x68xf32> to vector<16x68xf32>
    %177 = arith.mulf %172, %176 : vector<16x68xf32>
    %178 = arith.addf %168, %177 : vector<16x68xf32>
    %c1_129 = arith.constant 1 : index
    %c0_130 = arith.constant 0 : index
    %179 = vector.load %arg14[%c1_129, %c0_130] : memref<34x68xf32, #tpu.memory_space<vmem>>, vector<16x68xf32>
    %c0_131 = arith.constant 0 : index
    %c6_132 = arith.constant 6 : index
    %c0_133 = arith.constant 0 : index
    %180 = vector.load %arg2[%c0_131, %c6_132, %c0_133] : memref<2x25x68xf32, #tpu.memory_space<vmem>>, vector<1x1x68xf32>
    %181 = vector.shape_cast %180 : vector<1x1x68xf32> to vector<68xf32>
    %182 = vector.shape_cast %181 : vector<68xf32> to vector<1x68xf32>
    %183 = vector.broadcast %182 : vector<1x68xf32> to vector<16x68xf32>
    %184 = arith.mulf %179, %183 : vector<16x68xf32>
    %185 = arith.addf %178, %184 : vector<16x68xf32>
    %c2_134 = arith.constant 2 : index
    %c0_135 = arith.constant 0 : index
    %186 = vector.load %arg14[%c2_134, %c0_135] : memref<34x68xf32, #tpu.memory_space<vmem>>, vector<16x68xf32>
    %c0_136 = arith.constant 0 : index
    %c11 = arith.constant 11 : index
    %c0_137 = arith.constant 0 : index
    %187 = vector.load %arg2[%c0_136, %c11, %c0_137] : memref<2x25x68xf32, #tpu.memory_space<vmem>>, vector<1x1x68xf32>
    %188 = vector.shape_cast %187 : vector<1x1x68xf32> to vector<68xf32>
    %189 = vector.shape_cast %188 : vector<68xf32> to vector<1x68xf32>
    %190 = vector.broadcast %189 : vector<1x68xf32> to vector<16x68xf32>
    %191 = arith.mulf %186, %190 : vector<16x68xf32>
    %192 = arith.addf %185, %191 : vector<16x68xf32>
    %c3_138 = arith.constant 3 : index
    %c0_139 = arith.constant 0 : index
    %193 = vector.load %arg14[%c3_138, %c0_139] : memref<34x68xf32, #tpu.memory_space<vmem>>, vector<16x68xf32>
    %c0_140 = arith.constant 0 : index
    %c16_141 = arith.constant 16 : index
    %c0_142 = arith.constant 0 : index
    %194 = vector.load %arg2[%c0_140, %c16_141, %c0_142] : memref<2x25x68xf32, #tpu.memory_space<vmem>>, vector<1x1x68xf32>
    %195 = vector.shape_cast %194 : vector<1x1x68xf32> to vector<68xf32>
    %196 = vector.shape_cast %195 : vector<68xf32> to vector<1x68xf32>
    %197 = vector.broadcast %196 : vector<1x68xf32> to vector<16x68xf32>
    %198 = arith.mulf %193, %197 : vector<16x68xf32>
    %199 = arith.addf %192, %198 : vector<16x68xf32>
    %c4_143 = arith.constant 4 : index
    %c0_144 = arith.constant 0 : index
    %200 = vector.load %arg14[%c4_143, %c0_144] : memref<34x68xf32, #tpu.memory_space<vmem>>, vector<16x68xf32>
    %c0_145 = arith.constant 0 : index
    %c21_146 = arith.constant 21 : index
    %c0_147 = arith.constant 0 : index
    %201 = vector.load %arg2[%c0_145, %c21_146, %c0_147] : memref<2x25x68xf32, #tpu.memory_space<vmem>>, vector<1x1x68xf32>
    %202 = vector.shape_cast %201 : vector<1x1x68xf32> to vector<68xf32>
    %203 = vector.shape_cast %202 : vector<68xf32> to vector<1x68xf32>
    %204 = vector.broadcast %203 : vector<1x68xf32> to vector<16x68xf32>
    %205 = arith.mulf %200, %204 : vector<16x68xf32>
    %206 = arith.addf %199, %205 : vector<16x68xf32>
    %c0_148 = arith.constant 0 : index
    %c0_149 = arith.constant 0 : index
    %c9_150 = arith.constant 9 : index
    %207 = vector.load %arg11[%c0_148, %c0_149, %c9_150] : memref<2x20x86xf32, #tpu.memory_space<vmem>>, vector<1x20x68xf32>
    %208 = vector.shape_cast %207 : vector<1x20x68xf32> to vector<20x68xf32>
    %c0_151 = arith.constant 0 : index
    %c0_152 = arith.constant 0 : index
    %209 = vector.load %arg14[%c0_151, %c0_152] : memref<34x68xf32, #tpu.memory_space<vmem>>, vector<20x68xf32>
    tpu.vector_store %arg14[%c0_151, %c0_152], %208 {strides = array<i32>} : memref<34x68xf32, #tpu.memory_space<vmem>>, vector<20x68xf32>,
    %c0_153 = arith.constant 0 : index
    %c0_154 = arith.constant 0 : index
    %210 = vector.load %arg14[%c0_153, %c0_154] : memref<34x68xf32, #tpu.memory_space<vmem>>, vector<16x68xf32>
    %c0_155 = arith.constant 0 : index
    %c2_156 = arith.constant 2 : index
    %c0_157 = arith.constant 0 : index
    %211 = vector.load %arg2[%c0_155, %c2_156, %c0_157] : memref<2x25x68xf32, #tpu.memory_space<vmem>>, vector<1x1x68xf32>
    %212 = vector.shape_cast %211 : vector<1x1x68xf32> to vector<68xf32>
    %213 = vector.shape_cast %212 : vector<68xf32> to vector<1x68xf32>
    %214 = vector.broadcast %213 : vector<1x68xf32> to vector<16x68xf32>
    %215 = arith.mulf %210, %214 : vector<16x68xf32>
    %216 = arith.addf %206, %215 : vector<16x68xf32>
    %c1_158 = arith.constant 1 : index
    %c0_159 = arith.constant 0 : index
    %217 = vector.load %arg14[%c1_158, %c0_159] : memref<34x68xf32, #tpu.memory_space<vmem>>, vector<16x68xf32>
    %c0_160 = arith.constant 0 : index
    %c7_161 = arith.constant 7 : index
    %c0_162 = arith.constant 0 : index
    %218 = vector.load %arg2[%c0_160, %c7_161, %c0_162] : memref<2x25x68xf32, #tpu.memory_space<vmem>>, vector<1x1x68xf32>
    %219 = vector.shape_cast %218 : vector<1x1x68xf32> to vector<68xf32>
    %220 = vector.shape_cast %219 : vector<68xf32> to vector<1x68xf32>
    %221 = vector.broadcast %220 : vector<1x68xf32> to vector<16x68xf32>
    %222 = arith.mulf %217, %221 : vector<16x68xf32>
    %223 = arith.addf %216, %222 : vector<16x68xf32>
    %c2_163 = arith.constant 2 : index
    %c0_164 = arith.constant 0 : index
    %224 = vector.load %arg14[%c2_163, %c0_164] : memref<34x68xf32, #tpu.memory_space<vmem>>, vector<16x68xf32>
    %c0_165 = arith.constant 0 : index
    %c12_166 = arith.constant 12 : index
    %c0_167 = arith.constant 0 : index
    %225 = vector.load %arg2[%c0_165, %c12_166, %c0_167] : memref<2x25x68xf32, #tpu.memory_space<vmem>>, vector<1x1x68xf32>
    %226 = vector.shape_cast %225 : vector<1x1x68xf32> to vector<68xf32>
    %227 = vector.shape_cast %226 : vector<68xf32> to vector<1x68xf32>
    %228 = vector.broadcast %227 : vector<1x68xf32> to vector<16x68xf32>
    %229 = arith.mulf %224, %228 : vector<16x68xf32>
    %230 = arith.addf %223, %229 : vector<16x68xf32>
    %c3_168 = arith.constant 3 : index
    %c0_169 = arith.constant 0 : index
    %231 = vector.load %arg14[%c3_168, %c0_169] : memref<34x68xf32, #tpu.memory_space<vmem>>, vector<16x68xf32>
    %c0_170 = arith.constant 0 : index
    %c17_171 = arith.constant 17 : index
    %c0_172 = arith.constant 0 : index
    %232 = vector.load %arg2[%c0_170, %c17_171, %c0_172] : memref<2x25x68xf32, #tpu.memory_space<vmem>>, vector<1x1x68xf32>
    %233 = vector.shape_cast %232 : vector<1x1x68xf32> to vector<68xf32>
    %234 = vector.shape_cast %233 : vector<68xf32> to vector<1x68xf32>
    %235 = vector.broadcast %234 : vector<1x68xf32> to vector<16x68xf32>
    %236 = arith.mulf %231, %235 : vector<16x68xf32>
    %237 = arith.addf %230, %236 : vector<16x68xf32>
    %c4_173 = arith.constant 4 : index
    %c0_174 = arith.constant 0 : index
    %238 = vector.load %arg14[%c4_173, %c0_174] : memref<34x68xf32, #tpu.memory_space<vmem>>, vector<16x68xf32>
    %c0_175 = arith.constant 0 : index
    %c22 = arith.constant 22 : index
    %c0_176 = arith.constant 0 : index
    %239 = vector.load %arg2[%c0_175, %c22, %c0_176] : memref<2x25x68xf32, #tpu.memory_space<vmem>>, vector<1x1x68xf32>
    %240 = vector.shape_cast %239 : vector<1x1x68xf32> to vector<68xf32>
    %241 = vector.shape_cast %240 : vector<68xf32> to vector<1x68xf32>
    %242 = vector.broadcast %241 : vector<1x68xf32> to vector<16x68xf32>
    %243 = arith.mulf %238, %242 : vector<16x68xf32>
    %244 = arith.addf %237, %243 : vector<16x68xf32>
    %c0_177 = arith.constant 0 : index
    %c0_178 = arith.constant 0 : index
    %c10_179 = arith.constant 10 : index
    %245 = vector.load %arg11[%c0_177, %c0_178, %c10_179] : memref<2x20x86xf32, #tpu.memory_space<vmem>>, vector<1x20x68xf32>
    %246 = vector.shape_cast %245 : vector<1x20x68xf32> to vector<20x68xf32>
    %c0_180 = arith.constant 0 : index
    %c0_181 = arith.constant 0 : index
    %247 = vector.load %arg14[%c0_180, %c0_181] : memref<34x68xf32, #tpu.memory_space<vmem>>, vector<20x68xf32>
    tpu.vector_store %arg14[%c0_180, %c0_181], %246 {strides = array<i32>} : memref<34x68xf32, #tpu.memory_space<vmem>>, vector<20x68xf32>,
    %c0_182 = arith.constant 0 : index
    %c0_183 = arith.constant 0 : index
    %248 = vector.load %arg14[%c0_182, %c0_183] : memref<34x68xf32, #tpu.memory_space<vmem>>, vector<16x68xf32>
    %c0_184 = arith.constant 0 : index
    %c3_185 = arith.constant 3 : index
    %c0_186 = arith.constant 0 : index
    %249 = vector.load %arg2[%c0_184, %c3_185, %c0_186] : memref<2x25x68xf32, #tpu.memory_space<vmem>>, vector<1x1x68xf32>
    %250 = vector.shape_cast %249 : vector<1x1x68xf32> to vector<68xf32>
    %251 = vector.shape_cast %250 : vector<68xf32> to vector<1x68xf32>
    %252 = vector.broadcast %251 : vector<1x68xf32> to vector<16x68xf32>
    %253 = arith.mulf %248, %252 : vector<16x68xf32>
    %254 = arith.addf %244, %253 : vector<16x68xf32>
    %c1_187 = arith.constant 1 : index
    %c0_188 = arith.constant 0 : index
    %255 = vector.load %arg14[%c1_187, %c0_188] : memref<34x68xf32, #tpu.memory_space<vmem>>, vector<16x68xf32>
    %c0_189 = arith.constant 0 : index
    %c8_190 = arith.constant 8 : index
    %c0_191 = arith.constant 0 : index
    %256 = vector.load %arg2[%c0_189, %c8_190, %c0_191] : memref<2x25x68xf32, #tpu.memory_space<vmem>>, vector<1x1x68xf32>
    %257 = vector.shape_cast %256 : vector<1x1x68xf32> to vector<68xf32>
    %258 = vector.shape_cast %257 : vector<68xf32> to vector<1x68xf32>
    %259 = vector.broadcast %258 : vector<1x68xf32> to vector<16x68xf32>
    %260 = arith.mulf %255, %259 : vector<16x68xf32>
    %261 = arith.addf %254, %260 : vector<16x68xf32>
    %c2_192 = arith.constant 2 : index
    %c0_193 = arith.constant 0 : index
    %262 = vector.load %arg14[%c2_192, %c0_193] : memref<34x68xf32, #tpu.memory_space<vmem>>, vector<16x68xf32>
    %c0_194 = arith.constant 0 : index
    %c13_195 = arith.constant 13 : index
    %c0_196 = arith.constant 0 : index
    %263 = vector.load %arg2[%c0_194, %c13_195, %c0_196] : memref<2x25x68xf32, #tpu.memory_space<vmem>>, vector<1x1x68xf32>
    %264 = vector.shape_cast %263 : vector<1x1x68xf32> to vector<68xf32>
    %265 = vector.shape_cast %264 : vector<68xf32> to vector<1x68xf32>
    %266 = vector.broadcast %265 : vector<1x68xf32> to vector<16x68xf32>
    %267 = arith.mulf %262, %266 : vector<16x68xf32>
    %268 = arith.addf %261, %267 : vector<16x68xf32>
    %c3_197 = arith.constant 3 : index
    %c0_198 = arith.constant 0 : index
    %269 = vector.load %arg14[%c3_197, %c0_198] : memref<34x68xf32, #tpu.memory_space<vmem>>, vector<16x68xf32>
    %c0_199 = arith.constant 0 : index
    %c18_200 = arith.constant 18 : index
    %c0_201 = arith.constant 0 : index
    %270 = vector.load %arg2[%c0_199, %c18_200, %c0_201] : memref<2x25x68xf32, #tpu.memory_space<vmem>>, vector<1x1x68xf32>
    %271 = vector.shape_cast %270 : vector<1x1x68xf32> to vector<68xf32>
    %272 = vector.shape_cast %271 : vector<68xf32> to vector<1x68xf32>
    %273 = vector.broadcast %272 : vector<1x68xf32> to vector<16x68xf32>
    %274 = arith.mulf %269, %273 : vector<16x68xf32>
    %275 = arith.addf %268, %274 : vector<16x68xf32>
    %c4_202 = arith.constant 4 : index
    %c0_203 = arith.constant 0 : index
    %276 = vector.load %arg14[%c4_202, %c0_203] : memref<34x68xf32, #tpu.memory_space<vmem>>, vector<16x68xf32>
    %c0_204 = arith.constant 0 : index
    %c23 = arith.constant 23 : index
    %c0_205 = arith.constant 0 : index
    %277 = vector.load %arg2[%c0_204, %c23, %c0_205] : memref<2x25x68xf32, #tpu.memory_space<vmem>>, vector<1x1x68xf32>
    %278 = vector.shape_cast %277 : vector<1x1x68xf32> to vector<68xf32>
    %279 = vector.shape_cast %278 : vector<68xf32> to vector<1x68xf32>
    %280 = vector.broadcast %279 : vector<1x68xf32> to vector<16x68xf32>
    %281 = arith.mulf %276, %280 : vector<16x68xf32>
    %282 = arith.addf %275, %281 : vector<16x68xf32>
    %c0_206 = arith.constant 0 : index
    %c0_207 = arith.constant 0 : index
    %c11_208 = arith.constant 11 : index
    %283 = vector.load %arg11[%c0_206, %c0_207, %c11_208] : memref<2x20x86xf32, #tpu.memory_space<vmem>>, vector<1x20x68xf32>
    %284 = vector.shape_cast %283 : vector<1x20x68xf32> to vector<20x68xf32>
    %c0_209 = arith.constant 0 : index
    %c0_210 = arith.constant 0 : index
    %285 = vector.load %arg14[%c0_209, %c0_210] : memref<34x68xf32, #tpu.memory_space<vmem>>, vector<20x68xf32>
    tpu.vector_store %arg14[%c0_209, %c0_210], %284 {strides = array<i32>} : memref<34x68xf32, #tpu.memory_space<vmem>>, vector<20x68xf32>,
    %c0_211 = arith.constant 0 : index
    %c0_212 = arith.constant 0 : index
    %286 = vector.load %arg14[%c0_211, %c0_212] : memref<34x68xf32, #tpu.memory_space<vmem>>, vector<16x68xf32>
    %c0_213 = arith.constant 0 : index
    %c4_214 = arith.constant 4 : index
    %c0_215 = arith.constant 0 : index
    %287 = vector.load %arg2[%c0_213, %c4_214, %c0_215] : memref<2x25x68xf32, #tpu.memory_space<vmem>>, vector<1x1x68xf32>
    %288 = vector.shape_cast %287 : vector<1x1x68xf32> to vector<68xf32>
    %289 = vector.shape_cast %288 : vector<68xf32> to vector<1x68xf32>
    %290 = vector.broadcast %289 : vector<1x68xf32> to vector<16x68xf32>
    %291 = arith.mulf %286, %290 : vector<16x68xf32>
    %292 = arith.addf %282, %291 : vector<16x68xf32>
    %c1_216 = arith.constant 1 : index
    %c0_217 = arith.constant 0 : index
    %293 = vector.load %arg14[%c1_216, %c0_217] : memref<34x68xf32, #tpu.memory_space<vmem>>, vector<16x68xf32>
    %c0_218 = arith.constant 0 : index
    %c9_219 = arith.constant 9 : index
    %c0_220 = arith.constant 0 : index
    %294 = vector.load %arg2[%c0_218, %c9_219, %c0_220] : memref<2x25x68xf32, #tpu.memory_space<vmem>>, vector<1x1x68xf32>
    %295 = vector.shape_cast %294 : vector<1x1x68xf32> to vector<68xf32>
    %296 = vector.shape_cast %295 : vector<68xf32> to vector<1x68xf32>
    %297 = vector.broadcast %296 : vector<1x68xf32> to vector<16x68xf32>
    %298 = arith.mulf %293, %297 : vector<16x68xf32>
    %299 = arith.addf %292, %298 : vector<16x68xf32>
    %c2_221 = arith.constant 2 : index
    %c0_222 = arith.constant 0 : index
    %300 = vector.load %arg14[%c2_221, %c0_222] : memref<34x68xf32, #tpu.memory_space<vmem>>, vector<16x68xf32>
    %c0_223 = arith.constant 0 : index
    %c14 = arith.constant 14 : index
    %c0_224 = arith.constant 0 : index
    %301 = vector.load %arg2[%c0_223, %c14, %c0_224] : memref<2x25x68xf32, #tpu.memory_space<vmem>>, vector<1x1x68xf32>
    %302 = vector.shape_cast %301 : vector<1x1x68xf32> to vector<68xf32>
    %303 = vector.shape_cast %302 : vector<68xf32> to vector<1x68xf32>
    %304 = vector.broadcast %303 : vector<1x68xf32> to vector<16x68xf32>
    %305 = arith.mulf %300, %304 : vector<16x68xf32>
    %306 = arith.addf %299, %305 : vector<16x68xf32>
    %c3_225 = arith.constant 3 : index
    %c0_226 = arith.constant 0 : index
    %307 = vector.load %arg14[%c3_225, %c0_226] : memref<34x68xf32, #tpu.memory_space<vmem>>, vector<16x68xf32>
    %c0_227 = arith.constant 0 : index
    %c19 = arith.constant 19 : index
    %c0_228 = arith.constant 0 : index
    %308 = vector.load %arg2[%c0_227, %c19, %c0_228] : memref<2x25x68xf32, #tpu.memory_space<vmem>>, vector<1x1x68xf32>
    %309 = vector.shape_cast %308 : vector<1x1x68xf32> to vector<68xf32>
    %310 = vector.shape_cast %309 : vector<68xf32> to vector<1x68xf32>
    %311 = vector.broadcast %310 : vector<1x68xf32> to vector<16x68xf32>
    %312 = arith.mulf %307, %311 : vector<16x68xf32>
    %313 = arith.addf %306, %312 : vector<16x68xf32>
    %c4_229 = arith.constant 4 : index
    %c0_230 = arith.constant 0 : index
    %314 = vector.load %arg14[%c4_229, %c0_230] : memref<34x68xf32, #tpu.memory_space<vmem>>, vector<16x68xf32>
    %c0_231 = arith.constant 0 : index
    %c24_232 = arith.constant 24 : index
    %c0_233 = arith.constant 0 : index
    %315 = vector.load %arg2[%c0_231, %c24_232, %c0_233] : memref<2x25x68xf32, #tpu.memory_space<vmem>>, vector<1x1x68xf32>
    %316 = vector.shape_cast %315 : vector<1x1x68xf32> to vector<68xf32>
    %317 = vector.shape_cast %316 : vector<68xf32> to vector<1x68xf32>
    %318 = vector.broadcast %317 : vector<1x68xf32> to vector<16x68xf32>
    %319 = arith.mulf %314, %318 : vector<16x68xf32>
    %320 = arith.addf %313, %319 : vector<16x68xf32>
    %c0_234 = arith.constant 0 : index
    %c0_235 = arith.constant 0 : index
    %321 = vector.load %arg3[%c0_234, %c0_235] : memref<2x68xf32, #tpu.memory_space<vmem>>, vector<1x68xf32>
    %322 = vector.shape_cast %321 : vector<1x68xf32> to vector<68xf32>
    %323 = vector.shape_cast %322 : vector<68xf32> to vector<1x68xf32>
    %324 = vector.broadcast %323 : vector<1x68xf32> to vector<16x68xf32>
    %325 = arith.addf %320, %324 : vector<16x68xf32>
    %c9_236 = arith.constant 9 : index
    %c9_237 = arith.constant 9 : index
    %326 = vector.load %arg12[%c9_236, %c9_237] : memref<34x86xf32, #tpu.memory_space<vmem>>, vector<16x68xf32>
    tpu.vector_store %arg12[%c9_236, %c9_237], %325 {strides = array<i32>} : memref<34x86xf32, #tpu.memory_space<vmem>>, vector<16x68xf32>,
    %cst_238 = arith.constant 0.000000e+00 : f32
    %327 = vector.broadcast %cst_238 : f32 to vector<16x68xf32>
    %c0_239 = arith.constant 0 : index
    %c0_240 = arith.constant 0 : index
    %328 = vector.load %arg12[%c0_239, %c0_240] : memref<34x86xf32, #tpu.memory_space<vmem>>, vector<34x68xf32>
    %c0_241 = arith.constant 0 : index
    %c0_242 = arith.constant 0 : index
    %329 = vector.load %arg14[%c0_241, %c0_242] : memref<34x68xf32, #tpu.memory_space<vmem>>, vector<34x68xf32>
    tpu.vector_store %arg14[%c0_241, %c0_242], %328 {strides = array<i32>} : memref<34x68xf32, #tpu.memory_space<vmem>>, vector<34x68xf32>,
    %c0_243 = arith.constant 0 : index
    %c0_244 = arith.constant 0 : index
    %330 = vector.load %arg14[%c0_243, %c0_244] : memref<34x68xf32, #tpu.memory_space<vmem>>, vector<16x68xf32>
    %c0_245 = arith.constant 0 : index
    %c0_246 = arith.constant 0 : index
    %c0_247 = arith.constant 0 : index
    %331 = vector.load %arg4[%c0_245, %c0_246, %c0_247] : memref<2x49x68xf32, #tpu.memory_space<vmem>>, vector<1x1x68xf32>
    %332 = vector.shape_cast %331 : vector<1x1x68xf32> to vector<68xf32>
    %333 = vector.shape_cast %332 : vector<68xf32> to vector<1x68xf32>
    %334 = vector.broadcast %333 : vector<1x68xf32> to vector<16x68xf32>
    %335 = arith.mulf %330, %334 : vector<16x68xf32>
    %336 = arith.addf %327, %335 : vector<16x68xf32>
    %c3_248 = arith.constant 3 : index
    %c0_249 = arith.constant 0 : index
    %337 = vector.load %arg14[%c3_248, %c0_249] : memref<34x68xf32, #tpu.memory_space<vmem>>, vector<16x68xf32>
    %c0_250 = arith.constant 0 : index
    %c7_251 = arith.constant 7 : index
    %c0_252 = arith.constant 0 : index
    %338 = vector.load %arg4[%c0_250, %c7_251, %c0_252] : memref<2x49x68xf32, #tpu.memory_space<vmem>>, vector<1x1x68xf32>
    %339 = vector.shape_cast %338 : vector<1x1x68xf32> to vector<68xf32>
    %340 = vector.shape_cast %339 : vector<68xf32> to vector<1x68xf32>
    %341 = vector.broadcast %340 : vector<1x68xf32> to vector<16x68xf32>
    %342 = arith.mulf %337, %341 : vector<16x68xf32>
    %343 = arith.addf %336, %342 : vector<16x68xf32>
    %c6_253 = arith.constant 6 : index
    %c0_254 = arith.constant 0 : index
    %344 = vector.load %arg14[%c6_253, %c0_254] : memref<34x68xf32, #tpu.memory_space<vmem>>, vector<16x68xf32>
    %c0_255 = arith.constant 0 : index
    %c14_256 = arith.constant 14 : index
    %c0_257 = arith.constant 0 : index
    %345 = vector.load %arg4[%c0_255, %c14_256, %c0_257] : memref<2x49x68xf32, #tpu.memory_space<vmem>>, vector<1x1x68xf32>
    %346 = vector.shape_cast %345 : vector<1x1x68xf32> to vector<68xf32>
    %347 = vector.shape_cast %346 : vector<68xf32> to vector<1x68xf32>
    %348 = vector.broadcast %347 : vector<1x68xf32> to vector<16x68xf32>
    %349 = arith.mulf %344, %348 : vector<16x68xf32>
    %350 = arith.addf %343, %349 : vector<16x68xf32>
    %c9_258 = arith.constant 9 : index
    %c0_259 = arith.constant 0 : index
    %351 = vector.load %arg14[%c9_258, %c0_259] : memref<34x68xf32, #tpu.memory_space<vmem>>, vector<16x68xf32>
    %c0_260 = arith.constant 0 : index
    %c21_261 = arith.constant 21 : index
    %c0_262 = arith.constant 0 : index
    %352 = vector.load %arg4[%c0_260, %c21_261, %c0_262] : memref<2x49x68xf32, #tpu.memory_space<vmem>>, vector<1x1x68xf32>
    %353 = vector.shape_cast %352 : vector<1x1x68xf32> to vector<68xf32>
    %354 = vector.shape_cast %353 : vector<68xf32> to vector<1x68xf32>
    %355 = vector.broadcast %354 : vector<1x68xf32> to vector<16x68xf32>
    %356 = arith.mulf %351, %355 : vector<16x68xf32>
    %357 = arith.addf %350, %356 : vector<16x68xf32>
    %c12_263 = arith.constant 12 : index
    %c0_264 = arith.constant 0 : index
    %358 = vector.load %arg14[%c12_263, %c0_264] : memref<34x68xf32, #tpu.memory_space<vmem>>, vector<16x68xf32>
    %c0_265 = arith.constant 0 : index
    %c28_266 = arith.constant 28 : index
    %c0_267 = arith.constant 0 : index
    %359 = vector.load %arg4[%c0_265, %c28_266, %c0_267] : memref<2x49x68xf32, #tpu.memory_space<vmem>>, vector<1x1x68xf32>
    %360 = vector.shape_cast %359 : vector<1x1x68xf32> to vector<68xf32>
    %361 = vector.shape_cast %360 : vector<68xf32> to vector<1x68xf32>
    %362 = vector.broadcast %361 : vector<1x68xf32> to vector<16x68xf32>
    %363 = arith.mulf %358, %362 : vector<16x68xf32>
    %364 = arith.addf %357, %363 : vector<16x68xf32>
    %c15_268 = arith.constant 15 : index
    %c0_269 = arith.constant 0 : index
    %365 = vector.load %arg14[%c15_268, %c0_269] : memref<34x68xf32, #tpu.memory_space<vmem>>, vector<16x68xf32>
    %c0_270 = arith.constant 0 : index
    %c35 = arith.constant 35 : index
    %c0_271 = arith.constant 0 : index
    %366 = vector.load %arg4[%c0_270, %c35, %c0_271] : memref<2x49x68xf32, #tpu.memory_space<vmem>>, vector<1x1x68xf32>
    %367 = vector.shape_cast %366 : vector<1x1x68xf32> to vector<68xf32>
    %368 = vector.shape_cast %367 : vector<68xf32> to vector<1x68xf32>
    %369 = vector.broadcast %368 : vector<1x68xf32> to vector<16x68xf32>
    %370 = arith.mulf %365, %369 : vector<16x68xf32>
    %371 = arith.addf %364, %370 : vector<16x68xf32>
    %c18_272 = arith.constant 18 : index
    %c0_273 = arith.constant 0 : index
    %372 = vector.load %arg14[%c18_272, %c0_273] : memref<34x68xf32, #tpu.memory_space<vmem>>, vector<16x68xf32>
    %c0_274 = arith.constant 0 : index
    %c42 = arith.constant 42 : index
    %c0_275 = arith.constant 0 : index
    %373 = vector.load %arg4[%c0_274, %c42, %c0_275] : memref<2x49x68xf32, #tpu.memory_space<vmem>>, vector<1x1x68xf32>
    %374 = vector.shape_cast %373 : vector<1x1x68xf32> to vector<68xf32>
    %375 = vector.shape_cast %374 : vector<68xf32> to vector<1x68xf32>
    %376 = vector.broadcast %375 : vector<1x68xf32> to vector<16x68xf32>
    %377 = arith.mulf %372, %376 : vector<16x68xf32>
    %378 = arith.addf %371, %377 : vector<16x68xf32>
    %c0_276 = arith.constant 0 : index
    %c3_277 = arith.constant 3 : index
    %379 = vector.load %arg12[%c0_276, %c3_277] : memref<34x86xf32, #tpu.memory_space<vmem>>, vector<34x68xf32>
    %c0_278 = arith.constant 0 : index
    %c0_279 = arith.constant 0 : index
    %380 = vector.load %arg14[%c0_278, %c0_279] : memref<34x68xf32, #tpu.memory_space<vmem>>, vector<34x68xf32>
    tpu.vector_store %arg14[%c0_278, %c0_279], %379 {strides = array<i32>} : memref<34x68xf32, #tpu.memory_space<vmem>>, vector<34x68xf32>,
    %c0_280 = arith.constant 0 : index
    %c0_281 = arith.constant 0 : index
    %381 = vector.load %arg14[%c0_280, %c0_281] : memref<34x68xf32, #tpu.memory_space<vmem>>, vector<16x68xf32>
    %c0_282 = arith.constant 0 : index
    %c1_283 = arith.constant 1 : index
    %c0_284 = arith.constant 0 : index
    %382 = vector.load %arg4[%c0_282, %c1_283, %c0_284] : memref<2x49x68xf32, #tpu.memory_space<vmem>>, vector<1x1x68xf32>
    %383 = vector.shape_cast %382 : vector<1x1x68xf32> to vector<68xf32>
    %384 = vector.shape_cast %383 : vector<68xf32> to vector<1x68xf32>
    %385 = vector.broadcast %384 : vector<1x68xf32> to vector<16x68xf32>
    %386 = arith.mulf %381, %385 : vector<16x68xf32>
    %387 = arith.addf %378, %386 : vector<16x68xf32>
    %c3_285 = arith.constant 3 : index
    %c0_286 = arith.constant 0 : index
    %388 = vector.load %arg14[%c3_285, %c0_286] : memref<34x68xf32, #tpu.memory_space<vmem>>, vector<16x68xf32>
    %c0_287 = arith.constant 0 : index
    %c8_288 = arith.constant 8 : index
    %c0_289 = arith.constant 0 : index
    %389 = vector.load %arg4[%c0_287, %c8_288, %c0_289] : memref<2x49x68xf32, #tpu.memory_space<vmem>>, vector<1x1x68xf32>
    %390 = vector.shape_cast %389 : vector<1x1x68xf32> to vector<68xf32>
    %391 = vector.shape_cast %390 : vector<68xf32> to vector<1x68xf32>
    %392 = vector.broadcast %391 : vector<1x68xf32> to vector<16x68xf32>
    %393 = arith.mulf %388, %392 : vector<16x68xf32>
    %394 = arith.addf %387, %393 : vector<16x68xf32>
    %c6_290 = arith.constant 6 : index
    %c0_291 = arith.constant 0 : index
    %395 = vector.load %arg14[%c6_290, %c0_291] : memref<34x68xf32, #tpu.memory_space<vmem>>, vector<16x68xf32>
    %c0_292 = arith.constant 0 : index
    %c15_293 = arith.constant 15 : index
    %c0_294 = arith.constant 0 : index
    %396 = vector.load %arg4[%c0_292, %c15_293, %c0_294] : memref<2x49x68xf32, #tpu.memory_space<vmem>>, vector<1x1x68xf32>
    %397 = vector.shape_cast %396 : vector<1x1x68xf32> to vector<68xf32>
    %398 = vector.shape_cast %397 : vector<68xf32> to vector<1x68xf32>
    %399 = vector.broadcast %398 : vector<1x68xf32> to vector<16x68xf32>
    %400 = arith.mulf %395, %399 : vector<16x68xf32>
    %401 = arith.addf %394, %400 : vector<16x68xf32>
    %c9_295 = arith.constant 9 : index
    %c0_296 = arith.constant 0 : index
    %402 = vector.load %arg14[%c9_295, %c0_296] : memref<34x68xf32, #tpu.memory_space<vmem>>, vector<16x68xf32>
    %c0_297 = arith.constant 0 : index
    %c22_298 = arith.constant 22 : index
    %c0_299 = arith.constant 0 : index
    %403 = vector.load %arg4[%c0_297, %c22_298, %c0_299] : memref<2x49x68xf32, #tpu.memory_space<vmem>>, vector<1x1x68xf32>
    %404 = vector.shape_cast %403 : vector<1x1x68xf32> to vector<68xf32>
    %405 = vector.shape_cast %404 : vector<68xf32> to vector<1x68xf32>
    %406 = vector.broadcast %405 : vector<1x68xf32> to vector<16x68xf32>
    %407 = arith.mulf %402, %406 : vector<16x68xf32>
    %408 = arith.addf %401, %407 : vector<16x68xf32>
    %c12_300 = arith.constant 12 : index
    %c0_301 = arith.constant 0 : index
    %409 = vector.load %arg14[%c12_300, %c0_301] : memref<34x68xf32, #tpu.memory_space<vmem>>, vector<16x68xf32>
    %c0_302 = arith.constant 0 : index
    %c29_303 = arith.constant 29 : index
    %c0_304 = arith.constant 0 : index
    %410 = vector.load %arg4[%c0_302, %c29_303, %c0_304] : memref<2x49x68xf32, #tpu.memory_space<vmem>>, vector<1x1x68xf32>
    %411 = vector.shape_cast %410 : vector<1x1x68xf32> to vector<68xf32>
    %412 = vector.shape_cast %411 : vector<68xf32> to vector<1x68xf32>
    %413 = vector.broadcast %412 : vector<1x68xf32> to vector<16x68xf32>
    %414 = arith.mulf %409, %413 : vector<16x68xf32>
    %415 = arith.addf %408, %414 : vector<16x68xf32>
    %c15_305 = arith.constant 15 : index
    %c0_306 = arith.constant 0 : index
    %416 = vector.load %arg14[%c15_305, %c0_306] : memref<34x68xf32, #tpu.memory_space<vmem>>, vector<16x68xf32>
    %c0_307 = arith.constant 0 : index
    %c36 = arith.constant 36 : index
    %c0_308 = arith.constant 0 : index
    %417 = vector.load %arg4[%c0_307, %c36, %c0_308] : memref<2x49x68xf32, #tpu.memory_space<vmem>>, vector<1x1x68xf32>
    %418 = vector.shape_cast %417 : vector<1x1x68xf32> to vector<68xf32>
    %419 = vector.shape_cast %418 : vector<68xf32> to vector<1x68xf32>
    %420 = vector.broadcast %419 : vector<1x68xf32> to vector<16x68xf32>
    %421 = arith.mulf %416, %420 : vector<16x68xf32>
    %422 = arith.addf %415, %421 : vector<16x68xf32>
    %c18_309 = arith.constant 18 : index
    %c0_310 = arith.constant 0 : index
    %423 = vector.load %arg14[%c18_309, %c0_310] : memref<34x68xf32, #tpu.memory_space<vmem>>, vector<16x68xf32>
    %c0_311 = arith.constant 0 : index
    %c43 = arith.constant 43 : index
    %c0_312 = arith.constant 0 : index
    %424 = vector.load %arg4[%c0_311, %c43, %c0_312] : memref<2x49x68xf32, #tpu.memory_space<vmem>>, vector<1x1x68xf32>
    %425 = vector.shape_cast %424 : vector<1x1x68xf32> to vector<68xf32>
    %426 = vector.shape_cast %425 : vector<68xf32> to vector<1x68xf32>
    %427 = vector.broadcast %426 : vector<1x68xf32> to vector<16x68xf32>
    %428 = arith.mulf %423, %427 : vector<16x68xf32>
    %429 = arith.addf %422, %428 : vector<16x68xf32>
    %c0_313 = arith.constant 0 : index
    %c6_314 = arith.constant 6 : index
    %430 = vector.load %arg12[%c0_313, %c6_314] : memref<34x86xf32, #tpu.memory_space<vmem>>, vector<34x68xf32>
    %c0_315 = arith.constant 0 : index
    %c0_316 = arith.constant 0 : index
    %431 = vector.load %arg14[%c0_315, %c0_316] : memref<34x68xf32, #tpu.memory_space<vmem>>, vector<34x68xf32>
    tpu.vector_store %arg14[%c0_315, %c0_316], %430 {strides = array<i32>} : memref<34x68xf32, #tpu.memory_space<vmem>>, vector<34x68xf32>,
    %c0_317 = arith.constant 0 : index
    %c0_318 = arith.constant 0 : index
    %432 = vector.load %arg14[%c0_317, %c0_318] : memref<34x68xf32, #tpu.memory_space<vmem>>, vector<16x68xf32>
    %c0_319 = arith.constant 0 : index
    %c2_320 = arith.constant 2 : index
    %c0_321 = arith.constant 0 : index
    %433 = vector.load %arg4[%c0_319, %c2_320, %c0_321] : memref<2x49x68xf32, #tpu.memory_space<vmem>>, vector<1x1x68xf32>
    %434 = vector.shape_cast %433 : vector<1x1x68xf32> to vector<68xf32>
    %435 = vector.shape_cast %434 : vector<68xf32> to vector<1x68xf32>
    %436 = vector.broadcast %435 : vector<1x68xf32> to vector<16x68xf32>
    %437 = arith.mulf %432, %436 : vector<16x68xf32>
    %438 = arith.addf %429, %437 : vector<16x68xf32>
    %c3_322 = arith.constant 3 : index
    %c0_323 = arith.constant 0 : index
    %439 = vector.load %arg14[%c3_322, %c0_323] : memref<34x68xf32, #tpu.memory_space<vmem>>, vector<16x68xf32>
    %c0_324 = arith.constant 0 : index
    %c9_325 = arith.constant 9 : index
    %c0_326 = arith.constant 0 : index
    %440 = vector.load %arg4[%c0_324, %c9_325, %c0_326] : memref<2x49x68xf32, #tpu.memory_space<vmem>>, vector<1x1x68xf32>
    %441 = vector.shape_cast %440 : vector<1x1x68xf32> to vector<68xf32>
    %442 = vector.shape_cast %441 : vector<68xf32> to vector<1x68xf32>
    %443 = vector.broadcast %442 : vector<1x68xf32> to vector<16x68xf32>
    %444 = arith.mulf %439, %443 : vector<16x68xf32>
    %445 = arith.addf %438, %444 : vector<16x68xf32>
    %c6_327 = arith.constant 6 : index
    %c0_328 = arith.constant 0 : index
    %446 = vector.load %arg14[%c6_327, %c0_328] : memref<34x68xf32, #tpu.memory_space<vmem>>, vector<16x68xf32>
    %c0_329 = arith.constant 0 : index
    %c16_330 = arith.constant 16 : index
    %c0_331 = arith.constant 0 : index
    %447 = vector.load %arg4[%c0_329, %c16_330, %c0_331] : memref<2x49x68xf32, #tpu.memory_space<vmem>>, vector<1x1x68xf32>
    %448 = vector.shape_cast %447 : vector<1x1x68xf32> to vector<68xf32>
    %449 = vector.shape_cast %448 : vector<68xf32> to vector<1x68xf32>
    %450 = vector.broadcast %449 : vector<1x68xf32> to vector<16x68xf32>
    %451 = arith.mulf %446, %450 : vector<16x68xf32>
    %452 = arith.addf %445, %451 : vector<16x68xf32>
    %c9_332 = arith.constant 9 : index
    %c0_333 = arith.constant 0 : index
    %453 = vector.load %arg14[%c9_332, %c0_333] : memref<34x68xf32, #tpu.memory_space<vmem>>, vector<16x68xf32>
    %c0_334 = arith.constant 0 : index
    %c23_335 = arith.constant 23 : index
    %c0_336 = arith.constant 0 : index
    %454 = vector.load %arg4[%c0_334, %c23_335, %c0_336] : memref<2x49x68xf32, #tpu.memory_space<vmem>>, vector<1x1x68xf32>
    %455 = vector.shape_cast %454 : vector<1x1x68xf32> to vector<68xf32>
    %456 = vector.shape_cast %455 : vector<68xf32> to vector<1x68xf32>
    %457 = vector.broadcast %456 : vector<1x68xf32> to vector<16x68xf32>
    %458 = arith.mulf %453, %457 : vector<16x68xf32>
    %459 = arith.addf %452, %458 : vector<16x68xf32>
    %c12_337 = arith.constant 12 : index
    %c0_338 = arith.constant 0 : index
    %460 = vector.load %arg14[%c12_337, %c0_338] : memref<34x68xf32, #tpu.memory_space<vmem>>, vector<16x68xf32>
    %c0_339 = arith.constant 0 : index
    %c30 = arith.constant 30 : index
    %c0_340 = arith.constant 0 : index
    %461 = vector.load %arg4[%c0_339, %c30, %c0_340] : memref<2x49x68xf32, #tpu.memory_space<vmem>>, vector<1x1x68xf32>
    %462 = vector.shape_cast %461 : vector<1x1x68xf32> to vector<68xf32>
    %463 = vector.shape_cast %462 : vector<68xf32> to vector<1x68xf32>
    %464 = vector.broadcast %463 : vector<1x68xf32> to vector<16x68xf32>
    %465 = arith.mulf %460, %464 : vector<16x68xf32>
    %466 = arith.addf %459, %465 : vector<16x68xf32>
    %c15_341 = arith.constant 15 : index
    %c0_342 = arith.constant 0 : index
    %467 = vector.load %arg14[%c15_341, %c0_342] : memref<34x68xf32, #tpu.memory_space<vmem>>, vector<16x68xf32>
    %c0_343 = arith.constant 0 : index
    %c37 = arith.constant 37 : index
    %c0_344 = arith.constant 0 : index
    %468 = vector.load %arg4[%c0_343, %c37, %c0_344] : memref<2x49x68xf32, #tpu.memory_space<vmem>>, vector<1x1x68xf32>
    %469 = vector.shape_cast %468 : vector<1x1x68xf32> to vector<68xf32>
    %470 = vector.shape_cast %469 : vector<68xf32> to vector<1x68xf32>
    %471 = vector.broadcast %470 : vector<1x68xf32> to vector<16x68xf32>
    %472 = arith.mulf %467, %471 : vector<16x68xf32>
    %473 = arith.addf %466, %472 : vector<16x68xf32>
    %c18_345 = arith.constant 18 : index
    %c0_346 = arith.constant 0 : index
    %474 = vector.load %arg14[%c18_345, %c0_346] : memref<34x68xf32, #tpu.memory_space<vmem>>, vector<16x68xf32>
    %c0_347 = arith.constant 0 : index
    %c44 = arith.constant 44 : index
    %c0_348 = arith.constant 0 : index
    %475 = vector.load %arg4[%c0_347, %c44, %c0_348] : memref<2x49x68xf32, #tpu.memory_space<vmem>>, vector<1x1x68xf32>
    %476 = vector.shape_cast %475 : vector<1x1x68xf32> to vector<68xf32>
    %477 = vector.shape_cast %476 : vector<68xf32> to vector<1x68xf32>
    %478 = vector.broadcast %477 : vector<1x68xf32> to vector<16x68xf32>
    %479 = arith.mulf %474, %478 : vector<16x68xf32>
    %480 = arith.addf %473, %479 : vector<16x68xf32>
    %c0_349 = arith.constant 0 : index
    %c9_350 = arith.constant 9 : index
    %481 = vector.load %arg12[%c0_349, %c9_350] : memref<34x86xf32, #tpu.memory_space<vmem>>, vector<34x68xf32>
    %c0_351 = arith.constant 0 : index
    %c0_352 = arith.constant 0 : index
    %482 = vector.load %arg14[%c0_351, %c0_352] : memref<34x68xf32, #tpu.memory_space<vmem>>, vector<34x68xf32>
    tpu.vector_store %arg14[%c0_351, %c0_352], %481 {strides = array<i32>} : memref<34x68xf32, #tpu.memory_space<vmem>>, vector<34x68xf32>,
    %c0_353 = arith.constant 0 : index
    %c0_354 = arith.constant 0 : index
    %483 = vector.load %arg14[%c0_353, %c0_354] : memref<34x68xf32, #tpu.memory_space<vmem>>, vector<16x68xf32>
    %c0_355 = arith.constant 0 : index
    %c3_356 = arith.constant 3 : index
    %c0_357 = arith.constant 0 : index
    %484 = vector.load %arg4[%c0_355, %c3_356, %c0_357] : memref<2x49x68xf32, #tpu.memory_space<vmem>>, vector<1x1x68xf32>
    %485 = vector.shape_cast %484 : vector<1x1x68xf32> to vector<68xf32>
    %486 = vector.shape_cast %485 : vector<68xf32> to vector<1x68xf32>
    %487 = vector.broadcast %486 : vector<1x68xf32> to vector<16x68xf32>
    %488 = arith.mulf %483, %487 : vector<16x68xf32>
    %489 = arith.addf %480, %488 : vector<16x68xf32>
    %c3_358 = arith.constant 3 : index
    %c0_359 = arith.constant 0 : index
    %490 = vector.load %arg14[%c3_358, %c0_359] : memref<34x68xf32, #tpu.memory_space<vmem>>, vector<16x68xf32>
    %c0_360 = arith.constant 0 : index
    %c10_361 = arith.constant 10 : index
    %c0_362 = arith.constant 0 : index
    %491 = vector.load %arg4[%c0_360, %c10_361, %c0_362] : memref<2x49x68xf32, #tpu.memory_space<vmem>>, vector<1x1x68xf32>
    %492 = vector.shape_cast %491 : vector<1x1x68xf32> to vector<68xf32>
    %493 = vector.shape_cast %492 : vector<68xf32> to vector<1x68xf32>
    %494 = vector.broadcast %493 : vector<1x68xf32> to vector<16x68xf32>
    %495 = arith.mulf %490, %494 : vector<16x68xf32>
    %496 = arith.addf %489, %495 : vector<16x68xf32>
    %c6_363 = arith.constant 6 : index
    %c0_364 = arith.constant 0 : index
    %497 = vector.load %arg14[%c6_363, %c0_364] : memref<34x68xf32, #tpu.memory_space<vmem>>, vector<16x68xf32>
    %c0_365 = arith.constant 0 : index
    %c17_366 = arith.constant 17 : index
    %c0_367 = arith.constant 0 : index
    %498 = vector.load %arg4[%c0_365, %c17_366, %c0_367] : memref<2x49x68xf32, #tpu.memory_space<vmem>>, vector<1x1x68xf32>
    %499 = vector.shape_cast %498 : vector<1x1x68xf32> to vector<68xf32>
    %500 = vector.shape_cast %499 : vector<68xf32> to vector<1x68xf32>
    %501 = vector.broadcast %500 : vector<1x68xf32> to vector<16x68xf32>
    %502 = arith.mulf %497, %501 : vector<16x68xf32>
    %503 = arith.addf %496, %502 : vector<16x68xf32>
    %c9_368 = arith.constant 9 : index
    %c0_369 = arith.constant 0 : index
    %504 = vector.load %arg14[%c9_368, %c0_369] : memref<34x68xf32, #tpu.memory_space<vmem>>, vector<16x68xf32>
    %c0_370 = arith.constant 0 : index
    %c24_371 = arith.constant 24 : index
    %c0_372 = arith.constant 0 : index
    %505 = vector.load %arg4[%c0_370, %c24_371, %c0_372] : memref<2x49x68xf32, #tpu.memory_space<vmem>>, vector<1x1x68xf32>
    %506 = vector.shape_cast %505 : vector<1x1x68xf32> to vector<68xf32>
    %507 = vector.shape_cast %506 : vector<68xf32> to vector<1x68xf32>
    %508 = vector.broadcast %507 : vector<1x68xf32> to vector<16x68xf32>
    %509 = arith.mulf %504, %508 : vector<16x68xf32>
    %510 = arith.addf %503, %509 : vector<16x68xf32>
    %c12_373 = arith.constant 12 : index
    %c0_374 = arith.constant 0 : index
    %511 = vector.load %arg14[%c12_373, %c0_374] : memref<34x68xf32, #tpu.memory_space<vmem>>, vector<16x68xf32>
    %c0_375 = arith.constant 0 : index
    %c31 = arith.constant 31 : index
    %c0_376 = arith.constant 0 : index
    %512 = vector.load %arg4[%c0_375, %c31, %c0_376] : memref<2x49x68xf32, #tpu.memory_space<vmem>>, vector<1x1x68xf32>
    %513 = vector.shape_cast %512 : vector<1x1x68xf32> to vector<68xf32>
    %514 = vector.shape_cast %513 : vector<68xf32> to vector<1x68xf32>
    %515 = vector.broadcast %514 : vector<1x68xf32> to vector<16x68xf32>
    %516 = arith.mulf %511, %515 : vector<16x68xf32>
    %517 = arith.addf %510, %516 : vector<16x68xf32>
    %c15_377 = arith.constant 15 : index
    %c0_378 = arith.constant 0 : index
    %518 = vector.load %arg14[%c15_377, %c0_378] : memref<34x68xf32, #tpu.memory_space<vmem>>, vector<16x68xf32>
    %c0_379 = arith.constant 0 : index
    %c38 = arith.constant 38 : index
    %c0_380 = arith.constant 0 : index
    %519 = vector.load %arg4[%c0_379, %c38, %c0_380] : memref<2x49x68xf32, #tpu.memory_space<vmem>>, vector<1x1x68xf32>
    %520 = vector.shape_cast %519 : vector<1x1x68xf32> to vector<68xf32>
    %521 = vector.shape_cast %520 : vector<68xf32> to vector<1x68xf32>
    %522 = vector.broadcast %521 : vector<1x68xf32> to vector<16x68xf32>
    %523 = arith.mulf %518, %522 : vector<16x68xf32>
    %524 = arith.addf %517, %523 : vector<16x68xf32>
    %c18_381 = arith.constant 18 : index
    %c0_382 = arith.constant 0 : index
    %525 = vector.load %arg14[%c18_381, %c0_382] : memref<34x68xf32, #tpu.memory_space<vmem>>, vector<16x68xf32>
    %c0_383 = arith.constant 0 : index
    %c45 = arith.constant 45 : index
    %c0_384 = arith.constant 0 : index
    %526 = vector.load %arg4[%c0_383, %c45, %c0_384] : memref<2x49x68xf32, #tpu.memory_space<vmem>>, vector<1x1x68xf32>
    %527 = vector.shape_cast %526 : vector<1x1x68xf32> to vector<68xf32>
    %528 = vector.shape_cast %527 : vector<68xf32> to vector<1x68xf32>
    %529 = vector.broadcast %528 : vector<1x68xf32> to vector<16x68xf32>
    %530 = arith.mulf %525, %529 : vector<16x68xf32>
    %531 = arith.addf %524, %530 : vector<16x68xf32>
    %c0_385 = arith.constant 0 : index
    %c12_386 = arith.constant 12 : index
    %532 = vector.load %arg12[%c0_385, %c12_386] : memref<34x86xf32, #tpu.memory_space<vmem>>, vector<34x68xf32>
    %c0_387 = arith.constant 0 : index
    %c0_388 = arith.constant 0 : index
    %533 = vector.load %arg14[%c0_387, %c0_388] : memref<34x68xf32, #tpu.memory_space<vmem>>, vector<34x68xf32>
    tpu.vector_store %arg14[%c0_387, %c0_388], %532 {strides = array<i32>} : memref<34x68xf32, #tpu.memory_space<vmem>>, vector<34x68xf32>,
    %c0_389 = arith.constant 0 : index
    %c0_390 = arith.constant 0 : index
    %534 = vector.load %arg14[%c0_389, %c0_390] : memref<34x68xf32, #tpu.memory_space<vmem>>, vector<16x68xf32>
    %c0_391 = arith.constant 0 : index
    %c4_392 = arith.constant 4 : index
    %c0_393 = arith.constant 0 : index
    %535 = vector.load %arg4[%c0_391, %c4_392, %c0_393] : memref<2x49x68xf32, #tpu.memory_space<vmem>>, vector<1x1x68xf32>
    %536 = vector.shape_cast %535 : vector<1x1x68xf32> to vector<68xf32>
    %537 = vector.shape_cast %536 : vector<68xf32> to vector<1x68xf32>
    %538 = vector.broadcast %537 : vector<1x68xf32> to vector<16x68xf32>
    %539 = arith.mulf %534, %538 : vector<16x68xf32>
    %540 = arith.addf %531, %539 : vector<16x68xf32>
    %c3_394 = arith.constant 3 : index
    %c0_395 = arith.constant 0 : index
    %541 = vector.load %arg14[%c3_394, %c0_395] : memref<34x68xf32, #tpu.memory_space<vmem>>, vector<16x68xf32>
    %c0_396 = arith.constant 0 : index
    %c11_397 = arith.constant 11 : index
    %c0_398 = arith.constant 0 : index
    %542 = vector.load %arg4[%c0_396, %c11_397, %c0_398] : memref<2x49x68xf32, #tpu.memory_space<vmem>>, vector<1x1x68xf32>
    %543 = vector.shape_cast %542 : vector<1x1x68xf32> to vector<68xf32>
    %544 = vector.shape_cast %543 : vector<68xf32> to vector<1x68xf32>
    %545 = vector.broadcast %544 : vector<1x68xf32> to vector<16x68xf32>
    %546 = arith.mulf %541, %545 : vector<16x68xf32>
    %547 = arith.addf %540, %546 : vector<16x68xf32>
    %c6_399 = arith.constant 6 : index
    %c0_400 = arith.constant 0 : index
    %548 = vector.load %arg14[%c6_399, %c0_400] : memref<34x68xf32, #tpu.memory_space<vmem>>, vector<16x68xf32>
    %c0_401 = arith.constant 0 : index
    %c18_402 = arith.constant 18 : index
    %c0_403 = arith.constant 0 : index
    %549 = vector.load %arg4[%c0_401, %c18_402, %c0_403] : memref<2x49x68xf32, #tpu.memory_space<vmem>>, vector<1x1x68xf32>
    %550 = vector.shape_cast %549 : vector<1x1x68xf32> to vector<68xf32>
    %551 = vector.shape_cast %550 : vector<68xf32> to vector<1x68xf32>
    %552 = vector.broadcast %551 : vector<1x68xf32> to vector<16x68xf32>
    %553 = arith.mulf %548, %552 : vector<16x68xf32>
    %554 = arith.addf %547, %553 : vector<16x68xf32>
    %c9_404 = arith.constant 9 : index
    %c0_405 = arith.constant 0 : index
    %555 = vector.load %arg14[%c9_404, %c0_405] : memref<34x68xf32, #tpu.memory_space<vmem>>, vector<16x68xf32>
    %c0_406 = arith.constant 0 : index
    %c25_407 = arith.constant 25 : index
    %c0_408 = arith.constant 0 : index
    %556 = vector.load %arg4[%c0_406, %c25_407, %c0_408] : memref<2x49x68xf32, #tpu.memory_space<vmem>>, vector<1x1x68xf32>
    %557 = vector.shape_cast %556 : vector<1x1x68xf32> to vector<68xf32>
    %558 = vector.shape_cast %557 : vector<68xf32> to vector<1x68xf32>
    %559 = vector.broadcast %558 : vector<1x68xf32> to vector<16x68xf32>
    %560 = arith.mulf %555, %559 : vector<16x68xf32>
    %561 = arith.addf %554, %560 : vector<16x68xf32>
    %c12_409 = arith.constant 12 : index
    %c0_410 = arith.constant 0 : index
    %562 = vector.load %arg14[%c12_409, %c0_410] : memref<34x68xf32, #tpu.memory_space<vmem>>, vector<16x68xf32>
    %c0_411 = arith.constant 0 : index
    %c32 = arith.constant 32 : index
    %c0_412 = arith.constant 0 : index
    %563 = vector.load %arg4[%c0_411, %c32, %c0_412] : memref<2x49x68xf32, #tpu.memory_space<vmem>>, vector<1x1x68xf32>
    %564 = vector.shape_cast %563 : vector<1x1x68xf32> to vector<68xf32>
    %565 = vector.shape_cast %564 : vector<68xf32> to vector<1x68xf32>
    %566 = vector.broadcast %565 : vector<1x68xf32> to vector<16x68xf32>
    %567 = arith.mulf %562, %566 : vector<16x68xf32>
    %568 = arith.addf %561, %567 : vector<16x68xf32>
    %c15_413 = arith.constant 15 : index
    %c0_414 = arith.constant 0 : index
    %569 = vector.load %arg14[%c15_413, %c0_414] : memref<34x68xf32, #tpu.memory_space<vmem>>, vector<16x68xf32>
    %c0_415 = arith.constant 0 : index
    %c39 = arith.constant 39 : index
    %c0_416 = arith.constant 0 : index
    %570 = vector.load %arg4[%c0_415, %c39, %c0_416] : memref<2x49x68xf32, #tpu.memory_space<vmem>>, vector<1x1x68xf32>
    %571 = vector.shape_cast %570 : vector<1x1x68xf32> to vector<68xf32>
    %572 = vector.shape_cast %571 : vector<68xf32> to vector<1x68xf32>
    %573 = vector.broadcast %572 : vector<1x68xf32> to vector<16x68xf32>
    %574 = arith.mulf %569, %573 : vector<16x68xf32>
    %575 = arith.addf %568, %574 : vector<16x68xf32>
    %c18_417 = arith.constant 18 : index
    %c0_418 = arith.constant 0 : index
    %576 = vector.load %arg14[%c18_417, %c0_418] : memref<34x68xf32, #tpu.memory_space<vmem>>, vector<16x68xf32>
    %c0_419 = arith.constant 0 : index
    %c46 = arith.constant 46 : index
    %c0_420 = arith.constant 0 : index
    %577 = vector.load %arg4[%c0_419, %c46, %c0_420] : memref<2x49x68xf32, #tpu.memory_space<vmem>>, vector<1x1x68xf32>
    %578 = vector.shape_cast %577 : vector<1x1x68xf32> to vector<68xf32>
    %579 = vector.shape_cast %578 : vector<68xf32> to vector<1x68xf32>
    %580 = vector.broadcast %579 : vector<1x68xf32> to vector<16x68xf32>
    %581 = arith.mulf %576, %580 : vector<16x68xf32>
    %582 = arith.addf %575, %581 : vector<16x68xf32>
    %c0_421 = arith.constant 0 : index
    %c15_422 = arith.constant 15 : index
    %583 = vector.load %arg12[%c0_421, %c15_422] : memref<34x86xf32, #tpu.memory_space<vmem>>, vector<34x68xf32>
    %c0_423 = arith.constant 0 : index
    %c0_424 = arith.constant 0 : index
    %584 = vector.load %arg14[%c0_423, %c0_424] : memref<34x68xf32, #tpu.memory_space<vmem>>, vector<34x68xf32>
    tpu.vector_store %arg14[%c0_423, %c0_424], %583 {strides = array<i32>} : memref<34x68xf32, #tpu.memory_space<vmem>>, vector<34x68xf32>,
    %c0_425 = arith.constant 0 : index
    %c0_426 = arith.constant 0 : index
    %585 = vector.load %arg14[%c0_425, %c0_426] : memref<34x68xf32, #tpu.memory_space<vmem>>, vector<16x68xf32>
    %c0_427 = arith.constant 0 : index
    %c5_428 = arith.constant 5 : index
    %c0_429 = arith.constant 0 : index
    %586 = vector.load %arg4[%c0_427, %c5_428, %c0_429] : memref<2x49x68xf32, #tpu.memory_space<vmem>>, vector<1x1x68xf32>
    %587 = vector.shape_cast %586 : vector<1x1x68xf32> to vector<68xf32>
    %588 = vector.shape_cast %587 : vector<68xf32> to vector<1x68xf32>
    %589 = vector.broadcast %588 : vector<1x68xf32> to vector<16x68xf32>
    %590 = arith.mulf %585, %589 : vector<16x68xf32>
    %591 = arith.addf %582, %590 : vector<16x68xf32>
    %c3_430 = arith.constant 3 : index
    %c0_431 = arith.constant 0 : index
    %592 = vector.load %arg14[%c3_430, %c0_431] : memref<34x68xf32, #tpu.memory_space<vmem>>, vector<16x68xf32>
    %c0_432 = arith.constant 0 : index
    %c12_433 = arith.constant 12 : index
    %c0_434 = arith.constant 0 : index
    %593 = vector.load %arg4[%c0_432, %c12_433, %c0_434] : memref<2x49x68xf32, #tpu.memory_space<vmem>>, vector<1x1x68xf32>
    %594 = vector.shape_cast %593 : vector<1x1x68xf32> to vector<68xf32>
    %595 = vector.shape_cast %594 : vector<68xf32> to vector<1x68xf32>
    %596 = vector.broadcast %595 : vector<1x68xf32> to vector<16x68xf32>
    %597 = arith.mulf %592, %596 : vector<16x68xf32>
    %598 = arith.addf %591, %597 : vector<16x68xf32>
    %c6_435 = arith.constant 6 : index
    %c0_436 = arith.constant 0 : index
    %599 = vector.load %arg14[%c6_435, %c0_436] : memref<34x68xf32, #tpu.memory_space<vmem>>, vector<16x68xf32>
    %c0_437 = arith.constant 0 : index
    %c19_438 = arith.constant 19 : index
    %c0_439 = arith.constant 0 : index
    %600 = vector.load %arg4[%c0_437, %c19_438, %c0_439] : memref<2x49x68xf32, #tpu.memory_space<vmem>>, vector<1x1x68xf32>
    %601 = vector.shape_cast %600 : vector<1x1x68xf32> to vector<68xf32>
    %602 = vector.shape_cast %601 : vector<68xf32> to vector<1x68xf32>
    %603 = vector.broadcast %602 : vector<1x68xf32> to vector<16x68xf32>
    %604 = arith.mulf %599, %603 : vector<16x68xf32>
    %605 = arith.addf %598, %604 : vector<16x68xf32>
    %c9_440 = arith.constant 9 : index
    %c0_441 = arith.constant 0 : index
    %606 = vector.load %arg14[%c9_440, %c0_441] : memref<34x68xf32, #tpu.memory_space<vmem>>, vector<16x68xf32>
    %c0_442 = arith.constant 0 : index
    %c26 = arith.constant 26 : index
    %c0_443 = arith.constant 0 : index
    %607 = vector.load %arg4[%c0_442, %c26, %c0_443] : memref<2x49x68xf32, #tpu.memory_space<vmem>>, vector<1x1x68xf32>
    %608 = vector.shape_cast %607 : vector<1x1x68xf32> to vector<68xf32>
    %609 = vector.shape_cast %608 : vector<68xf32> to vector<1x68xf32>
    %610 = vector.broadcast %609 : vector<1x68xf32> to vector<16x68xf32>
    %611 = arith.mulf %606, %610 : vector<16x68xf32>
    %612 = arith.addf %605, %611 : vector<16x68xf32>
    %c12_444 = arith.constant 12 : index
    %c0_445 = arith.constant 0 : index
    %613 = vector.load %arg14[%c12_444, %c0_445] : memref<34x68xf32, #tpu.memory_space<vmem>>, vector<16x68xf32>
    %c0_446 = arith.constant 0 : index
    %c33 = arith.constant 33 : index
    %c0_447 = arith.constant 0 : index
    %614 = vector.load %arg4[%c0_446, %c33, %c0_447] : memref<2x49x68xf32, #tpu.memory_space<vmem>>, vector<1x1x68xf32>
    %615 = vector.shape_cast %614 : vector<1x1x68xf32> to vector<68xf32>
    %616 = vector.shape_cast %615 : vector<68xf32> to vector<1x68xf32>
    %617 = vector.broadcast %616 : vector<1x68xf32> to vector<16x68xf32>
    %618 = arith.mulf %613, %617 : vector<16x68xf32>
    %619 = arith.addf %612, %618 : vector<16x68xf32>
    %c15_448 = arith.constant 15 : index
    %c0_449 = arith.constant 0 : index
    %620 = vector.load %arg14[%c15_448, %c0_449] : memref<34x68xf32, #tpu.memory_space<vmem>>, vector<16x68xf32>
    %c0_450 = arith.constant 0 : index
    %c40 = arith.constant 40 : index
    %c0_451 = arith.constant 0 : index
    %621 = vector.load %arg4[%c0_450, %c40, %c0_451] : memref<2x49x68xf32, #tpu.memory_space<vmem>>, vector<1x1x68xf32>
    %622 = vector.shape_cast %621 : vector<1x1x68xf32> to vector<68xf32>
    %623 = vector.shape_cast %622 : vector<68xf32> to vector<1x68xf32>
    %624 = vector.broadcast %623 : vector<1x68xf32> to vector<16x68xf32>
    %625 = arith.mulf %620, %624 : vector<16x68xf32>
    %626 = arith.addf %619, %625 : vector<16x68xf32>
    %c18_452 = arith.constant 18 : index
    %c0_453 = arith.constant 0 : index
    %627 = vector.load %arg14[%c18_452, %c0_453] : memref<34x68xf32, #tpu.memory_space<vmem>>, vector<16x68xf32>
    %c0_454 = arith.constant 0 : index
    %c47 = arith.constant 47 : index
    %c0_455 = arith.constant 0 : index
    %628 = vector.load %arg4[%c0_454, %c47, %c0_455] : memref<2x49x68xf32, #tpu.memory_space<vmem>>, vector<1x1x68xf32>
    %629 = vector.shape_cast %628 : vector<1x1x68xf32> to vector<68xf32>
    %630 = vector.shape_cast %629 : vector<68xf32> to vector<1x68xf32>
    %631 = vector.broadcast %630 : vector<1x68xf32> to vector<16x68xf32>
    %632 = arith.mulf %627, %631 : vector<16x68xf32>
    %633 = arith.addf %626, %632 : vector<16x68xf32>
    %c0_456 = arith.constant 0 : index
    %c18_457 = arith.constant 18 : index
    %634 = vector.load %arg12[%c0_456, %c18_457] : memref<34x86xf32, #tpu.memory_space<vmem>>, vector<34x68xf32>
    %c0_458 = arith.constant 0 : index
    %c0_459 = arith.constant 0 : index
    %635 = vector.load %arg14[%c0_458, %c0_459] : memref<34x68xf32, #tpu.memory_space<vmem>>, vector<34x68xf32>
    tpu.vector_store %arg14[%c0_458, %c0_459], %634 {strides = array<i32>} : memref<34x68xf32, #tpu.memory_space<vmem>>, vector<34x68xf32>,
    %c0_460 = arith.constant 0 : index
    %c0_461 = arith.constant 0 : index
    %636 = vector.load %arg14[%c0_460, %c0_461] : memref<34x68xf32, #tpu.memory_space<vmem>>, vector<16x68xf32>
    %c0_462 = arith.constant 0 : index
    %c6_463 = arith.constant 6 : index
    %c0_464 = arith.constant 0 : index
    %637 = vector.load %arg4[%c0_462, %c6_463, %c0_464] : memref<2x49x68xf32, #tpu.memory_space<vmem>>, vector<1x1x68xf32>
    %638 = vector.shape_cast %637 : vector<1x1x68xf32> to vector<68xf32>
    %639 = vector.shape_cast %638 : vector<68xf32> to vector<1x68xf32>
    %640 = vector.broadcast %639 : vector<1x68xf32> to vector<16x68xf32>
    %641 = arith.mulf %636, %640 : vector<16x68xf32>
    %642 = arith.addf %633, %641 : vector<16x68xf32>
    %c3_465 = arith.constant 3 : index
    %c0_466 = arith.constant 0 : index
    %643 = vector.load %arg14[%c3_465, %c0_466] : memref<34x68xf32, #tpu.memory_space<vmem>>, vector<16x68xf32>
    %c0_467 = arith.constant 0 : index
    %c13_468 = arith.constant 13 : index
    %c0_469 = arith.constant 0 : index
    %644 = vector.load %arg4[%c0_467, %c13_468, %c0_469] : memref<2x49x68xf32, #tpu.memory_space<vmem>>, vector<1x1x68xf32>
    %645 = vector.shape_cast %644 : vector<1x1x68xf32> to vector<68xf32>
    %646 = vector.shape_cast %645 : vector<68xf32> to vector<1x68xf32>
    %647 = vector.broadcast %646 : vector<1x68xf32> to vector<16x68xf32>
    %648 = arith.mulf %643, %647 : vector<16x68xf32>
    %649 = arith.addf %642, %648 : vector<16x68xf32>
    %c6_470 = arith.constant 6 : index
    %c0_471 = arith.constant 0 : index
    %650 = vector.load %arg14[%c6_470, %c0_471] : memref<34x68xf32, #tpu.memory_space<vmem>>, vector<16x68xf32>
    %c0_472 = arith.constant 0 : index
    %c20_473 = arith.constant 20 : index
    %c0_474 = arith.constant 0 : index
    %651 = vector.load %arg4[%c0_472, %c20_473, %c0_474] : memref<2x49x68xf32, #tpu.memory_space<vmem>>, vector<1x1x68xf32>
    %652 = vector.shape_cast %651 : vector<1x1x68xf32> to vector<68xf32>
    %653 = vector.shape_cast %652 : vector<68xf32> to vector<1x68xf32>
    %654 = vector.broadcast %653 : vector<1x68xf32> to vector<16x68xf32>
    %655 = arith.mulf %650, %654 : vector<16x68xf32>
    %656 = arith.addf %649, %655 : vector<16x68xf32>
    %c9_475 = arith.constant 9 : index
    %c0_476 = arith.constant 0 : index
    %657 = vector.load %arg14[%c9_475, %c0_476] : memref<34x68xf32, #tpu.memory_space<vmem>>, vector<16x68xf32>
    %c0_477 = arith.constant 0 : index
    %c27 = arith.constant 27 : index
    %c0_478 = arith.constant 0 : index
    %658 = vector.load %arg4[%c0_477, %c27, %c0_478] : memref<2x49x68xf32, #tpu.memory_space<vmem>>, vector<1x1x68xf32>
    %659 = vector.shape_cast %658 : vector<1x1x68xf32> to vector<68xf32>
    %660 = vector.shape_cast %659 : vector<68xf32> to vector<1x68xf32>
    %661 = vector.broadcast %660 : vector<1x68xf32> to vector<16x68xf32>
    %662 = arith.mulf %657, %661 : vector<16x68xf32>
    %663 = arith.addf %656, %662 : vector<16x68xf32>
    %c12_479 = arith.constant 12 : index
    %c0_480 = arith.constant 0 : index
    %664 = vector.load %arg14[%c12_479, %c0_480] : memref<34x68xf32, #tpu.memory_space<vmem>>, vector<16x68xf32>
    %c0_481 = arith.constant 0 : index
    %c34 = arith.constant 34 : index
    %c0_482 = arith.constant 0 : index
    %665 = vector.load %arg4[%c0_481, %c34, %c0_482] : memref<2x49x68xf32, #tpu.memory_space<vmem>>, vector<1x1x68xf32>
    %666 = vector.shape_cast %665 : vector<1x1x68xf32> to vector<68xf32>
    %667 = vector.shape_cast %666 : vector<68xf32> to vector<1x68xf32>
    %668 = vector.broadcast %667 : vector<1x68xf32> to vector<16x68xf32>
    %669 = arith.mulf %664, %668 : vector<16x68xf32>
    %670 = arith.addf %663, %669 : vector<16x68xf32>
    %c15_483 = arith.constant 15 : index
    %c0_484 = arith.constant 0 : index
    %671 = vector.load %arg14[%c15_483, %c0_484] : memref<34x68xf32, #tpu.memory_space<vmem>>, vector<16x68xf32>
    %c0_485 = arith.constant 0 : index
    %c41 = arith.constant 41 : index
    %c0_486 = arith.constant 0 : index
    %672 = vector.load %arg4[%c0_485, %c41, %c0_486] : memref<2x49x68xf32, #tpu.memory_space<vmem>>, vector<1x1x68xf32>
    %673 = vector.shape_cast %672 : vector<1x1x68xf32> to vector<68xf32>
    %674 = vector.shape_cast %673 : vector<68xf32> to vector<1x68xf32>
    %675 = vector.broadcast %674 : vector<1x68xf32> to vector<16x68xf32>
    %676 = arith.mulf %671, %675 : vector<16x68xf32>
    %677 = arith.addf %670, %676 : vector<16x68xf32>
    %c18_487 = arith.constant 18 : index
    %c0_488 = arith.constant 0 : index
    %678 = vector.load %arg14[%c18_487, %c0_488] : memref<34x68xf32, #tpu.memory_space<vmem>>, vector<16x68xf32>
    %c0_489 = arith.constant 0 : index
    %c48 = arith.constant 48 : index
    %c0_490 = arith.constant 0 : index
    %679 = vector.load %arg4[%c0_489, %c48, %c0_490] : memref<2x49x68xf32, #tpu.memory_space<vmem>>, vector<1x1x68xf32>
    %680 = vector.shape_cast %679 : vector<1x1x68xf32> to vector<68xf32>
    %681 = vector.shape_cast %680 : vector<68xf32> to vector<1x68xf32>
    %682 = vector.broadcast %681 : vector<1x68xf32> to vector<16x68xf32>
    %683 = arith.mulf %678, %682 : vector<16x68xf32>
    %684 = arith.addf %677, %683 : vector<16x68xf32>
    %c0_491 = arith.constant 0 : index
    %c0_492 = arith.constant 0 : index
    %685 = vector.load %arg5[%c0_491, %c0_492] : memref<2x68xf32, #tpu.memory_space<vmem>>, vector<1x68xf32>
    %686 = vector.shape_cast %685 : vector<1x68xf32> to vector<68xf32>
    %687 = vector.shape_cast %686 : vector<68xf32> to vector<1x68xf32>
    %688 = vector.broadcast %687 : vector<1x68xf32> to vector<16x68xf32>
    %689 = arith.addf %684, %688 : vector<16x68xf32>
    %c0_493 = arith.constant 0 : index
    %c0_494 = arith.constant 0 : index
    %c0_495 = arith.constant 0 : index
    %690 = vector.load %arg13[%c0_493, %c0_494, %c0_495] : memref<2x16x68xf32, #tpu.memory_space<vmem>>, vector<1x16x68xf32>
    %691 = vector.shape_cast %690 : vector<1x16x68xf32> to vector<16x68xf32>
    %692 = vector.shape_cast %689 : vector<16x68xf32> to vector<1x16x68xf32>
    tpu.vector_store %arg13[%c0_493, %c0_494, %c0_495], %692 {strides = array<i32>} : memref<2x16x68xf32, #tpu.memory_space<vmem>>, vector<1x16x68xf32>,
    %cst_496 = arith.constant 0.000000e+00 : f32
    %693 = vector.broadcast %cst_496 : f32 to vector<2x86xf32>
    %c1_497 = arith.constant 1 : index
    %c0_498 = arith.constant 0 : index
    %c0_499 = arith.constant 0 : index
    %694 = vector.load %arg11[%c1_497, %c0_498, %c0_499] : memref<2x20x86xf32, #tpu.memory_space<vmem>>, vector<1x2x86xf32>
    %695 = vector.shape_cast %694 : vector<1x2x86xf32> to vector<2x86xf32>
    %696 = vector.shape_cast %693 : vector<2x86xf32> to vector<1x2x86xf32>
    tpu.vector_store %arg11[%c1_497, %c0_498, %c0_499], %696 {strides = array<i32>} : memref<2x20x86xf32, #tpu.memory_space<vmem>>, vector<1x2x86xf32>,
    %cst_500 = arith.constant 0.000000e+00 : f32
    %697 = vector.broadcast %cst_500 : f32 to vector<2x86xf32>
    %c1_501 = arith.constant 1 : index
    %c18_502 = arith.constant 18 : index
    %c0_503 = arith.constant 0 : index
    %698 = vector.load %arg11[%c1_501, %c18_502, %c0_503] : memref<2x20x86xf32, #tpu.memory_space<vmem>>, vector<1x2x86xf32>
    %699 = vector.shape_cast %698 : vector<1x2x86xf32> to vector<2x86xf32>
    %700 = vector.shape_cast %697 : vector<2x86xf32> to vector<1x2x86xf32>
    tpu.vector_store %arg11[%c1_501, %c18_502, %c0_503], %700 {strides = array<i32>} : memref<2x20x86xf32, #tpu.memory_space<vmem>>, vector<1x2x86xf32>,
    %cst_504 = arith.constant 0.000000e+00 : f32
    %701 = vector.broadcast %cst_504 : f32 to vector<16x86xf32>
    %c1_505 = arith.constant 1 : index
    %c2_506 = arith.constant 2 : index
    %c0_507 = arith.constant 0 : index
    %702 = vector.load %arg11[%c1_505, %c2_506, %c0_507] : memref<2x20x86xf32, #tpu.memory_space<vmem>>, vector<1x16x86xf32>
    %703 = vector.shape_cast %702 : vector<1x16x86xf32> to vector<16x86xf32>
    %704 = vector.shape_cast %701 : vector<16x86xf32> to vector<1x16x86xf32>
    tpu.vector_store %arg11[%c1_505, %c2_506, %c0_507], %704 {strides = array<i32>} : memref<2x20x86xf32, #tpu.memory_space<vmem>>, vector<1x16x86xf32>,
    %c2_508 = arith.constant 2 : index
    %705 = memref.load %arg7[%c2_508] : memref<4xf32, #tpu.memory_space<smem>>
    %706 = vector.broadcast %705 : f32 to vector<16x16xf32>
    %c0_509 = arith.constant 0 : index
    %c0_510 = arith.constant 0 : index
    %c0_511 = arith.constant 0 : index
    %c0_512 = arith.constant 0 : index
    %707 = vector.load %arg1[%c0_509, %c0_510, %c0_511, %c0_512] : memref<1x8x16x16xf32, #tpu.memory_space<vmem>>, vector<1x1x16x16xf32>
    %708 = vector.shape_cast %707 : vector<1x1x16x16xf32> to vector<16x16xf32>
    %c2_513 = arith.constant 2 : index
    %709 = memref.load %arg6[%c2_513] : memref<32xf32, #tpu.memory_space<smem>>
    %710 = vector.broadcast %709 : f32 to vector<16x16xf32>
    %711 = arith.mulf %708, %710 : vector<16x16xf32>
    %712 = arith.addf %706, %711 : vector<16x16xf32>
    %c0_514 = arith.constant 0 : index
    %c1_515 = arith.constant 1 : index
    %c0_516 = arith.constant 0 : index
    %c0_517 = arith.constant 0 : index
    %713 = vector.load %arg1[%c0_514, %c1_515, %c0_516, %c0_517] : memref<1x8x16x16xf32, #tpu.memory_space<vmem>>, vector<1x1x16x16xf32>
    %714 = vector.shape_cast %713 : vector<1x1x16x16xf32> to vector<16x16xf32>
    %c6_518 = arith.constant 6 : index
    %715 = memref.load %arg6[%c6_518] : memref<32xf32, #tpu.memory_space<smem>>
    %716 = vector.broadcast %715 : f32 to vector<16x16xf32>
    %717 = arith.mulf %714, %716 : vector<16x16xf32>
    %718 = arith.addf %712, %717 : vector<16x16xf32>
    %c0_519 = arith.constant 0 : index
    %c2_520 = arith.constant 2 : index
    %c0_521 = arith.constant 0 : index
    %c0_522 = arith.constant 0 : index
    %719 = vector.load %arg1[%c0_519, %c2_520, %c0_521, %c0_522] : memref<1x8x16x16xf32, #tpu.memory_space<vmem>>, vector<1x1x16x16xf32>
    %720 = vector.shape_cast %719 : vector<1x1x16x16xf32> to vector<16x16xf32>
    %c10_523 = arith.constant 10 : index
    %721 = memref.load %arg6[%c10_523] : memref<32xf32, #tpu.memory_space<smem>>
    %722 = vector.broadcast %721 : f32 to vector<16x16xf32>
    %723 = arith.mulf %720, %722 : vector<16x16xf32>
    %724 = arith.addf %718, %723 : vector<16x16xf32>
    %c0_524 = arith.constant 0 : index
    %c3_525 = arith.constant 3 : index
    %c0_526 = arith.constant 0 : index
    %c0_527 = arith.constant 0 : index
    %725 = vector.load %arg1[%c0_524, %c3_525, %c0_526, %c0_527] : memref<1x8x16x16xf32, #tpu.memory_space<vmem>>, vector<1x1x16x16xf32>
    %726 = vector.shape_cast %725 : vector<1x1x16x16xf32> to vector<16x16xf32>
    %c14_528 = arith.constant 14 : index
    %727 = memref.load %arg6[%c14_528] : memref<32xf32, #tpu.memory_space<smem>>
    %728 = vector.broadcast %727 : f32 to vector<16x16xf32>
    %729 = arith.mulf %726, %728 : vector<16x16xf32>
    %730 = arith.addf %724, %729 : vector<16x16xf32>
    %c0_529 = arith.constant 0 : index
    %c4_530 = arith.constant 4 : index
    %c0_531 = arith.constant 0 : index
    %c0_532 = arith.constant 0 : index
    %731 = vector.load %arg1[%c0_529, %c4_530, %c0_531, %c0_532] : memref<1x8x16x16xf32, #tpu.memory_space<vmem>>, vector<1x1x16x16xf32>
    %732 = vector.shape_cast %731 : vector<1x1x16x16xf32> to vector<16x16xf32>
    %c18_533 = arith.constant 18 : index
    %733 = memref.load %arg6[%c18_533] : memref<32xf32, #tpu.memory_space<smem>>
    %734 = vector.broadcast %733 : f32 to vector<16x16xf32>
    %735 = arith.mulf %732, %734 : vector<16x16xf32>
    %736 = arith.addf %730, %735 : vector<16x16xf32>
    %c0_534 = arith.constant 0 : index
    %c5_535 = arith.constant 5 : index
    %c0_536 = arith.constant 0 : index
    %c0_537 = arith.constant 0 : index
    %737 = vector.load %arg1[%c0_534, %c5_535, %c0_536, %c0_537] : memref<1x8x16x16xf32, #tpu.memory_space<vmem>>, vector<1x1x16x16xf32>
    %738 = vector.shape_cast %737 : vector<1x1x16x16xf32> to vector<16x16xf32>
    %c22_538 = arith.constant 22 : index
    %739 = memref.load %arg6[%c22_538] : memref<32xf32, #tpu.memory_space<smem>>
    %740 = vector.broadcast %739 : f32 to vector<16x16xf32>
    %741 = arith.mulf %738, %740 : vector<16x16xf32>
    %742 = arith.addf %736, %741 : vector<16x16xf32>
    %c0_539 = arith.constant 0 : index
    %c6_540 = arith.constant 6 : index
    %c0_541 = arith.constant 0 : index
    %c0_542 = arith.constant 0 : index
    %743 = vector.load %arg1[%c0_539, %c6_540, %c0_541, %c0_542] : memref<1x8x16x16xf32, #tpu.memory_space<vmem>>, vector<1x1x16x16xf32>
    %744 = vector.shape_cast %743 : vector<1x1x16x16xf32> to vector<16x16xf32>
    %c26_543 = arith.constant 26 : index
    %745 = memref.load %arg6[%c26_543] : memref<32xf32, #tpu.memory_space<smem>>
    %746 = vector.broadcast %745 : f32 to vector<16x16xf32>
    %747 = arith.mulf %744, %746 : vector<16x16xf32>
    %748 = arith.addf %742, %747 : vector<16x16xf32>
    %c0_544 = arith.constant 0 : index
    %c7_545 = arith.constant 7 : index
    %c0_546 = arith.constant 0 : index
    %c0_547 = arith.constant 0 : index
    %749 = vector.load %arg1[%c0_544, %c7_545, %c0_546, %c0_547] : memref<1x8x16x16xf32, #tpu.memory_space<vmem>>, vector<1x1x16x16xf32>
    %750 = vector.shape_cast %749 : vector<1x1x16x16xf32> to vector<16x16xf32>
    %c30_548 = arith.constant 30 : index
    %751 = memref.load %arg6[%c30_548] : memref<32xf32, #tpu.memory_space<smem>>
    %752 = vector.broadcast %751 : f32 to vector<16x16xf32>
    %753 = arith.mulf %750, %752 : vector<16x16xf32>
    %754 = arith.addf %748, %753 : vector<16x16xf32>
    %cst_549 = arith.constant 0.000000e+00 : f32
    %755 = vector.broadcast %cst_549 : f32 to vector<16x16xf32>
    %756 = arith.maximumf %754, %755 : vector<16x16xf32>
    %c1_550 = arith.constant 1 : index
    %c2_551 = arith.constant 2 : index
    %c18_552 = arith.constant 18 : index
    %757 = vector.load %arg11[%c1_550, %c2_551, %c18_552] : memref<2x20x86xf32, #tpu.memory_space<vmem>>, vector<1x16x16xf32>
    %758 = vector.shape_cast %757 : vector<1x16x16xf32> to vector<16x16xf32>
    %759 = vector.shape_cast %756 : vector<16x16xf32> to vector<1x16x16xf32>
    tpu.vector_store %arg11[%c1_550, %c2_551, %c18_552], %759 {strides = array<i32>} : memref<2x20x86xf32, #tpu.memory_space<vmem>>, vector<1x16x16xf32>,
    %c3_553 = arith.constant 3 : index
    %760 = memref.load %arg7[%c3_553] : memref<4xf32, #tpu.memory_space<smem>>
    %761 = vector.broadcast %760 : f32 to vector<16x16xf32>
    %c0_554 = arith.constant 0 : index
    %c0_555 = arith.constant 0 : index
    %c0_556 = arith.constant 0 : index
    %c0_557 = arith.constant 0 : index
    %762 = vector.load %arg1[%c0_554, %c0_555, %c0_556, %c0_557] : memref<1x8x16x16xf32, #tpu.memory_space<vmem>>, vector<1x1x16x16xf32>
    %763 = vector.shape_cast %762 : vector<1x1x16x16xf32> to vector<16x16xf32>
    %c3_558 = arith.constant 3 : index
    %764 = memref.load %arg6[%c3_558] : memref<32xf32, #tpu.memory_space<smem>>
    %765 = vector.broadcast %764 : f32 to vector<16x16xf32>
    %766 = arith.mulf %763, %765 : vector<16x16xf32>
    %767 = arith.addf %761, %766 : vector<16x16xf32>
    %c0_559 = arith.constant 0 : index
    %c1_560 = arith.constant 1 : index
    %c0_561 = arith.constant 0 : index
    %c0_562 = arith.constant 0 : index
    %768 = vector.load %arg1[%c0_559, %c1_560, %c0_561, %c0_562] : memref<1x8x16x16xf32, #tpu.memory_space<vmem>>, vector<1x1x16x16xf32>
    %769 = vector.shape_cast %768 : vector<1x1x16x16xf32> to vector<16x16xf32>
    %c7_563 = arith.constant 7 : index
    %770 = memref.load %arg6[%c7_563] : memref<32xf32, #tpu.memory_space<smem>>
    %771 = vector.broadcast %770 : f32 to vector<16x16xf32>
    %772 = arith.mulf %769, %771 : vector<16x16xf32>
    %773 = arith.addf %767, %772 : vector<16x16xf32>
    %c0_564 = arith.constant 0 : index
    %c2_565 = arith.constant 2 : index
    %c0_566 = arith.constant 0 : index
    %c0_567 = arith.constant 0 : index
    %774 = vector.load %arg1[%c0_564, %c2_565, %c0_566, %c0_567] : memref<1x8x16x16xf32, #tpu.memory_space<vmem>>, vector<1x1x16x16xf32>
    %775 = vector.shape_cast %774 : vector<1x1x16x16xf32> to vector<16x16xf32>
    %c11_568 = arith.constant 11 : index
    %776 = memref.load %arg6[%c11_568] : memref<32xf32, #tpu.memory_space<smem>>
    %777 = vector.broadcast %776 : f32 to vector<16x16xf32>
    %778 = arith.mulf %775, %777 : vector<16x16xf32>
    %779 = arith.addf %773, %778 : vector<16x16xf32>
    %c0_569 = arith.constant 0 : index
    %c3_570 = arith.constant 3 : index
    %c0_571 = arith.constant 0 : index
    %c0_572 = arith.constant 0 : index
    %780 = vector.load %arg1[%c0_569, %c3_570, %c0_571, %c0_572] : memref<1x8x16x16xf32, #tpu.memory_space<vmem>>, vector<1x1x16x16xf32>
    %781 = vector.shape_cast %780 : vector<1x1x16x16xf32> to vector<16x16xf32>
    %c15_573 = arith.constant 15 : index
    %782 = memref.load %arg6[%c15_573] : memref<32xf32, #tpu.memory_space<smem>>
    %783 = vector.broadcast %782 : f32 to vector<16x16xf32>
    %784 = arith.mulf %781, %783 : vector<16x16xf32>
    %785 = arith.addf %779, %784 : vector<16x16xf32>
    %c0_574 = arith.constant 0 : index
    %c4_575 = arith.constant 4 : index
    %c0_576 = arith.constant 0 : index
    %c0_577 = arith.constant 0 : index
    %786 = vector.load %arg1[%c0_574, %c4_575, %c0_576, %c0_577] : memref<1x8x16x16xf32, #tpu.memory_space<vmem>>, vector<1x1x16x16xf32>
    %787 = vector.shape_cast %786 : vector<1x1x16x16xf32> to vector<16x16xf32>
    %c19_578 = arith.constant 19 : index
    %788 = memref.load %arg6[%c19_578] : memref<32xf32, #tpu.memory_space<smem>>
    %789 = vector.broadcast %788 : f32 to vector<16x16xf32>
    %790 = arith.mulf %787, %789 : vector<16x16xf32>
    %791 = arith.addf %785, %790 : vector<16x16xf32>
    %c0_579 = arith.constant 0 : index
    %c5_580 = arith.constant 5 : index
    %c0_581 = arith.constant 0 : index
    %c0_582 = arith.constant 0 : index
    %792 = vector.load %arg1[%c0_579, %c5_580, %c0_581, %c0_582] : memref<1x8x16x16xf32, #tpu.memory_space<vmem>>, vector<1x1x16x16xf32>
    %793 = vector.shape_cast %792 : vector<1x1x16x16xf32> to vector<16x16xf32>
    %c23_583 = arith.constant 23 : index
    %794 = memref.load %arg6[%c23_583] : memref<32xf32, #tpu.memory_space<smem>>
    %795 = vector.broadcast %794 : f32 to vector<16x16xf32>
    %796 = arith.mulf %793, %795 : vector<16x16xf32>
    %797 = arith.addf %791, %796 : vector<16x16xf32>
    %c0_584 = arith.constant 0 : index
    %c6_585 = arith.constant 6 : index
    %c0_586 = arith.constant 0 : index
    %c0_587 = arith.constant 0 : index
    %798 = vector.load %arg1[%c0_584, %c6_585, %c0_586, %c0_587] : memref<1x8x16x16xf32, #tpu.memory_space<vmem>>, vector<1x1x16x16xf32>
    %799 = vector.shape_cast %798 : vector<1x1x16x16xf32> to vector<16x16xf32>
    %c27_588 = arith.constant 27 : index
    %800 = memref.load %arg6[%c27_588] : memref<32xf32, #tpu.memory_space<smem>>
    %801 = vector.broadcast %800 : f32 to vector<16x16xf32>
    %802 = arith.mulf %799, %801 : vector<16x16xf32>
    %803 = arith.addf %797, %802 : vector<16x16xf32>
    %c0_589 = arith.constant 0 : index
    %c7_590 = arith.constant 7 : index
    %c0_591 = arith.constant 0 : index
    %c0_592 = arith.constant 0 : index
    %804 = vector.load %arg1[%c0_589, %c7_590, %c0_591, %c0_592] : memref<1x8x16x16xf32, #tpu.memory_space<vmem>>, vector<1x1x16x16xf32>
    %805 = vector.shape_cast %804 : vector<1x1x16x16xf32> to vector<16x16xf32>
    %c31_593 = arith.constant 31 : index
    %806 = memref.load %arg6[%c31_593] : memref<32xf32, #tpu.memory_space<smem>>
    %807 = vector.broadcast %806 : f32 to vector<16x16xf32>
    %808 = arith.mulf %805, %807 : vector<16x16xf32>
    %809 = arith.addf %803, %808 : vector<16x16xf32>
    %cst_594 = arith.constant 0.000000e+00 : f32
    %810 = vector.broadcast %cst_594 : f32 to vector<16x16xf32>
    %811 = arith.maximumf %809, %810 : vector<16x16xf32>
    %c1_595 = arith.constant 1 : index
    %c2_596 = arith.constant 2 : index
    %c52_597 = arith.constant 52 : index
    %812 = vector.load %arg11[%c1_595, %c2_596, %c52_597] : memref<2x20x86xf32, #tpu.memory_space<vmem>>, vector<1x16x16xf32>
    %813 = vector.shape_cast %812 : vector<1x16x16xf32> to vector<16x16xf32>
    %814 = vector.shape_cast %811 : vector<16x16xf32> to vector<1x16x16xf32>
    tpu.vector_store %arg11[%c1_595, %c2_596, %c52_597], %814 {strides = array<i32>} : memref<2x20x86xf32, #tpu.memory_space<vmem>>, vector<1x16x16xf32>,
    %cst_598 = arith.constant 0.000000e+00 : f32
    %815 = vector.broadcast %cst_598 : f32 to vector<16x68xf32>
    %c1_599 = arith.constant 1 : index
    %c0_600 = arith.constant 0 : index
    %c7_601 = arith.constant 7 : index
    %816 = vector.load %arg11[%c1_599, %c0_600, %c7_601] : memref<2x20x86xf32, #tpu.memory_space<vmem>>, vector<1x20x68xf32>
    %817 = vector.shape_cast %816 : vector<1x20x68xf32> to vector<20x68xf32>
    %c0_602 = arith.constant 0 : index
    %c0_603 = arith.constant 0 : index
    %818 = vector.load %arg14[%c0_602, %c0_603] : memref<34x68xf32, #tpu.memory_space<vmem>>, vector<20x68xf32>
    tpu.vector_store %arg14[%c0_602, %c0_603], %817 {strides = array<i32>} : memref<34x68xf32, #tpu.memory_space<vmem>>, vector<20x68xf32>,
    %c0_604 = arith.constant 0 : index
    %c0_605 = arith.constant 0 : index
    %819 = vector.load %arg14[%c0_604, %c0_605] : memref<34x68xf32, #tpu.memory_space<vmem>>, vector<16x68xf32>
    %c1_606 = arith.constant 1 : index
    %c0_607 = arith.constant 0 : index
    %c0_608 = arith.constant 0 : index
    %820 = vector.load %arg2[%c1_606, %c0_607, %c0_608] : memref<2x25x68xf32, #tpu.memory_space<vmem>>, vector<1x1x68xf32>
    %821 = vector.shape_cast %820 : vector<1x1x68xf32> to vector<68xf32>
    %822 = vector.shape_cast %821 : vector<68xf32> to vector<1x68xf32>
    %823 = vector.broadcast %822 : vector<1x68xf32> to vector<16x68xf32>
    %824 = arith.mulf %819, %823 : vector<16x68xf32>
    %825 = arith.addf %815, %824 : vector<16x68xf32>
    %c1_609 = arith.constant 1 : index
    %c0_610 = arith.constant 0 : index
    %826 = vector.load %arg14[%c1_609, %c0_610] : memref<34x68xf32, #tpu.memory_space<vmem>>, vector<16x68xf32>
    %c1_611 = arith.constant 1 : index
    %c5_612 = arith.constant 5 : index
    %c0_613 = arith.constant 0 : index
    %827 = vector.load %arg2[%c1_611, %c5_612, %c0_613] : memref<2x25x68xf32, #tpu.memory_space<vmem>>, vector<1x1x68xf32>
    %828 = vector.shape_cast %827 : vector<1x1x68xf32> to vector<68xf32>
    %829 = vector.shape_cast %828 : vector<68xf32> to vector<1x68xf32>
    %830 = vector.broadcast %829 : vector<1x68xf32> to vector<16x68xf32>
    %831 = arith.mulf %826, %830 : vector<16x68xf32>
    %832 = arith.addf %825, %831 : vector<16x68xf32>
    %c2_614 = arith.constant 2 : index
    %c0_615 = arith.constant 0 : index
    %833 = vector.load %arg14[%c2_614, %c0_615] : memref<34x68xf32, #tpu.memory_space<vmem>>, vector<16x68xf32>
    %c1_616 = arith.constant 1 : index
    %c10_617 = arith.constant 10 : index
    %c0_618 = arith.constant 0 : index
    %834 = vector.load %arg2[%c1_616, %c10_617, %c0_618] : memref<2x25x68xf32, #tpu.memory_space<vmem>>, vector<1x1x68xf32>
    %835 = vector.shape_cast %834 : vector<1x1x68xf32> to vector<68xf32>
    %836 = vector.shape_cast %835 : vector<68xf32> to vector<1x68xf32>
    %837 = vector.broadcast %836 : vector<1x68xf32> to vector<16x68xf32>
    %838 = arith.mulf %833, %837 : vector<16x68xf32>
    %839 = arith.addf %832, %838 : vector<16x68xf32>
    %c3_619 = arith.constant 3 : index
    %c0_620 = arith.constant 0 : index
    %840 = vector.load %arg14[%c3_619, %c0_620] : memref<34x68xf32, #tpu.memory_space<vmem>>, vector<16x68xf32>
    %c1_621 = arith.constant 1 : index
    %c15_622 = arith.constant 15 : index
    %c0_623 = arith.constant 0 : index
    %841 = vector.load %arg2[%c1_621, %c15_622, %c0_623] : memref<2x25x68xf32, #tpu.memory_space<vmem>>, vector<1x1x68xf32>
    %842 = vector.shape_cast %841 : vector<1x1x68xf32> to vector<68xf32>
    %843 = vector.shape_cast %842 : vector<68xf32> to vector<1x68xf32>
    %844 = vector.broadcast %843 : vector<1x68xf32> to vector<16x68xf32>
    %845 = arith.mulf %840, %844 : vector<16x68xf32>
    %846 = arith.addf %839, %845 : vector<16x68xf32>
    %c4_624 = arith.constant 4 : index
    %c0_625 = arith.constant 0 : index
    %847 = vector.load %arg14[%c4_624, %c0_625] : memref<34x68xf32, #tpu.memory_space<vmem>>, vector<16x68xf32>
    %c1_626 = arith.constant 1 : index
    %c20_627 = arith.constant 20 : index
    %c0_628 = arith.constant 0 : index
    %848 = vector.load %arg2[%c1_626, %c20_627, %c0_628] : memref<2x25x68xf32, #tpu.memory_space<vmem>>, vector<1x1x68xf32>
    %849 = vector.shape_cast %848 : vector<1x1x68xf32> to vector<68xf32>
    %850 = vector.shape_cast %849 : vector<68xf32> to vector<1x68xf32>
    %851 = vector.broadcast %850 : vector<1x68xf32> to vector<16x68xf32>
    %852 = arith.mulf %847, %851 : vector<16x68xf32>
    %853 = arith.addf %846, %852 : vector<16x68xf32>
    %c1_629 = arith.constant 1 : index
    %c0_630 = arith.constant 0 : index
    %c8_631 = arith.constant 8 : index
    %854 = vector.load %arg11[%c1_629, %c0_630, %c8_631] : memref<2x20x86xf32, #tpu.memory_space<vmem>>, vector<1x20x68xf32>
    %855 = vector.shape_cast %854 : vector<1x20x68xf32> to vector<20x68xf32>
    %c0_632 = arith.constant 0 : index
    %c0_633 = arith.constant 0 : index
    %856 = vector.load %arg14[%c0_632, %c0_633] : memref<34x68xf32, #tpu.memory_space<vmem>>, vector<20x68xf32>
    tpu.vector_store %arg14[%c0_632, %c0_633], %855 {strides = array<i32>} : memref<34x68xf32, #tpu.memory_space<vmem>>, vector<20x68xf32>,
    %c0_634 = arith.constant 0 : index
    %c0_635 = arith.constant 0 : index
    %857 = vector.load %arg14[%c0_634, %c0_635] : memref<34x68xf32, #tpu.memory_space<vmem>>, vector<16x68xf32>
    %c1_636 = arith.constant 1 : index
    %c1_637 = arith.constant 1 : index
    %c0_638 = arith.constant 0 : index
    %858 = vector.load %arg2[%c1_636, %c1_637, %c0_638] : memref<2x25x68xf32, #tpu.memory_space<vmem>>, vector<1x1x68xf32>
    %859 = vector.shape_cast %858 : vector<1x1x68xf32> to vector<68xf32>
    %860 = vector.shape_cast %859 : vector<68xf32> to vector<1x68xf32>
    %861 = vector.broadcast %860 : vector<1x68xf32> to vector<16x68xf32>
    %862 = arith.mulf %857, %861 : vector<16x68xf32>
    %863 = arith.addf %853, %862 : vector<16x68xf32>
    %c1_639 = arith.constant 1 : index
    %c0_640 = arith.constant 0 : index
    %864 = vector.load %arg14[%c1_639, %c0_640] : memref<34x68xf32, #tpu.memory_space<vmem>>, vector<16x68xf32>
    %c1_641 = arith.constant 1 : index
    %c6_642 = arith.constant 6 : index
    %c0_643 = arith.constant 0 : index
    %865 = vector.load %arg2[%c1_641, %c6_642, %c0_643] : memref<2x25x68xf32, #tpu.memory_space<vmem>>, vector<1x1x68xf32>
    %866 = vector.shape_cast %865 : vector<1x1x68xf32> to vector<68xf32>
    %867 = vector.shape_cast %866 : vector<68xf32> to vector<1x68xf32>
    %868 = vector.broadcast %867 : vector<1x68xf32> to vector<16x68xf32>
    %869 = arith.mulf %864, %868 : vector<16x68xf32>
    %870 = arith.addf %863, %869 : vector<16x68xf32>
    %c2_644 = arith.constant 2 : index
    %c0_645 = arith.constant 0 : index
    %871 = vector.load %arg14[%c2_644, %c0_645] : memref<34x68xf32, #tpu.memory_space<vmem>>, vector<16x68xf32>
    %c1_646 = arith.constant 1 : index
    %c11_647 = arith.constant 11 : index
    %c0_648 = arith.constant 0 : index
    %872 = vector.load %arg2[%c1_646, %c11_647, %c0_648] : memref<2x25x68xf32, #tpu.memory_space<vmem>>, vector<1x1x68xf32>
    %873 = vector.shape_cast %872 : vector<1x1x68xf32> to vector<68xf32>
    %874 = vector.shape_cast %873 : vector<68xf32> to vector<1x68xf32>
    %875 = vector.broadcast %874 : vector<1x68xf32> to vector<16x68xf32>
    %876 = arith.mulf %871, %875 : vector<16x68xf32>
    %877 = arith.addf %870, %876 : vector<16x68xf32>
    %c3_649 = arith.constant 3 : index
    %c0_650 = arith.constant 0 : index
    %878 = vector.load %arg14[%c3_649, %c0_650] : memref<34x68xf32, #tpu.memory_space<vmem>>, vector<16x68xf32>
    %c1_651 = arith.constant 1 : index
    %c16_652 = arith.constant 16 : index
    %c0_653 = arith.constant 0 : index
    %879 = vector.load %arg2[%c1_651, %c16_652, %c0_653] : memref<2x25x68xf32, #tpu.memory_space<vmem>>, vector<1x1x68xf32>
    %880 = vector.shape_cast %879 : vector<1x1x68xf32> to vector<68xf32>
    %881 = vector.shape_cast %880 : vector<68xf32> to vector<1x68xf32>
    %882 = vector.broadcast %881 : vector<1x68xf32> to vector<16x68xf32>
    %883 = arith.mulf %878, %882 : vector<16x68xf32>
    %884 = arith.addf %877, %883 : vector<16x68xf32>
    %c4_654 = arith.constant 4 : index
    %c0_655 = arith.constant 0 : index
    %885 = vector.load %arg14[%c4_654, %c0_655] : memref<34x68xf32, #tpu.memory_space<vmem>>, vector<16x68xf32>
    %c1_656 = arith.constant 1 : index
    %c21_657 = arith.constant 21 : index
    %c0_658 = arith.constant 0 : index
    %886 = vector.load %arg2[%c1_656, %c21_657, %c0_658] : memref<2x25x68xf32, #tpu.memory_space<vmem>>, vector<1x1x68xf32>
    %887 = vector.shape_cast %886 : vector<1x1x68xf32> to vector<68xf32>
    %888 = vector.shape_cast %887 : vector<68xf32> to vector<1x68xf32>
    %889 = vector.broadcast %888 : vector<1x68xf32> to vector<16x68xf32>
    %890 = arith.mulf %885, %889 : vector<16x68xf32>
    %891 = arith.addf %884, %890 : vector<16x68xf32>
    %c1_659 = arith.constant 1 : index
    %c0_660 = arith.constant 0 : index
    %c9_661 = arith.constant 9 : index
    %892 = vector.load %arg11[%c1_659, %c0_660, %c9_661] : memref<2x20x86xf32, #tpu.memory_space<vmem>>, vector<1x20x68xf32>
    %893 = vector.shape_cast %892 : vector<1x20x68xf32> to vector<20x68xf32>
    %c0_662 = arith.constant 0 : index
    %c0_663 = arith.constant 0 : index
    %894 = vector.load %arg14[%c0_662, %c0_663] : memref<34x68xf32, #tpu.memory_space<vmem>>, vector<20x68xf32>
    tpu.vector_store %arg14[%c0_662, %c0_663], %893 {strides = array<i32>} : memref<34x68xf32, #tpu.memory_space<vmem>>, vector<20x68xf32>,
    %c0_664 = arith.constant 0 : index
    %c0_665 = arith.constant 0 : index
    %895 = vector.load %arg14[%c0_664, %c0_665] : memref<34x68xf32, #tpu.memory_space<vmem>>, vector<16x68xf32>
    %c1_666 = arith.constant 1 : index
    %c2_667 = arith.constant 2 : index
    %c0_668 = arith.constant 0 : index
    %896 = vector.load %arg2[%c1_666, %c2_667, %c0_668] : memref<2x25x68xf32, #tpu.memory_space<vmem>>, vector<1x1x68xf32>
    %897 = vector.shape_cast %896 : vector<1x1x68xf32> to vector<68xf32>
    %898 = vector.shape_cast %897 : vector<68xf32> to vector<1x68xf32>
    %899 = vector.broadcast %898 : vector<1x68xf32> to vector<16x68xf32>
    %900 = arith.mulf %895, %899 : vector<16x68xf32>
    %901 = arith.addf %891, %900 : vector<16x68xf32>
    %c1_669 = arith.constant 1 : index
    %c0_670 = arith.constant 0 : index
    %902 = vector.load %arg14[%c1_669, %c0_670] : memref<34x68xf32, #tpu.memory_space<vmem>>, vector<16x68xf32>
    %c1_671 = arith.constant 1 : index
    %c7_672 = arith.constant 7 : index
    %c0_673 = arith.constant 0 : index
    %903 = vector.load %arg2[%c1_671, %c7_672, %c0_673] : memref<2x25x68xf32, #tpu.memory_space<vmem>>, vector<1x1x68xf32>
    %904 = vector.shape_cast %903 : vector<1x1x68xf32> to vector<68xf32>
    %905 = vector.shape_cast %904 : vector<68xf32> to vector<1x68xf32>
    %906 = vector.broadcast %905 : vector<1x68xf32> to vector<16x68xf32>
    %907 = arith.mulf %902, %906 : vector<16x68xf32>
    %908 = arith.addf %901, %907 : vector<16x68xf32>
    %c2_674 = arith.constant 2 : index
    %c0_675 = arith.constant 0 : index
    %909 = vector.load %arg14[%c2_674, %c0_675] : memref<34x68xf32, #tpu.memory_space<vmem>>, vector<16x68xf32>
    %c1_676 = arith.constant 1 : index
    %c12_677 = arith.constant 12 : index
    %c0_678 = arith.constant 0 : index
    %910 = vector.load %arg2[%c1_676, %c12_677, %c0_678] : memref<2x25x68xf32, #tpu.memory_space<vmem>>, vector<1x1x68xf32>
    %911 = vector.shape_cast %910 : vector<1x1x68xf32> to vector<68xf32>
    %912 = vector.shape_cast %911 : vector<68xf32> to vector<1x68xf32>
    %913 = vector.broadcast %912 : vector<1x68xf32> to vector<16x68xf32>
    %914 = arith.mulf %909, %913 : vector<16x68xf32>
    %915 = arith.addf %908, %914 : vector<16x68xf32>
    %c3_679 = arith.constant 3 : index
    %c0_680 = arith.constant 0 : index
    %916 = vector.load %arg14[%c3_679, %c0_680] : memref<34x68xf32, #tpu.memory_space<vmem>>, vector<16x68xf32>
    %c1_681 = arith.constant 1 : index
    %c17_682 = arith.constant 17 : index
    %c0_683 = arith.constant 0 : index
    %917 = vector.load %arg2[%c1_681, %c17_682, %c0_683] : memref<2x25x68xf32, #tpu.memory_space<vmem>>, vector<1x1x68xf32>
    %918 = vector.shape_cast %917 : vector<1x1x68xf32> to vector<68xf32>
    %919 = vector.shape_cast %918 : vector<68xf32> to vector<1x68xf32>
    %920 = vector.broadcast %919 : vector<1x68xf32> to vector<16x68xf32>
    %921 = arith.mulf %916, %920 : vector<16x68xf32>
    %922 = arith.addf %915, %921 : vector<16x68xf32>
    %c4_684 = arith.constant 4 : index
    %c0_685 = arith.constant 0 : index
    %923 = vector.load %arg14[%c4_684, %c0_685] : memref<34x68xf32, #tpu.memory_space<vmem>>, vector<16x68xf32>
    %c1_686 = arith.constant 1 : index
    %c22_687 = arith.constant 22 : index
    %c0_688 = arith.constant 0 : index
    %924 = vector.load %arg2[%c1_686, %c22_687, %c0_688] : memref<2x25x68xf32, #tpu.memory_space<vmem>>, vector<1x1x68xf32>
    %925 = vector.shape_cast %924 : vector<1x1x68xf32> to vector<68xf32>
    %926 = vector.shape_cast %925 : vector<68xf32> to vector<1x68xf32>
    %927 = vector.broadcast %926 : vector<1x68xf32> to vector<16x68xf32>
    %928 = arith.mulf %923, %927 : vector<16x68xf32>
    %929 = arith.addf %922, %928 : vector<16x68xf32>
    %c1_689 = arith.constant 1 : index
    %c0_690 = arith.constant 0 : index
    %c10_691 = arith.constant 10 : index
    %930 = vector.load %arg11[%c1_689, %c0_690, %c10_691] : memref<2x20x86xf32, #tpu.memory_space<vmem>>, vector<1x20x68xf32>
    %931 = vector.shape_cast %930 : vector<1x20x68xf32> to vector<20x68xf32>
    %c0_692 = arith.constant 0 : index
    %c0_693 = arith.constant 0 : index
    %932 = vector.load %arg14[%c0_692, %c0_693] : memref<34x68xf32, #tpu.memory_space<vmem>>, vector<20x68xf32>
    tpu.vector_store %arg14[%c0_692, %c0_693], %931 {strides = array<i32>} : memref<34x68xf32, #tpu.memory_space<vmem>>, vector<20x68xf32>,
    %c0_694 = arith.constant 0 : index
    %c0_695 = arith.constant 0 : index
    %933 = vector.load %arg14[%c0_694, %c0_695] : memref<34x68xf32, #tpu.memory_space<vmem>>, vector<16x68xf32>
    %c1_696 = arith.constant 1 : index
    %c3_697 = arith.constant 3 : index
    %c0_698 = arith.constant 0 : index
    %934 = vector.load %arg2[%c1_696, %c3_697, %c0_698] : memref<2x25x68xf32, #tpu.memory_space<vmem>>, vector<1x1x68xf32>
    %935 = vector.shape_cast %934 : vector<1x1x68xf32> to vector<68xf32>
    %936 = vector.shape_cast %935 : vector<68xf32> to vector<1x68xf32>
    %937 = vector.broadcast %936 : vector<1x68xf32> to vector<16x68xf32>
    %938 = arith.mulf %933, %937 : vector<16x68xf32>
    %939 = arith.addf %929, %938 : vector<16x68xf32>
    %c1_699 = arith.constant 1 : index
    %c0_700 = arith.constant 0 : index
    %940 = vector.load %arg14[%c1_699, %c0_700] : memref<34x68xf32, #tpu.memory_space<vmem>>, vector<16x68xf32>
    %c1_701 = arith.constant 1 : index
    %c8_702 = arith.constant 8 : index
    %c0_703 = arith.constant 0 : index
    %941 = vector.load %arg2[%c1_701, %c8_702, %c0_703] : memref<2x25x68xf32, #tpu.memory_space<vmem>>, vector<1x1x68xf32>
    %942 = vector.shape_cast %941 : vector<1x1x68xf32> to vector<68xf32>
    %943 = vector.shape_cast %942 : vector<68xf32> to vector<1x68xf32>
    %944 = vector.broadcast %943 : vector<1x68xf32> to vector<16x68xf32>
    %945 = arith.mulf %940, %944 : vector<16x68xf32>
    %946 = arith.addf %939, %945 : vector<16x68xf32>
    %c2_704 = arith.constant 2 : index
    %c0_705 = arith.constant 0 : index
    %947 = vector.load %arg14[%c2_704, %c0_705] : memref<34x68xf32, #tpu.memory_space<vmem>>, vector<16x68xf32>
    %c1_706 = arith.constant 1 : index
    %c13_707 = arith.constant 13 : index
    %c0_708 = arith.constant 0 : index
    %948 = vector.load %arg2[%c1_706, %c13_707, %c0_708] : memref<2x25x68xf32, #tpu.memory_space<vmem>>, vector<1x1x68xf32>
    %949 = vector.shape_cast %948 : vector<1x1x68xf32> to vector<68xf32>
    %950 = vector.shape_cast %949 : vector<68xf32> to vector<1x68xf32>
    %951 = vector.broadcast %950 : vector<1x68xf32> to vector<16x68xf32>
    %952 = arith.mulf %947, %951 : vector<16x68xf32>
    %953 = arith.addf %946, %952 : vector<16x68xf32>
    %c3_709 = arith.constant 3 : index
    %c0_710 = arith.constant 0 : index
    %954 = vector.load %arg14[%c3_709, %c0_710] : memref<34x68xf32, #tpu.memory_space<vmem>>, vector<16x68xf32>
    %c1_711 = arith.constant 1 : index
    %c18_712 = arith.constant 18 : index
    %c0_713 = arith.constant 0 : index
    %955 = vector.load %arg2[%c1_711, %c18_712, %c0_713] : memref<2x25x68xf32, #tpu.memory_space<vmem>>, vector<1x1x68xf32>
    %956 = vector.shape_cast %955 : vector<1x1x68xf32> to vector<68xf32>
    %957 = vector.shape_cast %956 : vector<68xf32> to vector<1x68xf32>
    %958 = vector.broadcast %957 : vector<1x68xf32> to vector<16x68xf32>
    %959 = arith.mulf %954, %958 : vector<16x68xf32>
    %960 = arith.addf %953, %959 : vector<16x68xf32>
    %c4_714 = arith.constant 4 : index
    %c0_715 = arith.constant 0 : index
    %961 = vector.load %arg14[%c4_714, %c0_715] : memref<34x68xf32, #tpu.memory_space<vmem>>, vector<16x68xf32>
    %c1_716 = arith.constant 1 : index
    %c23_717 = arith.constant 23 : index
    %c0_718 = arith.constant 0 : index
    %962 = vector.load %arg2[%c1_716, %c23_717, %c0_718] : memref<2x25x68xf32, #tpu.memory_space<vmem>>, vector<1x1x68xf32>
    %963 = vector.shape_cast %962 : vector<1x1x68xf32> to vector<68xf32>
    %964 = vector.shape_cast %963 : vector<68xf32> to vector<1x68xf32>
    %965 = vector.broadcast %964 : vector<1x68xf32> to vector<16x68xf32>
    %966 = arith.mulf %961, %965 : vector<16x68xf32>
    %967 = arith.addf %960, %966 : vector<16x68xf32>
    %c1_719 = arith.constant 1 : index
    %c0_720 = arith.constant 0 : index
    %c11_721 = arith.constant 11 : index
    %968 = vector.load %arg11[%c1_719, %c0_720, %c11_721] : memref<2x20x86xf32, #tpu.memory_space<vmem>>, vector<1x20x68xf32>
    %969 = vector.shape_cast %968 : vector<1x20x68xf32> to vector<20x68xf32>
    %c0_722 = arith.constant 0 : index
    %c0_723 = arith.constant 0 : index
    %970 = vector.load %arg14[%c0_722, %c0_723] : memref<34x68xf32, #tpu.memory_space<vmem>>, vector<20x68xf32>
    tpu.vector_store %arg14[%c0_722, %c0_723], %969 {strides = array<i32>} : memref<34x68xf32, #tpu.memory_space<vmem>>, vector<20x68xf32>,
    %c0_724 = arith.constant 0 : index
    %c0_725 = arith.constant 0 : index
    %971 = vector.load %arg14[%c0_724, %c0_725] : memref<34x68xf32, #tpu.memory_space<vmem>>, vector<16x68xf32>
    %c1_726 = arith.constant 1 : index
    %c4_727 = arith.constant 4 : index
    %c0_728 = arith.constant 0 : index
    %972 = vector.load %arg2[%c1_726, %c4_727, %c0_728] : memref<2x25x68xf32, #tpu.memory_space<vmem>>, vector<1x1x68xf32>
    %973 = vector.shape_cast %972 : vector<1x1x68xf32> to vector<68xf32>
    %974 = vector.shape_cast %973 : vector<68xf32> to vector<1x68xf32>
    %975 = vector.broadcast %974 : vector<1x68xf32> to vector<16x68xf32>
    %976 = arith.mulf %971, %975 : vector<16x68xf32>
    %977 = arith.addf %967, %976 : vector<16x68xf32>
    %c1_729 = arith.constant 1 : index
    %c0_730 = arith.constant 0 : index
    %978 = vector.load %arg14[%c1_729, %c0_730] : memref<34x68xf32, #tpu.memory_space<vmem>>, vector<16x68xf32>
    %c1_731 = arith.constant 1 : index
    %c9_732 = arith.constant 9 : index
    %c0_733 = arith.constant 0 : index
    %979 = vector.load %arg2[%c1_731, %c9_732, %c0_733] : memref<2x25x68xf32, #tpu.memory_space<vmem>>, vector<1x1x68xf32>
    %980 = vector.shape_cast %979 : vector<1x1x68xf32> to vector<68xf32>
    %981 = vector.shape_cast %980 : vector<68xf32> to vector<1x68xf32>
    %982 = vector.broadcast %981 : vector<1x68xf32> to vector<16x68xf32>
    %983 = arith.mulf %978, %982 : vector<16x68xf32>
    %984 = arith.addf %977, %983 : vector<16x68xf32>
    %c2_734 = arith.constant 2 : index
    %c0_735 = arith.constant 0 : index
    %985 = vector.load %arg14[%c2_734, %c0_735] : memref<34x68xf32, #tpu.memory_space<vmem>>, vector<16x68xf32>
    %c1_736 = arith.constant 1 : index
    %c14_737 = arith.constant 14 : index
    %c0_738 = arith.constant 0 : index
    %986 = vector.load %arg2[%c1_736, %c14_737, %c0_738] : memref<2x25x68xf32, #tpu.memory_space<vmem>>, vector<1x1x68xf32>
    %987 = vector.shape_cast %986 : vector<1x1x68xf32> to vector<68xf32>
    %988 = vector.shape_cast %987 : vector<68xf32> to vector<1x68xf32>
    %989 = vector.broadcast %988 : vector<1x68xf32> to vector<16x68xf32>
    %990 = arith.mulf %985, %989 : vector<16x68xf32>
    %991 = arith.addf %984, %990 : vector<16x68xf32>
    %c3_739 = arith.constant 3 : index
    %c0_740 = arith.constant 0 : index
    %992 = vector.load %arg14[%c3_739, %c0_740] : memref<34x68xf32, #tpu.memory_space<vmem>>, vector<16x68xf32>
    %c1_741 = arith.constant 1 : index
    %c19_742 = arith.constant 19 : index
    %c0_743 = arith.constant 0 : index
    %993 = vector.load %arg2[%c1_741, %c19_742, %c0_743] : memref<2x25x68xf32, #tpu.memory_space<vmem>>, vector<1x1x68xf32>
    %994 = vector.shape_cast %993 : vector<1x1x68xf32> to vector<68xf32>
    %995 = vector.shape_cast %994 : vector<68xf32> to vector<1x68xf32>
    %996 = vector.broadcast %995 : vector<1x68xf32> to vector<16x68xf32>
    %997 = arith.mulf %992, %996 : vector<16x68xf32>
    %998 = arith.addf %991, %997 : vector<16x68xf32>
    %c4_744 = arith.constant 4 : index
    %c0_745 = arith.constant 0 : index
    %999 = vector.load %arg14[%c4_744, %c0_745] : memref<34x68xf32, #tpu.memory_space<vmem>>, vector<16x68xf32>
    %c1_746 = arith.constant 1 : index
    %c24_747 = arith.constant 24 : index
    %c0_748 = arith.constant 0 : index
    %1000 = vector.load %arg2[%c1_746, %c24_747, %c0_748] : memref<2x25x68xf32, #tpu.memory_space<vmem>>, vector<1x1x68xf32>
    %1001 = vector.shape_cast %1000 : vector<1x1x68xf32> to vector<68xf32>
    %1002 = vector.shape_cast %1001 : vector<68xf32> to vector<1x68xf32>
    %1003 = vector.broadcast %1002 : vector<1x68xf32> to vector<16x68xf32>
    %1004 = arith.mulf %999, %1003 : vector<16x68xf32>
    %1005 = arith.addf %998, %1004 : vector<16x68xf32>
    %c1_749 = arith.constant 1 : index
    %c0_750 = arith.constant 0 : index
    %1006 = vector.load %arg3[%c1_749, %c0_750] : memref<2x68xf32, #tpu.memory_space<vmem>>, vector<1x68xf32>
    %1007 = vector.shape_cast %1006 : vector<1x68xf32> to vector<68xf32>
    %1008 = vector.shape_cast %1007 : vector<68xf32> to vector<1x68xf32>
    %1009 = vector.broadcast %1008 : vector<1x68xf32> to vector<16x68xf32>
    %1010 = arith.addf %1005, %1009 : vector<16x68xf32>
    %c9_751 = arith.constant 9 : index
    %c9_752 = arith.constant 9 : index
    %1011 = vector.load %arg12[%c9_751, %c9_752] : memref<34x86xf32, #tpu.memory_space<vmem>>, vector<16x68xf32>
    tpu.vector_store %arg12[%c9_751, %c9_752], %1010 {strides = array<i32>} : memref<34x86xf32, #tpu.memory_space<vmem>>, vector<16x68xf32>,
    %cst_753 = arith.constant 0.000000e+00 : f32
    %1012 = vector.broadcast %cst_753 : f32 to vector<16x68xf32>
    %c0_754 = arith.constant 0 : index
    %c0_755 = arith.constant 0 : index
    %1013 = vector.load %arg12[%c0_754, %c0_755] : memref<34x86xf32, #tpu.memory_space<vmem>>, vector<34x68xf32>
    %c0_756 = arith.constant 0 : index
    %c0_757 = arith.constant 0 : index
    %1014 = vector.load %arg14[%c0_756, %c0_757] : memref<34x68xf32, #tpu.memory_space<vmem>>, vector<34x68xf32>
    tpu.vector_store %arg14[%c0_756, %c0_757], %1013 {strides = array<i32>} : memref<34x68xf32, #tpu.memory_space<vmem>>, vector<34x68xf32>,
    %c0_758 = arith.constant 0 : index
    %c0_759 = arith.constant 0 : index
    %1015 = vector.load %arg14[%c0_758, %c0_759] : memref<34x68xf32, #tpu.memory_space<vmem>>, vector<16x68xf32>
    %c1_760 = arith.constant 1 : index
    %c0_761 = arith.constant 0 : index
    %c0_762 = arith.constant 0 : index
    %1016 = vector.load %arg4[%c1_760, %c0_761, %c0_762] : memref<2x49x68xf32, #tpu.memory_space<vmem>>, vector<1x1x68xf32>
    %1017 = vector.shape_cast %1016 : vector<1x1x68xf32> to vector<68xf32>
    %1018 = vector.shape_cast %1017 : vector<68xf32> to vector<1x68xf32>
    %1019 = vector.broadcast %1018 : vector<1x68xf32> to vector<16x68xf32>
    %1020 = arith.mulf %1015, %1019 : vector<16x68xf32>
    %1021 = arith.addf %1012, %1020 : vector<16x68xf32>
    %c3_763 = arith.constant 3 : index
    %c0_764 = arith.constant 0 : index
    %1022 = vector.load %arg14[%c3_763, %c0_764] : memref<34x68xf32, #tpu.memory_space<vmem>>, vector<16x68xf32>
    %c1_765 = arith.constant 1 : index
    %c7_766 = arith.constant 7 : index
    %c0_767 = arith.constant 0 : index
    %1023 = vector.load %arg4[%c1_765, %c7_766, %c0_767] : memref<2x49x68xf32, #tpu.memory_space<vmem>>, vector<1x1x68xf32>
    %1024 = vector.shape_cast %1023 : vector<1x1x68xf32> to vector<68xf32>
    %1025 = vector.shape_cast %1024 : vector<68xf32> to vector<1x68xf32>
    %1026 = vector.broadcast %1025 : vector<1x68xf32> to vector<16x68xf32>
    %1027 = arith.mulf %1022, %1026 : vector<16x68xf32>
    %1028 = arith.addf %1021, %1027 : vector<16x68xf32>
    %c6_768 = arith.constant 6 : index
    %c0_769 = arith.constant 0 : index
    %1029 = vector.load %arg14[%c6_768, %c0_769] : memref<34x68xf32, #tpu.memory_space<vmem>>, vector<16x68xf32>
    %c1_770 = arith.constant 1 : index
    %c14_771 = arith.constant 14 : index
    %c0_772 = arith.constant 0 : index
    %1030 = vector.load %arg4[%c1_770, %c14_771, %c0_772] : memref<2x49x68xf32, #tpu.memory_space<vmem>>, vector<1x1x68xf32>
    %1031 = vector.shape_cast %1030 : vector<1x1x68xf32> to vector<68xf32>
    %1032 = vector.shape_cast %1031 : vector<68xf32> to vector<1x68xf32>
    %1033 = vector.broadcast %1032 : vector<1x68xf32> to vector<16x68xf32>
    %1034 = arith.mulf %1029, %1033 : vector<16x68xf32>
    %1035 = arith.addf %1028, %1034 : vector<16x68xf32>
    %c9_773 = arith.constant 9 : index
    %c0_774 = arith.constant 0 : index
    %1036 = vector.load %arg14[%c9_773, %c0_774] : memref<34x68xf32, #tpu.memory_space<vmem>>, vector<16x68xf32>
    %c1_775 = arith.constant 1 : index
    %c21_776 = arith.constant 21 : index
    %c0_777 = arith.constant 0 : index
    %1037 = vector.load %arg4[%c1_775, %c21_776, %c0_777] : memref<2x49x68xf32, #tpu.memory_space<vmem>>, vector<1x1x68xf32>
    %1038 = vector.shape_cast %1037 : vector<1x1x68xf32> to vector<68xf32>
    %1039 = vector.shape_cast %1038 : vector<68xf32> to vector<1x68xf32>
    %1040 = vector.broadcast %1039 : vector<1x68xf32> to vector<16x68xf32>
    %1041 = arith.mulf %1036, %1040 : vector<16x68xf32>
    %1042 = arith.addf %1035, %1041 : vector<16x68xf32>
    %c12_778 = arith.constant 12 : index
    %c0_779 = arith.constant 0 : index
    %1043 = vector.load %arg14[%c12_778, %c0_779] : memref<34x68xf32, #tpu.memory_space<vmem>>, vector<16x68xf32>
    %c1_780 = arith.constant 1 : index
    %c28_781 = arith.constant 28 : index
    %c0_782 = arith.constant 0 : index
    %1044 = vector.load %arg4[%c1_780, %c28_781, %c0_782] : memref<2x49x68xf32, #tpu.memory_space<vmem>>, vector<1x1x68xf32>
    %1045 = vector.shape_cast %1044 : vector<1x1x68xf32> to vector<68xf32>
    %1046 = vector.shape_cast %1045 : vector<68xf32> to vector<1x68xf32>
    %1047 = vector.broadcast %1046 : vector<1x68xf32> to vector<16x68xf32>
    %1048 = arith.mulf %1043, %1047 : vector<16x68xf32>
    %1049 = arith.addf %1042, %1048 : vector<16x68xf32>
    %c15_783 = arith.constant 15 : index
    %c0_784 = arith.constant 0 : index
    %1050 = vector.load %arg14[%c15_783, %c0_784] : memref<34x68xf32, #tpu.memory_space<vmem>>, vector<16x68xf32>
    %c1_785 = arith.constant 1 : index
    %c35_786 = arith.constant 35 : index
    %c0_787 = arith.constant 0 : index
    %1051 = vector.load %arg4[%c1_785, %c35_786, %c0_787] : memref<2x49x68xf32, #tpu.memory_space<vmem>>, vector<1x1x68xf32>
    %1052 = vector.shape_cast %1051 : vector<1x1x68xf32> to vector<68xf32>
    %1053 = vector.shape_cast %1052 : vector<68xf32> to vector<1x68xf32>
    %1054 = vector.broadcast %1053 : vector<1x68xf32> to vector<16x68xf32>
    %1055 = arith.mulf %1050, %1054 : vector<16x68xf32>
    %1056 = arith.addf %1049, %1055 : vector<16x68xf32>
    %c18_788 = arith.constant 18 : index
    %c0_789 = arith.constant 0 : index
    %1057 = vector.load %arg14[%c18_788, %c0_789] : memref<34x68xf32, #tpu.memory_space<vmem>>, vector<16x68xf32>
    %c1_790 = arith.constant 1 : index
    %c42_791 = arith.constant 42 : index
    %c0_792 = arith.constant 0 : index
    %1058 = vector.load %arg4[%c1_790, %c42_791, %c0_792] : memref<2x49x68xf32, #tpu.memory_space<vmem>>, vector<1x1x68xf32>
    %1059 = vector.shape_cast %1058 : vector<1x1x68xf32> to vector<68xf32>
    %1060 = vector.shape_cast %1059 : vector<68xf32> to vector<1x68xf32>
    %1061 = vector.broadcast %1060 : vector<1x68xf32> to vector<16x68xf32>
    %1062 = arith.mulf %1057, %1061 : vector<16x68xf32>
    %1063 = arith.addf %1056, %1062 : vector<16x68xf32>
    %c0_793 = arith.constant 0 : index
    %c3_794 = arith.constant 3 : index
    %1064 = vector.load %arg12[%c0_793, %c3_794] : memref<34x86xf32, #tpu.memory_space<vmem>>, vector<34x68xf32>
    %c0_795 = arith.constant 0 : index
    %c0_796 = arith.constant 0 : index
    %1065 = vector.load %arg14[%c0_795, %c0_796] : memref<34x68xf32, #tpu.memory_space<vmem>>, vector<34x68xf32>
    tpu.vector_store %arg14[%c0_795, %c0_796], %1064 {strides = array<i32>} : memref<34x68xf32, #tpu.memory_space<vmem>>, vector<34x68xf32>,
    %c0_797 = arith.constant 0 : index
    %c0_798 = arith.constant 0 : index
    %1066 = vector.load %arg14[%c0_797, %c0_798] : memref<34x68xf32, #tpu.memory_space<vmem>>, vector<16x68xf32>
    %c1_799 = arith.constant 1 : index
    %c1_800 = arith.constant 1 : index
    %c0_801 = arith.constant 0 : index
    %1067 = vector.load %arg4[%c1_799, %c1_800, %c0_801] : memref<2x49x68xf32, #tpu.memory_space<vmem>>, vector<1x1x68xf32>
    %1068 = vector.shape_cast %1067 : vector<1x1x68xf32> to vector<68xf32>
    %1069 = vector.shape_cast %1068 : vector<68xf32> to vector<1x68xf32>
    %1070 = vector.broadcast %1069 : vector<1x68xf32> to vector<16x68xf32>
    %1071 = arith.mulf %1066, %1070 : vector<16x68xf32>
    %1072 = arith.addf %1063, %1071 : vector<16x68xf32>
    %c3_802 = arith.constant 3 : index
    %c0_803 = arith.constant 0 : index
    %1073 = vector.load %arg14[%c3_802, %c0_803] : memref<34x68xf32, #tpu.memory_space<vmem>>, vector<16x68xf32>
    %c1_804 = arith.constant 1 : index
    %c8_805 = arith.constant 8 : index
    %c0_806 = arith.constant 0 : index
    %1074 = vector.load %arg4[%c1_804, %c8_805, %c0_806] : memref<2x49x68xf32, #tpu.memory_space<vmem>>, vector<1x1x68xf32>
    %1075 = vector.shape_cast %1074 : vector<1x1x68xf32> to vector<68xf32>
    %1076 = vector.shape_cast %1075 : vector<68xf32> to vector<1x68xf32>
    %1077 = vector.broadcast %1076 : vector<1x68xf32> to vector<16x68xf32>
    %1078 = arith.mulf %1073, %1077 : vector<16x68xf32>
    %1079 = arith.addf %1072, %1078 : vector<16x68xf32>
    %c6_807 = arith.constant 6 : index
    %c0_808 = arith.constant 0 : index
    %1080 = vector.load %arg14[%c6_807, %c0_808] : memref<34x68xf32, #tpu.memory_space<vmem>>, vector<16x68xf32>
    %c1_809 = arith.constant 1 : index
    %c15_810 = arith.constant 15 : index
    %c0_811 = arith.constant 0 : index
    %1081 = vector.load %arg4[%c1_809, %c15_810, %c0_811] : memref<2x49x68xf32, #tpu.memory_space<vmem>>, vector<1x1x68xf32>
    %1082 = vector.shape_cast %1081 : vector<1x1x68xf32> to vector<68xf32>
    %1083 = vector.shape_cast %1082 : vector<68xf32> to vector<1x68xf32>
    %1084 = vector.broadcast %1083 : vector<1x68xf32> to vector<16x68xf32>
    %1085 = arith.mulf %1080, %1084 : vector<16x68xf32>
    %1086 = arith.addf %1079, %1085 : vector<16x68xf32>
    %c9_812 = arith.constant 9 : index
    %c0_813 = arith.constant 0 : index
    %1087 = vector.load %arg14[%c9_812, %c0_813] : memref<34x68xf32, #tpu.memory_space<vmem>>, vector<16x68xf32>
    %c1_814 = arith.constant 1 : index
    %c22_815 = arith.constant 22 : index
    %c0_816 = arith.constant 0 : index
    %1088 = vector.load %arg4[%c1_814, %c22_815, %c0_816] : memref<2x49x68xf32, #tpu.memory_space<vmem>>, vector<1x1x68xf32>
    %1089 = vector.shape_cast %1088 : vector<1x1x68xf32> to vector<68xf32>
    %1090 = vector.shape_cast %1089 : vector<68xf32> to vector<1x68xf32>
    %1091 = vector.broadcast %1090 : vector<1x68xf32> to vector<16x68xf32>
    %1092 = arith.mulf %1087, %1091 : vector<16x68xf32>
    %1093 = arith.addf %1086, %1092 : vector<16x68xf32>
    %c12_817 = arith.constant 12 : index
    %c0_818 = arith.constant 0 : index
    %1094 = vector.load %arg14[%c12_817, %c0_818] : memref<34x68xf32, #tpu.memory_space<vmem>>, vector<16x68xf32>
    %c1_819 = arith.constant 1 : index
    %c29_820 = arith.constant 29 : index
    %c0_821 = arith.constant 0 : index
    %1095 = vector.load %arg4[%c1_819, %c29_820, %c0_821] : memref<2x49x68xf32, #tpu.memory_space<vmem>>, vector<1x1x68xf32>
    %1096 = vector.shape_cast %1095 : vector<1x1x68xf32> to vector<68xf32>
    %1097 = vector.shape_cast %1096 : vector<68xf32> to vector<1x68xf32>
    %1098 = vector.broadcast %1097 : vector<1x68xf32> to vector<16x68xf32>
    %1099 = arith.mulf %1094, %1098 : vector<16x68xf32>
    %1100 = arith.addf %1093, %1099 : vector<16x68xf32>
    %c15_822 = arith.constant 15 : index
    %c0_823 = arith.constant 0 : index
    %1101 = vector.load %arg14[%c15_822, %c0_823] : memref<34x68xf32, #tpu.memory_space<vmem>>, vector<16x68xf32>
    %c1_824 = arith.constant 1 : index
    %c36_825 = arith.constant 36 : index
    %c0_826 = arith.constant 0 : index
    %1102 = vector.load %arg4[%c1_824, %c36_825, %c0_826] : memref<2x49x68xf32, #tpu.memory_space<vmem>>, vector<1x1x68xf32>
    %1103 = vector.shape_cast %1102 : vector<1x1x68xf32> to vector<68xf32>
    %1104 = vector.shape_cast %1103 : vector<68xf32> to vector<1x68xf32>
    %1105 = vector.broadcast %1104 : vector<1x68xf32> to vector<16x68xf32>
    %1106 = arith.mulf %1101, %1105 : vector<16x68xf32>
    %1107 = arith.addf %1100, %1106 : vector<16x68xf32>
    %c18_827 = arith.constant 18 : index
    %c0_828 = arith.constant 0 : index
    %1108 = vector.load %arg14[%c18_827, %c0_828] : memref<34x68xf32, #tpu.memory_space<vmem>>, vector<16x68xf32>
    %c1_829 = arith.constant 1 : index
    %c43_830 = arith.constant 43 : index
    %c0_831 = arith.constant 0 : index
    %1109 = vector.load %arg4[%c1_829, %c43_830, %c0_831] : memref<2x49x68xf32, #tpu.memory_space<vmem>>, vector<1x1x68xf32>
    %1110 = vector.shape_cast %1109 : vector<1x1x68xf32> to vector<68xf32>
    %1111 = vector.shape_cast %1110 : vector<68xf32> to vector<1x68xf32>
    %1112 = vector.broadcast %1111 : vector<1x68xf32> to vector<16x68xf32>
    %1113 = arith.mulf %1108, %1112 : vector<16x68xf32>
    %1114 = arith.addf %1107, %1113 : vector<16x68xf32>
    %c0_832 = arith.constant 0 : index
    %c6_833 = arith.constant 6 : index
    %1115 = vector.load %arg12[%c0_832, %c6_833] : memref<34x86xf32, #tpu.memory_space<vmem>>, vector<34x68xf32>
    %c0_834 = arith.constant 0 : index
    %c0_835 = arith.constant 0 : index
    %1116 = vector.load %arg14[%c0_834, %c0_835] : memref<34x68xf32, #tpu.memory_space<vmem>>, vector<34x68xf32>
    tpu.vector_store %arg14[%c0_834, %c0_835], %1115 {strides = array<i32>} : memref<34x68xf32, #tpu.memory_space<vmem>>, vector<34x68xf32>,
    %c0_836 = arith.constant 0 : index
    %c0_837 = arith.constant 0 : index
    %1117 = vector.load %arg14[%c0_836, %c0_837] : memref<34x68xf32, #tpu.memory_space<vmem>>, vector<16x68xf32>
    %c1_838 = arith.constant 1 : index
    %c2_839 = arith.constant 2 : index
    %c0_840 = arith.constant 0 : index
    %1118 = vector.load %arg4[%c1_838, %c2_839, %c0_840] : memref<2x49x68xf32, #tpu.memory_space<vmem>>, vector<1x1x68xf32>
    %1119 = vector.shape_cast %1118 : vector<1x1x68xf32> to vector<68xf32>
    %1120 = vector.shape_cast %1119 : vector<68xf32> to vector<1x68xf32>
    %1121 = vector.broadcast %1120 : vector<1x68xf32> to vector<16x68xf32>
    %1122 = arith.mulf %1117, %1121 : vector<16x68xf32>
    %1123 = arith.addf %1114, %1122 : vector<16x68xf32>
    %c3_841 = arith.constant 3 : index
    %c0_842 = arith.constant 0 : index
    %1124 = vector.load %arg14[%c3_841, %c0_842] : memref<34x68xf32, #tpu.memory_space<vmem>>, vector<16x68xf32>
    %c1_843 = arith.constant 1 : index
    %c9_844 = arith.constant 9 : index
    %c0_845 = arith.constant 0 : index
    %1125 = vector.load %arg4[%c1_843, %c9_844, %c0_845] : memref<2x49x68xf32, #tpu.memory_space<vmem>>, vector<1x1x68xf32>
    %1126 = vector.shape_cast %1125 : vector<1x1x68xf32> to vector<68xf32>
    %1127 = vector.shape_cast %1126 : vector<68xf32> to vector<1x68xf32>
    %1128 = vector.broadcast %1127 : vector<1x68xf32> to vector<16x68xf32>
    %1129 = arith.mulf %1124, %1128 : vector<16x68xf32>
    %1130 = arith.addf %1123, %1129 : vector<16x68xf32>
    %c6_846 = arith.constant 6 : index
    %c0_847 = arith.constant 0 : index
    %1131 = vector.load %arg14[%c6_846, %c0_847] : memref<34x68xf32, #tpu.memory_space<vmem>>, vector<16x68xf32>
    %c1_848 = arith.constant 1 : index
    %c16_849 = arith.constant 16 : index
    %c0_850 = arith.constant 0 : index
    %1132 = vector.load %arg4[%c1_848, %c16_849, %c0_850] : memref<2x49x68xf32, #tpu.memory_space<vmem>>, vector<1x1x68xf32>
    %1133 = vector.shape_cast %1132 : vector<1x1x68xf32> to vector<68xf32>
    %1134 = vector.shape_cast %1133 : vector<68xf32> to vector<1x68xf32>
    %1135 = vector.broadcast %1134 : vector<1x68xf32> to vector<16x68xf32>
    %1136 = arith.mulf %1131, %1135 : vector<16x68xf32>
    %1137 = arith.addf %1130, %1136 : vector<16x68xf32>
    %c9_851 = arith.constant 9 : index
    %c0_852 = arith.constant 0 : index
    %1138 = vector.load %arg14[%c9_851, %c0_852] : memref<34x68xf32, #tpu.memory_space<vmem>>, vector<16x68xf32>
    %c1_853 = arith.constant 1 : index
    %c23_854 = arith.constant 23 : index
    %c0_855 = arith.constant 0 : index
    %1139 = vector.load %arg4[%c1_853, %c23_854, %c0_855] : memref<2x49x68xf32, #tpu.memory_space<vmem>>, vector<1x1x68xf32>
    %1140 = vector.shape_cast %1139 : vector<1x1x68xf32> to vector<68xf32>
    %1141 = vector.shape_cast %1140 : vector<68xf32> to vector<1x68xf32>
    %1142 = vector.broadcast %1141 : vector<1x68xf32> to vector<16x68xf32>
    %1143 = arith.mulf %1138, %1142 : vector<16x68xf32>
    %1144 = arith.addf %1137, %1143 : vector<16x68xf32>
    %c12_856 = arith.constant 12 : index
    %c0_857 = arith.constant 0 : index
    %1145 = vector.load %arg14[%c12_856, %c0_857] : memref<34x68xf32, #tpu.memory_space<vmem>>, vector<16x68xf32>
    %c1_858 = arith.constant 1 : index
    %c30_859 = arith.constant 30 : index
    %c0_860 = arith.constant 0 : index
    %1146 = vector.load %arg4[%c1_858, %c30_859, %c0_860] : memref<2x49x68xf32, #tpu.memory_space<vmem>>, vector<1x1x68xf32>
    %1147 = vector.shape_cast %1146 : vector<1x1x68xf32> to vector<68xf32>
    %1148 = vector.shape_cast %1147 : vector<68xf32> to vector<1x68xf32>
    %1149 = vector.broadcast %1148 : vector<1x68xf32> to vector<16x68xf32>
    %1150 = arith.mulf %1145, %1149 : vector<16x68xf32>
    %1151 = arith.addf %1144, %1150 : vector<16x68xf32>
    %c15_861 = arith.constant 15 : index
    %c0_862 = arith.constant 0 : index
    %1152 = vector.load %arg14[%c15_861, %c0_862] : memref<34x68xf32, #tpu.memory_space<vmem>>, vector<16x68xf32>
    %c1_863 = arith.constant 1 : index
    %c37_864 = arith.constant 37 : index
    %c0_865 = arith.constant 0 : index
    %1153 = vector.load %arg4[%c1_863, %c37_864, %c0_865] : memref<2x49x68xf32, #tpu.memory_space<vmem>>, vector<1x1x68xf32>
    %1154 = vector.shape_cast %1153 : vector<1x1x68xf32> to vector<68xf32>
    %1155 = vector.shape_cast %1154 : vector<68xf32> to vector<1x68xf32>
    %1156 = vector.broadcast %1155 : vector<1x68xf32> to vector<16x68xf32>
    %1157 = arith.mulf %1152, %1156 : vector<16x68xf32>
    %1158 = arith.addf %1151, %1157 : vector<16x68xf32>
    %c18_866 = arith.constant 18 : index
    %c0_867 = arith.constant 0 : index
    %1159 = vector.load %arg14[%c18_866, %c0_867] : memref<34x68xf32, #tpu.memory_space<vmem>>, vector<16x68xf32>
    %c1_868 = arith.constant 1 : index
    %c44_869 = arith.constant 44 : index
    %c0_870 = arith.constant 0 : index
    %1160 = vector.load %arg4[%c1_868, %c44_869, %c0_870] : memref<2x49x68xf32, #tpu.memory_space<vmem>>, vector<1x1x68xf32>
    %1161 = vector.shape_cast %1160 : vector<1x1x68xf32> to vector<68xf32>
    %1162 = vector.shape_cast %1161 : vector<68xf32> to vector<1x68xf32>
    %1163 = vector.broadcast %1162 : vector<1x68xf32> to vector<16x68xf32>
    %1164 = arith.mulf %1159, %1163 : vector<16x68xf32>
    %1165 = arith.addf %1158, %1164 : vector<16x68xf32>
    %c0_871 = arith.constant 0 : index
    %c9_872 = arith.constant 9 : index
    %1166 = vector.load %arg12[%c0_871, %c9_872] : memref<34x86xf32, #tpu.memory_space<vmem>>, vector<34x68xf32>
    %c0_873 = arith.constant 0 : index
    %c0_874 = arith.constant 0 : index
    %1167 = vector.load %arg14[%c0_873, %c0_874] : memref<34x68xf32, #tpu.memory_space<vmem>>, vector<34x68xf32>
    tpu.vector_store %arg14[%c0_873, %c0_874], %1166 {strides = array<i32>} : memref<34x68xf32, #tpu.memory_space<vmem>>, vector<34x68xf32>,
    %c0_875 = arith.constant 0 : index
    %c0_876 = arith.constant 0 : index
    %1168 = vector.load %arg14[%c0_875, %c0_876] : memref<34x68xf32, #tpu.memory_space<vmem>>, vector<16x68xf32>
    %c1_877 = arith.constant 1 : index
    %c3_878 = arith.constant 3 : index
    %c0_879 = arith.constant 0 : index
    %1169 = vector.load %arg4[%c1_877, %c3_878, %c0_879] : memref<2x49x68xf32, #tpu.memory_space<vmem>>, vector<1x1x68xf32>
    %1170 = vector.shape_cast %1169 : vector<1x1x68xf32> to vector<68xf32>
    %1171 = vector.shape_cast %1170 : vector<68xf32> to vector<1x68xf32>
    %1172 = vector.broadcast %1171 : vector<1x68xf32> to vector<16x68xf32>
    %1173 = arith.mulf %1168, %1172 : vector<16x68xf32>
    %1174 = arith.addf %1165, %1173 : vector<16x68xf32>
    %c3_880 = arith.constant 3 : index
    %c0_881 = arith.constant 0 : index
    %1175 = vector.load %arg14[%c3_880, %c0_881] : memref<34x68xf32, #tpu.memory_space<vmem>>, vector<16x68xf32>
    %c1_882 = arith.constant 1 : index
    %c10_883 = arith.constant 10 : index
    %c0_884 = arith.constant 0 : index
    %1176 = vector.load %arg4[%c1_882, %c10_883, %c0_884] : memref<2x49x68xf32, #tpu.memory_space<vmem>>, vector<1x1x68xf32>
    %1177 = vector.shape_cast %1176 : vector<1x1x68xf32> to vector<68xf32>
    %1178 = vector.shape_cast %1177 : vector<68xf32> to vector<1x68xf32>
    %1179 = vector.broadcast %1178 : vector<1x68xf32> to vector<16x68xf32>
    %1180 = arith.mulf %1175, %1179 : vector<16x68xf32>
    %1181 = arith.addf %1174, %1180 : vector<16x68xf32>
    %c6_885 = arith.constant 6 : index
    %c0_886 = arith.constant 0 : index
    %1182 = vector.load %arg14[%c6_885, %c0_886] : memref<34x68xf32, #tpu.memory_space<vmem>>, vector<16x68xf32>
    %c1_887 = arith.constant 1 : index
    %c17_888 = arith.constant 17 : index
    %c0_889 = arith.constant 0 : index
    %1183 = vector.load %arg4[%c1_887, %c17_888, %c0_889] : memref<2x49x68xf32, #tpu.memory_space<vmem>>, vector<1x1x68xf32>
    %1184 = vector.shape_cast %1183 : vector<1x1x68xf32> to vector<68xf32>
    %1185 = vector.shape_cast %1184 : vector<68xf32> to vector<1x68xf32>
    %1186 = vector.broadcast %1185 : vector<1x68xf32> to vector<16x68xf32>
    %1187 = arith.mulf %1182, %1186 : vector<16x68xf32>
    %1188 = arith.addf %1181, %1187 : vector<16x68xf32>
    %c9_890 = arith.constant 9 : index
    %c0_891 = arith.constant 0 : index
    %1189 = vector.load %arg14[%c9_890, %c0_891] : memref<34x68xf32, #tpu.memory_space<vmem>>, vector<16x68xf32>
    %c1_892 = arith.constant 1 : index
    %c24_893 = arith.constant 24 : index
    %c0_894 = arith.constant 0 : index
    %1190 = vector.load %arg4[%c1_892, %c24_893, %c0_894] : memref<2x49x68xf32, #tpu.memory_space<vmem>>, vector<1x1x68xf32>
    %1191 = vector.shape_cast %1190 : vector<1x1x68xf32> to vector<68xf32>
    %1192 = vector.shape_cast %1191 : vector<68xf32> to vector<1x68xf32>
    %1193 = vector.broadcast %1192 : vector<1x68xf32> to vector<16x68xf32>
    %1194 = arith.mulf %1189, %1193 : vector<16x68xf32>
    %1195 = arith.addf %1188, %1194 : vector<16x68xf32>
    %c12_895 = arith.constant 12 : index
    %c0_896 = arith.constant 0 : index
    %1196 = vector.load %arg14[%c12_895, %c0_896] : memref<34x68xf32, #tpu.memory_space<vmem>>, vector<16x68xf32>
    %c1_897 = arith.constant 1 : index
    %c31_898 = arith.constant 31 : index
    %c0_899 = arith.constant 0 : index
    %1197 = vector.load %arg4[%c1_897, %c31_898, %c0_899] : memref<2x49x68xf32, #tpu.memory_space<vmem>>, vector<1x1x68xf32>
    %1198 = vector.shape_cast %1197 : vector<1x1x68xf32> to vector<68xf32>
    %1199 = vector.shape_cast %1198 : vector<68xf32> to vector<1x68xf32>
    %1200 = vector.broadcast %1199 : vector<1x68xf32> to vector<16x68xf32>
    %1201 = arith.mulf %1196, %1200 : vector<16x68xf32>
    %1202 = arith.addf %1195, %1201 : vector<16x68xf32>
    %c15_900 = arith.constant 15 : index
    %c0_901 = arith.constant 0 : index
    %1203 = vector.load %arg14[%c15_900, %c0_901] : memref<34x68xf32, #tpu.memory_space<vmem>>, vector<16x68xf32>
    %c1_902 = arith.constant 1 : index
    %c38_903 = arith.constant 38 : index
    %c0_904 = arith.constant 0 : index
    %1204 = vector.load %arg4[%c1_902, %c38_903, %c0_904] : memref<2x49x68xf32, #tpu.memory_space<vmem>>, vector<1x1x68xf32>
    %1205 = vector.shape_cast %1204 : vector<1x1x68xf32> to vector<68xf32>
    %1206 = vector.shape_cast %1205 : vector<68xf32> to vector<1x68xf32>
    %1207 = vector.broadcast %1206 : vector<1x68xf32> to vector<16x68xf32>
    %1208 = arith.mulf %1203, %1207 : vector<16x68xf32>
    %1209 = arith.addf %1202, %1208 : vector<16x68xf32>
    %c18_905 = arith.constant 18 : index
    %c0_906 = arith.constant 0 : index
    %1210 = vector.load %arg14[%c18_905, %c0_906] : memref<34x68xf32, #tpu.memory_space<vmem>>, vector<16x68xf32>
    %c1_907 = arith.constant 1 : index
    %c45_908 = arith.constant 45 : index
    %c0_909 = arith.constant 0 : index
    %1211 = vector.load %arg4[%c1_907, %c45_908, %c0_909] : memref<2x49x68xf32, #tpu.memory_space<vmem>>, vector<1x1x68xf32>
    %1212 = vector.shape_cast %1211 : vector<1x1x68xf32> to vector<68xf32>
    %1213 = vector.shape_cast %1212 : vector<68xf32> to vector<1x68xf32>
    %1214 = vector.broadcast %1213 : vector<1x68xf32> to vector<16x68xf32>
    %1215 = arith.mulf %1210, %1214 : vector<16x68xf32>
    %1216 = arith.addf %1209, %1215 : vector<16x68xf32>
    %c0_910 = arith.constant 0 : index
    %c12_911 = arith.constant 12 : index
    %1217 = vector.load %arg12[%c0_910, %c12_911] : memref<34x86xf32, #tpu.memory_space<vmem>>, vector<34x68xf32>
    %c0_912 = arith.constant 0 : index
    %c0_913 = arith.constant 0 : index
    %1218 = vector.load %arg14[%c0_912, %c0_913] : memref<34x68xf32, #tpu.memory_space<vmem>>, vector<34x68xf32>
    tpu.vector_store %arg14[%c0_912, %c0_913], %1217 {strides = array<i32>} : memref<34x68xf32, #tpu.memory_space<vmem>>, vector<34x68xf32>,
    %c0_914 = arith.constant 0 : index
    %c0_915 = arith.constant 0 : index
    %1219 = vector.load %arg14[%c0_914, %c0_915] : memref<34x68xf32, #tpu.memory_space<vmem>>, vector<16x68xf32>
    %c1_916 = arith.constant 1 : index
    %c4_917 = arith.constant 4 : index
    %c0_918 = arith.constant 0 : index
    %1220 = vector.load %arg4[%c1_916, %c4_917, %c0_918] : memref<2x49x68xf32, #tpu.memory_space<vmem>>, vector<1x1x68xf32>
    %1221 = vector.shape_cast %1220 : vector<1x1x68xf32> to vector<68xf32>
    %1222 = vector.shape_cast %1221 : vector<68xf32> to vector<1x68xf32>
    %1223 = vector.broadcast %1222 : vector<1x68xf32> to vector<16x68xf32>
    %1224 = arith.mulf %1219, %1223 : vector<16x68xf32>
    %1225 = arith.addf %1216, %1224 : vector<16x68xf32>
    %c3_919 = arith.constant 3 : index
    %c0_920 = arith.constant 0 : index
    %1226 = vector.load %arg14[%c3_919, %c0_920] : memref<34x68xf32, #tpu.memory_space<vmem>>, vector<16x68xf32>
    %c1_921 = arith.constant 1 : index
    %c11_922 = arith.constant 11 : index
    %c0_923 = arith.constant 0 : index
    %1227 = vector.load %arg4[%c1_921, %c11_922, %c0_923] : memref<2x49x68xf32, #tpu.memory_space<vmem>>, vector<1x1x68xf32>
    %1228 = vector.shape_cast %1227 : vector<1x1x68xf32> to vector<68xf32>
    %1229 = vector.shape_cast %1228 : vector<68xf32> to vector<1x68xf32>
    %1230 = vector.broadcast %1229 : vector<1x68xf32> to vector<16x68xf32>
    %1231 = arith.mulf %1226, %1230 : vector<16x68xf32>
    %1232 = arith.addf %1225, %1231 : vector<16x68xf32>
    %c6_924 = arith.constant 6 : index
    %c0_925 = arith.constant 0 : index
    %1233 = vector.load %arg14[%c6_924, %c0_925] : memref<34x68xf32, #tpu.memory_space<vmem>>, vector<16x68xf32>
    %c1_926 = arith.constant 1 : index
    %c18_927 = arith.constant 18 : index
    %c0_928 = arith.constant 0 : index
    %1234 = vector.load %arg4[%c1_926, %c18_927, %c0_928] : memref<2x49x68xf32, #tpu.memory_space<vmem>>, vector<1x1x68xf32>
    %1235 = vector.shape_cast %1234 : vector<1x1x68xf32> to vector<68xf32>
    %1236 = vector.shape_cast %1235 : vector<68xf32> to vector<1x68xf32>
    %1237 = vector.broadcast %1236 : vector<1x68xf32> to vector<16x68xf32>
    %1238 = arith.mulf %1233, %1237 : vector<16x68xf32>
    %1239 = arith.addf %1232, %1238 : vector<16x68xf32>
    %c9_929 = arith.constant 9 : index
    %c0_930 = arith.constant 0 : index
    %1240 = vector.load %arg14[%c9_929, %c0_930] : memref<34x68xf32, #tpu.memory_space<vmem>>, vector<16x68xf32>
    %c1_931 = arith.constant 1 : index
    %c25_932 = arith.constant 25 : index
    %c0_933 = arith.constant 0 : index
    %1241 = vector.load %arg4[%c1_931, %c25_932, %c0_933] : memref<2x49x68xf32, #tpu.memory_space<vmem>>, vector<1x1x68xf32>
    %1242 = vector.shape_cast %1241 : vector<1x1x68xf32> to vector<68xf32>
    %1243 = vector.shape_cast %1242 : vector<68xf32> to vector<1x68xf32>
    %1244 = vector.broadcast %1243 : vector<1x68xf32> to vector<16x68xf32>
    %1245 = arith.mulf %1240, %1244 : vector<16x68xf32>
    %1246 = arith.addf %1239, %1245 : vector<16x68xf32>
    %c12_934 = arith.constant 12 : index
    %c0_935 = arith.constant 0 : index
    %1247 = vector.load %arg14[%c12_934, %c0_935] : memref<34x68xf32, #tpu.memory_space<vmem>>, vector<16x68xf32>
    %c1_936 = arith.constant 1 : index
    %c32_937 = arith.constant 32 : index
    %c0_938 = arith.constant 0 : index
    %1248 = vector.load %arg4[%c1_936, %c32_937, %c0_938] : memref<2x49x68xf32, #tpu.memory_space<vmem>>, vector<1x1x68xf32>
    %1249 = vector.shape_cast %1248 : vector<1x1x68xf32> to vector<68xf32>
    %1250 = vector.shape_cast %1249 : vector<68xf32> to vector<1x68xf32>
    %1251 = vector.broadcast %1250 : vector<1x68xf32> to vector<16x68xf32>
    %1252 = arith.mulf %1247, %1251 : vector<16x68xf32>
    %1253 = arith.addf %1246, %1252 : vector<16x68xf32>
    %c15_939 = arith.constant 15 : index
    %c0_940 = arith.constant 0 : index
    %1254 = vector.load %arg14[%c15_939, %c0_940] : memref<34x68xf32, #tpu.memory_space<vmem>>, vector<16x68xf32>
    %c1_941 = arith.constant 1 : index
    %c39_942 = arith.constant 39 : index
    %c0_943 = arith.constant 0 : index
    %1255 = vector.load %arg4[%c1_941, %c39_942, %c0_943] : memref<2x49x68xf32, #tpu.memory_space<vmem>>, vector<1x1x68xf32>
    %1256 = vector.shape_cast %1255 : vector<1x1x68xf32> to vector<68xf32>
    %1257 = vector.shape_cast %1256 : vector<68xf32> to vector<1x68xf32>
    %1258 = vector.broadcast %1257 : vector<1x68xf32> to vector<16x68xf32>
    %1259 = arith.mulf %1254, %1258 : vector<16x68xf32>
    %1260 = arith.addf %1253, %1259 : vector<16x68xf32>
    %c18_944 = arith.constant 18 : index
    %c0_945 = arith.constant 0 : index
    %1261 = vector.load %arg14[%c18_944, %c0_945] : memref<34x68xf32, #tpu.memory_space<vmem>>, vector<16x68xf32>
    %c1_946 = arith.constant 1 : index
    %c46_947 = arith.constant 46 : index
    %c0_948 = arith.constant 0 : index
    %1262 = vector.load %arg4[%c1_946, %c46_947, %c0_948] : memref<2x49x68xf32, #tpu.memory_space<vmem>>, vector<1x1x68xf32>
    %1263 = vector.shape_cast %1262 : vector<1x1x68xf32> to vector<68xf32>
    %1264 = vector.shape_cast %1263 : vector<68xf32> to vector<1x68xf32>
    %1265 = vector.broadcast %1264 : vector<1x68xf32> to vector<16x68xf32>
    %1266 = arith.mulf %1261, %1265 : vector<16x68xf32>
    %1267 = arith.addf %1260, %1266 : vector<16x68xf32>
    %c0_949 = arith.constant 0 : index
    %c15_950 = arith.constant 15 : index
    %1268 = vector.load %arg12[%c0_949, %c15_950] : memref<34x86xf32, #tpu.memory_space<vmem>>, vector<34x68xf32>
    %c0_951 = arith.constant 0 : index
    %c0_952 = arith.constant 0 : index
    %1269 = vector.load %arg14[%c0_951, %c0_952] : memref<34x68xf32, #tpu.memory_space<vmem>>, vector<34x68xf32>
    tpu.vector_store %arg14[%c0_951, %c0_952], %1268 {strides = array<i32>} : memref<34x68xf32, #tpu.memory_space<vmem>>, vector<34x68xf32>,
    %c0_953 = arith.constant 0 : index
    %c0_954 = arith.constant 0 : index
    %1270 = vector.load %arg14[%c0_953, %c0_954] : memref<34x68xf32, #tpu.memory_space<vmem>>, vector<16x68xf32>
    %c1_955 = arith.constant 1 : index
    %c5_956 = arith.constant 5 : index
    %c0_957 = arith.constant 0 : index
    %1271 = vector.load %arg4[%c1_955, %c5_956, %c0_957] : memref<2x49x68xf32, #tpu.memory_space<vmem>>, vector<1x1x68xf32>
    %1272 = vector.shape_cast %1271 : vector<1x1x68xf32> to vector<68xf32>
    %1273 = vector.shape_cast %1272 : vector<68xf32> to vector<1x68xf32>
    %1274 = vector.broadcast %1273 : vector<1x68xf32> to vector<16x68xf32>
    %1275 = arith.mulf %1270, %1274 : vector<16x68xf32>
    %1276 = arith.addf %1267, %1275 : vector<16x68xf32>
    %c3_958 = arith.constant 3 : index
    %c0_959 = arith.constant 0 : index
    %1277 = vector.load %arg14[%c3_958, %c0_959] : memref<34x68xf32, #tpu.memory_space<vmem>>, vector<16x68xf32>
    %c1_960 = arith.constant 1 : index
    %c12_961 = arith.constant 12 : index
    %c0_962 = arith.constant 0 : index
    %1278 = vector.load %arg4[%c1_960, %c12_961, %c0_962] : memref<2x49x68xf32, #tpu.memory_space<vmem>>, vector<1x1x68xf32>
    %1279 = vector.shape_cast %1278 : vector<1x1x68xf32> to vector<68xf32>
    %1280 = vector.shape_cast %1279 : vector<68xf32> to vector<1x68xf32>
    %1281 = vector.broadcast %1280 : vector<1x68xf32> to vector<16x68xf32>
    %1282 = arith.mulf %1277, %1281 : vector<16x68xf32>
    %1283 = arith.addf %1276, %1282 : vector<16x68xf32>
    %c6_963 = arith.constant 6 : index
    %c0_964 = arith.constant 0 : index
    %1284 = vector.load %arg14[%c6_963, %c0_964] : memref<34x68xf32, #tpu.memory_space<vmem>>, vector<16x68xf32>
    %c1_965 = arith.constant 1 : index
    %c19_966 = arith.constant 19 : index
    %c0_967 = arith.constant 0 : index
    %1285 = vector.load %arg4[%c1_965, %c19_966, %c0_967] : memref<2x49x68xf32, #tpu.memory_space<vmem>>, vector<1x1x68xf32>
    %1286 = vector.shape_cast %1285 : vector<1x1x68xf32> to vector<68xf32>
    %1287 = vector.shape_cast %1286 : vector<68xf32> to vector<1x68xf32>
    %1288 = vector.broadcast %1287 : vector<1x68xf32> to vector<16x68xf32>
    %1289 = arith.mulf %1284, %1288 : vector<16x68xf32>
    %1290 = arith.addf %1283, %1289 : vector<16x68xf32>
    %c9_968 = arith.constant 9 : index
    %c0_969 = arith.constant 0 : index
    %1291 = vector.load %arg14[%c9_968, %c0_969] : memref<34x68xf32, #tpu.memory_space<vmem>>, vector<16x68xf32>
    %c1_970 = arith.constant 1 : index
    %c26_971 = arith.constant 26 : index
    %c0_972 = arith.constant 0 : index
    %1292 = vector.load %arg4[%c1_970, %c26_971, %c0_972] : memref<2x49x68xf32, #tpu.memory_space<vmem>>, vector<1x1x68xf32>
    %1293 = vector.shape_cast %1292 : vector<1x1x68xf32> to vector<68xf32>
    %1294 = vector.shape_cast %1293 : vector<68xf32> to vector<1x68xf32>
    %1295 = vector.broadcast %1294 : vector<1x68xf32> to vector<16x68xf32>
    %1296 = arith.mulf %1291, %1295 : vector<16x68xf32>
    %1297 = arith.addf %1290, %1296 : vector<16x68xf32>
    %c12_973 = arith.constant 12 : index
    %c0_974 = arith.constant 0 : index
    %1298 = vector.load %arg14[%c12_973, %c0_974] : memref<34x68xf32, #tpu.memory_space<vmem>>, vector<16x68xf32>
    %c1_975 = arith.constant 1 : index
    %c33_976 = arith.constant 33 : index
    %c0_977 = arith.constant 0 : index
    %1299 = vector.load %arg4[%c1_975, %c33_976, %c0_977] : memref<2x49x68xf32, #tpu.memory_space<vmem>>, vector<1x1x68xf32>
    %1300 = vector.shape_cast %1299 : vector<1x1x68xf32> to vector<68xf32>
    %1301 = vector.shape_cast %1300 : vector<68xf32> to vector<1x68xf32>
    %1302 = vector.broadcast %1301 : vector<1x68xf32> to vector<16x68xf32>
    %1303 = arith.mulf %1298, %1302 : vector<16x68xf32>
    %1304 = arith.addf %1297, %1303 : vector<16x68xf32>
    %c15_978 = arith.constant 15 : index
    %c0_979 = arith.constant 0 : index
    %1305 = vector.load %arg14[%c15_978, %c0_979] : memref<34x68xf32, #tpu.memory_space<vmem>>, vector<16x68xf32>
    %c1_980 = arith.constant 1 : index
    %c40_981 = arith.constant 40 : index
    %c0_982 = arith.constant 0 : index
    %1306 = vector.load %arg4[%c1_980, %c40_981, %c0_982] : memref<2x49x68xf32, #tpu.memory_space<vmem>>, vector<1x1x68xf32>
    %1307 = vector.shape_cast %1306 : vector<1x1x68xf32> to vector<68xf32>
    %1308 = vector.shape_cast %1307 : vector<68xf32> to vector<1x68xf32>
    %1309 = vector.broadcast %1308 : vector<1x68xf32> to vector<16x68xf32>
    %1310 = arith.mulf %1305, %1309 : vector<16x68xf32>
    %1311 = arith.addf %1304, %1310 : vector<16x68xf32>
    %c18_983 = arith.constant 18 : index
    %c0_984 = arith.constant 0 : index
    %1312 = vector.load %arg14[%c18_983, %c0_984] : memref<34x68xf32, #tpu.memory_space<vmem>>, vector<16x68xf32>
    %c1_985 = arith.constant 1 : index
    %c47_986 = arith.constant 47 : index
    %c0_987 = arith.constant 0 : index
    %1313 = vector.load %arg4[%c1_985, %c47_986, %c0_987] : memref<2x49x68xf32, #tpu.memory_space<vmem>>, vector<1x1x68xf32>
    %1314 = vector.shape_cast %1313 : vector<1x1x68xf32> to vector<68xf32>
    %1315 = vector.shape_cast %1314 : vector<68xf32> to vector<1x68xf32>
    %1316 = vector.broadcast %1315 : vector<1x68xf32> to vector<16x68xf32>
    %1317 = arith.mulf %1312, %1316 : vector<16x68xf32>
    %1318 = arith.addf %1311, %1317 : vector<16x68xf32>
    %c0_988 = arith.constant 0 : index
    %c18_989 = arith.constant 18 : index
    %1319 = vector.load %arg12[%c0_988, %c18_989] : memref<34x86xf32, #tpu.memory_space<vmem>>, vector<34x68xf32>
    %c0_990 = arith.constant 0 : index
    %c0_991 = arith.constant 0 : index
    %1320 = vector.load %arg14[%c0_990, %c0_991] : memref<34x68xf32, #tpu.memory_space<vmem>>, vector<34x68xf32>
    tpu.vector_store %arg14[%c0_990, %c0_991], %1319 {strides = array<i32>} : memref<34x68xf32, #tpu.memory_space<vmem>>, vector<34x68xf32>,
    %c0_992 = arith.constant 0 : index
    %c0_993 = arith.constant 0 : index
    %1321 = vector.load %arg14[%c0_992, %c0_993] : memref<34x68xf32, #tpu.memory_space<vmem>>, vector<16x68xf32>
    %c1_994 = arith.constant 1 : index
    %c6_995 = arith.constant 6 : index
    %c0_996 = arith.constant 0 : index
    %1322 = vector.load %arg4[%c1_994, %c6_995, %c0_996] : memref<2x49x68xf32, #tpu.memory_space<vmem>>, vector<1x1x68xf32>
    %1323 = vector.shape_cast %1322 : vector<1x1x68xf32> to vector<68xf32>
    %1324 = vector.shape_cast %1323 : vector<68xf32> to vector<1x68xf32>
    %1325 = vector.broadcast %1324 : vector<1x68xf32> to vector<16x68xf32>
    %1326 = arith.mulf %1321, %1325 : vector<16x68xf32>
    %1327 = arith.addf %1318, %1326 : vector<16x68xf32>
    %c3_997 = arith.constant 3 : index
    %c0_998 = arith.constant 0 : index
    %1328 = vector.load %arg14[%c3_997, %c0_998] : memref<34x68xf32, #tpu.memory_space<vmem>>, vector<16x68xf32>
    %c1_999 = arith.constant 1 : index
    %c13_1000 = arith.constant 13 : index
    %c0_1001 = arith.constant 0 : index
    %1329 = vector.load %arg4[%c1_999, %c13_1000, %c0_1001] : memref<2x49x68xf32, #tpu.memory_space<vmem>>, vector<1x1x68xf32>
    %1330 = vector.shape_cast %1329 : vector<1x1x68xf32> to vector<68xf32>
    %1331 = vector.shape_cast %1330 : vector<68xf32> to vector<1x68xf32>
    %1332 = vector.broadcast %1331 : vector<1x68xf32> to vector<16x68xf32>
    %1333 = arith.mulf %1328, %1332 : vector<16x68xf32>
    %1334 = arith.addf %1327, %1333 : vector<16x68xf32>
    %c6_1002 = arith.constant 6 : index
    %c0_1003 = arith.constant 0 : index
    %1335 = vector.load %arg14[%c6_1002, %c0_1003] : memref<34x68xf32, #tpu.memory_space<vmem>>, vector<16x68xf32>
    %c1_1004 = arith.constant 1 : index
    %c20_1005 = arith.constant 20 : index
    %c0_1006 = arith.constant 0 : index
    %1336 = vector.load %arg4[%c1_1004, %c20_1005, %c0_1006] : memref<2x49x68xf32, #tpu.memory_space<vmem>>, vector<1x1x68xf32>
    %1337 = vector.shape_cast %1336 : vector<1x1x68xf32> to vector<68xf32>
    %1338 = vector.shape_cast %1337 : vector<68xf32> to vector<1x68xf32>
    %1339 = vector.broadcast %1338 : vector<1x68xf32> to vector<16x68xf32>
    %1340 = arith.mulf %1335, %1339 : vector<16x68xf32>
    %1341 = arith.addf %1334, %1340 : vector<16x68xf32>
    %c9_1007 = arith.constant 9 : index
    %c0_1008 = arith.constant 0 : index
    %1342 = vector.load %arg14[%c9_1007, %c0_1008] : memref<34x68xf32, #tpu.memory_space<vmem>>, vector<16x68xf32>
    %c1_1009 = arith.constant 1 : index
    %c27_1010 = arith.constant 27 : index
    %c0_1011 = arith.constant 0 : index
    %1343 = vector.load %arg4[%c1_1009, %c27_1010, %c0_1011] : memref<2x49x68xf32, #tpu.memory_space<vmem>>, vector<1x1x68xf32>
    %1344 = vector.shape_cast %1343 : vector<1x1x68xf32> to vector<68xf32>
    %1345 = vector.shape_cast %1344 : vector<68xf32> to vector<1x68xf32>
    %1346 = vector.broadcast %1345 : vector<1x68xf32> to vector<16x68xf32>
    %1347 = arith.mulf %1342, %1346 : vector<16x68xf32>
    %1348 = arith.addf %1341, %1347 : vector<16x68xf32>
    %c12_1012 = arith.constant 12 : index
    %c0_1013 = arith.constant 0 : index
    %1349 = vector.load %arg14[%c12_1012, %c0_1013] : memref<34x68xf32, #tpu.memory_space<vmem>>, vector<16x68xf32>
    %c1_1014 = arith.constant 1 : index
    %c34_1015 = arith.constant 34 : index
    %c0_1016 = arith.constant 0 : index
    %1350 = vector.load %arg4[%c1_1014, %c34_1015, %c0_1016] : memref<2x49x68xf32, #tpu.memory_space<vmem>>, vector<1x1x68xf32>
    %1351 = vector.shape_cast %1350 : vector<1x1x68xf32> to vector<68xf32>
    %1352 = vector.shape_cast %1351 : vector<68xf32> to vector<1x68xf32>
    %1353 = vector.broadcast %1352 : vector<1x68xf32> to vector<16x68xf32>
    %1354 = arith.mulf %1349, %1353 : vector<16x68xf32>
    %1355 = arith.addf %1348, %1354 : vector<16x68xf32>
    %c15_1017 = arith.constant 15 : index
    %c0_1018 = arith.constant 0 : index
    %1356 = vector.load %arg14[%c15_1017, %c0_1018] : memref<34x68xf32, #tpu.memory_space<vmem>>, vector<16x68xf32>
    %c1_1019 = arith.constant 1 : index
    %c41_1020 = arith.constant 41 : index
    %c0_1021 = arith.constant 0 : index
    %1357 = vector.load %arg4[%c1_1019, %c41_1020, %c0_1021] : memref<2x49x68xf32, #tpu.memory_space<vmem>>, vector<1x1x68xf32>
    %1358 = vector.shape_cast %1357 : vector<1x1x68xf32> to vector<68xf32>
    %1359 = vector.shape_cast %1358 : vector<68xf32> to vector<1x68xf32>
    %1360 = vector.broadcast %1359 : vector<1x68xf32> to vector<16x68xf32>
    %1361 = arith.mulf %1356, %1360 : vector<16x68xf32>
    %1362 = arith.addf %1355, %1361 : vector<16x68xf32>
    %c18_1022 = arith.constant 18 : index
    %c0_1023 = arith.constant 0 : index
    %1363 = vector.load %arg14[%c18_1022, %c0_1023] : memref<34x68xf32, #tpu.memory_space<vmem>>, vector<16x68xf32>
    %c1_1024 = arith.constant 1 : index
    %c48_1025 = arith.constant 48 : index
    %c0_1026 = arith.constant 0 : index
    %1364 = vector.load %arg4[%c1_1024, %c48_1025, %c0_1026] : memref<2x49x68xf32, #tpu.memory_space<vmem>>, vector<1x1x68xf32>
    %1365 = vector.shape_cast %1364 : vector<1x1x68xf32> to vector<68xf32>
    %1366 = vector.shape_cast %1365 : vector<68xf32> to vector<1x68xf32>
    %1367 = vector.broadcast %1366 : vector<1x68xf32> to vector<16x68xf32>
    %1368 = arith.mulf %1363, %1367 : vector<16x68xf32>
    %1369 = arith.addf %1362, %1368 : vector<16x68xf32>
    %c1_1027 = arith.constant 1 : index
    %c0_1028 = arith.constant 0 : index
    %1370 = vector.load %arg5[%c1_1027, %c0_1028] : memref<2x68xf32, #tpu.memory_space<vmem>>, vector<1x68xf32>
    %1371 = vector.shape_cast %1370 : vector<1x68xf32> to vector<68xf32>
    %1372 = vector.shape_cast %1371 : vector<68xf32> to vector<1x68xf32>
    %1373 = vector.broadcast %1372 : vector<1x68xf32> to vector<16x68xf32>
    %1374 = arith.addf %1369, %1373 : vector<16x68xf32>
    %c1_1029 = arith.constant 1 : index
    %c0_1030 = arith.constant 0 : index
    %c0_1031 = arith.constant 0 : index
    %1375 = vector.load %arg13[%c1_1029, %c0_1030, %c0_1031] : memref<2x16x68xf32, #tpu.memory_space<vmem>>, vector<1x16x68xf32>
    %1376 = vector.shape_cast %1375 : vector<1x16x68xf32> to vector<16x68xf32>
    %1377 = vector.shape_cast %1374 : vector<16x68xf32> to vector<1x16x68xf32>
    tpu.vector_store %arg13[%c1_1029, %c0_1030, %c0_1031], %1377 {strides = array<i32>} : memref<2x16x68xf32, #tpu.memory_space<vmem>>, vector<1x16x68xf32>,
    %c0_1032 = arith.constant 0 : index
    %1378 = memref.load %arg9[%c0_1032] : memref<4xf32, #tpu.memory_space<smem>>
    %1379 = vector.broadcast %1378 : f32 to vector<16x16xf32>
    %c1_1033 = arith.constant 1 : index
    %1380 = memref.load %arg9[%c1_1033] : memref<4xf32, #tpu.memory_space<smem>>
    %1381 = vector.broadcast %1380 : f32 to vector<16x16xf32>
    %c2_1034 = arith.constant 2 : index
    %1382 = memref.load %arg9[%c2_1034] : memref<4xf32, #tpu.memory_space<smem>>
    %1383 = vector.broadcast %1382 : f32 to vector<16x16xf32>
    %c3_1035 = arith.constant 3 : index
    %1384 = memref.load %arg9[%c3_1035] : memref<4xf32, #tpu.memory_space<smem>>
    %1385 = vector.broadcast %1384 : f32 to vector<16x16xf32>
    %c0_1036 = arith.constant 0 : index
    %c0_1037 = arith.constant 0 : index
    %c9_1038 = arith.constant 9 : index
    %1386 = vector.load %arg13[%c0_1036, %c0_1037, %c9_1038] : memref<2x16x68xf32, #tpu.memory_space<vmem>>, vector<1x16x16xf32>
    %1387 = vector.shape_cast %1386 : vector<1x16x16xf32> to vector<16x16xf32>
    %c0_1039 = arith.constant 0 : index
    %1388 = memref.load %arg8[%c0_1039] : memref<16xf32, #tpu.memory_space<smem>>
    %1389 = vector.broadcast %1388 : f32 to vector<16x16xf32>
    %1390 = arith.mulf %1387, %1389 : vector<16x16xf32>
    %1391 = arith.addf %1379, %1390 : vector<16x16xf32>
    %c1_1040 = arith.constant 1 : index
    %1392 = memref.load %arg8[%c1_1040] : memref<16xf32, #tpu.memory_space<smem>>
    %1393 = vector.broadcast %1392 : f32 to vector<16x16xf32>
    %1394 = arith.mulf %1387, %1393 : vector<16x16xf32>
    %1395 = arith.addf %1381, %1394 : vector<16x16xf32>
    %c2_1041 = arith.constant 2 : index
    %1396 = memref.load %arg8[%c2_1041] : memref<16xf32, #tpu.memory_space<smem>>
    %1397 = vector.broadcast %1396 : f32 to vector<16x16xf32>
    %1398 = arith.mulf %1387, %1397 : vector<16x16xf32>
    %1399 = arith.addf %1383, %1398 : vector<16x16xf32>
    %c3_1042 = arith.constant 3 : index
    %1400 = memref.load %arg8[%c3_1042] : memref<16xf32, #tpu.memory_space<smem>>
    %1401 = vector.broadcast %1400 : f32 to vector<16x16xf32>
    %1402 = arith.mulf %1387, %1401 : vector<16x16xf32>
    %1403 = arith.addf %1385, %1402 : vector<16x16xf32>
    %c0_1043 = arith.constant 0 : index
    %c0_1044 = arith.constant 0 : index
    %c43_1045 = arith.constant 43 : index
    %1404 = vector.load %arg13[%c0_1043, %c0_1044, %c43_1045] : memref<2x16x68xf32, #tpu.memory_space<vmem>>, vector<1x16x16xf32>
    %1405 = vector.shape_cast %1404 : vector<1x16x16xf32> to vector<16x16xf32>
    %c4_1046 = arith.constant 4 : index
    %1406 = memref.load %arg8[%c4_1046] : memref<16xf32, #tpu.memory_space<smem>>
    %1407 = vector.broadcast %1406 : f32 to vector<16x16xf32>
    %1408 = arith.mulf %1405, %1407 : vector<16x16xf32>
    %1409 = arith.addf %1391, %1408 : vector<16x16xf32>
    %c5_1047 = arith.constant 5 : index
    %1410 = memref.load %arg8[%c5_1047] : memref<16xf32, #tpu.memory_space<smem>>
    %1411 = vector.broadcast %1410 : f32 to vector<16x16xf32>
    %1412 = arith.mulf %1405, %1411 : vector<16x16xf32>
    %1413 = arith.addf %1395, %1412 : vector<16x16xf32>
    %c6_1048 = arith.constant 6 : index
    %1414 = memref.load %arg8[%c6_1048] : memref<16xf32, #tpu.memory_space<smem>>
    %1415 = vector.broadcast %1414 : f32 to vector<16x16xf32>
    %1416 = arith.mulf %1405, %1415 : vector<16x16xf32>
    %1417 = arith.addf %1399, %1416 : vector<16x16xf32>
    %c7_1049 = arith.constant 7 : index
    %1418 = memref.load %arg8[%c7_1049] : memref<16xf32, #tpu.memory_space<smem>>
    %1419 = vector.broadcast %1418 : f32 to vector<16x16xf32>
    %1420 = arith.mulf %1405, %1419 : vector<16x16xf32>
    %1421 = arith.addf %1403, %1420 : vector<16x16xf32>
    %c1_1050 = arith.constant 1 : index
    %c0_1051 = arith.constant 0 : index
    %c9_1052 = arith.constant 9 : index
    %1422 = vector.load %arg13[%c1_1050, %c0_1051, %c9_1052] : memref<2x16x68xf32, #tpu.memory_space<vmem>>, vector<1x16x16xf32>
    %1423 = vector.shape_cast %1422 : vector<1x16x16xf32> to vector<16x16xf32>
    %c8_1053 = arith.constant 8 : index
    %1424 = memref.load %arg8[%c8_1053] : memref<16xf32, #tpu.memory_space<smem>>
    %1425 = vector.broadcast %1424 : f32 to vector<16x16xf32>
    %1426 = arith.mulf %1423, %1425 : vector<16x16xf32>
    %1427 = arith.addf %1409, %1426 : vector<16x16xf32>
    %c9_1054 = arith.constant 9 : index
    %1428 = memref.load %arg8[%c9_1054] : memref<16xf32, #tpu.memory_space<smem>>
    %1429 = vector.broadcast %1428 : f32 to vector<16x16xf32>
    %1430 = arith.mulf %1423, %1429 : vector<16x16xf32>
    %1431 = arith.addf %1413, %1430 : vector<16x16xf32>
    %c10_1055 = arith.constant 10 : index
    %1432 = memref.load %arg8[%c10_1055] : memref<16xf32, #tpu.memory_space<smem>>
    %1433 = vector.broadcast %1432 : f32 to vector<16x16xf32>
    %1434 = arith.mulf %1423, %1433 : vector<16x16xf32>
    %1435 = arith.addf %1417, %1434 : vector<16x16xf32>
    %c11_1056 = arith.constant 11 : index
    %1436 = memref.load %arg8[%c11_1056] : memref<16xf32, #tpu.memory_space<smem>>
    %1437 = vector.broadcast %1436 : f32 to vector<16x16xf32>
    %1438 = arith.mulf %1423, %1437 : vector<16x16xf32>
    %1439 = arith.addf %1421, %1438 : vector<16x16xf32>
    %c1_1057 = arith.constant 1 : index
    %c0_1058 = arith.constant 0 : index
    %c43_1059 = arith.constant 43 : index
    %1440 = vector.load %arg13[%c1_1057, %c0_1058, %c43_1059] : memref<2x16x68xf32, #tpu.memory_space<vmem>>, vector<1x16x16xf32>
    %1441 = vector.shape_cast %1440 : vector<1x16x16xf32> to vector<16x16xf32>
    %c12_1060 = arith.constant 12 : index
    %1442 = memref.load %arg8[%c12_1060] : memref<16xf32, #tpu.memory_space<smem>>
    %1443 = vector.broadcast %1442 : f32 to vector<16x16xf32>
    %1444 = arith.mulf %1441, %1443 : vector<16x16xf32>
    %1445 = arith.addf %1427, %1444 : vector<16x16xf32>
    %c13_1061 = arith.constant 13 : index
    %1446 = memref.load %arg8[%c13_1061] : memref<16xf32, #tpu.memory_space<smem>>
    %1447 = vector.broadcast %1446 : f32 to vector<16x16xf32>
    %1448 = arith.mulf %1441, %1447 : vector<16x16xf32>
    %1449 = arith.addf %1431, %1448 : vector<16x16xf32>
    %c14_1062 = arith.constant 14 : index
    %1450 = memref.load %arg8[%c14_1062] : memref<16xf32, #tpu.memory_space<smem>>
    %1451 = vector.broadcast %1450 : f32 to vector<16x16xf32>
    %1452 = arith.mulf %1441, %1451 : vector<16x16xf32>
    %1453 = arith.addf %1435, %1452 : vector<16x16xf32>
    %c15_1063 = arith.constant 15 : index
    %1454 = memref.load %arg8[%c15_1063] : memref<16xf32, #tpu.memory_space<smem>>
    %1455 = vector.broadcast %1454 : f32 to vector<16x16xf32>
    %1456 = arith.mulf %1441, %1455 : vector<16x16xf32>
    %1457 = arith.addf %1439, %1456 : vector<16x16xf32>
    %c0_1064 = arith.constant 0 : index
    %c2_1065 = arith.constant 2 : index
    %c18_1066 = arith.constant 18 : index
    %1458 = vector.load %arg11[%c0_1064, %c2_1065, %c18_1066] : memref<2x20x86xf32, #tpu.memory_space<vmem>>, vector<1x16x16xf32>
    %1459 = vector.shape_cast %1458 : vector<1x16x16xf32> to vector<16x16xf32>
    %1460 = arith.mulf %1459, %1445 : vector<16x16xf32>
    %1461 = vector.extract_strided_slice %1460 {offsets = [0, 0], sizes = [1, 16], strides = [1, 1]} : vector<16x16xf32> to vector<1x16xf32>
    %c0_1067 = arith.constant 0 : index
    %c0_1068 = arith.constant 0 : index
    %c0_1069 = arith.constant 0 : index
    %1462 = vector.load %arg10[%c0_1067, %c0_1068, %c0_1069] : memref<1x4x256xf32, #tpu.memory_space<vmem>>, vector<1x1x16xf32>
    %1463 = vector.shape_cast %1462 : vector<1x1x16xf32> to vector<1x16xf32>
    %1464 = vector.shape_cast %1461 : vector<1x16xf32> to vector<1x1x16xf32>
    tpu.vector_store %arg10[%c0_1067, %c0_1068, %c0_1069], %1464 {strides = array<i32>} : memref<1x4x256xf32, #tpu.memory_space<vmem>>, vector<1x1x16xf32>,
    %1465 = vector.extract_strided_slice %1460 {offsets = [1, 0], sizes = [1, 16], strides = [1, 1]} : vector<16x16xf32> to vector<1x16xf32>
    %c0_1070 = arith.constant 0 : index
    %c0_1071 = arith.constant 0 : index
    %c16_1072 = arith.constant 16 : index
    %1466 = vector.load %arg10[%c0_1070, %c0_1071, %c16_1072] : memref<1x4x256xf32, #tpu.memory_space<vmem>>, vector<1x1x16xf32>
    %1467 = vector.shape_cast %1466 : vector<1x1x16xf32> to vector<1x16xf32>
    %1468 = vector.shape_cast %1465 : vector<1x16xf32> to vector<1x1x16xf32>
    tpu.vector_store %arg10[%c0_1070, %c0_1071, %c16_1072], %1468 {strides = array<i32>} : memref<1x4x256xf32, #tpu.memory_space<vmem>>, vector<1x1x16xf32>,
    %1469 = vector.extract_strided_slice %1460 {offsets = [2, 0], sizes = [1, 16], strides = [1, 1]} : vector<16x16xf32> to vector<1x16xf32>
    %c0_1073 = arith.constant 0 : index
    %c0_1074 = arith.constant 0 : index
    %c32_1075 = arith.constant 32 : index
    %1470 = vector.load %arg10[%c0_1073, %c0_1074, %c32_1075] : memref<1x4x256xf32, #tpu.memory_space<vmem>>, vector<1x1x16xf32>
    %1471 = vector.shape_cast %1470 : vector<1x1x16xf32> to vector<1x16xf32>
    %1472 = vector.shape_cast %1469 : vector<1x16xf32> to vector<1x1x16xf32>
    tpu.vector_store %arg10[%c0_1073, %c0_1074, %c32_1075], %1472 {strides = array<i32>} : memref<1x4x256xf32, #tpu.memory_space<vmem>>, vector<1x1x16xf32>,
    %1473 = vector.extract_strided_slice %1460 {offsets = [3, 0], sizes = [1, 16], strides = [1, 1]} : vector<16x16xf32> to vector<1x16xf32>
    %c0_1076 = arith.constant 0 : index
    %c0_1077 = arith.constant 0 : index
    %c48_1078 = arith.constant 48 : index
    %1474 = vector.load %arg10[%c0_1076, %c0_1077, %c48_1078] : memref<1x4x256xf32, #tpu.memory_space<vmem>>, vector<1x1x16xf32>
    %1475 = vector.shape_cast %1474 : vector<1x1x16xf32> to vector<1x16xf32>
    %1476 = vector.shape_cast %1473 : vector<1x16xf32> to vector<1x1x16xf32>
    tpu.vector_store %arg10[%c0_1076, %c0_1077, %c48_1078], %1476 {strides = array<i32>} : memref<1x4x256xf32, #tpu.memory_space<vmem>>, vector<1x1x16xf32>,
    %1477 = vector.extract_strided_slice %1460 {offsets = [4, 0], sizes = [1, 16], strides = [1, 1]} : vector<16x16xf32> to vector<1x16xf32>
    %c0_1079 = arith.constant 0 : index
    %c0_1080 = arith.constant 0 : index
    %c64 = arith.constant 64 : index
    %1478 = vector.load %arg10[%c0_1079, %c0_1080, %c64] : memref<1x4x256xf32, #tpu.memory_space<vmem>>, vector<1x1x16xf32>
    %1479 = vector.shape_cast %1478 : vector<1x1x16xf32> to vector<1x16xf32>
    %1480 = vector.shape_cast %1477 : vector<1x16xf32> to vector<1x1x16xf32>
    tpu.vector_store %arg10[%c0_1079, %c0_1080, %c64], %1480 {strides = array<i32>} : memref<1x4x256xf32, #tpu.memory_space<vmem>>, vector<1x1x16xf32>,
    %1481 = vector.extract_strided_slice %1460 {offsets = [5, 0], sizes = [1, 16], strides = [1, 1]} : vector<16x16xf32> to vector<1x16xf32>
    %c0_1081 = arith.constant 0 : index
    %c0_1082 = arith.constant 0 : index
    %c80 = arith.constant 80 : index
    %1482 = vector.load %arg10[%c0_1081, %c0_1082, %c80] : memref<1x4x256xf32, #tpu.memory_space<vmem>>, vector<1x1x16xf32>
    %1483 = vector.shape_cast %1482 : vector<1x1x16xf32> to vector<1x16xf32>
    %1484 = vector.shape_cast %1481 : vector<1x16xf32> to vector<1x1x16xf32>
    tpu.vector_store %arg10[%c0_1081, %c0_1082, %c80], %1484 {strides = array<i32>} : memref<1x4x256xf32, #tpu.memory_space<vmem>>, vector<1x1x16xf32>,
    %1485 = vector.extract_strided_slice %1460 {offsets = [6, 0], sizes = [1, 16], strides = [1, 1]} : vector<16x16xf32> to vector<1x16xf32>
    %c0_1083 = arith.constant 0 : index
    %c0_1084 = arith.constant 0 : index
    %c96 = arith.constant 96 : index
    %1486 = vector.load %arg10[%c0_1083, %c0_1084, %c96] : memref<1x4x256xf32, #tpu.memory_space<vmem>>, vector<1x1x16xf32>
    %1487 = vector.shape_cast %1486 : vector<1x1x16xf32> to vector<1x16xf32>
    %1488 = vector.shape_cast %1485 : vector<1x16xf32> to vector<1x1x16xf32>
    tpu.vector_store %arg10[%c0_1083, %c0_1084, %c96], %1488 {strides = array<i32>} : memref<1x4x256xf32, #tpu.memory_space<vmem>>, vector<1x1x16xf32>,
    %1489 = vector.extract_strided_slice %1460 {offsets = [7, 0], sizes = [1, 16], strides = [1, 1]} : vector<16x16xf32> to vector<1x16xf32>
    %c0_1085 = arith.constant 0 : index
    %c0_1086 = arith.constant 0 : index
    %c112 = arith.constant 112 : index
    %1490 = vector.load %arg10[%c0_1085, %c0_1086, %c112] : memref<1x4x256xf32, #tpu.memory_space<vmem>>, vector<1x1x16xf32>
    %1491 = vector.shape_cast %1490 : vector<1x1x16xf32> to vector<1x16xf32>
    %1492 = vector.shape_cast %1489 : vector<1x16xf32> to vector<1x1x16xf32>
    tpu.vector_store %arg10[%c0_1085, %c0_1086, %c112], %1492 {strides = array<i32>} : memref<1x4x256xf32, #tpu.memory_space<vmem>>, vector<1x1x16xf32>,
    %1493 = vector.extract_strided_slice %1460 {offsets = [8, 0], sizes = [1, 16], strides = [1, 1]} : vector<16x16xf32> to vector<1x16xf32>
    %c0_1087 = arith.constant 0 : index
    %c0_1088 = arith.constant 0 : index
    %c128 = arith.constant 128 : index
    %1494 = vector.load %arg10[%c0_1087, %c0_1088, %c128] : memref<1x4x256xf32, #tpu.memory_space<vmem>>, vector<1x1x16xf32>
    %1495 = vector.shape_cast %1494 : vector<1x1x16xf32> to vector<1x16xf32>
    %1496 = vector.shape_cast %1493 : vector<1x16xf32> to vector<1x1x16xf32>
    tpu.vector_store %arg10[%c0_1087, %c0_1088, %c128], %1496 {strides = array<i32>} : memref<1x4x256xf32, #tpu.memory_space<vmem>>, vector<1x1x16xf32>,
    %1497 = vector.extract_strided_slice %1460 {offsets = [9, 0], sizes = [1, 16], strides = [1, 1]} : vector<16x16xf32> to vector<1x16xf32>
    %c0_1089 = arith.constant 0 : index
    %c0_1090 = arith.constant 0 : index
    %c144 = arith.constant 144 : index
    %1498 = vector.load %arg10[%c0_1089, %c0_1090, %c144] : memref<1x4x256xf32, #tpu.memory_space<vmem>>, vector<1x1x16xf32>
    %1499 = vector.shape_cast %1498 : vector<1x1x16xf32> to vector<1x16xf32>
    %1500 = vector.shape_cast %1497 : vector<1x16xf32> to vector<1x1x16xf32>
    tpu.vector_store %arg10[%c0_1089, %c0_1090, %c144], %1500 {strides = array<i32>} : memref<1x4x256xf32, #tpu.memory_space<vmem>>, vector<1x1x16xf32>,
    %1501 = vector.extract_strided_slice %1460 {offsets = [10, 0], sizes = [1, 16], strides = [1, 1]} : vector<16x16xf32> to vector<1x16xf32>
    %c0_1091 = arith.constant 0 : index
    %c0_1092 = arith.constant 0 : index
    %c160 = arith.constant 160 : index
    %1502 = vector.load %arg10[%c0_1091, %c0_1092, %c160] : memref<1x4x256xf32, #tpu.memory_space<vmem>>, vector<1x1x16xf32>
    %1503 = vector.shape_cast %1502 : vector<1x1x16xf32> to vector<1x16xf32>
    %1504 = vector.shape_cast %1501 : vector<1x16xf32> to vector<1x1x16xf32>
    tpu.vector_store %arg10[%c0_1091, %c0_1092, %c160], %1504 {strides = array<i32>} : memref<1x4x256xf32, #tpu.memory_space<vmem>>, vector<1x1x16xf32>,
    %1505 = vector.extract_strided_slice %1460 {offsets = [11, 0], sizes = [1, 16], strides = [1, 1]} : vector<16x16xf32> to vector<1x16xf32>
    %c0_1093 = arith.constant 0 : index
    %c0_1094 = arith.constant 0 : index
    %c176 = arith.constant 176 : index
    %1506 = vector.load %arg10[%c0_1093, %c0_1094, %c176] : memref<1x4x256xf32, #tpu.memory_space<vmem>>, vector<1x1x16xf32>
    %1507 = vector.shape_cast %1506 : vector<1x1x16xf32> to vector<1x16xf32>
    %1508 = vector.shape_cast %1505 : vector<1x16xf32> to vector<1x1x16xf32>
    tpu.vector_store %arg10[%c0_1093, %c0_1094, %c176], %1508 {strides = array<i32>} : memref<1x4x256xf32, #tpu.memory_space<vmem>>, vector<1x1x16xf32>,
    %1509 = vector.extract_strided_slice %1460 {offsets = [12, 0], sizes = [1, 16], strides = [1, 1]} : vector<16x16xf32> to vector<1x16xf32>
    %c0_1095 = arith.constant 0 : index
    %c0_1096 = arith.constant 0 : index
    %c192 = arith.constant 192 : index
    %1510 = vector.load %arg10[%c0_1095, %c0_1096, %c192] : memref<1x4x256xf32, #tpu.memory_space<vmem>>, vector<1x1x16xf32>
    %1511 = vector.shape_cast %1510 : vector<1x1x16xf32> to vector<1x16xf32>
    %1512 = vector.shape_cast %1509 : vector<1x16xf32> to vector<1x1x16xf32>
    tpu.vector_store %arg10[%c0_1095, %c0_1096, %c192], %1512 {strides = array<i32>} : memref<1x4x256xf32, #tpu.memory_space<vmem>>, vector<1x1x16xf32>,
    %1513 = vector.extract_strided_slice %1460 {offsets = [13, 0], sizes = [1, 16], strides = [1, 1]} : vector<16x16xf32> to vector<1x16xf32>
    %c0_1097 = arith.constant 0 : index
    %c0_1098 = arith.constant 0 : index
    %c208 = arith.constant 208 : index
    %1514 = vector.load %arg10[%c0_1097, %c0_1098, %c208] : memref<1x4x256xf32, #tpu.memory_space<vmem>>, vector<1x1x16xf32>
    %1515 = vector.shape_cast %1514 : vector<1x1x16xf32> to vector<1x16xf32>
    %1516 = vector.shape_cast %1513 : vector<1x16xf32> to vector<1x1x16xf32>
    tpu.vector_store %arg10[%c0_1097, %c0_1098, %c208], %1516 {strides = array<i32>} : memref<1x4x256xf32, #tpu.memory_space<vmem>>, vector<1x1x16xf32>,
    %1517 = vector.extract_strided_slice %1460 {offsets = [14, 0], sizes = [1, 16], strides = [1, 1]} : vector<16x16xf32> to vector<1x16xf32>
    %c0_1099 = arith.constant 0 : index
    %c0_1100 = arith.constant 0 : index
    %c224 = arith.constant 224 : index
    %1518 = vector.load %arg10[%c0_1099, %c0_1100, %c224] : memref<1x4x256xf32, #tpu.memory_space<vmem>>, vector<1x1x16xf32>
    %1519 = vector.shape_cast %1518 : vector<1x1x16xf32> to vector<1x16xf32>
    %1520 = vector.shape_cast %1517 : vector<1x16xf32> to vector<1x1x16xf32>
    tpu.vector_store %arg10[%c0_1099, %c0_1100, %c224], %1520 {strides = array<i32>} : memref<1x4x256xf32, #tpu.memory_space<vmem>>, vector<1x1x16xf32>,
    %1521 = vector.extract_strided_slice %1460 {offsets = [15, 0], sizes = [1, 16], strides = [1, 1]} : vector<16x16xf32> to vector<1x16xf32>
    %c0_1101 = arith.constant 0 : index
    %c0_1102 = arith.constant 0 : index
    %c240 = arith.constant 240 : index
    %1522 = vector.load %arg10[%c0_1101, %c0_1102, %c240] : memref<1x4x256xf32, #tpu.memory_space<vmem>>, vector<1x1x16xf32>
    %1523 = vector.shape_cast %1522 : vector<1x1x16xf32> to vector<1x16xf32>
    %1524 = vector.shape_cast %1521 : vector<1x16xf32> to vector<1x1x16xf32>
    tpu.vector_store %arg10[%c0_1101, %c0_1102, %c240], %1524 {strides = array<i32>} : memref<1x4x256xf32, #tpu.memory_space<vmem>>, vector<1x1x16xf32>,
    %c0_1103 = arith.constant 0 : index
    %c2_1104 = arith.constant 2 : index
    %c52_1105 = arith.constant 52 : index
    %1525 = vector.load %arg11[%c0_1103, %c2_1104, %c52_1105] : memref<2x20x86xf32, #tpu.memory_space<vmem>>, vector<1x16x16xf32>
    %1526 = vector.shape_cast %1525 : vector<1x16x16xf32> to vector<16x16xf32>
    %1527 = arith.mulf %1526, %1449 : vector<16x16xf32>
    %1528 = vector.extract_strided_slice %1527 {offsets = [0, 0], sizes = [1, 16], strides = [1, 1]} : vector<16x16xf32> to vector<1x16xf32>
    %c0_1106 = arith.constant 0 : index
    %c1_1107 = arith.constant 1 : index
    %c0_1108 = arith.constant 0 : index
    %1529 = vector.load %arg10[%c0_1106, %c1_1107, %c0_1108] : memref<1x4x256xf32, #tpu.memory_space<vmem>>, vector<1x1x16xf32>
    %1530 = vector.shape_cast %1529 : vector<1x1x16xf32> to vector<1x16xf32>
    %1531 = vector.shape_cast %1528 : vector<1x16xf32> to vector<1x1x16xf32>
    tpu.vector_store %arg10[%c0_1106, %c1_1107, %c0_1108], %1531 {strides = array<i32>} : memref<1x4x256xf32, #tpu.memory_space<vmem>>, vector<1x1x16xf32>,
    %1532 = vector.extract_strided_slice %1527 {offsets = [1, 0], sizes = [1, 16], strides = [1, 1]} : vector<16x16xf32> to vector<1x16xf32>
    %c0_1109 = arith.constant 0 : index
    %c1_1110 = arith.constant 1 : index
    %c16_1111 = arith.constant 16 : index
    %1533 = vector.load %arg10[%c0_1109, %c1_1110, %c16_1111] : memref<1x4x256xf32, #tpu.memory_space<vmem>>, vector<1x1x16xf32>
    %1534 = vector.shape_cast %1533 : vector<1x1x16xf32> to vector<1x16xf32>
    %1535 = vector.shape_cast %1532 : vector<1x16xf32> to vector<1x1x16xf32>
    tpu.vector_store %arg10[%c0_1109, %c1_1110, %c16_1111], %1535 {strides = array<i32>} : memref<1x4x256xf32, #tpu.memory_space<vmem>>, vector<1x1x16xf32>,
    %1536 = vector.extract_strided_slice %1527 {offsets = [2, 0], sizes = [1, 16], strides = [1, 1]} : vector<16x16xf32> to vector<1x16xf32>
    %c0_1112 = arith.constant 0 : index
    %c1_1113 = arith.constant 1 : index
    %c32_1114 = arith.constant 32 : index
    %1537 = vector.load %arg10[%c0_1112, %c1_1113, %c32_1114] : memref<1x4x256xf32, #tpu.memory_space<vmem>>, vector<1x1x16xf32>
    %1538 = vector.shape_cast %1537 : vector<1x1x16xf32> to vector<1x16xf32>
    %1539 = vector.shape_cast %1536 : vector<1x16xf32> to vector<1x1x16xf32>
    tpu.vector_store %arg10[%c0_1112, %c1_1113, %c32_1114], %1539 {strides = array<i32>} : memref<1x4x256xf32, #tpu.memory_space<vmem>>, vector<1x1x16xf32>,
    %1540 = vector.extract_strided_slice %1527 {offsets = [3, 0], sizes = [1, 16], strides = [1, 1]} : vector<16x16xf32> to vector<1x16xf32>
    %c0_1115 = arith.constant 0 : index
    %c1_1116 = arith.constant 1 : index
    %c48_1117 = arith.constant 48 : index
    %1541 = vector.load %arg10[%c0_1115, %c1_1116, %c48_1117] : memref<1x4x256xf32, #tpu.memory_space<vmem>>, vector<1x1x16xf32>
    %1542 = vector.shape_cast %1541 : vector<1x1x16xf32> to vector<1x16xf32>
    %1543 = vector.shape_cast %1540 : vector<1x16xf32> to vector<1x1x16xf32>
    tpu.vector_store %arg10[%c0_1115, %c1_1116, %c48_1117], %1543 {strides = array<i32>} : memref<1x4x256xf32, #tpu.memory_space<vmem>>, vector<1x1x16xf32>,
    %1544 = vector.extract_strided_slice %1527 {offsets = [4, 0], sizes = [1, 16], strides = [1, 1]} : vector<16x16xf32> to vector<1x16xf32>
    %c0_1118 = arith.constant 0 : index
    %c1_1119 = arith.constant 1 : index
    %c64_1120 = arith.constant 64 : index
    %1545 = vector.load %arg10[%c0_1118, %c1_1119, %c64_1120] : memref<1x4x256xf32, #tpu.memory_space<vmem>>, vector<1x1x16xf32>
    %1546 = vector.shape_cast %1545 : vector<1x1x16xf32> to vector<1x16xf32>
    %1547 = vector.shape_cast %1544 : vector<1x16xf32> to vector<1x1x16xf32>
    tpu.vector_store %arg10[%c0_1118, %c1_1119, %c64_1120], %1547 {strides = array<i32>} : memref<1x4x256xf32, #tpu.memory_space<vmem>>, vector<1x1x16xf32>,
    %1548 = vector.extract_strided_slice %1527 {offsets = [5, 0], sizes = [1, 16], strides = [1, 1]} : vector<16x16xf32> to vector<1x16xf32>
    %c0_1121 = arith.constant 0 : index
    %c1_1122 = arith.constant 1 : index
    %c80_1123 = arith.constant 80 : index
    %1549 = vector.load %arg10[%c0_1121, %c1_1122, %c80_1123] : memref<1x4x256xf32, #tpu.memory_space<vmem>>, vector<1x1x16xf32>
    %1550 = vector.shape_cast %1549 : vector<1x1x16xf32> to vector<1x16xf32>
    %1551 = vector.shape_cast %1548 : vector<1x16xf32> to vector<1x1x16xf32>
    tpu.vector_store %arg10[%c0_1121, %c1_1122, %c80_1123], %1551 {strides = array<i32>} : memref<1x4x256xf32, #tpu.memory_space<vmem>>, vector<1x1x16xf32>,
    %1552 = vector.extract_strided_slice %1527 {offsets = [6, 0], sizes = [1, 16], strides = [1, 1]} : vector<16x16xf32> to vector<1x16xf32>
    %c0_1124 = arith.constant 0 : index
    %c1_1125 = arith.constant 1 : index
    %c96_1126 = arith.constant 96 : index
    %1553 = vector.load %arg10[%c0_1124, %c1_1125, %c96_1126] : memref<1x4x256xf32, #tpu.memory_space<vmem>>, vector<1x1x16xf32>
    %1554 = vector.shape_cast %1553 : vector<1x1x16xf32> to vector<1x16xf32>
    %1555 = vector.shape_cast %1552 : vector<1x16xf32> to vector<1x1x16xf32>
    tpu.vector_store %arg10[%c0_1124, %c1_1125, %c96_1126], %1555 {strides = array<i32>} : memref<1x4x256xf32, #tpu.memory_space<vmem>>, vector<1x1x16xf32>,
    %1556 = vector.extract_strided_slice %1527 {offsets = [7, 0], sizes = [1, 16], strides = [1, 1]} : vector<16x16xf32> to vector<1x16xf32>
    %c0_1127 = arith.constant 0 : index
    %c1_1128 = arith.constant 1 : index
    %c112_1129 = arith.constant 112 : index
    %1557 = vector.load %arg10[%c0_1127, %c1_1128, %c112_1129] : memref<1x4x256xf32, #tpu.memory_space<vmem>>, vector<1x1x16xf32>
    %1558 = vector.shape_cast %1557 : vector<1x1x16xf32> to vector<1x16xf32>
    %1559 = vector.shape_cast %1556 : vector<1x16xf32> to vector<1x1x16xf32>
    tpu.vector_store %arg10[%c0_1127, %c1_1128, %c112_1129], %1559 {strides = array<i32>} : memref<1x4x256xf32, #tpu.memory_space<vmem>>, vector<1x1x16xf32>,
    %1560 = vector.extract_strided_slice %1527 {offsets = [8, 0], sizes = [1, 16], strides = [1, 1]} : vector<16x16xf32> to vector<1x16xf32>
    %c0_1130 = arith.constant 0 : index
    %c1_1131 = arith.constant 1 : index
    %c128_1132 = arith.constant 128 : index
    %1561 = vector.load %arg10[%c0_1130, %c1_1131, %c128_1132] : memref<1x4x256xf32, #tpu.memory_space<vmem>>, vector<1x1x16xf32>
    %1562 = vector.shape_cast %1561 : vector<1x1x16xf32> to vector<1x16xf32>
    %1563 = vector.shape_cast %1560 : vector<1x16xf32> to vector<1x1x16xf32>
    tpu.vector_store %arg10[%c0_1130, %c1_1131, %c128_1132], %1563 {strides = array<i32>} : memref<1x4x256xf32, #tpu.memory_space<vmem>>, vector<1x1x16xf32>,
    %1564 = vector.extract_strided_slice %1527 {offsets = [9, 0], sizes = [1, 16], strides = [1, 1]} : vector<16x16xf32> to vector<1x16xf32>
    %c0_1133 = arith.constant 0 : index
    %c1_1134 = arith.constant 1 : index
    %c144_1135 = arith.constant 144 : index
    %1565 = vector.load %arg10[%c0_1133, %c1_1134, %c144_1135] : memref<1x4x256xf32, #tpu.memory_space<vmem>>, vector<1x1x16xf32>
    %1566 = vector.shape_cast %1565 : vector<1x1x16xf32> to vector<1x16xf32>
    %1567 = vector.shape_cast %1564 : vector<1x16xf32> to vector<1x1x16xf32>
    tpu.vector_store %arg10[%c0_1133, %c1_1134, %c144_1135], %1567 {strides = array<i32>} : memref<1x4x256xf32, #tpu.memory_space<vmem>>, vector<1x1x16xf32>,
    %1568 = vector.extract_strided_slice %1527 {offsets = [10, 0], sizes = [1, 16], strides = [1, 1]} : vector<16x16xf32> to vector<1x16xf32>
    %c0_1136 = arith.constant 0 : index
    %c1_1137 = arith.constant 1 : index
    %c160_1138 = arith.constant 160 : index
    %1569 = vector.load %arg10[%c0_1136, %c1_1137, %c160_1138] : memref<1x4x256xf32, #tpu.memory_space<vmem>>, vector<1x1x16xf32>
    %1570 = vector.shape_cast %1569 : vector<1x1x16xf32> to vector<1x16xf32>
    %1571 = vector.shape_cast %1568 : vector<1x16xf32> to vector<1x1x16xf32>
    tpu.vector_store %arg10[%c0_1136, %c1_1137, %c160_1138], %1571 {strides = array<i32>} : memref<1x4x256xf32, #tpu.memory_space<vmem>>, vector<1x1x16xf32>,
    %1572 = vector.extract_strided_slice %1527 {offsets = [11, 0], sizes = [1, 16], strides = [1, 1]} : vector<16x16xf32> to vector<1x16xf32>
    %c0_1139 = arith.constant 0 : index
    %c1_1140 = arith.constant 1 : index
    %c176_1141 = arith.constant 176 : index
    %1573 = vector.load %arg10[%c0_1139, %c1_1140, %c176_1141] : memref<1x4x256xf32, #tpu.memory_space<vmem>>, vector<1x1x16xf32>
    %1574 = vector.shape_cast %1573 : vector<1x1x16xf32> to vector<1x16xf32>
    %1575 = vector.shape_cast %1572 : vector<1x16xf32> to vector<1x1x16xf32>
    tpu.vector_store %arg10[%c0_1139, %c1_1140, %c176_1141], %1575 {strides = array<i32>} : memref<1x4x256xf32, #tpu.memory_space<vmem>>, vector<1x1x16xf32>,
    %1576 = vector.extract_strided_slice %1527 {offsets = [12, 0], sizes = [1, 16], strides = [1, 1]} : vector<16x16xf32> to vector<1x16xf32>
    %c0_1142 = arith.constant 0 : index
    %c1_1143 = arith.constant 1 : index
    %c192_1144 = arith.constant 192 : index
    %1577 = vector.load %arg10[%c0_1142, %c1_1143, %c192_1144] : memref<1x4x256xf32, #tpu.memory_space<vmem>>, vector<1x1x16xf32>
    %1578 = vector.shape_cast %1577 : vector<1x1x16xf32> to vector<1x16xf32>
    %1579 = vector.shape_cast %1576 : vector<1x16xf32> to vector<1x1x16xf32>
    tpu.vector_store %arg10[%c0_1142, %c1_1143, %c192_1144], %1579 {strides = array<i32>} : memref<1x4x256xf32, #tpu.memory_space<vmem>>, vector<1x1x16xf32>,
    %1580 = vector.extract_strided_slice %1527 {offsets = [13, 0], sizes = [1, 16], strides = [1, 1]} : vector<16x16xf32> to vector<1x16xf32>
    %c0_1145 = arith.constant 0 : index
    %c1_1146 = arith.constant 1 : index
    %c208_1147 = arith.constant 208 : index
    %1581 = vector.load %arg10[%c0_1145, %c1_1146, %c208_1147] : memref<1x4x256xf32, #tpu.memory_space<vmem>>, vector<1x1x16xf32>
    %1582 = vector.shape_cast %1581 : vector<1x1x16xf32> to vector<1x16xf32>
    %1583 = vector.shape_cast %1580 : vector<1x16xf32> to vector<1x1x16xf32>
    tpu.vector_store %arg10[%c0_1145, %c1_1146, %c208_1147], %1583 {strides = array<i32>} : memref<1x4x256xf32, #tpu.memory_space<vmem>>, vector<1x1x16xf32>,
    %1584 = vector.extract_strided_slice %1527 {offsets = [14, 0], sizes = [1, 16], strides = [1, 1]} : vector<16x16xf32> to vector<1x16xf32>
    %c0_1148 = arith.constant 0 : index
    %c1_1149 = arith.constant 1 : index
    %c224_1150 = arith.constant 224 : index
    %1585 = vector.load %arg10[%c0_1148, %c1_1149, %c224_1150] : memref<1x4x256xf32, #tpu.memory_space<vmem>>, vector<1x1x16xf32>
    %1586 = vector.shape_cast %1585 : vector<1x1x16xf32> to vector<1x16xf32>
    %1587 = vector.shape_cast %1584 : vector<1x16xf32> to vector<1x1x16xf32>
    tpu.vector_store %arg10[%c0_1148, %c1_1149, %c224_1150], %1587 {strides = array<i32>} : memref<1x4x256xf32, #tpu.memory_space<vmem>>, vector<1x1x16xf32>,
    %1588 = vector.extract_strided_slice %1527 {offsets = [15, 0], sizes = [1, 16], strides = [1, 1]} : vector<16x16xf32> to vector<1x16xf32>
    %c0_1151 = arith.constant 0 : index
    %c1_1152 = arith.constant 1 : index
    %c240_1153 = arith.constant 240 : index
    %1589 = vector.load %arg10[%c0_1151, %c1_1152, %c240_1153] : memref<1x4x256xf32, #tpu.memory_space<vmem>>, vector<1x1x16xf32>
    %1590 = vector.shape_cast %1589 : vector<1x1x16xf32> to vector<1x16xf32>
    %1591 = vector.shape_cast %1588 : vector<1x16xf32> to vector<1x1x16xf32>
    tpu.vector_store %arg10[%c0_1151, %c1_1152, %c240_1153], %1591 {strides = array<i32>} : memref<1x4x256xf32, #tpu.memory_space<vmem>>, vector<1x1x16xf32>,
    %c1_1154 = arith.constant 1 : index
    %c2_1155 = arith.constant 2 : index
    %c18_1156 = arith.constant 18 : index
    %1592 = vector.load %arg11[%c1_1154, %c2_1155, %c18_1156] : memref<2x20x86xf32, #tpu.memory_space<vmem>>, vector<1x16x16xf32>
    %1593 = vector.shape_cast %1592 : vector<1x16x16xf32> to vector<16x16xf32>
    %1594 = arith.mulf %1593, %1453 : vector<16x16xf32>
    %1595 = vector.extract_strided_slice %1594 {offsets = [0, 0], sizes = [1, 16], strides = [1, 1]} : vector<16x16xf32> to vector<1x16xf32>
    %c0_1157 = arith.constant 0 : index
    %c2_1158 = arith.constant 2 : index
    %c0_1159 = arith.constant 0 : index
    %1596 = vector.load %arg10[%c0_1157, %c2_1158, %c0_1159] : memref<1x4x256xf32, #tpu.memory_space<vmem>>, vector<1x1x16xf32>
    %1597 = vector.shape_cast %1596 : vector<1x1x16xf32> to vector<1x16xf32>
    %1598 = vector.shape_cast %1595 : vector<1x16xf32> to vector<1x1x16xf32>
    tpu.vector_store %arg10[%c0_1157, %c2_1158, %c0_1159], %1598 {strides = array<i32>} : memref<1x4x256xf32, #tpu.memory_space<vmem>>, vector<1x1x16xf32>,
    %1599 = vector.extract_strided_slice %1594 {offsets = [1, 0], sizes = [1, 16], strides = [1, 1]} : vector<16x16xf32> to vector<1x16xf32>
    %c0_1160 = arith.constant 0 : index
    %c2_1161 = arith.constant 2 : index
    %c16_1162 = arith.constant 16 : index
    %1600 = vector.load %arg10[%c0_1160, %c2_1161, %c16_1162] : memref<1x4x256xf32, #tpu.memory_space<vmem>>, vector<1x1x16xf32>
    %1601 = vector.shape_cast %1600 : vector<1x1x16xf32> to vector<1x16xf32>
    %1602 = vector.shape_cast %1599 : vector<1x16xf32> to vector<1x1x16xf32>
    tpu.vector_store %arg10[%c0_1160, %c2_1161, %c16_1162], %1602 {strides = array<i32>} : memref<1x4x256xf32, #tpu.memory_space<vmem>>, vector<1x1x16xf32>,
    %1603 = vector.extract_strided_slice %1594 {offsets = [2, 0], sizes = [1, 16], strides = [1, 1]} : vector<16x16xf32> to vector<1x16xf32>
    %c0_1163 = arith.constant 0 : index
    %c2_1164 = arith.constant 2 : index
    %c32_1165 = arith.constant 32 : index
    %1604 = vector.load %arg10[%c0_1163, %c2_1164, %c32_1165] : memref<1x4x256xf32, #tpu.memory_space<vmem>>, vector<1x1x16xf32>
    %1605 = vector.shape_cast %1604 : vector<1x1x16xf32> to vector<1x16xf32>
    %1606 = vector.shape_cast %1603 : vector<1x16xf32> to vector<1x1x16xf32>
    tpu.vector_store %arg10[%c0_1163, %c2_1164, %c32_1165], %1606 {strides = array<i32>} : memref<1x4x256xf32, #tpu.memory_space<vmem>>, vector<1x1x16xf32>,
    %1607 = vector.extract_strided_slice %1594 {offsets = [3, 0], sizes = [1, 16], strides = [1, 1]} : vector<16x16xf32> to vector<1x16xf32>
    %c0_1166 = arith.constant 0 : index
    %c2_1167 = arith.constant 2 : index
    %c48_1168 = arith.constant 48 : index
    %1608 = vector.load %arg10[%c0_1166, %c2_1167, %c48_1168] : memref<1x4x256xf32, #tpu.memory_space<vmem>>, vector<1x1x16xf32>
    %1609 = vector.shape_cast %1608 : vector<1x1x16xf32> to vector<1x16xf32>
    %1610 = vector.shape_cast %1607 : vector<1x16xf32> to vector<1x1x16xf32>
    tpu.vector_store %arg10[%c0_1166, %c2_1167, %c48_1168], %1610 {strides = array<i32>} : memref<1x4x256xf32, #tpu.memory_space<vmem>>, vector<1x1x16xf32>,
    %1611 = vector.extract_strided_slice %1594 {offsets = [4, 0], sizes = [1, 16], strides = [1, 1]} : vector<16x16xf32> to vector<1x16xf32>
    %c0_1169 = arith.constant 0 : index
    %c2_1170 = arith.constant 2 : index
    %c64_1171 = arith.constant 64 : index
    %1612 = vector.load %arg10[%c0_1169, %c2_1170, %c64_1171] : memref<1x4x256xf32, #tpu.memory_space<vmem>>, vector<1x1x16xf32>
    %1613 = vector.shape_cast %1612 : vector<1x1x16xf32> to vector<1x16xf32>
    %1614 = vector.shape_cast %1611 : vector<1x16xf32> to vector<1x1x16xf32>
    tpu.vector_store %arg10[%c0_1169, %c2_1170, %c64_1171], %1614 {strides = array<i32>} : memref<1x4x256xf32, #tpu.memory_space<vmem>>, vector<1x1x16xf32>,
    %1615 = vector.extract_strided_slice %1594 {offsets = [5, 0], sizes = [1, 16], strides = [1, 1]} : vector<16x16xf32> to vector<1x16xf32>
    %c0_1172 = arith.constant 0 : index
    %c2_1173 = arith.constant 2 : index
    %c80_1174 = arith.constant 80 : index
    %1616 = vector.load %arg10[%c0_1172, %c2_1173, %c80_1174] : memref<1x4x256xf32, #tpu.memory_space<vmem>>, vector<1x1x16xf32>
    %1617 = vector.shape_cast %1616 : vector<1x1x16xf32> to vector<1x16xf32>
    %1618 = vector.shape_cast %1615 : vector<1x16xf32> to vector<1x1x16xf32>
    tpu.vector_store %arg10[%c0_1172, %c2_1173, %c80_1174], %1618 {strides = array<i32>} : memref<1x4x256xf32, #tpu.memory_space<vmem>>, vector<1x1x16xf32>,
    %1619 = vector.extract_strided_slice %1594 {offsets = [6, 0], sizes = [1, 16], strides = [1, 1]} : vector<16x16xf32> to vector<1x16xf32>
    %c0_1175 = arith.constant 0 : index
    %c2_1176 = arith.constant 2 : index
    %c96_1177 = arith.constant 96 : index
    %1620 = vector.load %arg10[%c0_1175, %c2_1176, %c96_1177] : memref<1x4x256xf32, #tpu.memory_space<vmem>>, vector<1x1x16xf32>
    %1621 = vector.shape_cast %1620 : vector<1x1x16xf32> to vector<1x16xf32>
    %1622 = vector.shape_cast %1619 : vector<1x16xf32> to vector<1x1x16xf32>
    tpu.vector_store %arg10[%c0_1175, %c2_1176, %c96_1177], %1622 {strides = array<i32>} : memref<1x4x256xf32, #tpu.memory_space<vmem>>, vector<1x1x16xf32>,
    %1623 = vector.extract_strided_slice %1594 {offsets = [7, 0], sizes = [1, 16], strides = [1, 1]} : vector<16x16xf32> to vector<1x16xf32>
    %c0_1178 = arith.constant 0 : index
    %c2_1179 = arith.constant 2 : index
    %c112_1180 = arith.constant 112 : index
    %1624 = vector.load %arg10[%c0_1178, %c2_1179, %c112_1180] : memref<1x4x256xf32, #tpu.memory_space<vmem>>, vector<1x1x16xf32>
    %1625 = vector.shape_cast %1624 : vector<1x1x16xf32> to vector<1x16xf32>
    %1626 = vector.shape_cast %1623 : vector<1x16xf32> to vector<1x1x16xf32>
    tpu.vector_store %arg10[%c0_1178, %c2_1179, %c112_1180], %1626 {strides = array<i32>} : memref<1x4x256xf32, #tpu.memory_space<vmem>>, vector<1x1x16xf32>,
    %1627 = vector.extract_strided_slice %1594 {offsets = [8, 0], sizes = [1, 16], strides = [1, 1]} : vector<16x16xf32> to vector<1x16xf32>
    %c0_1181 = arith.constant 0 : index
    %c2_1182 = arith.constant 2 : index
    %c128_1183 = arith.constant 128 : index
    %1628 = vector.load %arg10[%c0_1181, %c2_1182, %c128_1183] : memref<1x4x256xf32, #tpu.memory_space<vmem>>, vector<1x1x16xf32>
    %1629 = vector.shape_cast %1628 : vector<1x1x16xf32> to vector<1x16xf32>
    %1630 = vector.shape_cast %1627 : vector<1x16xf32> to vector<1x1x16xf32>
    tpu.vector_store %arg10[%c0_1181, %c2_1182, %c128_1183], %1630 {strides = array<i32>} : memref<1x4x256xf32, #tpu.memory_space<vmem>>, vector<1x1x16xf32>,
    %1631 = vector.extract_strided_slice %1594 {offsets = [9, 0], sizes = [1, 16], strides = [1, 1]} : vector<16x16xf32> to vector<1x16xf32>
    %c0_1184 = arith.constant 0 : index
    %c2_1185 = arith.constant 2 : index
    %c144_1186 = arith.constant 144 : index
    %1632 = vector.load %arg10[%c0_1184, %c2_1185, %c144_1186] : memref<1x4x256xf32, #tpu.memory_space<vmem>>, vector<1x1x16xf32>
    %1633 = vector.shape_cast %1632 : vector<1x1x16xf32> to vector<1x16xf32>
    %1634 = vector.shape_cast %1631 : vector<1x16xf32> to vector<1x1x16xf32>
    tpu.vector_store %arg10[%c0_1184, %c2_1185, %c144_1186], %1634 {strides = array<i32>} : memref<1x4x256xf32, #tpu.memory_space<vmem>>, vector<1x1x16xf32>,
    %1635 = vector.extract_strided_slice %1594 {offsets = [10, 0], sizes = [1, 16], strides = [1, 1]} : vector<16x16xf32> to vector<1x16xf32>
    %c0_1187 = arith.constant 0 : index
    %c2_1188 = arith.constant 2 : index
    %c160_1189 = arith.constant 160 : index
    %1636 = vector.load %arg10[%c0_1187, %c2_1188, %c160_1189] : memref<1x4x256xf32, #tpu.memory_space<vmem>>, vector<1x1x16xf32>
    %1637 = vector.shape_cast %1636 : vector<1x1x16xf32> to vector<1x16xf32>
    %1638 = vector.shape_cast %1635 : vector<1x16xf32> to vector<1x1x16xf32>
    tpu.vector_store %arg10[%c0_1187, %c2_1188, %c160_1189], %1638 {strides = array<i32>} : memref<1x4x256xf32, #tpu.memory_space<vmem>>, vector<1x1x16xf32>,
    %1639 = vector.extract_strided_slice %1594 {offsets = [11, 0], sizes = [1, 16], strides = [1, 1]} : vector<16x16xf32> to vector<1x16xf32>
    %c0_1190 = arith.constant 0 : index
    %c2_1191 = arith.constant 2 : index
    %c176_1192 = arith.constant 176 : index
    %1640 = vector.load %arg10[%c0_1190, %c2_1191, %c176_1192] : memref<1x4x256xf32, #tpu.memory_space<vmem>>, vector<1x1x16xf32>
    %1641 = vector.shape_cast %1640 : vector<1x1x16xf32> to vector<1x16xf32>
    %1642 = vector.shape_cast %1639 : vector<1x16xf32> to vector<1x1x16xf32>
    tpu.vector_store %arg10[%c0_1190, %c2_1191, %c176_1192], %1642 {strides = array<i32>} : memref<1x4x256xf32, #tpu.memory_space<vmem>>, vector<1x1x16xf32>,
    %1643 = vector.extract_strided_slice %1594 {offsets = [12, 0], sizes = [1, 16], strides = [1, 1]} : vector<16x16xf32> to vector<1x16xf32>
    %c0_1193 = arith.constant 0 : index
    %c2_1194 = arith.constant 2 : index
    %c192_1195 = arith.constant 192 : index
    %1644 = vector.load %arg10[%c0_1193, %c2_1194, %c192_1195] : memref<1x4x256xf32, #tpu.memory_space<vmem>>, vector<1x1x16xf32>
    %1645 = vector.shape_cast %1644 : vector<1x1x16xf32> to vector<1x16xf32>
    %1646 = vector.shape_cast %1643 : vector<1x16xf32> to vector<1x1x16xf32>
    tpu.vector_store %arg10[%c0_1193, %c2_1194, %c192_1195], %1646 {strides = array<i32>} : memref<1x4x256xf32, #tpu.memory_space<vmem>>, vector<1x1x16xf32>,
    %1647 = vector.extract_strided_slice %1594 {offsets = [13, 0], sizes = [1, 16], strides = [1, 1]} : vector<16x16xf32> to vector<1x16xf32>
    %c0_1196 = arith.constant 0 : index
    %c2_1197 = arith.constant 2 : index
    %c208_1198 = arith.constant 208 : index
    %1648 = vector.load %arg10[%c0_1196, %c2_1197, %c208_1198] : memref<1x4x256xf32, #tpu.memory_space<vmem>>, vector<1x1x16xf32>
    %1649 = vector.shape_cast %1648 : vector<1x1x16xf32> to vector<1x16xf32>
    %1650 = vector.shape_cast %1647 : vector<1x16xf32> to vector<1x1x16xf32>
    tpu.vector_store %arg10[%c0_1196, %c2_1197, %c208_1198], %1650 {strides = array<i32>} : memref<1x4x256xf32, #tpu.memory_space<vmem>>, vector<1x1x16xf32>,
    %1651 = vector.extract_strided_slice %1594 {offsets = [14, 0], sizes = [1, 16], strides = [1, 1]} : vector<16x16xf32> to vector<1x16xf32>
    %c0_1199 = arith.constant 0 : index
    %c2_1200 = arith.constant 2 : index
    %c224_1201 = arith.constant 224 : index
    %1652 = vector.load %arg10[%c0_1199, %c2_1200, %c224_1201] : memref<1x4x256xf32, #tpu.memory_space<vmem>>, vector<1x1x16xf32>
    %1653 = vector.shape_cast %1652 : vector<1x1x16xf32> to vector<1x16xf32>
    %1654 = vector.shape_cast %1651 : vector<1x16xf32> to vector<1x1x16xf32>
    tpu.vector_store %arg10[%c0_1199, %c2_1200, %c224_1201], %1654 {strides = array<i32>} : memref<1x4x256xf32, #tpu.memory_space<vmem>>, vector<1x1x16xf32>,
    %1655 = vector.extract_strided_slice %1594 {offsets = [15, 0], sizes = [1, 16], strides = [1, 1]} : vector<16x16xf32> to vector<1x16xf32>
    %c0_1202 = arith.constant 0 : index
    %c2_1203 = arith.constant 2 : index
    %c240_1204 = arith.constant 240 : index
    %1656 = vector.load %arg10[%c0_1202, %c2_1203, %c240_1204] : memref<1x4x256xf32, #tpu.memory_space<vmem>>, vector<1x1x16xf32>
    %1657 = vector.shape_cast %1656 : vector<1x1x16xf32> to vector<1x16xf32>
    %1658 = vector.shape_cast %1655 : vector<1x16xf32> to vector<1x1x16xf32>
    tpu.vector_store %arg10[%c0_1202, %c2_1203, %c240_1204], %1658 {strides = array<i32>} : memref<1x4x256xf32, #tpu.memory_space<vmem>>, vector<1x1x16xf32>,
    %c1_1205 = arith.constant 1 : index
    %c2_1206 = arith.constant 2 : index
    %c52_1207 = arith.constant 52 : index
    %1659 = vector.load %arg11[%c1_1205, %c2_1206, %c52_1207] : memref<2x20x86xf32, #tpu.memory_space<vmem>>, vector<1x16x16xf32>
    %1660 = vector.shape_cast %1659 : vector<1x16x16xf32> to vector<16x16xf32>
    %1661 = arith.mulf %1660, %1457 : vector<16x16xf32>
    %1662 = vector.extract_strided_slice %1661 {offsets = [0, 0], sizes = [1, 16], strides = [1, 1]} : vector<16x16xf32> to vector<1x16xf32>
    %c0_1208 = arith.constant 0 : index
    %c3_1209 = arith.constant 3 : index
    %c0_1210 = arith.constant 0 : index
    %1663 = vector.load %arg10[%c0_1208, %c3_1209, %c0_1210] : memref<1x4x256xf32, #tpu.memory_space<vmem>>, vector<1x1x16xf32>
    %1664 = vector.shape_cast %1663 : vector<1x1x16xf32> to vector<1x16xf32>
    %1665 = vector.shape_cast %1662 : vector<1x16xf32> to vector<1x1x16xf32>
    tpu.vector_store %arg10[%c0_1208, %c3_1209, %c0_1210], %1665 {strides = array<i32>} : memref<1x4x256xf32, #tpu.memory_space<vmem>>, vector<1x1x16xf32>,
    %1666 = vector.extract_strided_slice %1661 {offsets = [1, 0], sizes = [1, 16], strides = [1, 1]} : vector<16x16xf32> to vector<1x16xf32>
    %c0_1211 = arith.constant 0 : index
    %c3_1212 = arith.constant 3 : index
    %c16_1213 = arith.constant 16 : index
    %1667 = vector.load %arg10[%c0_1211, %c3_1212, %c16_1213] : memref<1x4x256xf32, #tpu.memory_space<vmem>>, vector<1x1x16xf32>
    %1668 = vector.shape_cast %1667 : vector<1x1x16xf32> to vector<1x16xf32>
    %1669 = vector.shape_cast %1666 : vector<1x16xf32> to vector<1x1x16xf32>
    tpu.vector_store %arg10[%c0_1211, %c3_1212, %c16_1213], %1669 {strides = array<i32>} : memref<1x4x256xf32, #tpu.memory_space<vmem>>, vector<1x1x16xf32>,
    %1670 = vector.extract_strided_slice %1661 {offsets = [2, 0], sizes = [1, 16], strides = [1, 1]} : vector<16x16xf32> to vector<1x16xf32>
    %c0_1214 = arith.constant 0 : index
    %c3_1215 = arith.constant 3 : index
    %c32_1216 = arith.constant 32 : index
    %1671 = vector.load %arg10[%c0_1214, %c3_1215, %c32_1216] : memref<1x4x256xf32, #tpu.memory_space<vmem>>, vector<1x1x16xf32>
    %1672 = vector.shape_cast %1671 : vector<1x1x16xf32> to vector<1x16xf32>
    %1673 = vector.shape_cast %1670 : vector<1x16xf32> to vector<1x1x16xf32>
    tpu.vector_store %arg10[%c0_1214, %c3_1215, %c32_1216], %1673 {strides = array<i32>} : memref<1x4x256xf32, #tpu.memory_space<vmem>>, vector<1x1x16xf32>,
    %1674 = vector.extract_strided_slice %1661 {offsets = [3, 0], sizes = [1, 16], strides = [1, 1]} : vector<16x16xf32> to vector<1x16xf32>
    %c0_1217 = arith.constant 0 : index
    %c3_1218 = arith.constant 3 : index
    %c48_1219 = arith.constant 48 : index
    %1675 = vector.load %arg10[%c0_1217, %c3_1218, %c48_1219] : memref<1x4x256xf32, #tpu.memory_space<vmem>>, vector<1x1x16xf32>
    %1676 = vector.shape_cast %1675 : vector<1x1x16xf32> to vector<1x16xf32>
    %1677 = vector.shape_cast %1674 : vector<1x16xf32> to vector<1x1x16xf32>
    tpu.vector_store %arg10[%c0_1217, %c3_1218, %c48_1219], %1677 {strides = array<i32>} : memref<1x4x256xf32, #tpu.memory_space<vmem>>, vector<1x1x16xf32>,
    %1678 = vector.extract_strided_slice %1661 {offsets = [4, 0], sizes = [1, 16], strides = [1, 1]} : vector<16x16xf32> to vector<1x16xf32>
    %c0_1220 = arith.constant 0 : index
    %c3_1221 = arith.constant 3 : index
    %c64_1222 = arith.constant 64 : index
    %1679 = vector.load %arg10[%c0_1220, %c3_1221, %c64_1222] : memref<1x4x256xf32, #tpu.memory_space<vmem>>, vector<1x1x16xf32>
    %1680 = vector.shape_cast %1679 : vector<1x1x16xf32> to vector<1x16xf32>
    %1681 = vector.shape_cast %1678 : vector<1x16xf32> to vector<1x1x16xf32>
    tpu.vector_store %arg10[%c0_1220, %c3_1221, %c64_1222], %1681 {strides = array<i32>} : memref<1x4x256xf32, #tpu.memory_space<vmem>>, vector<1x1x16xf32>,
    %1682 = vector.extract_strided_slice %1661 {offsets = [5, 0], sizes = [1, 16], strides = [1, 1]} : vector<16x16xf32> to vector<1x16xf32>
    %c0_1223 = arith.constant 0 : index
    %c3_1224 = arith.constant 3 : index
    %c80_1225 = arith.constant 80 : index
    %1683 = vector.load %arg10[%c0_1223, %c3_1224, %c80_1225] : memref<1x4x256xf32, #tpu.memory_space<vmem>>, vector<1x1x16xf32>
    %1684 = vector.shape_cast %1683 : vector<1x1x16xf32> to vector<1x16xf32>
    %1685 = vector.shape_cast %1682 : vector<1x16xf32> to vector<1x1x16xf32>
    tpu.vector_store %arg10[%c0_1223, %c3_1224, %c80_1225], %1685 {strides = array<i32>} : memref<1x4x256xf32, #tpu.memory_space<vmem>>, vector<1x1x16xf32>,
    %1686 = vector.extract_strided_slice %1661 {offsets = [6, 0], sizes = [1, 16], strides = [1, 1]} : vector<16x16xf32> to vector<1x16xf32>
    %c0_1226 = arith.constant 0 : index
    %c3_1227 = arith.constant 3 : index
    %c96_1228 = arith.constant 96 : index
    %1687 = vector.load %arg10[%c0_1226, %c3_1227, %c96_1228] : memref<1x4x256xf32, #tpu.memory_space<vmem>>, vector<1x1x16xf32>
    %1688 = vector.shape_cast %1687 : vector<1x1x16xf32> to vector<1x16xf32>
    %1689 = vector.shape_cast %1686 : vector<1x16xf32> to vector<1x1x16xf32>
    tpu.vector_store %arg10[%c0_1226, %c3_1227, %c96_1228], %1689 {strides = array<i32>} : memref<1x4x256xf32, #tpu.memory_space<vmem>>, vector<1x1x16xf32>,
    %1690 = vector.extract_strided_slice %1661 {offsets = [7, 0], sizes = [1, 16], strides = [1, 1]} : vector<16x16xf32> to vector<1x16xf32>
    %c0_1229 = arith.constant 0 : index
    %c3_1230 = arith.constant 3 : index
    %c112_1231 = arith.constant 112 : index
    %1691 = vector.load %arg10[%c0_1229, %c3_1230, %c112_1231] : memref<1x4x256xf32, #tpu.memory_space<vmem>>, vector<1x1x16xf32>
    %1692 = vector.shape_cast %1691 : vector<1x1x16xf32> to vector<1x16xf32>
    %1693 = vector.shape_cast %1690 : vector<1x16xf32> to vector<1x1x16xf32>
    tpu.vector_store %arg10[%c0_1229, %c3_1230, %c112_1231], %1693 {strides = array<i32>} : memref<1x4x256xf32, #tpu.memory_space<vmem>>, vector<1x1x16xf32>,
    %1694 = vector.extract_strided_slice %1661 {offsets = [8, 0], sizes = [1, 16], strides = [1, 1]} : vector<16x16xf32> to vector<1x16xf32>
    %c0_1232 = arith.constant 0 : index
    %c3_1233 = arith.constant 3 : index
    %c128_1234 = arith.constant 128 : index
    %1695 = vector.load %arg10[%c0_1232, %c3_1233, %c128_1234] : memref<1x4x256xf32, #tpu.memory_space<vmem>>, vector<1x1x16xf32>
    %1696 = vector.shape_cast %1695 : vector<1x1x16xf32> to vector<1x16xf32>
    %1697 = vector.shape_cast %1694 : vector<1x16xf32> to vector<1x1x16xf32>
    tpu.vector_store %arg10[%c0_1232, %c3_1233, %c128_1234], %1697 {strides = array<i32>} : memref<1x4x256xf32, #tpu.memory_space<vmem>>, vector<1x1x16xf32>,
    %1698 = vector.extract_strided_slice %1661 {offsets = [9, 0], sizes = [1, 16], strides = [1, 1]} : vector<16x16xf32> to vector<1x16xf32>
    %c0_1235 = arith.constant 0 : index
    %c3_1236 = arith.constant 3 : index
    %c144_1237 = arith.constant 144 : index
    %1699 = vector.load %arg10[%c0_1235, %c3_1236, %c144_1237] : memref<1x4x256xf32, #tpu.memory_space<vmem>>, vector<1x1x16xf32>
    %1700 = vector.shape_cast %1699 : vector<1x1x16xf32> to vector<1x16xf32>
    %1701 = vector.shape_cast %1698 : vector<1x16xf32> to vector<1x1x16xf32>
    tpu.vector_store %arg10[%c0_1235, %c3_1236, %c144_1237], %1701 {strides = array<i32>} : memref<1x4x256xf32, #tpu.memory_space<vmem>>, vector<1x1x16xf32>,
    %1702 = vector.extract_strided_slice %1661 {offsets = [10, 0], sizes = [1, 16], strides = [1, 1]} : vector<16x16xf32> to vector<1x16xf32>
    %c0_1238 = arith.constant 0 : index
    %c3_1239 = arith.constant 3 : index
    %c160_1240 = arith.constant 160 : index
    %1703 = vector.load %arg10[%c0_1238, %c3_1239, %c160_1240] : memref<1x4x256xf32, #tpu.memory_space<vmem>>, vector<1x1x16xf32>
    %1704 = vector.shape_cast %1703 : vector<1x1x16xf32> to vector<1x16xf32>
    %1705 = vector.shape_cast %1702 : vector<1x16xf32> to vector<1x1x16xf32>
    tpu.vector_store %arg10[%c0_1238, %c3_1239, %c160_1240], %1705 {strides = array<i32>} : memref<1x4x256xf32, #tpu.memory_space<vmem>>, vector<1x1x16xf32>,
    %1706 = vector.extract_strided_slice %1661 {offsets = [11, 0], sizes = [1, 16], strides = [1, 1]} : vector<16x16xf32> to vector<1x16xf32>
    %c0_1241 = arith.constant 0 : index
    %c3_1242 = arith.constant 3 : index
    %c176_1243 = arith.constant 176 : index
    %1707 = vector.load %arg10[%c0_1241, %c3_1242, %c176_1243] : memref<1x4x256xf32, #tpu.memory_space<vmem>>, vector<1x1x16xf32>
    %1708 = vector.shape_cast %1707 : vector<1x1x16xf32> to vector<1x16xf32>
    %1709 = vector.shape_cast %1706 : vector<1x16xf32> to vector<1x1x16xf32>
    tpu.vector_store %arg10[%c0_1241, %c3_1242, %c176_1243], %1709 {strides = array<i32>} : memref<1x4x256xf32, #tpu.memory_space<vmem>>, vector<1x1x16xf32>,
    %1710 = vector.extract_strided_slice %1661 {offsets = [12, 0], sizes = [1, 16], strides = [1, 1]} : vector<16x16xf32> to vector<1x16xf32>
    %c0_1244 = arith.constant 0 : index
    %c3_1245 = arith.constant 3 : index
    %c192_1246 = arith.constant 192 : index
    %1711 = vector.load %arg10[%c0_1244, %c3_1245, %c192_1246] : memref<1x4x256xf32, #tpu.memory_space<vmem>>, vector<1x1x16xf32>
    %1712 = vector.shape_cast %1711 : vector<1x1x16xf32> to vector<1x16xf32>
    %1713 = vector.shape_cast %1710 : vector<1x16xf32> to vector<1x1x16xf32>
    tpu.vector_store %arg10[%c0_1244, %c3_1245, %c192_1246], %1713 {strides = array<i32>} : memref<1x4x256xf32, #tpu.memory_space<vmem>>, vector<1x1x16xf32>,
    %1714 = vector.extract_strided_slice %1661 {offsets = [13, 0], sizes = [1, 16], strides = [1, 1]} : vector<16x16xf32> to vector<1x16xf32>
    %c0_1247 = arith.constant 0 : index
    %c3_1248 = arith.constant 3 : index
    %c208_1249 = arith.constant 208 : index
    %1715 = vector.load %arg10[%c0_1247, %c3_1248, %c208_1249] : memref<1x4x256xf32, #tpu.memory_space<vmem>>, vector<1x1x16xf32>
    %1716 = vector.shape_cast %1715 : vector<1x1x16xf32> to vector<1x16xf32>
    %1717 = vector.shape_cast %1714 : vector<1x16xf32> to vector<1x1x16xf32>
    tpu.vector_store %arg10[%c0_1247, %c3_1248, %c208_1249], %1717 {strides = array<i32>} : memref<1x4x256xf32, #tpu.memory_space<vmem>>, vector<1x1x16xf32>,
    %1718 = vector.extract_strided_slice %1661 {offsets = [14, 0], sizes = [1, 16], strides = [1, 1]} : vector<16x16xf32> to vector<1x16xf32>
    %c0_1250 = arith.constant 0 : index
    %c3_1251 = arith.constant 3 : index
    %c224_1252 = arith.constant 224 : index
    %1719 = vector.load %arg10[%c0_1250, %c3_1251, %c224_1252] : memref<1x4x256xf32, #tpu.memory_space<vmem>>, vector<1x1x16xf32>
    %1720 = vector.shape_cast %1719 : vector<1x1x16xf32> to vector<1x16xf32>
    %1721 = vector.shape_cast %1718 : vector<1x16xf32> to vector<1x1x16xf32>
    tpu.vector_store %arg10[%c0_1250, %c3_1251, %c224_1252], %1721 {strides = array<i32>} : memref<1x4x256xf32, #tpu.memory_space<vmem>>, vector<1x1x16xf32>,
    %1722 = vector.extract_strided_slice %1661 {offsets = [15, 0], sizes = [1, 16], strides = [1, 1]} : vector<16x16xf32> to vector<1x16xf32>
    %c0_1253 = arith.constant 0 : index
    %c3_1254 = arith.constant 3 : index
    %c240_1255 = arith.constant 240 : index
    %1723 = vector.load %arg10[%c0_1253, %c3_1254, %c240_1255] : memref<1x4x256xf32, #tpu.memory_space<vmem>>, vector<1x1x16xf32>
    %1724 = vector.shape_cast %1723 : vector<1x1x16xf32> to vector<1x16xf32>
    %1725 = vector.shape_cast %1722 : vector<1x16xf32> to vector<1x1x16xf32>
    tpu.vector_store %arg10[%c0_1253, %c3_1254, %c240_1255], %1725 {strides = array<i32>} : memref<1x4x256xf32, #tpu.memory_space<vmem>>, vector<1x1x16xf32>,
    return
  }
  func.func @transform_0(%arg0: i32) -> (i32, i32, i32, i32) {
    %c0_i32 = arith.constant 0 : i32
    %c0_i32_0 = arith.constant 0 : i32
    %c0_i32_1 = arith.constant 0 : i32
    %c0_i32_2 = arith.constant 0 : i32
    return %arg0, %c0_i32, %c0_i32_0, %c0_i32_1 : i32, i32, i32, i32
  }
  func.func @transform_1(%arg0: i32) -> (i32, i32, i32) {
    %c0_i32 = arith.constant 0 : i32
    %c0_i32_0 = arith.constant 0 : i32
    %c0_i32_1 = arith.constant 0 : i32
    %c0_i32_2 = arith.constant 0 : i32
    return %c0_i32, %c0_i32_0, %c0_i32_1 : i32, i32, i32
  }
  func.func @transform_2(%arg0: i32) -> (i32, i32) {
    %c0_i32 = arith.constant 0 : i32
    %c0_i32_0 = arith.constant 0 : i32
    %c0_i32_1 = arith.constant 0 : i32
    return %c0_i32, %c0_i32_0 : i32, i32
  }
  func.func @transform_3(%arg0: i32) -> (i32, i32, i32) {
    %c0_i32 = arith.constant 0 : i32
    %c0_i32_0 = arith.constant 0 : i32
    %c0_i32_1 = arith.constant 0 : i32
    %c0_i32_2 = arith.constant 0 : i32
    return %c0_i32, %c0_i32_0, %c0_i32_1 : i32, i32, i32
  }
  func.func @transform_4(%arg0: i32) -> (i32, i32) {
    %c0_i32 = arith.constant 0 : i32
    %c0_i32_0 = arith.constant 0 : i32
    %c0_i32_1 = arith.constant 0 : i32
    return %c0_i32, %c0_i32_0 : i32, i32
  }
  func.func @transform_5(%arg0: i32) -> i32 {
    %c0_i32 = arith.constant 0 : i32
    %c0_i32_0 = arith.constant 0 : i32
    return %c0_i32 : i32
  }
  func.func @transform_6(%arg0: i32) -> i32 {
    %c0_i32 = arith.constant 0 : i32
    %c0_i32_0 = arith.constant 0 : i32
    return %c0_i32 : i32
  }
  func.func @transform_7(%arg0: i32) -> i32 {
    %c0_i32 = arith.constant 0 : i32
    %c0_i32_0 = arith.constant 0 : i32
    return %c0_i32 : i32
  }
  func.func @transform_8(%arg0: i32) -> i32 {
    %c0_i32 = arith.constant 0 : i32
    %c0_i32_0 = arith.constant 0 : i32
    return %c0_i32 : i32
  }
  func.func @transform_9(%arg0: i32) -> (i32, i32, i32) {
    %c0_i32 = arith.constant 0 : i32
    %c0_i32_0 = arith.constant 0 : i32
    %c0_i32_1 = arith.constant 0 : i32
    return %arg0, %c0_i32, %c0_i32_0 : i32, i32, i32
  }
}

</mosaic_0001>

<llo_original>
// kernel: tpu_custom_call.1
$region0: #{tpu_custom_call.1}
  #allocation0 [shape = 'u32[]', space=smem, size = 0x4, offset = 0x4, fixed_abs, tag = 'smem constant byte address 0x4 - core index']
  #allocation1 [shape = 'u32[72,128]{1,0:T(1,128)}', space=vmem, size = 0x9000, scoped, tag = 'internal scratch']
  #allocation2 [shape = 'f32[2,20,86]{2,1,0:T(8,128)}', space=vmem, size = 0x6000, scoped, tag = 'scratch operand']
  #allocation3 [shape = 'f32[34,86]{1,0:T(8,128)}', space=vmem, size = 0x5000, scoped, tag = 'scratch operand']
  #allocation4 [shape = 'f32[2,16,68]{2,1,0:T(8,128)}', space=vmem, size = 0x4000, scoped, tag = 'scratch operand']
  #allocation5 [shape = 'f32[34,68]{1,0:T(8,128)}', space=vmem, size = 0x5000, scoped, tag = 'scratch operand']
  %s0 = inlined_call_operand.vmem [shape: f32[2,8,16,16], index: 0, kind: input, shape index: {}]
  %s1 = inlined_call_operand.vmem [shape: f32[2,25,68], index: 1, kind: input, shape index: {}]
  %s2 = inlined_call_operand.vmem [shape: f32[2,68], index: 2, kind: input, shape index: {}]
  %s3 = inlined_call_operand.vmem [shape: f32[2,49,68], index: 3, kind: input, shape index: {}]
  %s4 = inlined_call_operand.vmem [shape: f32[2,68], index: 4, kind: input, shape index: {}]
  %s5 = inlined_call_operand.vmem [shape: f32[32], index: 5, kind: input, shape index: {}]
  %s6 = inlined_call_operand.vmem [shape: f32[4], index: 6, kind: input, shape index: {}]
  %s7 = inlined_call_operand.vmem [shape: f32[16], index: 7, kind: input, shape index: {}]
  %s8 = inlined_call_operand.vmem [shape: f32[4], index: 8, kind: input, shape index: {}]
  %s9 = inlined_call_operand.hbm [shape: f32[2,4,256], index: 9, kind: output, shape index: {}]
  %s10 = sld [smem:[#allocation0]]
  $region85: #{tpu_custom_call.1} parent=0
    _
  %s12 = ssub.s32 1, %s10
  %s13 = scalar_select 0, %s12, %s10
  $region1: #{tpu_custom_call.1} parent=0
    #allocation6 [shape = 'u8[512]{0}', space=smem, size = 0x200, scoped, tag = 'input window, operand 5, single buffered']
    #allocation7 [shape = 's32[2]{0}', space=sflag, size = 0x8, scoped, tag = 'scoped memory for tpu_custom_call.1']
    #allocation8 [shape = 's32[2]{0}', space=sflag, size = 0x8, scoped, tag = 'scoped memory for tpu_custom_call.1']
    #allocation9 [shape = 'u8[512]{0}', space=smem, size = 0x200, scoped, tag = 'input window, operand 6, single buffered']
    #allocation10 [shape = 's32[1]{0}', space=sflag, size = 0x4, scoped, tag = 'scoped memory for tpu_custom_call.1']
    #allocation11 [shape = 'u8[512]{0}', space=smem, size = 0x200, scoped, tag = 'input window, operand 7, single buffered']
    #allocation12 [shape = 'u8[512]{0}', space=smem, size = 0x200, scoped, tag = 'input window, operand 8, single buffered']
    #allocation13 [shape = 's32[1]{0}', space=sflag, size = 0x4, scoped, tag = 'scoped memory for tpu_custom_call.1']
    #allocation14 [shape = 'u8[8192]{0}', space=vmem, size = 0x2000, scoped, tag = 'output window, operand 0']
    %14 = vsyncpa [#allocation8], 0
    %15 = vsyncpa [#allocation10], 0
    %16 = vsyncpa [#allocation13], 0
    %17 = vsyncpa [#allocation7], 0
    %s18 = scalar_lea.sflag [#allocation7], 1
    %19 = vsyncpa %s18, 0
    loop: start=0, step=1, limit=4
    $region2: #{tpu_custom_call.1} parent=1 // loop_pre_header
      _
    $region3: #{tpu_custom_call.1} parent=1 // loop_header
      %s21 = sphi 0, %s25
      %p22 = scmp.ge.s32.totalorder %s21, 4
      %s31 = sphi 0, %s33
      %s34 = sphi 0, %s31
      %s35 = sphi 0, %s34
      %s51 = sphi 0, %s35
      %s55 = sphi 0, %s55
      %s57 = sphi 0, %s55
      %s58 = sphi 0, %s57
      %s72 = sphi 0, %s58
      %s76 = sphi 0, %s76
      %s78 = sphi 0, %s76
      %s79 = sphi 0, %s78
      %s93 = sphi 0, %s79
      %s97 = sphi 0, %s97
      %s99 = sphi 0, %s97
      %s100 = sphi 0, %s99
      %s114 = sphi 0, %s100
      %s118 = sphi 0, %s118
      %s120 = sphi 0, %s118
      %s121 = sphi 0, %s120
      %s135 = sphi 0, %s121
      %s139 = sphi 0, %s139
      %s141 = sphi 0, %s139
      %s142 = sphi 0, %s141
      %s156 = sphi 0, %s142
      %s160 = sphi 0, %s160
      %s162 = sphi 0, %s160
      %s163 = sphi 0, %s162
      %s177 = sphi 0, %s163
      %s181 = sphi 0, %s181
      %s183 = sphi 0, %s181
      %s184 = sphi 0, %s183
      %s198 = sphi 0, %s184
      %s202 = sphi 0, %s202
      %s204 = sphi 0, %s202
      %s205 = sphi 0, %s204
      %s219 = sphi 0, %s205
      %s225 = sphi 0, %s227
      %s228 = sphi 0, %s225
      %s229 = sphi 0, %s228
      %s245 = sphi 0, %s229
    $region4: #{tpu_custom_call.1} parent=1 // loop_header_branch
      %24 = sbr.rel (%p22) target = $region8
    $region5: #{tpu_custom_call.1} parent=1 // loop_body
      %s26 = ssub.s32 %s21, 1
      %s27 = ssub.s32 %s21, 2
      %s28 = sadd.s32 %s21, 1
      %s29 = ssub.s32 %s21, %s28
      %p30 = scmp.eq.s32.totalorder %s29, 0
      %s32 = sadd.s32 %s31, 1
      %s33 = scalar_select %p30, %s31, %s32
      %p36 = pneg %p30
      %p37 = scmp.eq.s32.totalorder %s21, 1
      %p38 = por %p36, %p37
      %p39 = scmp.ne.s32.totalorder %s31, %s34
      %p40 = scmp.eq.s32.totalorder %s21, 0
      %p41 = por %p39, %p40
      %p42 = scmp.ne.s32.totalorder %s31, %s34
      %p43 = scmp.eq.s32.totalorder %s26, 1
      %p44 = por %p42, %p43
      %p45 = scmp.ne.s32.totalorder %s34, %s35
      %p46 = scmp.eq.s32.totalorder %s26, 0
      %p47 = por %p45, %p46
      %p48 = scmp.ne.s32.totalorder %s34, %s35
      %p49 = scmp.eq.s32.totalorder %s27, 1
      %p50 = por %p48, %p49
      %p52 = scmp.ne.s32.totalorder %s35, %s51
      %p53 = scmp.eq.s32.totalorder %s27, 0
      %p54 = por %p52, %p53
      %s56 = sadd.s32 %s55, 1
      %p59 = scmp.eq.s32.totalorder %s21, 1
      %p60 = scmp.ne.s32.totalorder %s55, %s57
      %p61 = scmp.eq.s32.totalorder %s21, 0
      %p62 = por %p60, %p61
      %p63 = scmp.ne.s32.totalorder %s55, %s57
      %p64 = scmp.eq.s32.totalorder %s26, 1
      %p65 = por %p63, %p64
      %p66 = scmp.ne.s32.totalorder %s57, %s58
      %p67 = scmp.eq.s32.totalorder %s26, 0
      %p68 = por %p66, %p67
      %p69 = scmp.ne.s32.totalorder %s57, %s58
      %p70 = scmp.eq.s32.totalorder %s27, 1
      %p71 = por %p69, %p70
      %p73 = scmp.ne.s32.totalorder %s58, %s72
      %p74 = scmp.eq.s32.totalorder %s27, 0
      %p75 = por %p73, %p74
      %s77 = sadd.s32 %s76, 1
      %p80 = scmp.eq.s32.totalorder %s21, 1
      %p81 = scmp.ne.s32.totalorder %s76, %s78
      %p82 = scmp.eq.s32.totalorder %s21, 0
      %p83 = por %p81, %p82
      %p84 = scmp.ne.s32.totalorder %s76, %s78
      %p85 = scmp.eq.s32.totalorder %s26, 1
      %p86 = por %p84, %p85
      %p87 = scmp.ne.s32.totalorder %s78, %s79
      %p88 = scmp.eq.s32.totalorder %s26, 0
      %p89 = por %p87, %p88
      %p90 = scmp.ne.s32.totalorder %s78, %s79
      %p91 = scmp.eq.s32.totalorder %s27, 1
      %p92 = por %p90, %p91
      %p94 = scmp.ne.s32.totalorder %s79, %s93
      %p95 = scmp.eq.s32.totalorder %s27, 0
      %p96 = por %p94, %p95
      %s98 = sadd.s32 %s97, 1
      %p101 = scmp.eq.s32.totalorder %s21, 1
      %p102 = scmp.ne.s32.totalorder %s97, %s99
      %p103 = scmp.eq.s32.totalorder %s21, 0
      %p104 = por %p102, %p103
      %p105 = scmp.ne.s32.totalorder %s97, %s99
      %p106 = scmp.eq.s32.totalorder %s26, 1
      %p107 = por %p105, %p106
      %p108 = scmp.ne.s32.totalorder %s99, %s100
      %p109 = scmp.eq.s32.totalorder %s26, 0
      %p110 = por %p108, %p109
      %p111 = scmp.ne.s32.totalorder %s99, %s100
      %p112 = scmp.eq.s32.totalorder %s27, 1
      %p113 = por %p111, %p112
      %p115 = scmp.ne.s32.totalorder %s100, %s114
      %p116 = scmp.eq.s32.totalorder %s27, 0
      %p117 = por %p115, %p116
      %s119 = sadd.s32 %s118, 1
      %p122 = scmp.eq.s32.totalorder %s21, 1
      %p123 = scmp.ne.s32.totalorder %s118, %s120
      %p124 = scmp.eq.s32.totalorder %s21, 0
      %p125 = por %p123, %p124
      %p126 = scmp.ne.s32.totalorder %s118, %s120
      %p127 = scmp.eq.s32.totalorder %s26, 1
      %p128 = por %p126, %p127
      %p129 = scmp.ne.s32.totalorder %s120, %s121
      %p130 = scmp.eq.s32.totalorder %s26, 0
      %p131 = por %p129, %p130
      %p132 = scmp.ne.s32.totalorder %s120, %s121
      %p133 = scmp.eq.s32.totalorder %s27, 1
      %p134 = por %p132, %p133
      %p136 = scmp.ne.s32.totalorder %s121, %s135
      %p137 = scmp.eq.s32.totalorder %s27, 0
      %p138 = por %p136, %p137
      %s140 = sadd.s32 %s139, 1
      %p143 = scmp.eq.s32.totalorder %s21, 1
      %p144 = scmp.ne.s32.totalorder %s139, %s141
      %p145 = scmp.eq.s32.totalorder %s21, 0
      %p146 = por %p144, %p145
      %p147 = scmp.ne.s32.totalorder %s139, %s141
      %p148 = scmp.eq.s32.totalorder %s26, 1
      %p149 = por %p147, %p148
      %p150 = scmp.ne.s32.totalorder %s141, %s142
      %p151 = scmp.eq.s32.totalorder %s26, 0
      %p152 = por %p150, %p151
      %p153 = scmp.ne.s32.totalorder %s141, %s142
      %p154 = scmp.eq.s32.totalorder %s27, 1
      %p155 = por %p153, %p154
      %p157 = scmp.ne.s32.totalorder %s142, %s156
      %p158 = scmp.eq.s32.totalorder %s27, 0
      %p159 = por %p157, %p158
      %s161 = sadd.s32 %s160, 1
      %p164 = scmp.eq.s32.totalorder %s21, 1
      %p165 = scmp.ne.s32.totalorder %s160, %s162
      %p166 = scmp.eq.s32.totalorder %s21, 0
      %p167 = por %p165, %p166
      %p168 = scmp.ne.s32.totalorder %s160, %s162
      %p169 = scmp.eq.s32.totalorder %s26, 1
      %p170 = por %p168, %p169
      %p171 = scmp.ne.s32.totalorder %s162, %s163
      %p172 = scmp.eq.s32.totalorder %s26, 0
      %p173 = por %p171, %p172
      %p174 = scmp.ne.s32.totalorder %s162, %s163
      %p175 = scmp.eq.s32.totalorder %s27, 1
      %p176 = por %p174, %p175
      %p178 = scmp.ne.s32.totalorder %s163, %s177
      %p179 = scmp.eq.s32.totalorder %s27, 0
      %p180 = por %p178, %p179
      %s182 = sadd.s32 %s181, 1
      %p185 = scmp.eq.s32.totalorder %s21, 1
      %p186 = scmp.ne.s32.totalorder %s181, %s183
      %p187 = scmp.eq.s32.totalorder %s21, 0
      %p188 = por %p186, %p187
      %p189 = scmp.ne.s32.totalorder %s181, %s183
      %p190 = scmp.eq.s32.totalorder %s26, 1
      %p191 = por %p189, %p190
      %p192 = scmp.ne.s32.totalorder %s183, %s184
      %p193 = scmp.eq.s32.totalorder %s26, 0
      %p194 = por %p192, %p193
      %p195 = scmp.ne.s32.totalorder %s183, %s184
      %p196 = scmp.eq.s32.totalorder %s27, 1
      %p197 = por %p195, %p196
      %p199 = scmp.ne.s32.totalorder %s184, %s198
      %p200 = scmp.eq.s32.totalorder %s27, 0
      %p201 = por %p199, %p200
      %s203 = sadd.s32 %s202, 1
      %p206 = scmp.eq.s32.totalorder %s21, 1
      %p207 = scmp.ne.s32.totalorder %s202, %s204
      %p208 = scmp.eq.s32.totalorder %s21, 0
      %p209 = por %p207, %p208
      %p210 = scmp.ne.s32.totalorder %s202, %s204
      %p211 = scmp.eq.s32.totalorder %s26, 1
      %p212 = por %p210, %p211
      %p213 = scmp.ne.s32.totalorder %s204, %s205
      %p214 = scmp.eq.s32.totalorder %s26, 0
      %p215 = por %p213, %p214
      %p216 = scmp.ne.s32.totalorder %s204, %s205
      %p217 = scmp.eq.s32.totalorder %s27, 1
      %p218 = por %p216, %p217
      %p220 = scmp.ne.s32.totalorder %s205, %s219
      %p221 = scmp.eq.s32.totalorder %s27, 0
      %p222 = por %p220, %p221
      %s223 = ssub.s32 %s21, %s28
      %p224 = scmp.eq.s32.totalorder %s223, 0
      %s226 = sadd.s32 %s225, 1
      %s227 = scalar_select %p224, %s225, %s226
      %p230 = pneg %p224
      %p231 = scmp.eq.s32.totalorder %s21, 1
      %p232 = por %p230, %p231
      %p233 = scmp.ne.s32.totalorder %s225, %s228
      %p234 = scmp.eq.s32.totalorder %s21, 0
      %p235 = por %p233, %p234
      %p236 = scmp.ne.s32.totalorder %s225, %s228
      %p237 = scmp.eq.s32.totalorder %s26, 1
      %p238 = por %p236, %p237
      %p239 = scmp.ne.s32.totalorder %s228, %s229
      %p240 = scmp.eq.s32.totalorder %s26, 0
      %p241 = por %p239, %p240
      %p242 = scmp.ne.s32.totalorder %s228, %s229
      %p243 = scmp.eq.s32.totalorder %s27, 1
      %p244 = por %p242, %p243
      %p246 = scmp.ne.s32.totalorder %s229, %s245
      %p247 = scmp.eq.s32.totalorder %s27, 0
      %p248 = por %p246, %p247
      %p249 = scmp.le.s32.totalorder 1, %s21
      %p250 = scmp.lt.s32.totalorder %s21, 3
      %p251 = pnand %p249, %p250
      %p252 = pneg %p251
      // Predicated region
      $region9: #{tpu_custom_call.1} parent=5 // pred_check
        _
      $region10: #{tpu_custom_call.1} parent=5 // pred_check_branch
        %254 = sbr.rel (%p251) target = $region12
      $region11: #{tpu_custom_call.1} parent=5 // pred_region
        %s255 = ssub.s32 %s21, 1
        // Predicated region
        $region13: #{tpu_custom_call.1} parent=11 // pred_check
          %p256 = pneg %p68
        $region14: #{tpu_custom_call.1} parent=11 // pred_check_branch
          %258 = sbr.rel (%p256) target = $region16
        $region15: #{tpu_custom_call.1} parent=11 // pred_region
          _
        $region16: #{tpu_custom_call.1} parent=11 // pred_fallthru
          _
        // Predicated region
        $region17: #{tpu_custom_call.1} parent=11 // pred_check
          %p259 = pneg %p89
        $region18: #{tpu_custom_call.1} parent=11 // pred_check_branch
          %261 = sbr.rel (%p259) target = $region20
        $region19: #{tpu_custom_call.1} parent=11 // pred_region
          _
        $region20: #{tpu_custom_call.1} parent=11 // pred_fallthru
          _
        // Predicated region
        $region21: #{tpu_custom_call.1} parent=11 // pred_check
          %p262 = pneg %p110
        $region22: #{tpu_custom_call.1} parent=11 // pred_check_branch
          %264 = sbr.rel (%p262) target = $region24
        $region23: #{tpu_custom_call.1} parent=11 // pred_region
          _
        $region24: #{tpu_custom_call.1} parent=11 // pred_fallthru
          _
        // Predicated region
        $region25: #{tpu_custom_call.1} parent=11 // pred_check
          %p265 = pneg %p131
        $region26: #{tpu_custom_call.1} parent=11 // pred_check_branch
          %267 = sbr.rel (%p265) target = $region28
        $region27: #{tpu_custom_call.1} parent=11 // pred_region
          _
        $region28: #{tpu_custom_call.1} parent=11 // pred_fallthru
          _
        // Predicated region
        $region29: #{tpu_custom_call.1} parent=11 // pred_check
          %p268 = pneg %p152
        $region30: #{tpu_custom_call.1} parent=11 // pred_check_branch
          %270 = sbr.rel (%p268) target = $region32
        $region31: #{tpu_custom_call.1} parent=11 // pred_region
          %272 = vsyncadd [#allocation8], 0
          %s274 = sshll.u32 %s5, 4
          %s275 = int_to_ptr.vmem [resolvable:$true] %s274
          %277 = dma.vmem_to_smem %s275, 16, [#allocation6], [#allocation8]
        $region32: #{tpu_custom_call.1} parent=11 // pred_fallthru
          _
        // Predicated region
        $region33: #{tpu_custom_call.1} parent=11 // pred_check
          %p278 = pneg %p173
        $region34: #{tpu_custom_call.1} parent=11 // pred_check_branch
          %280 = sbr.rel (%p278) target = $region36
        $region35: #{tpu_custom_call.1} parent=11 // pred_region
          %282 = vsyncadd [#allocation10], 0
          %s284 = sshll.u32 %s6, 4
          %s285 = int_to_ptr.vmem [resolvable:$true] %s284
          %287 = dma.vmem_to_smem %s285, 16, [#allocation9], [#allocation10]
        $region36: #{tpu_custom_call.1} parent=11 // pred_fallthru
          _
        // Predicated region
        $region37: #{tpu_custom_call.1} parent=11 // pred_check
          %p288 = pneg %p194
        $region38: #{tpu_custom_call.1} parent=11 // pred_check_branch
          %290 = sbr.rel (%p288) target = $region40
        $region39: #{tpu_custom_call.1} parent=11 // pred_region
          %292 = vsyncadd [#allocation10], 0
          %s294 = sshll.u32 %s7, 4
          %s295 = int_to_ptr.vmem [resolvable:$true] %s294
          %297 = dma.vmem_to_smem %s295, 16, [#allocation11], [#allocation10]
        $region40: #{tpu_custom_call.1} parent=11 // pred_fallthru
          _
        // Predicated region
        $region41: #{tpu_custom_call.1} parent=11 // pred_check
          %p298 = pneg %p215
        $region42: #{tpu_custom_call.1} parent=11 // pred_check_branch
          %300 = sbr.rel (%p298) target = $region44
        $region43: #{tpu_custom_call.1} parent=11 // pred_region
          %302 = vsyncadd [#allocation13], 0
          %s304 = sshll.u32 %s8, 4
          %s305 = int_to_ptr.vmem [resolvable:$true] %s304
          %307 = dma.vmem_to_smem %s305, 16, [#allocation12], [#allocation13]
        $region44: #{tpu_custom_call.1} parent=11 // pred_fallthru
          _
      $region12: #{tpu_custom_call.1} parent=5 // pred_fallthru
        _
      %p308 = scmp.lt.s32.totalorder %s21, 2
      // Predicated region
      $region45: #{tpu_custom_call.1} parent=5 // pred_check
        %p309 = pneg %p308
      $region46: #{tpu_custom_call.1} parent=5 // pred_check_branch
        %311 = sbr.rel (%p309) target = $region48
      $region47: #{tpu_custom_call.1} parent=5 // pred_region
        // Predicated region
        $region49: #{tpu_custom_call.1} parent=47 // pred_check
          %p312 = pneg %p41
        $region50: #{tpu_custom_call.1} parent=47 // pred_check_branch
          %314 = sbr.rel (%p312) target = $region52
        $region51: #{tpu_custom_call.1} parent=47 // pred_region
          %p315 = scmp.lt.s32.totalorder %s21, 1
          %s316 = scalar_select %p315, %s21, 1
          %s317 = smul.addr %s316, 16
          %s318 = smul.addr %s317, 8
          %s319 = scalar_lea.vmem %s0, %s318
        $region52: #{tpu_custom_call.1} parent=47 // pred_fallthru
          _
      $region48: #{tpu_custom_call.1} parent=5 // pred_fallthru
        _
      %p320 = scmp.le.s32.totalorder 1, %s21
      %p321 = scmp.lt.s32.totalorder %s21, 3
      %p322 = pnand %p320, %p321
      %p323 = pneg %p322
      // Predicated region
      $region53: #{tpu_custom_call.1} parent=5 // pred_check
        _
      $region54: #{tpu_custom_call.1} parent=5 // pred_check_branch
        %325 = sbr.rel (%p322) target = $region56
      $region55: #{tpu_custom_call.1} parent=5 // pred_region
        %s326 = ssub.s32 %s21, 1
        // Predicated region
        $region57: #{tpu_custom_call.1} parent=55 // pred_check
          %p327 = pneg %p152
        $region58: #{tpu_custom_call.1} parent=55 // pred_check_branch
          %329 = sbr.rel (%p327) target = $region60
        $region59: #{tpu_custom_call.1} parent=55 // pred_region
          %331 = dma.done [#allocation8], 16
        $region60: #{tpu_custom_call.1} parent=55 // pred_fallthru
          _
        // Predicated region
        $region61: #{tpu_custom_call.1} parent=55 // pred_check
          %p332 = pneg %p173
        $region62: #{tpu_custom_call.1} parent=55 // pred_check_branch
          %334 = sbr.rel (%p332) target = $region64
        $region63: #{tpu_custom_call.1} parent=55 // pred_region
          %336 = dma.done [#allocation10], 16
        $region64: #{tpu_custom_call.1} parent=55 // pred_fallthru
          _
        // Predicated region
        $region65: #{tpu_custom_call.1} parent=55 // pred_check
          %p337 = pneg %p194
        $region66: #{tpu_custom_call.1} parent=55 // pred_check_branch
          %339 = sbr.rel (%p337) target = $region68
        $region67: #{tpu_custom_call.1} parent=55 // pred_region
          %341 = dma.done [#allocation10], 16
        $region68: #{tpu_custom_call.1} parent=55 // pred_fallthru
          _
        // Predicated region
        $region69: #{tpu_custom_call.1} parent=55 // pred_check
          %p342 = pneg %p215
        $region70: #{tpu_custom_call.1} parent=55 // pred_check_branch
          %344 = sbr.rel (%p342) target = $region72
        $region71: #{tpu_custom_call.1} parent=55 // pred_region
          %346 = dma.done [#allocation13], 16
        $region72: #{tpu_custom_call.1} parent=55 // pred_fallthru
          _
        %347 = sfence
        %p348 = scmp.lt.s32.totalorder %s26, 1
        %s349 = scalar_select %p348, %s26, 1
        %s350 = smul.addr %s349, 16
        %s351 = smul.addr %s350, 8
        %s352 = scalar_lea.vmem %s0, %s351
        %p353 = pneg %p47
        %p354 = pneg %p44
        %p355 = pneg %p68
        %p356 = pneg %p65
        %p357 = pneg %p89
        %p358 = pneg %p86
        %p359 = pneg %p110
        %p360 = pneg %p107
        %p361 = pneg %p131
        %p362 = pneg %p128
        %p363 = pneg %p152
        %p364 = pneg %p149
        %p365 = pneg %p173
        %p366 = pneg %p170
        %p367 = pneg %p194
        %p368 = pneg %p191
        %p369 = pneg %p215
        %p370 = pneg %p212
        %p371 = pneg %p241
        %p372 = pneg %p238
        %s373 = sand.u32 %s228, 1
        %s374 = scalar_lea.sflag [#allocation7], %s373
        %s375 = sand.u32 %s228, 1
        %s376 = smul.addr %s375, 8
        %s377 = scalar_lea.vmem [#allocation14], %s376
        %p378 = scmp.lt.s32.totalorder %s26, 1
        %s379 = scalar_select %p378, %s26, 1
        %s380 = smul.addr %s379, 16
        %s381 = smul.addr %s380, 8
        %s382 = scalar_lea.vmem %s0, %s381
        %vm383 = vcmask 703488
        %384 = vst.msk [vmem:[#allocation3] sm:$0xff] %vm383, 0.0
        %vm385 = vcmask 696320
        %386 = vst.msk [vmem:[#allocation3 + $0x8] sm:$0x1] %vm385, 0.0
        %387 = vst.msk [vmem:[#allocation3 + $0x19] sm:$0xff] %vm383, 0.0
        %388 = vst.msk [vmem:[#allocation3 + $0x21] sm:$0x1] %vm385, 0.0
        %vm389 = vcmask 72704
        %390 = vst.msk [vmem:[#allocation3 + $0x9] sm:$0xff] %vm389, 0.0
        %391 = vst.msk [vmem:[#allocation3 + $0x11] sm:$0xff] %vm389, 0.0
        %vm392 = vcmask 704104
        %393 = vst.msk [vmem:[#allocation3 + $0x9] sm:$0xff] %vm392, 0.0
        %394 = vst.msk [vmem:[#allocation3 + $0x11] sm:$0xff] %vm392, 0.0
        %vm395 = vcmask 697344
        %396 = vst.msk [vmem:[#allocation2] sm:$0x3] %vm395, 0.0
        %397 = vst.msk [vmem:[#allocation2 + $0x12] sm:$0x3] %vm395, 0.0
        %398 = vst.msk [vmem:[#allocation2 + $0x2] sm:$0xff] %vm383, 0.0
        %399 = vst.msk [vmem:[#allocation2 + $0xa] sm:$0xff] %vm383, 0.0
        %s400 = sld [smem:[#allocation9]]
        %v401 = vstv %s400
        %v402 = vld [vmem:[%s382] sm:$0xff]
        %v403 = vld [vmem:[%s382 + $0x8] sm:$0xff]
        %s404 = sld [smem:[#allocation6]]
        %v405 = vstv %s404
        %v406 = vmul.f32 %v402, %v405
        %v407 = vmul.f32 %v403, %v405
        %v408 = vadd.f32 %v401, %v406
        %v409 = vadd.f32 %v401, %v407
        %s410 = scalar_lea.vmem %s382, 16
        %v411 = vld [vmem:[%s410] sm:$0xff]
        %v412 = vld [vmem:[%s410 + $0x8] sm:$0xff]
        %s413 = sld [smem:[#allocation6 + $0x4]]
        %v414 = vstv %s413
        %v415 = vmul.f32 %v411, %v414
        %v416 = vmul.f32 %v412, %v414
        %v417 = vadd.f32 %v408, %v415
        %v418 = vadd.f32 %v409, %v416
        %s419 = scalar_lea.vmem %s382, 32
        %v420 = vld [vmem:[%s419] sm:$0xff]
        %v421 = vld [vmem:[%s419 + $0x8] sm:$0xff]
        %s422 = sld [smem:[#allocation6 + $0x8]]
        %v423 = vstv %s422
        %v424 = vmul.f32 %v420, %v423
        %v425 = vmul.f32 %v421, %v423
        %v426 = vadd.f32 %v417, %v424
        %v427 = vadd.f32 %v418, %v425
        %s428 = scalar_lea.vmem %s382, 48
        %v429 = vld [vmem:[%s428] sm:$0xff]
        %v430 = vld [vmem:[%s428 + $0x8] sm:$0xff]
        %s431 = sld [smem:[#allocation6 + $0xc]]
        %v432 = vstv %s431
        %v433 = vmul.f32 %v429, %v432
        %v434 = vmul.f32 %v430, %v432
        %v435 = vadd.f32 %v426, %v433
        %v436 = vadd.f32 %v427, %v434
        %s437 = scalar_lea.vmem %s382, 64
        %v438 = vld [vmem:[%s437] sm:$0xff]
        %v439 = vld [vmem:[%s437 + $0x8] sm:$0xff]
        %s440 = sld [smem:[#allocation6 + $0x10]]
        %v441 = vstv %s440
        %v442 = vmul.f32 %v438, %v441
        %v443 = vmul.f32 %v439, %v441
        %v444 = vadd.f32 %v435, %v442
        %v445 = vadd.f32 %v436, %v443
        %s446 = scalar_lea.vmem %s382, 80
        %v447 = vld [vmem:[%s446] sm:$0xff]
        %v448 = vld [vmem:[%s446 + $0x8] sm:$0xff]
        %s449 = sld [smem:[#allocation6 + $0x14]]
        %v450 = vstv %s449
        %v451 = vmul.f32 %v447, %v450
        %v452 = vmul.f32 %v448, %v450
        %v453 = vadd.f32 %v444, %v451
        %v454 = vadd.f32 %v445, %v452
        %s455 = scalar_lea.vmem %s382, 96
        %v456 = vld [vmem:[%s455] sm:$0xff]
        %v457 = vld [vmem:[%s455 + $0x8] sm:$0xff]
        %s458 = sld [smem:[#allocation6 + $0x18]]
        %v459 = vstv %s458
        %v460 = vmul.f32 %v456, %v459
        %v461 = vmul.f32 %v457, %v459
        %v462 = vadd.f32 %v453, %v460
        %v463 = vadd.f32 %v454, %v461
        %s464 = scalar_lea.vmem %s382, 112
        %v465 = vld [vmem:[%s464] sm:$0xff]
        %v466 = vld [vmem:[%s464 + $0x8] sm:$0xff]
        %s467 = sld [smem:[#allocation6 + $0x1c]]
        %v468 = vstv %s467
        %v469 = vmul.f32 %v465, %v468
        %v470 = vmul.f32 %v466, %v468
        %v471 = vadd.f32 %v462, %v469
        %v472 = vadd.f32 %v463, %v470
        %v473 = vmax.f32 %v471, 0.0
        %v474 = vmax.f32 %v472, 0.0
        %477 = vrot.lane.b32.xlu0 %v473, 18
        %v478 = vpop.permute.xlu0 %477
        %479 = vrot.lane.b32.xlu0 %v474, 18
        %v480 = vpop.permute.xlu0 %479
        %vm483 = vcmask 277648
        %484 = vst.msk [vmem:[#allocation2 + $0x2] sm:$0xff] %vm483, %v478
        %485 = vst.msk [vmem:[#allocation2 + $0xa] sm:$0xff] %vm483, %v480
        %s486 = sld [smem:[#allocation9 + $0x1]]
        %v487 = vstv %s486
        %v488 = vld [vmem:[%s382] sm:$0xff]
        %v489 = vld [vmem:[%s382 + $0x8] sm:$0xff]
        %s490 = sld [smem:[#allocation6 + $0x1]]
        %v491 = vstv %s490
        %v492 = vmul.f32 %v488, %v491
        %v493 = vmul.f32 %v489, %v491
        %v494 = vadd.f32 %v487, %v492
        %v495 = vadd.f32 %v487, %v493
        %v496 = vld [vmem:[%s410] sm:$0xff]
        %v497 = vld [vmem:[%s410 + $0x8] sm:$0xff]
        %s498 = sld [smem:[#allocation6 + $0x5]]
        %v499 = vstv %s498
        %v500 = vmul.f32 %v496, %v499
        %v501 = vmul.f32 %v497, %v499
        %v502 = vadd.f32 %v494, %v500
        %v503 = vadd.f32 %v495, %v501
        %v504 = vld [vmem:[%s419] sm:$0xff]
        %v505 = vld [vmem:[%s419 + $0x8] sm:$0xff]
        %s506 = sld [smem:[#allocation6 + $0x9]]
        %v507 = vstv %s506
        %v508 = vmul.f32 %v504, %v507
        %v509 = vmul.f32 %v505, %v507
        %v510 = vadd.f32 %v502, %v508
        %v511 = vadd.f32 %v503, %v509
        %v512 = vld [vmem:[%s428] sm:$0xff]
        %v513 = vld [vmem:[%s428 + $0x8] sm:$0xff]
        %s514 = sld [smem:[#allocation6 + $0xd]]
        %v515 = vstv %s514
        %v516 = vmul.f32 %v512, %v515
        %v517 = vmul.f32 %v513, %v515
        %v518 = vadd.f32 %v510, %v516
        %v519 = vadd.f32 %v511, %v517
        %v520 = vld [vmem:[%s437] sm:$0xff]
        %v521 = vld [vmem:[%s437 + $0x8] sm:$0xff]
        %s522 = sld [smem:[#allocation6 + $0x11]]
        %v523 = vstv %s522
        %v524 = vmul.f32 %v520, %v523
        %v525 = vmul.f32 %v521, %v523
        %v526 = vadd.f32 %v518, %v524
        %v527 = vadd.f32 %v519, %v525
        %v528 = vld [vmem:[%s446] sm:$0xff]
        %v529 = vld [vmem:[%s446 + $0x8] sm:$0xff]
        %s530 = sld [smem:[#allocation6 + $0x15]]
        %v531 = vstv %s530
        %v532 = vmul.f32 %v528, %v531
        %v533 = vmul.f32 %v529, %v531
        %v534 = vadd.f32 %v526, %v532
        %v535 = vadd.f32 %v527, %v533
        %v536 = vld [vmem:[%s455] sm:$0xff]
        %v537 = vld [vmem:[%s455 + $0x8] sm:$0xff]
        %s538 = sld [smem:[#allocation6 + $0x19]]
        %v539 = vstv %s538
        %v540 = vmul.f32 %v536, %v539
        %v541 = vmul.f32 %v537, %v539
        %v542 = vadd.f32 %v534, %v540
        %v543 = vadd.f32 %v535, %v541
        %v544 = vld [vmem:[%s464] sm:$0xff]
        %v545 = vld [vmem:[%s464 + $0x8] sm:$0xff]
        %s546 = sld [smem:[#allocation6 + $0x1d]]
        %v547 = vstv %s546
        %v548 = vmul.f32 %v544, %v547
        %v549 = vmul.f32 %v545, %v547
        %v550 = vadd.f32 %v542, %v548
        %v551 = vadd.f32 %v543, %v549
        %v552 = vmax.f32 %v550, 0.0
        %v553 = vmax.f32 %v551, 0.0
        %556 = vrot.lane.b32.xlu0 %v552, 52
        %v557 = vpop.permute.xlu0 %556
        %558 = vrot.lane.b32.xlu0 %v553, 52
        %v559 = vpop.permute.xlu0 %558
        %vm562 = vcmask 556448
        %563 = vst.msk [vmem:[#allocation2 + $0x2] sm:$0xff] %vm562, %v557
        %564 = vst.msk [vmem:[#allocation2 + $0xa] sm:$0xff] %vm562, %v559
        %v565 = vld [vmem:[#allocation2] sm:$0xff]
        %v566 = vld [vmem:[#allocation2 + $0x8] sm:$0xff]
        %v567 = vld [vmem:[#allocation2 + $0x10] sm:$0xf]
        %571 = vrot.lane.b32.xlu0 %v565, 121
        %v572 = vpop.permute.xlu0 %571
        %573 = vrot.lane.b32.xlu0 %v566, 121
        %v574 = vpop.permute.xlu0 %573
        %575 = vrot.lane.b32.xlu0 %v567, 121
        %v576 = vpop.permute.xlu0 %575
        %vm580 = vcmask 556032
        %581 = vst.msk [vmem:[#allocation5] sm:$0xff] %vm580, %v572
        %582 = vst.msk [vmem:[#allocation5 + $0x8] sm:$0xff] %vm580, %v574
        %vm583 = vcmask 551936
        %584 = vst.msk [vmem:[#allocation5 + $0x10] sm:$0xf] %vm583, %v576
        %v585 = vld [vmem:[#allocation5] sm:$0xff]
        %v586 = vld [vmem:[#allocation5 + $0x8] sm:$0xff]
        %v587 = vld [vmem:[%s1] sm:$0x1]
        %v588 = vperm.slane %v587, 0
        %v589 = vmul.f32 %v585, %v588
        %v590 = vmul.f32 %v586, %v588
        %v591 = vadd.f32 %v589, 0.0
        %v592 = vadd.f32 %v590, 0.0
        %v593 = vld [vmem:[#allocation5 + $0x1] sm:$0xff]
        %v594 = vld [vmem:[#allocation5 + $0x9] sm:$0xff]
        %v595 = vld [vmem:[%s1 + $0x5] sm:$0x1]
        %v596 = vperm.slane %v595, 0
        %v597 = vmul.f32 %v593, %v596
        %v598 = vmul.f32 %v594, %v596
        %v599 = vadd.f32 %v591, %v597
        %v600 = vadd.f32 %v592, %v598
        %v601 = vld [vmem:[#allocation5 + $0x2] sm:$0xff]
        %v602 = vld [vmem:[#allocation5 + $0xa] sm:$0xff]
        %v603 = vld [vmem:[%s1 + $0xa] sm:$0x1]
        %v604 = vperm.slane %v603, 0
        %v605 = vmul.f32 %v601, %v604
        %v606 = vmul.f32 %v602, %v604
        %v607 = vadd.f32 %v599, %v605
        %v608 = vadd.f32 %v600, %v606
        %v609 = vld [vmem:[#allocation5 + $0x3] sm:$0xff]
        %v610 = vld [vmem:[#allocation5 + $0xb] sm:$0xff]
        %v611 = vld [vmem:[%s1 + $0xf] sm:$0x1]
        %v612 = vperm.slane %v611, 0
        %v613 = vmul.f32 %v609, %v612
        %v614 = vmul.f32 %v610, %v612
        %v615 = vadd.f32 %v607, %v613
        %v616 = vadd.f32 %v608, %v614
        %v617 = vld [vmem:[#allocation5 + $0x4] sm:$0xff]
        %v618 = vld [vmem:[#allocation5 + $0xc] sm:$0xff]
        %v619 = vld [vmem:[%s1 + $0x14] sm:$0x1]
        %v620 = vperm.slane %v619, 0
        %v621 = vmul.f32 %v617, %v620
        %v622 = vmul.f32 %v618, %v620
        %v623 = vadd.f32 %v615, %v621
        %v624 = vadd.f32 %v616, %v622
        %v625 = vld [vmem:[#allocation2] sm:$0xff]
        %v626 = vld [vmem:[#allocation2 + $0x8] sm:$0xff]
        %v627 = vld [vmem:[#allocation2 + $0x10] sm:$0xf]
        %631 = vrot.lane.b32.xlu0 %v625, 120
        %v632 = vpop.permute.xlu0 %631
        %633 = vrot.lane.b32.xlu0 %v626, 120
        %v634 = vpop.permute.xlu0 %633
        %635 = vrot.lane.b32.xlu0 %v627, 120
        %v636 = vpop.permute.xlu0 %635
        %640 = vst.msk [vmem:[#allocation5] sm:$0xff] %vm580, %v632
        %641 = vst.msk [vmem:[#allocation5 + $0x8] sm:$0xff] %vm580, %v634
        %642 = vst.msk [vmem:[#allocation5 + $0x10] sm:$0xf] %vm583, %v636
        %v643 = vld [vmem:[#allocation5] sm:$0xff]
        %v644 = vld [vmem:[#allocation5 + $0x8] sm:$0xff]
        %v645 = vld [vmem:[%s1 + $0x1] sm:$0x1]
        %v646 = vperm.slane %v645, 0
        %v647 = vmul.f32 %v643, %v646
        %v648 = vmul.f32 %v644, %v646
        %v649 = vadd.f32 %v623, %v647
        %v650 = vadd.f32 %v624, %v648
        %v651 = vld [vmem:[#allocation5 + $0x1] sm:$0xff]
        %v652 = vld [vmem:[#allocation5 + $0x9] sm:$0xff]
        %v653 = vld [vmem:[%s1 + $0x6] sm:$0x1]
        %v654 = vperm.slane %v653, 0
        %v655 = vmul.f32 %v651, %v654
        %v656 = vmul.f32 %v652, %v654
        %v657 = vadd.f32 %v649, %v655
        %v658 = vadd.f32 %v650, %v656
        %v659 = vld [vmem:[#allocation5 + $0x2] sm:$0xff]
        %v660 = vld [vmem:[#allocation5 + $0xa] sm:$0xff]
        %v661 = vld [vmem:[%s1 + $0xb] sm:$0x1]
        %v662 = vperm.slane %v661, 0
        %v663 = vmul.f32 %v659, %v662
        %v664 = vmul.f32 %v660, %v662
        %v665 = vadd.f32 %v657, %v663
        %v666 = vadd.f32 %v658, %v664
        %v667 = vld [vmem:[#allocation5 + $0x3] sm:$0xff]
        %v668 = vld [vmem:[#allocation5 + $0xb] sm:$0xff]
        %v669 = vld [vmem:[%s1 + $0x10] sm:$0x1]
        %v670 = vperm.slane %v669, 0
        %v671 = vmul.f32 %v667, %v670
        %v672 = vmul.f32 %v668, %v670
        %v673 = vadd.f32 %v665, %v671
        %v674 = vadd.f32 %v666, %v672
        %v675 = vld [vmem:[#allocation5 + $0x4] sm:$0xff]
        %v676 = vld [vmem:[#allocation5 + $0xc] sm:$0xff]
        %v677 = vld [vmem:[%s1 + $0x15] sm:$0x1]
        %v678 = vperm.slane %v677, 0
        %v679 = vmul.f32 %v675, %v678
        %v680 = vmul.f32 %v676, %v678
        %v681 = vadd.f32 %v673, %v679
        %v682 = vadd.f32 %v674, %v680
        %v683 = vld [vmem:[#allocation2] sm:$0xff]
        %v684 = vld [vmem:[#allocation2 + $0x8] sm:$0xff]
        %v685 = vld [vmem:[#allocation2 + $0x10] sm:$0xf]
        %689 = vrot.lane.b32.xlu0 %v683, 119
        %v690 = vpop.permute.xlu0 %689
        %691 = vrot.lane.b32.xlu0 %v684, 119
        %v692 = vpop.permute.xlu0 %691
        %693 = vrot.lane.b32.xlu0 %v685, 119
        %v694 = vpop.permute.xlu0 %693
        %698 = vst.msk [vmem:[#allocation5] sm:$0xff] %vm580, %v690
        %699 = vst.msk [vmem:[#allocation5 + $0x8] sm:$0xff] %vm580, %v692
        %700 = vst.msk [vmem:[#allocation5 + $0x10] sm:$0xf] %vm583, %v694
        %v701 = vld [vmem:[#allocation5] sm:$0xff]
        %v702 = vld [vmem:[#allocation5 + $0x8] sm:$0xff]
        %v703 = vld [vmem:[%s1 + $0x2] sm:$0x1]
        %v704 = vperm.slane %v703, 0
        %v705 = vmul.f32 %v701, %v704
        %v706 = vmul.f32 %v702, %v704
        %v707 = vadd.f32 %v681, %v705
        %v708 = vadd.f32 %v682, %v706
        %v709 = vld [vmem:[#allocation5 + $0x1] sm:$0xff]
        %v710 = vld [vmem:[#allocation5 + $0x9] sm:$0xff]
        %v711 = vld [vmem:[%s1 + $0x7] sm:$0x1]
        %v712 = vperm.slane %v711, 0
        %v713 = vmul.f32 %v709, %v712
        %v714 = vmul.f32 %v710, %v712
        %v715 = vadd.f32 %v707, %v713
        %v716 = vadd.f32 %v708, %v714
        %v717 = vld [vmem:[#allocation5 + $0x2] sm:$0xff]
        %v718 = vld [vmem:[#allocation5 + $0xa] sm:$0xff]
        %v719 = vld [vmem:[%s1 + $0xc] sm:$0x1]
        %v720 = vperm.slane %v719, 0
        %v721 = vmul.f32 %v717, %v720
        %v722 = vmul.f32 %v718, %v720
        %v723 = vadd.f32 %v715, %v721
        %v724 = vadd.f32 %v716, %v722
        %v725 = vld [vmem:[#allocation5 + $0x3] sm:$0xff]
        %v726 = vld [vmem:[#allocation5 + $0xb] sm:$0xff]
        %v727 = vld [vmem:[%s1 + $0x11] sm:$0x1]
        %v728 = vperm.slane %v727, 0
        %v729 = vmul.f32 %v725, %v728
        %v730 = vmul.f32 %v726, %v728
        %v731 = vadd.f32 %v723, %v729
        %v732 = vadd.f32 %v724, %v730
        %v733 = vld [vmem:[#allocation5 + $0x4] sm:$0xff]
        %v734 = vld [vmem:[#allocation5 + $0xc] sm:$0xff]
        %v735 = vld [vmem:[%s1 + $0x16] sm:$0x1]
        %v736 = vperm.slane %v735, 0
        %v737 = vmul.f32 %v733, %v736
        %v738 = vmul.f32 %v734, %v736
        %v739 = vadd.f32 %v731, %v737
        %v740 = vadd.f32 %v732, %v738
        %v741 = vld [vmem:[#allocation2] sm:$0xff]
        %v742 = vld [vmem:[#allocation2 + $0x8] sm:$0xff]
        %v743 = vld [vmem:[#allocation2 + $0x10] sm:$0xf]
        %747 = vrot.lane.b32.xlu0 %v741, 118
        %v748 = vpop.permute.xlu0 %747
        %749 = vrot.lane.b32.xlu0 %v742, 118
        %v750 = vpop.permute.xlu0 %749
        %751 = vrot.lane.b32.xlu0 %v743, 118
        %v752 = vpop.permute.xlu0 %751
        %756 = vst.msk [vmem:[#allocation5] sm:$0xff] %vm580, %v748
        %757 = vst.msk [vmem:[#allocation5 + $0x8] sm:$0xff] %vm580, %v750
        %758 = vst.msk [vmem:[#allocation5 + $0x10] sm:$0xf] %vm583, %v752
        %v759 = vld [vmem:[#allocation5] sm:$0xff]
        %v760 = vld [vmem:[#allocation5 + $0x8] sm:$0xff]
        %v761 = vld [vmem:[%s1 + $0x3] sm:$0x1]
        %v762 = vperm.slane %v761, 0
        %v763 = vmul.f32 %v759, %v762
        %v764 = vmul.f32 %v760, %v762
        %v765 = vadd.f32 %v739, %v763
        %v766 = vadd.f32 %v740, %v764
        %v767 = vld [vmem:[#allocation5 + $0x1] sm:$0xff]
        %v768 = vld [vmem:[#allocation5 + $0x9] sm:$0xff]
        %v769 = vld [vmem:[%s1 + $0x8] sm:$0x1]
        %v770 = vperm.slane %v769, 0
        %v771 = vmul.f32 %v767, %v770
        %v772 = vmul.f32 %v768, %v770
        %v773 = vadd.f32 %v765, %v771
        %v774 = vadd.f32 %v766, %v772
        %v775 = vld [vmem:[#allocation5 + $0x2] sm:$0xff]
        %v776 = vld [vmem:[#allocation5 + $0xa] sm:$0xff]
        %v777 = vld [vmem:[%s1 + $0xd] sm:$0x1]
        %v778 = vperm.slane %v777, 0
        %v779 = vmul.f32 %v775, %v778
        %v780 = vmul.f32 %v776, %v778
        %v781 = vadd.f32 %v773, %v779
        %v782 = vadd.f32 %v774, %v780
        %v783 = vld [vmem:[#allocation5 + $0x3] sm:$0xff]
        %v784 = vld [vmem:[#allocation5 + $0xb] sm:$0xff]
        %v785 = vld [vmem:[%s1 + $0x12] sm:$0x1]
        %v786 = vperm.slane %v785, 0
        %v787 = vmul.f32 %v783, %v786
        %v788 = vmul.f32 %v784, %v786
        %v789 = vadd.f32 %v781, %v787
        %v790 = vadd.f32 %v782, %v788
        %v791 = vld [vmem:[#allocation5 + $0x4] sm:$0xff]
        %v792 = vld [vmem:[#allocation5 + $0xc] sm:$0xff]
        %v793 = vld [vmem:[%s1 + $0x17] sm:$0x1]
        %v794 = vperm.slane %v793, 0
        %v795 = vmul.f32 %v791, %v794
        %v796 = vmul.f32 %v792, %v794
        %v797 = vadd.f32 %v789, %v795
        %v798 = vadd.f32 %v790, %v796
        %v799 = vld [vmem:[#allocation2] sm:$0xff]
        %v800 = vld [vmem:[#allocation2 + $0x8] sm:$0xff]
        %v801 = vld [vmem:[#allocation2 + $0x10] sm:$0xf]
        %805 = vrot.lane.b32.xlu0 %v799, 117
        %v806 = vpop.permute.xlu0 %805
        %807 = vrot.lane.b32.xlu0 %v800, 117
        %v808 = vpop.permute.xlu0 %807
        %809 = vrot.lane.b32.xlu0 %v801, 117
        %v810 = vpop.permute.xlu0 %809
        %814 = vst.msk [vmem:[#allocation5] sm:$0xff] %vm580, %v806
        %815 = vst.msk [vmem:[#allocation5 + $0x8] sm:$0xff] %vm580, %v808
        %816 = vst.msk [vmem:[#allocation5 + $0x10] sm:$0xf] %vm583, %v810
        %v817 = vld [vmem:[#allocation5] sm:$0xff]
        %v818 = vld [vmem:[#allocation5 + $0x8] sm:$0xff]
        %v819 = vld [vmem:[%s1 + $0x4] sm:$0x1]
        %v820 = vperm.slane %v819, 0
        %v821 = vmul.f32 %v817, %v820
        %v822 = vmul.f32 %v818, %v820
        %v823 = vadd.f32 %v797, %v821
        %v824 = vadd.f32 %v798, %v822
        %v825 = vld [vmem:[#allocation5 + $0x1] sm:$0xff]
        %v826 = vld [vmem:[#allocation5 + $0x9] sm:$0xff]
        %v827 = vld [vmem:[%s1 + $0x9] sm:$0x1]
        %v828 = vperm.slane %v827, 0
        %v829 = vmul.f32 %v825, %v828
        %v830 = vmul.f32 %v826, %v828
        %v831 = vadd.f32 %v823, %v829
        %v832 = vadd.f32 %v824, %v830
        %v833 = vld [vmem:[#allocation5 + $0x2] sm:$0xff]
        %v834 = vld [vmem:[#allocation5 + $0xa] sm:$0xff]
        %v835 = vld [vmem:[%s1 + $0xe] sm:$0x1]
        %v836 = vperm.slane %v835, 0
        %v837 = vmul.f32 %v833, %v836
        %v838 = vmul.f32 %v834, %v836
        %v839 = vadd.f32 %v831, %v837
        %v840 = vadd.f32 %v832, %v838
        %v841 = vld [vmem:[#allocation5 + $0x3] sm:$0xff]
        %v842 = vld [vmem:[#allocation5 + $0xb] sm:$0xff]
        %v843 = vld [vmem:[%s1 + $0x13] sm:$0x1]
        %v844 = vperm.slane %v843, 0
        %v845 = vmul.f32 %v841, %v844
        %v846 = vmul.f32 %v842, %v844
        %v847 = vadd.f32 %v839, %v845
        %v848 = vadd.f32 %v840, %v846
        %v849 = vld [vmem:[#allocation5 + $0x4] sm:$0xff]
        %v850 = vld [vmem:[#allocation5 + $0xc] sm:$0xff]
        %v851 = vld [vmem:[%s1 + $0x18] sm:$0x1]
        %v852 = vperm.slane %v851, 0
        %v853 = vmul.f32 %v849, %v852
        %v854 = vmul.f32 %v850, %v852
        %v855 = vadd.f32 %v847, %v853
        %v856 = vadd.f32 %v848, %v854
        %v857 = vld [vmem:[%s2] sm:$0x1]
        %v858 = vperm.slane %v857, 0
        %v859 = vadd.f32 %v855, %v858
        %v860 = vadd.f32 %v856, %v858
        %863 = vrot.lane.b32.xlu0 %v859, 9
        %v864 = vpop.permute.xlu0 %863
        %865 = vrot.lane.b32.xlu0 %v860, 9
        %v866 = vpop.permute.xlu0 %865
        %vm869 = vcmask 629832
        %870 = vst.msk [vmem:[#allocation3 + $0x9] sm:$0xff] %vm869, %v864
        %871 = vst.msk [vmem:[#allocation3 + $0x11] sm:$0xff] %vm869, %v866
        %v872 = vld [vmem:[#allocation3] sm:$0xff]
        %v873 = vld [vmem:[#allocation3 + $0x8] sm:$0xff]
        %v874 = vld [vmem:[#allocation3 + $0x10] sm:$0xff]
        %v875 = vld [vmem:[#allocation3 + $0x18] sm:$0xff]
        %v876 = vld [vmem:[#allocation3 + $0x20] sm:$0x3]
        %877 = vst.msk [vmem:[#allocation5] sm:$0xff] %vm580, %v872
        %878 = vst.msk [vmem:[#allocation5 + $0x8] sm:$0xff] %vm580, %v873
        %879 = vst.msk [vmem:[#allocation5 + $0x10] sm:$0xff] %vm580, %v874
        %880 = vst.msk [vmem:[#allocation5 + $0x18] sm:$0xff] %vm580, %v875
        %vm881 = vcmask 549888
        %882 = vst.msk [vmem:[#allocation5 + $0x20] sm:$0x3] %vm881, %v876
        %v883 = vld [vmem:[#allocation5] sm:$0xff]
        %v884 = vld [vmem:[#allocation5 + $0x8] sm:$0xff]
        %v885 = vld [vmem:[%s3] sm:$0x1]
        %v886 = vperm.slane %v885, 0
        %v887 = vmul.f32 %v883, %v886
        %v888 = vmul.f32 %v884, %v886
        %v889 = vadd.f32 %v887, 0.0
        %v890 = vadd.f32 %v888, 0.0
        %v891 = vld [vmem:[#allocation5 + $0x3] sm:$0xff]
        %v892 = vld [vmem:[#allocation5 + $0xb] sm:$0xff]
        %v893 = vld [vmem:[%s3 + $0x7] sm:$0x1]
        %v894 = vperm.slane %v893, 0
        %v895 = vmul.f32 %v891, %v894
        %v896 = vmul.f32 %v892, %v894
        %v897 = vadd.f32 %v889, %v895
        %v898 = vadd.f32 %v890, %v896
        %v899 = vld [vmem:[#allocation5 + $0x6] sm:$0xff]
        %v900 = vld [vmem:[#allocation5 + $0xe] sm:$0xff]
        %v901 = vld [vmem:[%s3 + $0xe] sm:$0x1]
        %v902 = vperm.slane %v901, 0
        %v903 = vmul.f32 %v899, %v902
        %v904 = vmul.f32 %v900, %v902
        %v905 = vadd.f32 %v897, %v903
        %v906 = vadd.f32 %v898, %v904
        %v907 = vld [vmem:[#allocation5 + $0x9] sm:$0xff]
        %v908 = vld [vmem:[#allocation5 + $0x11] sm:$0xff]
        %v909 = vld [vmem:[%s3 + $0x15] sm:$0x1]
        %v910 = vperm.slane %v909, 0
        %v911 = vmul.f32 %v907, %v910
        %v912 = vmul.f32 %v908, %v910
        %v913 = vadd.f32 %v905, %v911
        %v914 = vadd.f32 %v906, %v912
        %v915 = vld [vmem:[#allocation5 + $0xc] sm:$0xff]
        %v916 = vld [vmem:[#allocation5 + $0x14] sm:$0xff]
        %v917 = vld [vmem:[%s3 + $0x1c] sm:$0x1]
        %v918 = vperm.slane %v917, 0
        %v919 = vmul.f32 %v915, %v918
        %v920 = vmul.f32 %v916, %v918
        %v921 = vadd.f32 %v913, %v919
        %v922 = vadd.f32 %v914, %v920
        %v923 = vld [vmem:[#allocation5 + $0xf] sm:$0xff]
        %v924 = vld [vmem:[#allocation5 + $0x17] sm:$0xff]
        %v925 = vld [vmem:[%s3 + $0x23] sm:$0x1]
        %v926 = vperm.slane %v925, 0
        %v927 = vmul.f32 %v923, %v926
        %v928 = vmul.f32 %v924, %v926
        %v929 = vadd.f32 %v921, %v927
        %v930 = vadd.f32 %v922, %v928
        %v931 = vld [vmem:[#allocation5 + $0x12] sm:$0xff]
        %v932 = vld [vmem:[#allocation5 + $0x1a] sm:$0xff]
        %v933 = vld [vmem:[%s3 + $0x2a] sm:$0x1]
        %v934 = vperm.slane %v933, 0
        %v935 = vmul.f32 %v931, %v934
        %v936 = vmul.f32 %v932, %v934
        %v937 = vadd.f32 %v929, %v935
        %v938 = vadd.f32 %v930, %v936
        %v939 = vld [vmem:[#allocation3] sm:$0xff]
        %v940 = vld [vmem:[#allocation3 + $0x8] sm:$0xff]
        %v941 = vld [vmem:[#allocation3 + $0x10] sm:$0xff]
        %v942 = vld [vmem:[#allocation3 + $0x18] sm:$0xff]
        %v943 = vld [vmem:[#allocation3 + $0x20] sm:$0x3]
        %949 = vrot.lane.b32.xlu0 %v939, 125
        %v950 = vpop.permute.xlu0 %949
        %951 = vrot.lane.b32.xlu0 %v940, 125
        %v952 = vpop.permute.xlu0 %951
        %953 = vrot.lane.b32.xlu0 %v941, 125
        %v954 = vpop.permute.xlu0 %953
        %955 = vrot.lane.b32.xlu0 %v942, 125
        %v956 = vpop.permute.xlu0 %955
        %957 = vrot.lane.b32.xlu0 %v943, 125
        %v958 = vpop.permute.xlu0 %957
        %964 = vst.msk [vmem:[#allocation5] sm:$0xff] %vm580, %v950
        %965 = vst.msk [vmem:[#allocation5 + $0x8] sm:$0xff] %vm580, %v952
        %966 = vst.msk [vmem:[#allocation5 + $0x10] sm:$0xff] %vm580, %v954
        %967 = vst.msk [vmem:[#allocation5 + $0x18] sm:$0xff] %vm580, %v956
        %968 = vst.msk [vmem:[#allocation5 + $0x20] sm:$0x3] %vm881, %v958
        %v969 = vld [vmem:[#allocation5] sm:$0xff]
        %v970 = vld [vmem:[#allocation5 + $0x8] sm:$0xff]
        %v971 = vld [vmem:[%s3 + $0x1] sm:$0x1]
        %v972 = vperm.slane %v971, 0
        %v973 = vmul.f32 %v969, %v972
        %v974 = vmul.f32 %v970, %v972
        %v975 = vadd.f32 %v937, %v973
        %v976 = vadd.f32 %v938, %v974
        %v977 = vld [vmem:[#allocation5 + $0x3] sm:$0xff]
        %v978 = vld [vmem:[#allocation5 + $0xb] sm:$0xff]
        %v979 = vld [vmem:[%s3 + $0x8] sm:$0x1]
        %v980 = vperm.slane %v979, 0
        %v981 = vmul.f32 %v977, %v980
        %v982 = vmul.f32 %v978, %v980
        %v983 = vadd.f32 %v975, %v981
        %v984 = vadd.f32 %v976, %v982
        %v985 = vld [vmem:[#allocation5 + $0x6] sm:$0xff]
        %v986 = vld [vmem:[#allocation5 + $0xe] sm:$0xff]
        %v987 = vld [vmem:[%s3 + $0xf] sm:$0x1]
        %v988 = vperm.slane %v987, 0
        %v989 = vmul.f32 %v985, %v988
        %v990 = vmul.f32 %v986, %v988
        %v991 = vadd.f32 %v983, %v989
        %v992 = vadd.f32 %v984, %v990
        %v993 = vld [vmem:[#allocation5 + $0x9] sm:$0xff]
        %v994 = vld [vmem:[#allocation5 + $0x11] sm:$0xff]
        %v995 = vld [vmem:[%s3 + $0x16] sm:$0x1]
        %v996 = vperm.slane %v995, 0
        %v997 = vmul.f32 %v993, %v996
        %v998 = vmul.f32 %v994, %v996
        %v999 = vadd.f32 %v991, %v997
        %v1000 = vadd.f32 %v992, %v998
        %v1001 = vld [vmem:[#allocation5 + $0xc] sm:$0xff]
        %v1002 = vld [vmem:[#allocation5 + $0x14] sm:$0xff]
        %v1003 = vld [vmem:[%s3 + $0x1d] sm:$0x1]
        %v1004 = vperm.slane %v1003, 0
        %v1005 = vmul.f32 %v1001, %v1004
        %v1006 = vmul.f32 %v1002, %v1004
        %v1007 = vadd.f32 %v999, %v1005
        %v1008 = vadd.f32 %v1000, %v1006
        %v1009 = vld [vmem:[#allocation5 + $0xf] sm:$0xff]
        %v1010 = vld [vmem:[#allocation5 + $0x17] sm:$0xff]
        %v1011 = vld [vmem:[%s3 + $0x24] sm:$0x1]
        %v1012 = vperm.slane %v1011, 0
        %v1013 = vmul.f32 %v1009, %v1012
        %v1014 = vmul.f32 %v1010, %v1012
        %v1015 = vadd.f32 %v1007, %v1013
        %v1016 = vadd.f32 %v1008, %v1014
        %v1017 = vld [vmem:[#allocation5 + $0x12] sm:$0xff]
        %v1018 = vld [vmem:[#allocation5 + $0x1a] sm:$0xff]
        %v1019 = vld [vmem:[%s3 + $0x2b] sm:$0x1]
        %v1020 = vperm.slane %v1019, 0
        %v1021 = vmul.f32 %v1017, %v1020
        %v1022 = vmul.f32 %v1018, %v1020
        %v1023 = vadd.f32 %v1015, %v1021
        %v1024 = vadd.f32 %v1016, %v1022
        %v1025 = vld [vmem:[#allocation3] sm:$0xff]
        %v1026 = vld [vmem:[#allocation3 + $0x8] sm:$0xff]
        %v1027 = vld [vmem:[#allocation3 + $0x10] sm:$0xff]
        %v1028 = vld [vmem:[#allocation3 + $0x18] sm:$0xff]
        %v1029 = vld [vmem:[#allocation3 + $0x20] sm:$0x3]
        %1035 = vrot.lane.b32.xlu0 %v1025, 122
        %v1036 = vpop.permute.xlu0 %1035
        %1037 = vrot.lane.b32.xlu0 %v1026, 122
        %v1038 = vpop.permute.xlu0 %1037
        %1039 = vrot.lane.b32.xlu0 %v1027, 122
        %v1040 = vpop.permute.xlu0 %1039
        %1041 = vrot.lane.b32.xlu0 %v1028, 122
        %v1042 = vpop.permute.xlu0 %1041
        %1043 = vrot.lane.b32.xlu0 %v1029, 122
        %v1044 = vpop.permute.xlu0 %1043
        %1050 = vst.msk [vmem:[#allocation5] sm:$0xff] %vm580, %v1036
        %1051 = vst.msk [vmem:[#allocation5 + $0x8] sm:$0xff] %vm580, %v1038
        %1052 = vst.msk [vmem:[#allocation5 + $0x10] sm:$0xff] %vm580, %v1040
        %1053 = vst.msk [vmem:[#allocation5 + $0x18] sm:$0xff] %vm580, %v1042
        %1054 = vst.msk [vmem:[#allocation5 + $0x20] sm:$0x3] %vm881, %v1044
        %v1055 = vld [vmem:[#allocation5] sm:$0xff]
        %v1056 = vld [vmem:[#allocation5 + $0x8] sm:$0xff]
        %v1057 = vld [vmem:[%s3 + $0x2] sm:$0x1]
        %v1058 = vperm.slane %v1057, 0
        %v1059 = vmul.f32 %v1055, %v1058
        %v1060 = vmul.f32 %v1056, %v1058
        %v1061 = vadd.f32 %v1023, %v1059
        %v1062 = vadd.f32 %v1024, %v1060
        %v1063 = vld [vmem:[#allocation5 + $0x3] sm:$0xff]
        %v1064 = vld [vmem:[#allocation5 + $0xb] sm:$0xff]
        %v1065 = vld [vmem:[%s3 + $0x9] sm:$0x1]
        %v1066 = vperm.slane %v1065, 0
        %v1067 = vmul.f32 %v1063, %v1066
        %v1068 = vmul.f32 %v1064, %v1066
        %v1069 = vadd.f32 %v1061, %v1067
        %v1070 = vadd.f32 %v1062, %v1068
        %v1071 = vld [vmem:[#allocation5 + $0x6] sm:$0xff]
        %v1072 = vld [vmem:[#allocation5 + $0xe] sm:$0xff]
        %v1073 = vld [vmem:[%s3 + $0x10] sm:$0x1]
        %v1074 = vperm.slane %v1073, 0
        %v1075 = vmul.f32 %v1071, %v1074
        %v1076 = vmul.f32 %v1072, %v1074
        %v1077 = vadd.f32 %v1069, %v1075
        %v1078 = vadd.f32 %v1070, %v1076
        %v1079 = vld [vmem:[#allocation5 + $0x9] sm:$0xff]
        %v1080 = vld [vmem:[#allocation5 + $0x11] sm:$0xff]
        %v1081 = vld [vmem:[%s3 + $0x17] sm:$0x1]
        %v1082 = vperm.slane %v1081, 0
        %v1083 = vmul.f32 %v1079, %v1082
        %v1084 = vmul.f32 %v1080, %v1082
        %v1085 = vadd.f32 %v1077, %v1083
        %v1086 = vadd.f32 %v1078, %v1084
        %v1087 = vld [vmem:[#allocation5 + $0xc] sm:$0xff]
        %v1088 = vld [vmem:[#allocation5 + $0x14] sm:$0xff]
        %v1089 = vld [vmem:[%s3 + $0x1e] sm:$0x1]
        %v1090 = vperm.slane %v1089, 0
        %v1091 = vmul.f32 %v1087, %v1090
        %v1092 = vmul.f32 %v1088, %v1090
        %v1093 = vadd.f32 %v1085, %v1091
        %v1094 = vadd.f32 %v1086, %v1092
        %v1095 = vld [vmem:[#allocation5 + $0xf] sm:$0xff]
        %v1096 = vld [vmem:[#allocation5 + $0x17] sm:$0xff]
        %v1097 = vld [vmem:[%s3 + $0x25] sm:$0x1]
        %v1098 = vperm.slane %v1097, 0
        %v1099 = vmul.f32 %v1095, %v1098
        %v1100 = vmul.f32 %v1096, %v1098
        %v1101 = vadd.f32 %v1093, %v1099
        %v1102 = vadd.f32 %v1094, %v1100
        %v1103 = vld [vmem:[#allocation5 + $0x12] sm:$0xff]
        %v1104 = vld [vmem:[#allocation5 + $0x1a] sm:$0xff]
        %v1105 = vld [vmem:[%s3 + $0x2c] sm:$0x1]
        %v1106 = vperm.slane %v1105, 0
        %v1107 = vmul.f32 %v1103, %v1106
        %v1108 = vmul.f32 %v1104, %v1106
        %v1109 = vadd.f32 %v1101, %v1107
        %v1110 = vadd.f32 %v1102, %v1108
        %v1111 = vld [vmem:[#allocation3] sm:$0xff]
        %v1112 = vld [vmem:[#allocation3 + $0x8] sm:$0xff]
        %v1113 = vld [vmem:[#allocation3 + $0x10] sm:$0xff]
        %v1114 = vld [vmem:[#allocation3 + $0x18] sm:$0xff]
        %v1115 = vld [vmem:[#allocation3 + $0x20] sm:$0x3]
        %1121 = vrot.lane.b32.xlu0 %v1111, 119
        %v1122 = vpop.permute.xlu0 %1121
        %1123 = vrot.lane.b32.xlu0 %v1112, 119
        %v1124 = vpop.permute.xlu0 %1123
        %1125 = vrot.lane.b32.xlu0 %v1113, 119
        %v1126 = vpop.permute.xlu0 %1125
        %1127 = vrot.lane.b32.xlu0 %v1114, 119
        %v1128 = vpop.permute.xlu0 %1127
        %1129 = vrot.lane.b32.xlu0 %v1115, 119
        %v1130 = vpop.permute.xlu0 %1129
        %1136 = vst.msk [vmem:[#allocation5] sm:$0xff] %vm580, %v1122
        %1137 = vst.msk [vmem:[#allocation5 + $0x8] sm:$0xff] %vm580, %v1124
        %1138 = vst.msk [vmem:[#allocation5 + $0x10] sm:$0xff] %vm580, %v1126
        %1139 = vst.msk [vmem:[#allocation5 + $0x18] sm:$0xff] %vm580, %v1128
        %1140 = vst.msk [vmem:[#allocation5 + $0x20] sm:$0x3] %vm881, %v1130
        %v1141 = vld [vmem:[#allocation5] sm:$0xff]
        %v1142 = vld [vmem:[#allocation5 + $0x8] sm:$0xff]
        %v1143 = vld [vmem:[%s3 + $0x3] sm:$0x1]
        %v1144 = vperm.slane %v1143, 0
        %v1145 = vmul.f32 %v1141, %v1144
        %v1146 = vmul.f32 %v1142, %v1144
        %v1147 = vadd.f32 %v1109, %v1145
        %v1148 = vadd.f32 %v1110, %v1146
        %v1149 = vld [vmem:[#allocation5 + $0x3] sm:$0xff]
        %v1150 = vld [vmem:[#allocation5 + $0xb] sm:$0xff]
        %v1151 = vld [vmem:[%s3 + $0xa] sm:$0x1]
        %v1152 = vperm.slane %v1151, 0
        %v1153 = vmul.f32 %v1149, %v1152
        %v1154 = vmul.f32 %v1150, %v1152
        %v1155 = vadd.f32 %v1147, %v1153
        %v1156 = vadd.f32 %v1148, %v1154
        %v1157 = vld [vmem:[#allocation5 + $0x6] sm:$0xff]
        %v1158 = vld [vmem:[#allocation5 + $0xe] sm:$0xff]
        %v1159 = vld [vmem:[%s3 + $0x11] sm:$0x1]
        %v1160 = vperm.slane %v1159, 0
        %v1161 = vmul.f32 %v1157, %v1160
        %v1162 = vmul.f32 %v1158, %v1160
        %v1163 = vadd.f32 %v1155, %v1161
        %v1164 = vadd.f32 %v1156, %v1162
        %v1165 = vld [vmem:[#allocation5 + $0x9] sm:$0xff]
        %v1166 = vld [vmem:[#allocation5 + $0x11] sm:$0xff]
        %v1167 = vld [vmem:[%s3 + $0x18] sm:$0x1]
        %v1168 = vperm.slane %v1167, 0
        %v1169 = vmul.f32 %v1165, %v1168
        %v1170 = vmul.f32 %v1166, %v1168
        %v1171 = vadd.f32 %v1163, %v1169
        %v1172 = vadd.f32 %v1164, %v1170
        %v1173 = vld [vmem:[#allocation5 + $0xc] sm:$0xff]
        %v1174 = vld [vmem:[#allocation5 + $0x14] sm:$0xff]
        %v1175 = vld [vmem:[%s3 + $0x1f] sm:$0x1]
        %v1176 = vperm.slane %v1175, 0
        %v1177 = vmul.f32 %v1173, %v1176
        %v1178 = vmul.f32 %v1174, %v1176
        %v1179 = vadd.f32 %v1171, %v1177
        %v1180 = vadd.f32 %v1172, %v1178
        %v1181 = vld [vmem:[#allocation5 + $0xf] sm:$0xff]
        %v1182 = vld [vmem:[#allocation5 + $0x17] sm:$0xff]
        %v1183 = vld [vmem:[%s3 + $0x26] sm:$0x1]
        %v1184 = vperm.slane %v1183, 0
        %v1185 = vmul.f32 %v1181, %v1184
        %v1186 = vmul.f32 %v1182, %v1184
        %v1187 = vadd.f32 %v1179, %v1185
        %v1188 = vadd.f32 %v1180, %v1186
        %v1189 = vld [vmem:[#allocation5 + $0x12] sm:$0xff]
        %v1190 = vld [vmem:[#allocation5 + $0x1a] sm:$0xff]
        %v1191 = vld [vmem:[%s3 + $0x2d] sm:$0x1]
        %v1192 = vperm.slane %v1191, 0
        %v1193 = vmul.f32 %v1189, %v1192
        %v1194 = vmul.f32 %v1190, %v1192
        %v1195 = vadd.f32 %v1187, %v1193
        %v1196 = vadd.f32 %v1188, %v1194
        %v1197 = vld [vmem:[#allocation3] sm:$0xff]
        %v1198 = vld [vmem:[#allocation3 + $0x8] sm:$0xff]
        %v1199 = vld [vmem:[#allocation3 + $0x10] sm:$0xff]
        %v1200 = vld [vmem:[#allocation3 + $0x18] sm:$0xff]
        %v1201 = vld [vmem:[#allocation3 + $0x20] sm:$0x3]
        %1207 = vrot.lane.b32.xlu0 %v1197, 116
        %v1208 = vpop.permute.xlu0 %1207
        %1209 = vrot.lane.b32.xlu0 %v1198, 116
        %v1210 = vpop.permute.xlu0 %1209
        %1211 = vrot.lane.b32.xlu0 %v1199, 116
        %v1212 = vpop.permute.xlu0 %1211
        %1213 = vrot.lane.b32.xlu0 %v1200, 116
        %v1214 = vpop.permute.xlu0 %1213
        %1215 = vrot.lane.b32.xlu0 %v1201, 116
        %v1216 = vpop.permute.xlu0 %1215
        %1222 = vst.msk [vmem:[#allocation5] sm:$0xff] %vm580, %v1208
        %1223 = vst.msk [vmem:[#allocation5 + $0x8] sm:$0xff] %vm580, %v1210
        %1224 = vst.msk [vmem:[#allocation5 + $0x10] sm:$0xff] %vm580, %v1212
        %1225 = vst.msk [vmem:[#allocation5 + $0x18] sm:$0xff] %vm580, %v1214
        %1226 = vst.msk [vmem:[#allocation5 + $0x20] sm:$0x3] %vm881, %v1216
        %v1227 = vld [vmem:[#allocation5] sm:$0xff]
        %v1228 = vld [vmem:[#allocation5 + $0x8] sm:$0xff]
        %v1229 = vld [vmem:[%s3 + $0x4] sm:$0x1]
        %v1230 = vperm.slane %v1229, 0
        %v1231 = vmul.f32 %v1227, %v1230
        %v1232 = vmul.f32 %v1228, %v1230
        %v1233 = vadd.f32 %v1195, %v1231
        %v1234 = vadd.f32 %v1196, %v1232
        %v1235 = vld [vmem:[#allocation5 + $0x3] sm:$0xff]
        %v1236 = vld [vmem:[#allocation5 + $0xb] sm:$0xff]
        %v1237 = vld [vmem:[%s3 + $0xb] sm:$0x1]
        %v1238 = vperm.slane %v1237, 0
        %v1239 = vmul.f32 %v1235, %v1238
        %v1240 = vmul.f32 %v1236, %v1238
        %v1241 = vadd.f32 %v1233, %v1239
        %v1242 = vadd.f32 %v1234, %v1240
        %v1243 = vld [vmem:[#allocation5 + $0x6] sm:$0xff]
        %v1244 = vld [vmem:[#allocation5 + $0xe] sm:$0xff]
        %v1245 = vld [vmem:[%s3 + $0x12] sm:$0x1]
        %v1246 = vperm.slane %v1245, 0
        %v1247 = vmul.f32 %v1243, %v1246
        %v1248 = vmul.f32 %v1244, %v1246
        %v1249 = vadd.f32 %v1241, %v1247
        %v1250 = vadd.f32 %v1242, %v1248
        %v1251 = vld [vmem:[#allocation5 + $0x9] sm:$0xff]
        %v1252 = vld [vmem:[#allocation5 + $0x11] sm:$0xff]
        %v1253 = vld [vmem:[%s3 + $0x19] sm:$0x1]
        %v1254 = vperm.slane %v1253, 0
        %v1255 = vmul.f32 %v1251, %v1254
        %v1256 = vmul.f32 %v1252, %v1254
        %v1257 = vadd.f32 %v1249, %v1255
        %v1258 = vadd.f32 %v1250, %v1256
        %v1259 = vld [vmem:[#allocation5 + $0xc] sm:$0xff]
        %v1260 = vld [vmem:[#allocation5 + $0x14] sm:$0xff]
        %v1261 = vld [vmem:[%s3 + $0x20] sm:$0x1]
        %v1262 = vperm.slane %v1261, 0
        %v1263 = vmul.f32 %v1259, %v1262
        %v1264 = vmul.f32 %v1260, %v1262
        %v1265 = vadd.f32 %v1257, %v1263
        %v1266 = vadd.f32 %v1258, %v1264
        %v1267 = vld [vmem:[#allocation5 + $0xf] sm:$0xff]
        %v1268 = vld [vmem:[#allocation5 + $0x17] sm:$0xff]
        %v1269 = vld [vmem:[%s3 + $0x27] sm:$0x1]
        %v1270 = vperm.slane %v1269, 0
        %v1271 = vmul.f32 %v1267, %v1270
        %v1272 = vmul.f32 %v1268, %v1270
        %v1273 = vadd.f32 %v1265, %v1271
        %v1274 = vadd.f32 %v1266, %v1272
        %v1275 = vld [vmem:[#allocation5 + $0x12] sm:$0xff]
        %v1276 = vld [vmem:[#allocation5 + $0x1a] sm:$0xff]
        %v1277 = vld [vmem:[%s3 + $0x2e] sm:$0x1]
        %v1278 = vperm.slane %v1277, 0
        %v1279 = vmul.f32 %v1275, %v1278
        %v1280 = vmul.f32 %v1276, %v1278
        %v1281 = vadd.f32 %v1273, %v1279
        %v1282 = vadd.f32 %v1274, %v1280
        %v1283 = vld [vmem:[#allocation3] sm:$0xff]
        %v1284 = vld [vmem:[#allocation3 + $0x8] sm:$0xff]
        %v1285 = vld [vmem:[#allocation3 + $0x10] sm:$0xff]
        %v1286 = vld [vmem:[#allocation3 + $0x18] sm:$0xff]
        %v1287 = vld [vmem:[#allocation3 + $0x20] sm:$0x3]
        %1293 = vrot.lane.b32.xlu0 %v1283, 113
        %v1294 = vpop.permute.xlu0 %1293
        %1295 = vrot.lane.b32.xlu0 %v1284, 113
        %v1296 = vpop.permute.xlu0 %1295
        %1297 = vrot.lane.b32.xlu0 %v1285, 113
        %v1298 = vpop.permute.xlu0 %1297
        %1299 = vrot.lane.b32.xlu0 %v1286, 113
        %v1300 = vpop.permute.xlu0 %1299
        %1301 = vrot.lane.b32.xlu0 %v1287, 113
        %v1302 = vpop.permute.xlu0 %1301
        %1308 = vst.msk [vmem:[#allocation5] sm:$0xff] %vm580, %v1294
        %1309 = vst.msk [vmem:[#allocation5 + $0x8] sm:$0xff] %vm580, %v1296
        %1310 = vst.msk [vmem:[#allocation5 + $0x10] sm:$0xff] %vm580, %v1298
        %1311 = vst.msk [vmem:[#allocation5 + $0x18] sm:$0xff] %vm580, %v1300
        %1312 = vst.msk [vmem:[#allocation5 + $0x20] sm:$0x3] %vm881, %v1302
        %v1313 = vld [vmem:[#allocation5] sm:$0xff]
        %v1314 = vld [vmem:[#allocation5 + $0x8] sm:$0xff]
        %v1315 = vld [vmem:[%s3 + $0x5] sm:$0x1]
        %v1316 = vperm.slane %v1315, 0
        %v1317 = vmul.f32 %v1313, %v1316
        %v1318 = vmul.f32 %v1314, %v1316
        %v1319 = vadd.f32 %v1281, %v1317
        %v1320 = vadd.f32 %v1282, %v1318
        %v1321 = vld [vmem:[#allocation5 + $0x3] sm:$0xff]
        %v1322 = vld [vmem:[#allocation5 + $0xb] sm:$0xff]
        %v1323 = vld [vmem:[%s3 + $0xc] sm:$0x1]
        %v1324 = vperm.slane %v1323, 0
        %v1325 = vmul.f32 %v1321, %v1324
        %v1326 = vmul.f32 %v1322, %v1324
        %v1327 = vadd.f32 %v1319, %v1325
        %v1328 = vadd.f32 %v1320, %v1326
        %v1329 = vld [vmem:[#allocation5 + $0x6] sm:$0xff]
        %v1330 = vld [vmem:[#allocation5 + $0xe] sm:$0xff]
        %v1331 = vld [vmem:[%s3 + $0x13] sm:$0x1]
        %v1332 = vperm.slane %v1331, 0
        %v1333 = vmul.f32 %v1329, %v1332
        %v1334 = vmul.f32 %v1330, %v1332
        %v1335 = vadd.f32 %v1327, %v1333
        %v1336 = vadd.f32 %v1328, %v1334
        %v1337 = vld [vmem:[#allocation5 + $0x9] sm:$0xff]
        %v1338 = vld [vmem:[#allocation5 + $0x11] sm:$0xff]
        %v1339 = vld [vmem:[%s3 + $0x1a] sm:$0x1]
        %v1340 = vperm.slane %v1339, 0
        %v1341 = vmul.f32 %v1337, %v1340
        %v1342 = vmul.f32 %v1338, %v1340
        %v1343 = vadd.f32 %v1335, %v1341
        %v1344 = vadd.f32 %v1336, %v1342
        %v1345 = vld [vmem:[#allocation5 + $0xc] sm:$0xff]
        %v1346 = vld [vmem:[#allocation5 + $0x14] sm:$0xff]
        %v1347 = vld [vmem:[%s3 + $0x21] sm:$0x1]
        %v1348 = vperm.slane %v1347, 0
        %v1349 = vmul.f32 %v1345, %v1348
        %v1350 = vmul.f32 %v1346, %v1348
        %v1351 = vadd.f32 %v1343, %v1349
        %v1352 = vadd.f32 %v1344, %v1350
        %v1353 = vld [vmem:[#allocation5 + $0xf] sm:$0xff]
        %v1354 = vld [vmem:[#allocation5 + $0x17] sm:$0xff]
        %v1355 = vld [vmem:[%s3 + $0x28] sm:$0x1]
        %v1356 = vperm.slane %v1355, 0
        %v1357 = vmul.f32 %v1353, %v1356
        %v1358 = vmul.f32 %v1354, %v1356
        %v1359 = vadd.f32 %v1351, %v1357
        %v1360 = vadd.f32 %v1352, %v1358
        %v1361 = vld [vmem:[#allocation5 + $0x12] sm:$0xff]
        %v1362 = vld [vmem:[#allocation5 + $0x1a] sm:$0xff]
        %v1363 = vld [vmem:[%s3 + $0x2f] sm:$0x1]
        %v1364 = vperm.slane %v1363, 0
        %v1365 = vmul.f32 %v1361, %v1364
        %v1366 = vmul.f32 %v1362, %v1364
        %v1367 = vadd.f32 %v1359, %v1365
        %v1368 = vadd.f32 %v1360, %v1366
        %v1369 = vld [vmem:[#allocation3] sm:$0xff]
        %v1370 = vld [vmem:[#allocation3 + $0x8] sm:$0xff]
        %v1371 = vld [vmem:[#allocation3 + $0x10] sm:$0xff]
        %v1372 = vld [vmem:[#allocation3 + $0x18] sm:$0xff]
        %v1373 = vld [vmem:[#allocation3 + $0x20] sm:$0x3]
        %1379 = vrot.lane.b32.xlu0 %v1369, 110
        %v1380 = vpop.permute.xlu0 %1379
        %1381 = vrot.lane.b32.xlu0 %v1370, 110
        %v1382 = vpop.permute.xlu0 %1381
        %1383 = vrot.lane.b32.xlu0 %v1371, 110
        %v1384 = vpop.permute.xlu0 %1383
        %1385 = vrot.lane.b32.xlu0 %v1372, 110
        %v1386 = vpop.permute.xlu0 %1385
        %1387 = vrot.lane.b32.xlu0 %v1373, 110
        %v1388 = vpop.permute.xlu0 %1387
        %1394 = vst.msk [vmem:[#allocation5] sm:$0xff] %vm580, %v1380
        %1395 = vst.msk [vmem:[#allocation5 + $0x8] sm:$0xff] %vm580, %v1382
        %1396 = vst.msk [vmem:[#allocation5 + $0x10] sm:$0xff] %vm580, %v1384
        %1397 = vst.msk [vmem:[#allocation5 + $0x18] sm:$0xff] %vm580, %v1386
        %1398 = vst.msk [vmem:[#allocation5 + $0x20] sm:$0x3] %vm881, %v1388
        %v1399 = vld [vmem:[#allocation5] sm:$0xff]
        %v1400 = vld [vmem:[#allocation5 + $0x8] sm:$0xff]
        %v1401 = vld [vmem:[%s3 + $0x6] sm:$0x1]
        %v1402 = vperm.slane %v1401, 0
        %v1403 = vmul.f32 %v1399, %v1402
        %v1404 = vmul.f32 %v1400, %v1402
        %v1405 = vadd.f32 %v1367, %v1403
        %v1406 = vadd.f32 %v1368, %v1404
        %v1407 = vld [vmem:[#allocation5 + $0x3] sm:$0xff]
        %v1408 = vld [vmem:[#allocation5 + $0xb] sm:$0xff]
        %v1409 = vld [vmem:[%s3 + $0xd] sm:$0x1]
        %v1410 = vperm.slane %v1409, 0
        %v1411 = vmul.f32 %v1407, %v1410
        %v1412 = vmul.f32 %v1408, %v1410
        %v1413 = vadd.f32 %v1405, %v1411
        %v1414 = vadd.f32 %v1406, %v1412
        %v1415 = vld [vmem:[#allocation5 + $0x6] sm:$0xff]
        %v1416 = vld [vmem:[#allocation5 + $0xe] sm:$0xff]
        %v1417 = vld [vmem:[%s3 + $0x14] sm:$0x1]
        %v1418 = vperm.slane %v1417, 0
        %v1419 = vmul.f32 %v1415, %v1418
        %v1420 = vmul.f32 %v1416, %v1418
        %v1421 = vadd.f32 %v1413, %v1419
        %v1422 = vadd.f32 %v1414, %v1420
        %v1423 = vld [vmem:[#allocation5 + $0x9] sm:$0xff]
        %v1424 = vld [vmem:[#allocation5 + $0x11] sm:$0xff]
        %v1425 = vld [vmem:[%s3 + $0x1b] sm:$0x1]
        %v1426 = vperm.slane %v1425, 0
        %v1427 = vmul.f32 %v1423, %v1426
        %v1428 = vmul.f32 %v1424, %v1426
        %v1429 = vadd.f32 %v1421, %v1427
        %v1430 = vadd.f32 %v1422, %v1428
        %v1431 = vld [vmem:[#allocation5 + $0xc] sm:$0xff]
        %v1432 = vld [vmem:[#allocation5 + $0x14] sm:$0xff]
        %v1433 = vld [vmem:[%s3 + $0x22] sm:$0x1]
        %v1434 = vperm.slane %v1433, 0
        %v1435 = vmul.f32 %v1431, %v1434
        %v1436 = vmul.f32 %v1432, %v1434
        %v1437 = vadd.f32 %v1429, %v1435
        %v1438 = vadd.f32 %v1430, %v1436
        %v1439 = vld [vmem:[#allocation5 + $0xf] sm:$0xff]
        %v1440 = vld [vmem:[#allocation5 + $0x17] sm:$0xff]
        %v1441 = vld [vmem:[%s3 + $0x29] sm:$0x1]
        %v1442 = vperm.slane %v1441, 0
        %v1443 = vmul.f32 %v1439, %v1442
        %v1444 = vmul.f32 %v1440, %v1442
        %v1445 = vadd.f32 %v1437, %v1443
        %v1446 = vadd.f32 %v1438, %v1444
        %v1447 = vld [vmem:[#allocation5 + $0x12] sm:$0xff]
        %v1448 = vld [vmem:[#allocation5 + $0x1a] sm:$0xff]
        %v1449 = vld [vmem:[%s3 + $0x30] sm:$0x1]
        %v1450 = vperm.slane %v1449, 0
        %v1451 = vmul.f32 %v1447, %v1450
        %v1452 = vmul.f32 %v1448, %v1450
        %v1453 = vadd.f32 %v1445, %v1451
        %v1454 = vadd.f32 %v1446, %v1452
        %v1455 = vld [vmem:[%s4] sm:$0x1]
        %v1456 = vperm.slane %v1455, 0
        %v1457 = vadd.f32 %v1453, %v1456
        %v1458 = vadd.f32 %v1454, %v1456
        %1459 = vst.msk [vmem:[#allocation4] sm:$0xff] %vm580, %v1457
        %1460 = vst.msk [vmem:[#allocation4 + $0x8] sm:$0xff] %vm580, %v1458
        %s1461 = scalar_lea.vmem [#allocation2], 24
        %1462 = vst.msk [vmem:[%s1461] sm:$0x3] %vm395, 0.0
        %1463 = vst.msk [vmem:[%s1461 + $0x12] sm:$0x3] %vm395, 0.0
        %1464 = vst.msk [vmem:[%s1461 + $0x2] sm:$0xff] %vm383, 0.0
        %1465 = vst.msk [vmem:[%s1461 + $0xa] sm:$0xff] %vm383, 0.0
        %s1466 = sld [smem:[#allocation9 + $0x2]]
        %v1467 = vstv %s1466
        %v1468 = vld [vmem:[%s382] sm:$0xff]
        %v1469 = vld [vmem:[%s382 + $0x8] sm:$0xff]
        %s1470 = sld [smem:[#allocation6 + $0x2]]
        %v1471 = vstv %s1470
        %v1472 = vmul.f32 %v1468, %v1471
        %v1473 = vmul.f32 %v1469, %v1471
        %v1474 = vadd.f32 %v1467, %v1472
        %v1475 = vadd.f32 %v1467, %v1473
        %v1476 = vld [vmem:[%s410] sm:$0xff]
        %v1477 = vld [vmem:[%s410 + $0x8] sm:$0xff]
        %s1478 = sld [smem:[#allocation6 + $0x6]]
        %v1479 = vstv %s1478
        %v1480 = vmul.f32 %v1476, %v1479
        %v1481 = vmul.f32 %v1477, %v1479
        %v1482 = vadd.f32 %v1474, %v1480
        %v1483 = vadd.f32 %v1475, %v1481
        %v1484 = vld [vmem:[%s419] sm:$0xff]
        %v1485 = vld [vmem:[%s419 + $0x8] sm:$0xff]
        %s1486 = sld [smem:[#allocation6 + $0xa]]
        %v1487 = vstv %s1486
        %v1488 = vmul.f32 %v1484, %v1487
        %v1489 = vmul.f32 %v1485, %v1487
        %v1490 = vadd.f32 %v1482, %v1488
        %v1491 = vadd.f32 %v1483, %v1489
        %v1492 = vld [vmem:[%s428] sm:$0xff]
        %v1493 = vld [vmem:[%s428 + $0x8] sm:$0xff]
        %s1494 = sld [smem:[#allocation6 + $0xe]]
        %v1495 = vstv %s1494
        %v1496 = vmul.f32 %v1492, %v1495
        %v1497 = vmul.f32 %v1493, %v1495
        %v1498 = vadd.f32 %v1490, %v1496
        %v1499 = vadd.f32 %v1491, %v1497
        %v1500 = vld [vmem:[%s437] sm:$0xff]
        %v1501 = vld [vmem:[%s437 + $0x8] sm:$0xff]
        %s1502 = sld [smem:[#allocation6 + $0x12]]
        %v1503 = vstv %s1502
        %v1504 = vmul.f32 %v1500, %v1503
        %v1505 = vmul.f32 %v1501, %v1503
        %v1506 = vadd.f32 %v1498, %v1504
        %v1507 = vadd.f32 %v1499, %v1505
        %v1508 = vld [vmem:[%s446] sm:$0xff]
        %v1509 = vld [vmem:[%s446 + $0x8] sm:$0xff]
        %s1510 = sld [smem:[#allocation6 + $0x16]]
        %v1511 = vstv %s1510
        %v1512 = vmul.f32 %v1508, %v1511
        %v1513 = vmul.f32 %v1509, %v1511
        %v1514 = vadd.f32 %v1506, %v1512
        %v1515 = vadd.f32 %v1507, %v1513
        %v1516 = vld [vmem:[%s455] sm:$0xff]
        %v1517 = vld [vmem:[%s455 + $0x8] sm:$0xff]
        %s1518 = sld [smem:[#allocation6 + $0x1a]]
        %v1519 = vstv %s1518
        %v1520 = vmul.f32 %v1516, %v1519
        %v1521 = vmul.f32 %v1517, %v1519
        %v1522 = vadd.f32 %v1514, %v1520
        %v1523 = vadd.f32 %v1515, %v1521
        %v1524 = vld [vmem:[%s464] sm:$0xff]
        %v1525 = vld [vmem:[%s464 + $0x8] sm:$0xff]
        %s1526 = sld [smem:[#allocation6 + $0x1e]]
        %v1527 = vstv %s1526
        %v1528 = vmul.f32 %v1524, %v1527
        %v1529 = vmul.f32 %v1525, %v1527
        %v1530 = vadd.f32 %v1522, %v1528
        %v1531 = vadd.f32 %v1523, %v1529
        %v1532 = vmax.f32 %v1530, 0.0
        %v1533 = vmax.f32 %v1531, 0.0
        %1536 = vrot.lane.b32.xlu0 %v1532, 18
        %v1537 = vpop.permute.xlu0 %1536
        %1538 = vrot.lane.b32.xlu0 %v1533, 18
        %v1539 = vpop.permute.xlu0 %1538
        %1542 = vst.msk [vmem:[%s1461 + $0x2] sm:$0xff] %vm483, %v1537
        %1543 = vst.msk [vmem:[%s1461 + $0xa] sm:$0xff] %vm483, %v1539
        %s1544 = sld [smem:[#allocation9 + $0x3]]
        %v1545 = vstv %s1544
        %v1546 = vld [vmem:[%s382] sm:$0xff]
        %v1547 = vld [vmem:[%s382 + $0x8] sm:$0xff]
        %s1548 = sld [smem:[#allocation6 + $0x3]]
        %v1549 = vstv %s1548
        %v1550 = vmul.f32 %v1546, %v1549
        %v1551 = vmul.f32 %v1547, %v1549
        %v1552 = vadd.f32 %v1545, %v1550
        %v1553 = vadd.f32 %v1545, %v1551
        %v1554 = vld [vmem:[%s410] sm:$0xff]
        %v1555 = vld [vmem:[%s410 + $0x8] sm:$0xff]
        %s1556 = sld [smem:[#allocation6 + $0x7]]
        %v1557 = vstv %s1556
        %v1558 = vmul.f32 %v1554, %v1557
        %v1559 = vmul.f32 %v1555, %v1557
        %v1560 = vadd.f32 %v1552, %v1558
        %v1561 = vadd.f32 %v1553, %v1559
        %v1562 = vld [vmem:[%s419] sm:$0xff]
        %v1563 = vld [vmem:[%s419 + $0x8] sm:$0xff]
        %s1564 = sld [smem:[#allocation6 + $0xb]]
        %v1565 = vstv %s1564
        %v1566 = vmul.f32 %v1562, %v1565
        %v1567 = vmul.f32 %v1563, %v1565
        %v1568 = vadd.f32 %v1560, %v1566
        %v1569 = vadd.f32 %v1561, %v1567
        %v1570 = vld [vmem:[%s428] sm:$0xff]
        %v1571 = vld [vmem:[%s428 + $0x8] sm:$0xff]
        %s1572 = sld [smem:[#allocation6 + $0xf]]
        %v1573 = vstv %s1572
        %v1574 = vmul.f32 %v1570, %v1573
        %v1575 = vmul.f32 %v1571, %v1573
        %v1576 = vadd.f32 %v1568, %v1574
        %v1577 = vadd.f32 %v1569, %v1575
        %v1578 = vld [vmem:[%s437] sm:$0xff]
        %v1579 = vld [vmem:[%s437 + $0x8] sm:$0xff]
        %s1580 = sld [smem:[#allocation6 + $0x13]]
        %v1581 = vstv %s1580
        %v1582 = vmul.f32 %v1578, %v1581
        %v1583 = vmul.f32 %v1579, %v1581
        %v1584 = vadd.f32 %v1576, %v1582
        %v1585 = vadd.f32 %v1577, %v1583
        %v1586 = vld [vmem:[%s446] sm:$0xff]
        %v1587 = vld [vmem:[%s446 + $0x8] sm:$0xff]
        %s1588 = sld [smem:[#allocation6 + $0x17]]
        %v1589 = vstv %s1588
        %v1590 = vmul.f32 %v1586, %v1589
        %v1591 = vmul.f32 %v1587, %v1589
        %v1592 = vadd.f32 %v1584, %v1590
        %v1593 = vadd.f32 %v1585, %v1591
        %v1594 = vld [vmem:[%s455] sm:$0xff]
        %v1595 = vld [vmem:[%s455 + $0x8] sm:$0xff]
        %s1596 = sld [smem:[#allocation6 + $0x1b]]
        %v1597 = vstv %s1596
        %v1598 = vmul.f32 %v1594, %v1597
        %v1599 = vmul.f32 %v1595, %v1597
        %v1600 = vadd.f32 %v1592, %v1598
        %v1601 = vadd.f32 %v1593, %v1599
        %v1602 = vld [vmem:[%s464] sm:$0xff]
        %v1603 = vld [vmem:[%s464 + $0x8] sm:$0xff]
        %s1604 = sld [smem:[#allocation6 + $0x1f]]
        %v1605 = vstv %s1604
        %v1606 = vmul.f32 %v1602, %v1605
        %v1607 = vmul.f32 %v1603, %v1605
        %v1608 = vadd.f32 %v1600, %v1606
        %v1609 = vadd.f32 %v1601, %v1607
        %v1610 = vmax.f32 %v1608, 0.0
        %v1611 = vmax.f32 %v1609, 0.0
        %1614 = vrot.lane.b32.xlu0 %v1610, 52
        %v1615 = vpop.permute.xlu0 %1614
        %1616 = vrot.lane.b32.xlu0 %v1611, 52
        %v1617 = vpop.permute.xlu0 %1616
        %1620 = vst.msk [vmem:[%s1461 + $0x2] sm:$0xff] %vm562, %v1615
        %1621 = vst.msk [vmem:[%s1461 + $0xa] sm:$0xff] %vm562, %v1617
        %v1622 = vld [vmem:[%s1461] sm:$0xff]
        %v1623 = vld [vmem:[%s1461 + $0x8] sm:$0xff]
        %v1624 = vld [vmem:[%s1461 + $0x10] sm:$0xf]
        %1628 = vrot.lane.b32.xlu0 %v1622, 121
        %v1629 = vpop.permute.xlu0 %1628
        %1630 = vrot.lane.b32.xlu0 %v1623, 121
        %v1631 = vpop.permute.xlu0 %1630
        %1632 = vrot.lane.b32.xlu0 %v1624, 121
        %v1633 = vpop.permute.xlu0 %1632
        %1637 = vst.msk [vmem:[#allocation5] sm:$0xff] %vm580, %v1629
        %1638 = vst.msk [vmem:[#allocation5 + $0x8] sm:$0xff] %vm580, %v1631
        %1639 = vst.msk [vmem:[#allocation5 + $0x10] sm:$0xf] %vm583, %v1633
        %v1640 = vld [vmem:[#allocation5] sm:$0xff]
        %v1641 = vld [vmem:[#allocation5 + $0x8] sm:$0xff]
        %s1642 = scalar_lea.vmem %s1, 32
        %v1643 = vld [vmem:[%s1642] sm:$0x1]
        %v1644 = vperm.slane %v1643, 0
        %v1645 = vmul.f32 %v1640, %v1644
        %v1646 = vmul.f32 %v1641, %v1644
        %v1647 = vadd.f32 %v1645, 0.0
        %v1648 = vadd.f32 %v1646, 0.0
        %v1649 = vld [vmem:[#allocation5 + $0x1] sm:$0xff]
        %v1650 = vld [vmem:[#allocation5 + $0x9] sm:$0xff]
        %v1651 = vld [vmem:[%s1642 + $0x5] sm:$0x1]
        %v1652 = vperm.slane %v1651, 0
        %v1653 = vmul.f32 %v1649, %v1652
        %v1654 = vmul.f32 %v1650, %v1652
        %v1655 = vadd.f32 %v1647, %v1653
        %v1656 = vadd.f32 %v1648, %v1654
        %v1657 = vld [vmem:[#allocation5 + $0x2] sm:$0xff]
        %v1658 = vld [vmem:[#allocation5 + $0xa] sm:$0xff]
        %v1659 = vld [vmem:[%s1642 + $0xa] sm:$0x1]
        %v1660 = vperm.slane %v1659, 0
        %v1661 = vmul.f32 %v1657, %v1660
        %v1662 = vmul.f32 %v1658, %v1660
        %v1663 = vadd.f32 %v1655, %v1661
        %v1664 = vadd.f32 %v1656, %v1662
        %v1665 = vld [vmem:[#allocation5 + $0x3] sm:$0xff]
        %v1666 = vld [vmem:[#allocation5 + $0xb] sm:$0xff]
        %v1667 = vld [vmem:[%s1642 + $0xf] sm:$0x1]
        %v1668 = vperm.slane %v1667, 0
        %v1669 = vmul.f32 %v1665, %v1668
        %v1670 = vmul.f32 %v1666, %v1668
        %v1671 = vadd.f32 %v1663, %v1669
        %v1672 = vadd.f32 %v1664, %v1670
        %v1673 = vld [vmem:[#allocation5 + $0x4] sm:$0xff]
        %v1674 = vld [vmem:[#allocation5 + $0xc] sm:$0xff]
        %v1675 = vld [vmem:[%s1642 + $0x14] sm:$0x1]
        %v1676 = vperm.slane %v1675, 0
        %v1677 = vmul.f32 %v1673, %v1676
        %v1678 = vmul.f32 %v1674, %v1676
        %v1679 = vadd.f32 %v1671, %v1677
        %v1680 = vadd.f32 %v1672, %v1678
        %v1681 = vld [vmem:[%s1461] sm:$0xff]
        %v1682 = vld [vmem:[%s1461 + $0x8] sm:$0xff]
        %v1683 = vld [vmem:[%s1461 + $0x10] sm:$0xf]
        %1687 = vrot.lane.b32.xlu0 %v1681, 120
        %v1688 = vpop.permute.xlu0 %1687
        %1689 = vrot.lane.b32.xlu0 %v1682, 120
        %v1690 = vpop.permute.xlu0 %1689
        %1691 = vrot.lane.b32.xlu0 %v1683, 120
        %v1692 = vpop.permute.xlu0 %1691
        %1696 = vst.msk [vmem:[#allocation5] sm:$0xff] %vm580, %v1688
        %1697 = vst.msk [vmem:[#allocation5 + $0x8] sm:$0xff] %vm580, %v1690
        %1698 = vst.msk [vmem:[#allocation5 + $0x10] sm:$0xf] %vm583, %v1692
        %v1699 = vld [vmem:[#allocation5] sm:$0xff]
        %v1700 = vld [vmem:[#allocation5 + $0x8] sm:$0xff]
        %v1701 = vld [vmem:[%s1642 + $0x1] sm:$0x1]
        %v1702 = vperm.slane %v1701, 0
        %v1703 = vmul.f32 %v1699, %v1702
        %v1704 = vmul.f32 %v1700, %v1702
        %v1705 = vadd.f32 %v1679, %v1703
        %v1706 = vadd.f32 %v1680, %v1704
        %v1707 = vld [vmem:[#allocation5 + $0x1] sm:$0xff]
        %v1708 = vld [vmem:[#allocation5 + $0x9] sm:$0xff]
        %v1709 = vld [vmem:[%s1642 + $0x6] sm:$0x1]
        %v1710 = vperm.slane %v1709, 0
        %v1711 = vmul.f32 %v1707, %v1710
        %v1712 = vmul.f32 %v1708, %v1710
        %v1713 = vadd.f32 %v1705, %v1711
        %v1714 = vadd.f32 %v1706, %v1712
        %v1715 = vld [vmem:[#allocation5 + $0x2] sm:$0xff]
        %v1716 = vld [vmem:[#allocation5 + $0xa] sm:$0xff]
        %v1717 = vld [vmem:[%s1642 + $0xb] sm:$0x1]
        %v1718 = vperm.slane %v1717, 0
        %v1719 = vmul.f32 %v1715, %v1718
        %v1720 = vmul.f32 %v1716, %v1718
        %v1721 = vadd.f32 %v1713, %v1719
        %v1722 = vadd.f32 %v1714, %v1720
        %v1723 = vld [vmem:[#allocation5 + $0x3] sm:$0xff]
        %v1724 = vld [vmem:[#allocation5 + $0xb] sm:$0xff]
        %v1725 = vld [vmem:[%s1642 + $0x10] sm:$0x1]
        %v1726 = vperm.slane %v1725, 0
        %v1727 = vmul.f32 %v1723, %v1726
        %v1728 = vmul.f32 %v1724, %v1726
        %v1729 = vadd.f32 %v1721, %v1727
        %v1730 = vadd.f32 %v1722, %v1728
        %v1731 = vld [vmem:[#allocation5 + $0x4] sm:$0xff]
        %v1732 = vld [vmem:[#allocation5 + $0xc] sm:$0xff]
        %v1733 = vld [vmem:[%s1642 + $0x15] sm:$0x1]
        %v1734 = vperm.slane %v1733, 0
        %v1735 = vmul.f32 %v1731, %v1734
        %v1736 = vmul.f32 %v1732, %v1734
        %v1737 = vadd.f32 %v1729, %v1735
        %v1738 = vadd.f32 %v1730, %v1736
        %v1739 = vld [vmem:[%s1461] sm:$0xff]
        %v1740 = vld [vmem:[%s1461 + $0x8] sm:$0xff]
        %v1741 = vld [vmem:[%s1461 + $0x10] sm:$0xf]
        %1745 = vrot.lane.b32.xlu0 %v1739, 119
        %v1746 = vpop.permute.xlu0 %1745
        %1747 = vrot.lane.b32.xlu0 %v1740, 119
        %v1748 = vpop.permute.xlu0 %1747
        %1749 = vrot.lane.b32.xlu0 %v1741, 119
        %v1750 = vpop.permute.xlu0 %1749
        %1754 = vst.msk [vmem:[#allocation5] sm:$0xff] %vm580, %v1746
        %1755 = vst.msk [vmem:[#allocation5 + $0x8] sm:$0xff] %vm580, %v1748
        %1756 = vst.msk [vmem:[#allocation5 + $0x10] sm:$0xf] %vm583, %v1750
        %v1757 = vld [vmem:[#allocation5] sm:$0xff]
        %v1758 = vld [vmem:[#allocation5 + $0x8] sm:$0xff]
        %v1759 = vld [vmem:[%s1642 + $0x2] sm:$0x1]
        %v1760 = vperm.slane %v1759, 0
        %v1761 = vmul.f32 %v1757, %v1760
        %v1762 = vmul.f32 %v1758, %v1760
        %v1763 = vadd.f32 %v1737, %v1761
        %v1764 = vadd.f32 %v1738, %v1762
        %v1765 = vld [vmem:[#allocation5 + $0x1] sm:$0xff]
        %v1766 = vld [vmem:[#allocation5 + $0x9] sm:$0xff]
        %v1767 = vld [vmem:[%s1642 + $0x7] sm:$0x1]
        %v1768 = vperm.slane %v1767, 0
        %v1769 = vmul.f32 %v1765, %v1768
        %v1770 = vmul.f32 %v1766, %v1768
        %v1771 = vadd.f32 %v1763, %v1769
        %v1772 = vadd.f32 %v1764, %v1770
        %v1773 = vld [vmem:[#allocation5 + $0x2] sm:$0xff]
        %v1774 = vld [vmem:[#allocation5 + $0xa] sm:$0xff]
        %v1775 = vld [vmem:[%s1642 + $0xc] sm:$0x1]
        %v1776 = vperm.slane %v1775, 0
        %v1777 = vmul.f32 %v1773, %v1776
        %v1778 = vmul.f32 %v1774, %v1776
        %v1779 = vadd.f32 %v1771, %v1777
        %v1780 = vadd.f32 %v1772, %v1778
        %v1781 = vld [vmem:[#allocation5 + $0x3] sm:$0xff]
        %v1782 = vld [vmem:[#allocation5 + $0xb] sm:$0xff]
        %v1783 = vld [vmem:[%s1642 + $0x11] sm:$0x1]
        %v1784 = vperm.slane %v1783, 0
        %v1785 = vmul.f32 %v1781, %v1784
        %v1786 = vmul.f32 %v1782, %v1784
        %v1787 = vadd.f32 %v1779, %v1785
        %v1788 = vadd.f32 %v1780, %v1786
        %v1789 = vld [vmem:[#allocation5 + $0x4] sm:$0xff]
        %v1790 = vld [vmem:[#allocation5 + $0xc] sm:$0xff]
        %v1791 = vld [vmem:[%s1642 + $0x16] sm:$0x1]
        %v1792 = vperm.slane %v1791, 0
        %v1793 = vmul.f32 %v1789, %v1792
        %v1794 = vmul.f32 %v1790, %v1792
        %v1795 = vadd.f32 %v1787, %v1793
        %v1796 = vadd.f32 %v1788, %v1794
        %v1797 = vld [vmem:[%s1461] sm:$0xff]
        %v1798 = vld [vmem:[%s1461 + $0x8] sm:$0xff]
        %v1799 = vld [vmem:[%s1461 + $0x10] sm:$0xf]
        %1803 = vrot.lane.b32.xlu0 %v1797, 118
        %v1804 = vpop.permute.xlu0 %1803
        %1805 = vrot.lane.b32.xlu0 %v1798, 118
        %v1806 = vpop.permute.xlu0 %1805
        %1807 = vrot.lane.b32.xlu0 %v1799, 118
        %v1808 = vpop.permute.xlu0 %1807
        %1812 = vst.msk [vmem:[#allocation5] sm:$0xff] %vm580, %v1804
        %1813 = vst.msk [vmem:[#allocation5 + $0x8] sm:$0xff] %vm580, %v1806
        %1814 = vst.msk [vmem:[#allocation5 + $0x10] sm:$0xf] %vm583, %v1808
        %v1815 = vld [vmem:[#allocation5] sm:$0xff]
        %v1816 = vld [vmem:[#allocation5 + $0x8] sm:$0xff]
        %v1817 = vld [vmem:[%s1642 + $0x3] sm:$0x1]
        %v1818 = vperm.slane %v1817, 0
        %v1819 = vmul.f32 %v1815, %v1818
        %v1820 = vmul.f32 %v1816, %v1818
        %v1821 = vadd.f32 %v1795, %v1819
        %v1822 = vadd.f32 %v1796, %v1820
        %v1823 = vld [vmem:[#allocation5 + $0x1] sm:$0xff]
        %v1824 = vld [vmem:[#allocation5 + $0x9] sm:$0xff]
        %v1825 = vld [vmem:[%s1642 + $0x8] sm:$0x1]
        %v1826 = vperm.slane %v1825, 0
        %v1827 = vmul.f32 %v1823, %v1826
        %v1828 = vmul.f32 %v1824, %v1826
        %v1829 = vadd.f32 %v1821, %v1827
        %v1830 = vadd.f32 %v1822, %v1828
        %v1831 = vld [vmem:[#allocation5 + $0x2] sm:$0xff]
        %v1832 = vld [vmem:[#allocation5 + $0xa] sm:$0xff]
        %v1833 = vld [vmem:[%s1642 + $0xd] sm:$0x1]
        %v1834 = vperm.slane %v1833, 0
        %v1835 = vmul.f32 %v1831, %v1834
        %v1836 = vmul.f32 %v1832, %v1834
        %v1837 = vadd.f32 %v1829, %v1835
        %v1838 = vadd.f32 %v1830, %v1836
        %v1839 = vld [vmem:[#allocation5 + $0x3] sm:$0xff]
        %v1840 = vld [vmem:[#allocation5 + $0xb] sm:$0xff]
        %v1841 = vld [vmem:[%s1642 + $0x12] sm:$0x1]
        %v1842 = vperm.slane %v1841, 0
        %v1843 = vmul.f32 %v1839, %v1842
        %v1844 = vmul.f32 %v1840, %v1842
        %v1845 = vadd.f32 %v1837, %v1843
        %v1846 = vadd.f32 %v1838, %v1844
        %v1847 = vld [vmem:[#allocation5 + $0x4] sm:$0xff]
        %v1848 = vld [vmem:[#allocation5 + $0xc] sm:$0xff]
        %v1849 = vld [vmem:[%s1642 + $0x17] sm:$0x1]
        %v1850 = vperm.slane %v1849, 0
        %v1851 = vmul.f32 %v1847, %v1850
        %v1852 = vmul.f32 %v1848, %v1850
        %v1853 = vadd.f32 %v1845, %v1851
        %v1854 = vadd.f32 %v1846, %v1852
        %v1855 = vld [vmem:[%s1461] sm:$0xff]
        %v1856 = vld [vmem:[%s1461 + $0x8] sm:$0xff]
        %v1857 = vld [vmem:[%s1461 + $0x10] sm:$0xf]
        %1861 = vrot.lane.b32.xlu0 %v1855, 117
        %v1862 = vpop.permute.xlu0 %1861
        %1863 = vrot.lane.b32.xlu0 %v1856, 117
        %v1864 = vpop.permute.xlu0 %1863
        %1865 = vrot.lane.b32.xlu0 %v1857, 117
        %v1866 = vpop.permute.xlu0 %1865
        %1870 = vst.msk [vmem:[#allocation5] sm:$0xff] %vm580, %v1862
        %1871 = vst.msk [vmem:[#allocation5 + $0x8] sm:$0xff] %vm580, %v1864
        %1872 = vst.msk [vmem:[#allocation5 + $0x10] sm:$0xf] %vm583, %v1866
        %v1873 = vld [vmem:[#allocation5] sm:$0xff]
        %v1874 = vld [vmem:[#allocation5 + $0x8] sm:$0xff]
        %v1875 = vld [vmem:[%s1642 + $0x4] sm:$0x1]
        %v1876 = vperm.slane %v1875, 0
        %v1877 = vmul.f32 %v1873, %v1876
        %v1878 = vmul.f32 %v1874, %v1876
        %v1879 = vadd.f32 %v1853, %v1877
        %v1880 = vadd.f32 %v1854, %v1878
        %v1881 = vld [vmem:[#allocation5 + $0x1] sm:$0xff]
        %v1882 = vld [vmem:[#allocation5 + $0x9] sm:$0xff]
        %v1883 = vld [vmem:[%s1642 + $0x9] sm:$0x1]
        %v1884 = vperm.slane %v1883, 0
        %v1885 = vmul.f32 %v1881, %v1884
        %v1886 = vmul.f32 %v1882, %v1884
        %v1887 = vadd.f32 %v1879, %v1885
        %v1888 = vadd.f32 %v1880, %v1886
        %v1889 = vld [vmem:[#allocation5 + $0x2] sm:$0xff]
        %v1890 = vld [vmem:[#allocation5 + $0xa] sm:$0xff]
        %v1891 = vld [vmem:[%s1642 + $0xe] sm:$0x1]
        %v1892 = vperm.slane %v1891, 0
        %v1893 = vmul.f32 %v1889, %v1892
        %v1894 = vmul.f32 %v1890, %v1892
        %v1895 = vadd.f32 %v1887, %v1893
        %v1896 = vadd.f32 %v1888, %v1894
        %v1897 = vld [vmem:[#allocation5 + $0x3] sm:$0xff]
        %v1898 = vld [vmem:[#allocation5 + $0xb] sm:$0xff]
        %v1899 = vld [vmem:[%s1642 + $0x13] sm:$0x1]
        %v1900 = vperm.slane %v1899, 0
        %v1901 = vmul.f32 %v1897, %v1900
        %v1902 = vmul.f32 %v1898, %v1900
        %v1903 = vadd.f32 %v1895, %v1901
        %v1904 = vadd.f32 %v1896, %v1902
        %v1905 = vld [vmem:[#allocation5 + $0x4] sm:$0xff]
        %v1906 = vld [vmem:[#allocation5 + $0xc] sm:$0xff]
        %v1907 = vld [vmem:[%s1642 + $0x18] sm:$0x1]
        %v1908 = vperm.slane %v1907, 0
        %v1909 = vmul.f32 %v1905, %v1908
        %v1910 = vmul.f32 %v1906, %v1908
        %v1911 = vadd.f32 %v1903, %v1909
        %v1912 = vadd.f32 %v1904, %v1910
        %v1913 = vld [vmem:[%s2 + $0x1] sm:$0x1]
        %v1914 = vperm.slane %v1913, 0
        %v1915 = vadd.f32 %v1911, %v1914
        %v1916 = vadd.f32 %v1912, %v1914
        %1919 = vrot.lane.b32.xlu0 %v1915, 9
        %v1920 = vpop.permute.xlu0 %1919
        %1921 = vrot.lane.b32.xlu0 %v1916, 9
        %v1922 = vpop.permute.xlu0 %1921
        %1925 = vst.msk [vmem:[#allocation3 + $0x9] sm:$0xff] %vm869, %v1920
        %1926 = vst.msk [vmem:[#allocation3 + $0x11] sm:$0xff] %vm869, %v1922
        %v1927 = vld [vmem:[#allocation3] sm:$0xff]
        %v1928 = vld [vmem:[#allocation3 + $0x8] sm:$0xff]
        %v1929 = vld [vmem:[#allocation3 + $0x10] sm:$0xff]
        %v1930 = vld [vmem:[#allocation3 + $0x18] sm:$0xff]
        %v1931 = vld [vmem:[#allocation3 + $0x20] sm:$0x3]
        %1932 = vst.msk [vmem:[#allocation5] sm:$0xff] %vm580, %v1927
        %1933 = vst.msk [vmem:[#allocation5 + $0x8] sm:$0xff] %vm580, %v1928
        %1934 = vst.msk [vmem:[#allocation5 + $0x10] sm:$0xff] %vm580, %v1929
        %1935 = vst.msk [vmem:[#allocation5 + $0x18] sm:$0xff] %vm580, %v1930
        %1936 = vst.msk [vmem:[#allocation5 + $0x20] sm:$0x3] %vm881, %v1931
        %v1937 = vld [vmem:[#allocation5] sm:$0xff]
        %v1938 = vld [vmem:[#allocation5 + $0x8] sm:$0xff]
        %s1939 = scalar_lea.vmem %s3, 56
        %v1940 = vld [vmem:[%s1939] sm:$0x1]
        %v1941 = vperm.slane %v1940, 0
        %v1942 = vmul.f32 %v1937, %v1941
        %v1943 = vmul.f32 %v1938, %v1941
        %v1944 = vadd.f32 %v1942, 0.0
        %v1945 = vadd.f32 %v1943, 0.0
        %v1946 = vld [vmem:[#allocation5 + $0x3] sm:$0xff]
        %v1947 = vld [vmem:[#allocation5 + $0xb] sm:$0xff]
        %v1948 = vld [vmem:[%s1939 + $0x7] sm:$0x1]
        %v1949 = vperm.slane %v1948, 0
        %v1950 = vmul.f32 %v1946, %v1949
        %v1951 = vmul.f32 %v1947, %v1949
        %v1952 = vadd.f32 %v1944, %v1950
        %v1953 = vadd.f32 %v1945, %v1951
        %v1954 = vld [vmem:[#allocation5 + $0x6] sm:$0xff]
        %v1955 = vld [vmem:[#allocation5 + $0xe] sm:$0xff]
        %v1956 = vld [vmem:[%s1939 + $0xe] sm:$0x1]
        %v1957 = vperm.slane %v1956, 0
        %v1958 = vmul.f32 %v1954, %v1957
        %v1959 = vmul.f32 %v1955, %v1957
        %v1960 = vadd.f32 %v1952, %v1958
        %v1961 = vadd.f32 %v1953, %v1959
        %v1962 = vld [vmem:[#allocation5 + $0x9] sm:$0xff]
        %v1963 = vld [vmem:[#allocation5 + $0x11] sm:$0xff]
        %v1964 = vld [vmem:[%s1939 + $0x15] sm:$0x1]
        %v1965 = vperm.slane %v1964, 0
        %v1966 = vmul.f32 %v1962, %v1965
        %v1967 = vmul.f32 %v1963, %v1965
        %v1968 = vadd.f32 %v1960, %v1966
        %v1969 = vadd.f32 %v1961, %v1967
        %v1970 = vld [vmem:[#allocation5 + $0xc] sm:$0xff]
        %v1971 = vld [vmem:[#allocation5 + $0x14] sm:$0xff]
        %v1972 = vld [vmem:[%s1939 + $0x1c] sm:$0x1]
        %v1973 = vperm.slane %v1972, 0
        %v1974 = vmul.f32 %v1970, %v1973
        %v1975 = vmul.f32 %v1971, %v1973
        %v1976 = vadd.f32 %v1968, %v1974
        %v1977 = vadd.f32 %v1969, %v1975
        %v1978 = vld [vmem:[#allocation5 + $0xf] sm:$0xff]
        %v1979 = vld [vmem:[#allocation5 + $0x17] sm:$0xff]
        %v1980 = vld [vmem:[%s1939 + $0x23] sm:$0x1]
        %v1981 = vperm.slane %v1980, 0
        %v1982 = vmul.f32 %v1978, %v1981
        %v1983 = vmul.f32 %v1979, %v1981
        %v1984 = vadd.f32 %v1976, %v1982
        %v1985 = vadd.f32 %v1977, %v1983
        %v1986 = vld [vmem:[#allocation5 + $0x12] sm:$0xff]
        %v1987 = vld [vmem:[#allocation5 + $0x1a] sm:$0xff]
        %v1988 = vld [vmem:[%s1939 + $0x2a] sm:$0x1]
        %v1989 = vperm.slane %v1988, 0
        %v1990 = vmul.f32 %v1986, %v1989
        %v1991 = vmul.f32 %v1987, %v1989
        %v1992 = vadd.f32 %v1984, %v1990
        %v1993 = vadd.f32 %v1985, %v1991
        %v1994 = vld [vmem:[#allocation3] sm:$0xff]
        %v1995 = vld [vmem:[#allocation3 + $0x8] sm:$0xff]
        %v1996 = vld [vmem:[#allocation3 + $0x10] sm:$0xff]
        %v1997 = vld [vmem:[#allocation3 + $0x18] sm:$0xff]
        %v1998 = vld [vmem:[#allocation3 + $0x20] sm:$0x3]
        %2004 = vrot.lane.b32.xlu0 %v1994, 125
        %v2005 = vpop.permute.xlu0 %2004
        %2006 = vrot.lane.b32.xlu0 %v1995, 125
        %v2007 = vpop.permute.xlu0 %2006
        %2008 = vrot.lane.b32.xlu0 %v1996, 125
        %v2009 = vpop.permute.xlu0 %2008
        %2010 = vrot.lane.b32.xlu0 %v1997, 125
        %v2011 = vpop.permute.xlu0 %2010
        %2012 = vrot.lane.b32.xlu0 %v1998, 125
        %v2013 = vpop.permute.xlu0 %2012
        %2019 = vst.msk [vmem:[#allocation5] sm:$0xff] %vm580, %v2005
        %2020 = vst.msk [vmem:[#allocation5 + $0x8] sm:$0xff] %vm580, %v2007
        %2021 = vst.msk [vmem:[#allocation5 + $0x10] sm:$0xff] %vm580, %v2009
        %2022 = vst.msk [vmem:[#allocation5 + $0x18] sm:$0xff] %vm580, %v2011
        %2023 = vst.msk [vmem:[#allocation5 + $0x20] sm:$0x3] %vm881, %v2013
        %v2024 = vld [vmem:[#allocation5] sm:$0xff]
        %v2025 = vld [vmem:[#allocation5 + $0x8] sm:$0xff]
        %v2026 = vld [vmem:[%s1939 + $0x1] sm:$0x1]
        %v2027 = vperm.slane %v2026, 0
        %v2028 = vmul.f32 %v2024, %v2027
        %v2029 = vmul.f32 %v2025, %v2027
        %v2030 = vadd.f32 %v1992, %v2028
        %v2031 = vadd.f32 %v1993, %v2029
        %v2032 = vld [vmem:[#allocation5 + $0x3] sm:$0xff]
        %v2033 = vld [vmem:[#allocation5 + $0xb] sm:$0xff]
        %v2034 = vld [vmem:[%s1939 + $0x8] sm:$0x1]
        %v2035 = vperm.slane %v2034, 0
        %v2036 = vmul.f32 %v2032, %v2035
        %v2037 = vmul.f32 %v2033, %v2035
        %v2038 = vadd.f32 %v2030, %v2036
        %v2039 = vadd.f32 %v2031, %v2037
        %v2040 = vld [vmem:[#allocation5 + $0x6] sm:$0xff]
        %v2041 = vld [vmem:[#allocation5 + $0xe] sm:$0xff]
        %v2042 = vld [vmem:[%s1939 + $0xf] sm:$0x1]
        %v2043 = vperm.slane %v2042, 0
        %v2044 = vmul.f32 %v2040, %v2043
        %v2045 = vmul.f32 %v2041, %v2043
        %v2046 = vadd.f32 %v2038, %v2044
        %v2047 = vadd.f32 %v2039, %v2045
        %v2048 = vld [vmem:[#allocation5 + $0x9] sm:$0xff]
        %v2049 = vld [vmem:[#allocation5 + $0x11] sm:$0xff]
        %v2050 = vld [vmem:[%s1939 + $0x16] sm:$0x1]
        %v2051 = vperm.slane %v2050, 0
        %v2052 = vmul.f32 %v2048, %v2051
        %v2053 = vmul.f32 %v2049, %v2051
        %v2054 = vadd.f32 %v2046, %v2052
        %v2055 = vadd.f32 %v2047, %v2053
        %v2056 = vld [vmem:[#allocation5 + $0xc] sm:$0xff]
        %v2057 = vld [vmem:[#allocation5 + $0x14] sm:$0xff]
        %v2058 = vld [vmem:[%s1939 + $0x1d] sm:$0x1]
        %v2059 = vperm.slane %v2058, 0
        %v2060 = vmul.f32 %v2056, %v2059
        %v2061 = vmul.f32 %v2057, %v2059
        %v2062 = vadd.f32 %v2054, %v2060
        %v2063 = vadd.f32 %v2055, %v2061
        %v2064 = vld [vmem:[#allocation5 + $0xf] sm:$0xff]
        %v2065 = vld [vmem:[#allocation5 + $0x17] sm:$0xff]
        %v2066 = vld [vmem:[%s1939 + $0x24] sm:$0x1]
        %v2067 = vperm.slane %v2066, 0
        %v2068 = vmul.f32 %v2064, %v2067
        %v2069 = vmul.f32 %v2065, %v2067
        %v2070 = vadd.f32 %v2062, %v2068
        %v2071 = vadd.f32 %v2063, %v2069
        %v2072 = vld [vmem:[#allocation5 + $0x12] sm:$0xff]
        %v2073 = vld [vmem:[#allocation5 + $0x1a] sm:$0xff]
        %v2074 = vld [vmem:[%s1939 + $0x2b] sm:$0x1]
        %v2075 = vperm.slane %v2074, 0
        %v2076 = vmul.f32 %v2072, %v2075
        %v2077 = vmul.f32 %v2073, %v2075
        %v2078 = vadd.f32 %v2070, %v2076
        %v2079 = vadd.f32 %v2071, %v2077
        %v2080 = vld [vmem:[#allocation3] sm:$0xff]
        %v2081 = vld [vmem:[#allocation3 + $0x8] sm:$0xff]
        %v2082 = vld [vmem:[#allocation3 + $0x10] sm:$0xff]
        %v2083 = vld [vmem:[#allocation3 + $0x18] sm:$0xff]
        %v2084 = vld [vmem:[#allocation3 + $0x20] sm:$0x3]
        %2090 = vrot.lane.b32.xlu0 %v2080, 122
        %v2091 = vpop.permute.xlu0 %2090
        %2092 = vrot.lane.b32.xlu0 %v2081, 122
        %v2093 = vpop.permute.xlu0 %2092
        %2094 = vrot.lane.b32.xlu0 %v2082, 122
        %v2095 = vpop.permute.xlu0 %2094
        %2096 = vrot.lane.b32.xlu0 %v2083, 122
        %v2097 = vpop.permute.xlu0 %2096
        %2098 = vrot.lane.b32.xlu0 %v2084, 122
        %v2099 = vpop.permute.xlu0 %2098
        %2105 = vst.msk [vmem:[#allocation5] sm:$0xff] %vm580, %v2091
        %2106 = vst.msk [vmem:[#allocation5 + $0x8] sm:$0xff] %vm580, %v2093
        %2107 = vst.msk [vmem:[#allocation5 + $0x10] sm:$0xff] %vm580, %v2095
        %2108 = vst.msk [vmem:[#allocation5 + $0x18] sm:$0xff] %vm580, %v2097
        %2109 = vst.msk [vmem:[#allocation5 + $0x20] sm:$0x3] %vm881, %v2099
        %v2110 = vld [vmem:[#allocation5] sm:$0xff]
        %v2111 = vld [vmem:[#allocation5 + $0x8] sm:$0xff]
        %v2112 = vld [vmem:[%s1939 + $0x2] sm:$0x1]
        %v2113 = vperm.slane %v2112, 0
        %v2114 = vmul.f32 %v2110, %v2113
        %v2115 = vmul.f32 %v2111, %v2113
        %v2116 = vadd.f32 %v2078, %v2114
        %v2117 = vadd.f32 %v2079, %v2115
        %v2118 = vld [vmem:[#allocation5 + $0x3] sm:$0xff]
        %v2119 = vld [vmem:[#allocation5 + $0xb] sm:$0xff]
        %v2120 = vld [vmem:[%s1939 + $0x9] sm:$0x1]
        %v2121 = vperm.slane %v2120, 0
        %v2122 = vmul.f32 %v2118, %v2121
        %v2123 = vmul.f32 %v2119, %v2121
        %v2124 = vadd.f32 %v2116, %v2122
        %v2125 = vadd.f32 %v2117, %v2123
        %v2126 = vld [vmem:[#allocation5 + $0x6] sm:$0xff]
        %v2127 = vld [vmem:[#allocation5 + $0xe] sm:$0xff]
        %v2128 = vld [vmem:[%s1939 + $0x10] sm:$0x1]
        %v2129 = vperm.slane %v2128, 0
        %v2130 = vmul.f32 %v2126, %v2129
        %v2131 = vmul.f32 %v2127, %v2129
        %v2132 = vadd.f32 %v2124, %v2130
        %v2133 = vadd.f32 %v2125, %v2131
        %v2134 = vld [vmem:[#allocation5 + $0x9] sm:$0xff]
        %v2135 = vld [vmem:[#allocation5 + $0x11] sm:$0xff]
        %v2136 = vld [vmem:[%s1939 + $0x17] sm:$0x1]
        %v2137 = vperm.slane %v2136, 0
        %v2138 = vmul.f32 %v2134, %v2137
        %v2139 = vmul.f32 %v2135, %v2137
        %v2140 = vadd.f32 %v2132, %v2138
        %v2141 = vadd.f32 %v2133, %v2139
        %v2142 = vld [vmem:[#allocation5 + $0xc] sm:$0xff]
        %v2143 = vld [vmem:[#allocation5 + $0x14] sm:$0xff]
        %v2144 = vld [vmem:[%s1939 + $0x1e] sm:$0x1]
        %v2145 = vperm.slane %v2144, 0
        %v2146 = vmul.f32 %v2142, %v2145
        %v2147 = vmul.f32 %v2143, %v2145
        %v2148 = vadd.f32 %v2140, %v2146
        %v2149 = vadd.f32 %v2141, %v2147
        %v2150 = vld [vmem:[#allocation5 + $0xf] sm:$0xff]
        %v2151 = vld [vmem:[#allocation5 + $0x17] sm:$0xff]
        %v2152 = vld [vmem:[%s1939 + $0x25] sm:$0x1]
        %v2153 = vperm.slane %v2152, 0
        %v2154 = vmul.f32 %v2150, %v2153
        %v2155 = vmul.f32 %v2151, %v2153
        %v2156 = vadd.f32 %v2148, %v2154
        %v2157 = vadd.f32 %v2149, %v2155
        %v2158 = vld [vmem:[#allocation5 + $0x12] sm:$0xff]
        %v2159 = vld [vmem:[#allocation5 + $0x1a] sm:$0xff]
        %v2160 = vld [vmem:[%s1939 + $0x2c] sm:$0x1]
        %v2161 = vperm.slane %v2160, 0
        %v2162 = vmul.f32 %v2158, %v2161
        %v2163 = vmul.f32 %v2159, %v2161
        %v2164 = vadd.f32 %v2156, %v2162
        %v2165 = vadd.f32 %v2157, %v2163
        %v2166 = vld [vmem:[#allocation3] sm:$0xff]
        %v2167 = vld [vmem:[#allocation3 + $0x8] sm:$0xff]
        %v2168 = vld [vmem:[#allocation3 + $0x10] sm:$0xff]
        %v2169 = vld [vmem:[#allocation3 + $0x18] sm:$0xff]
        %v2170 = vld [vmem:[#allocation3 + $0x20] sm:$0x3]
        %2176 = vrot.lane.b32.xlu0 %v2166, 119
        %v2177 = vpop.permute.xlu0 %2176
        %2178 = vrot.lane.b32.xlu0 %v2167, 119
        %v2179 = vpop.permute.xlu0 %2178
        %2180 = vrot.lane.b32.xlu0 %v2168, 119
        %v2181 = vpop.permute.xlu0 %2180
        %2182 = vrot.lane.b32.xlu0 %v2169, 119
        %v2183 = vpop.permute.xlu0 %2182
        %2184 = vrot.lane.b32.xlu0 %v2170, 119
        %v2185 = vpop.permute.xlu0 %2184
        %2191 = vst.msk [vmem:[#allocation5] sm:$0xff] %vm580, %v2177
        %2192 = vst.msk [vmem:[#allocation5 + $0x8] sm:$0xff] %vm580, %v2179
        %2193 = vst.msk [vmem:[#allocation5 + $0x10] sm:$0xff] %vm580, %v2181
        %2194 = vst.msk [vmem:[#allocation5 + $0x18] sm:$0xff] %vm580, %v2183
        %2195 = vst.msk [vmem:[#allocation5 + $0x20] sm:$0x3] %vm881, %v2185
        %v2196 = vld [vmem:[#allocation5] sm:$0xff]
        %v2197 = vld [vmem:[#allocation5 + $0x8] sm:$0xff]
        %v2198 = vld [vmem:[%s1939 + $0x3] sm:$0x1]
        %v2199 = vperm.slane %v2198, 0
        %v2200 = vmul.f32 %v2196, %v2199
        %v2201 = vmul.f32 %v2197, %v2199
        %v2202 = vadd.f32 %v2164, %v2200
        %v2203 = vadd.f32 %v2165, %v2201
        %v2204 = vld [vmem:[#allocation5 + $0x3] sm:$0xff]
        %v2205 = vld [vmem:[#allocation5 + $0xb] sm:$0xff]
        %v2206 = vld [vmem:[%s1939 + $0xa] sm:$0x1]
        %v2207 = vperm.slane %v2206, 0
        %v2208 = vmul.f32 %v2204, %v2207
        %v2209 = vmul.f32 %v2205, %v2207
        %v2210 = vadd.f32 %v2202, %v2208
        %v2211 = vadd.f32 %v2203, %v2209
        %v2212 = vld [vmem:[#allocation5 + $0x6] sm:$0xff]
        %v2213 = vld [vmem:[#allocation5 + $0xe] sm:$0xff]
        %v2214 = vld [vmem:[%s1939 + $0x11] sm:$0x1]
        %v2215 = vperm.slane %v2214, 0
        %v2216 = vmul.f32 %v2212, %v2215
        %v2217 = vmul.f32 %v2213, %v2215
        %v2218 = vadd.f32 %v2210, %v2216
        %v2219 = vadd.f32 %v2211, %v2217
        %v2220 = vld [vmem:[#allocation5 + $0x9] sm:$0xff]
        %v2221 = vld [vmem:[#allocation5 + $0x11] sm:$0xff]
        %v2222 = vld [vmem:[%s1939 + $0x18] sm:$0x1]
        %v2223 = vperm.slane %v2222, 0
        %v2224 = vmul.f32 %v2220, %v2223
        %v2225 = vmul.f32 %v2221, %v2223
        %v2226 = vadd.f32 %v2218, %v2224
        %v2227 = vadd.f32 %v2219, %v2225
        %v2228 = vld [vmem:[#allocation5 + $0xc] sm:$0xff]
        %v2229 = vld [vmem:[#allocation5 + $0x14] sm:$0xff]
        %v2230 = vld [vmem:[%s1939 + $0x1f] sm:$0x1]
        %v2231 = vperm.slane %v2230, 0
        %v2232 = vmul.f32 %v2228, %v2231
        %v2233 = vmul.f32 %v2229, %v2231
        %v2234 = vadd.f32 %v2226, %v2232
        %v2235 = vadd.f32 %v2227, %v2233
        %v2236 = vld [vmem:[#allocation5 + $0xf] sm:$0xff]
        %v2237 = vld [vmem:[#allocation5 + $0x17] sm:$0xff]
        %v2238 = vld [vmem:[%s1939 + $0x26] sm:$0x1]
        %v2239 = vperm.slane %v2238, 0
        %v2240 = vmul.f32 %v2236, %v2239
        %v2241 = vmul.f32 %v2237, %v2239
        %v2242 = vadd.f32 %v2234, %v2240
        %v2243 = vadd.f32 %v2235, %v2241
        %v2244 = vld [vmem:[#allocation5 + $0x12] sm:$0xff]
        %v2245 = vld [vmem:[#allocation5 + $0x1a] sm:$0xff]
        %v2246 = vld [vmem:[%s1939 + $0x2d] sm:$0x1]
        %v2247 = vperm.slane %v2246, 0
        %v2248 = vmul.f32 %v2244, %v2247
        %v2249 = vmul.f32 %v2245, %v2247
        %v2250 = vadd.f32 %v2242, %v2248
        %v2251 = vadd.f32 %v2243, %v2249
        %v2252 = vld [vmem:[#allocation3] sm:$0xff]
        %v2253 = vld [vmem:[#allocation3 + $0x8] sm:$0xff]
        %v2254 = vld [vmem:[#allocation3 + $0x10] sm:$0xff]
        %v2255 = vld [vmem:[#allocation3 + $0x18] sm:$0xff]
        %v2256 = vld [vmem:[#allocation3 + $0x20] sm:$0x3]
        %2262 = vrot.lane.b32.xlu0 %v2252, 116
        %v2263 = vpop.permute.xlu0 %2262
        %2264 = vrot.lane.b32.xlu0 %v2253, 116
        %v2265 = vpop.permute.xlu0 %2264
        %2266 = vrot.lane.b32.xlu0 %v2254, 116
        %v2267 = vpop.permute.xlu0 %2266
        %2268 = vrot.lane.b32.xlu0 %v2255, 116
        %v2269 = vpop.permute.xlu0 %2268
        %2270 = vrot.lane.b32.xlu0 %v2256, 116
        %v2271 = vpop.permute.xlu0 %2270
        %2277 = vst.msk [vmem:[#allocation5] sm:$0xff] %vm580, %v2263
        %2278 = vst.msk [vmem:[#allocation5 + $0x8] sm:$0xff] %vm580, %v2265
        %2279 = vst.msk [vmem:[#allocation5 + $0x10] sm:$0xff] %vm580, %v2267
        %2280 = vst.msk [vmem:[#allocation5 + $0x18] sm:$0xff] %vm580, %v2269
        %2281 = vst.msk [vmem:[#allocation5 + $0x20] sm:$0x3] %vm881, %v2271
        %v2282 = vld [vmem:[#allocation5] sm:$0xff]
        %v2283 = vld [vmem:[#allocation5 + $0x8] sm:$0xff]
        %v2284 = vld [vmem:[%s1939 + $0x4] sm:$0x1]
        %v2285 = vperm.slane %v2284, 0
        %v2286 = vmul.f32 %v2282, %v2285
        %v2287 = vmul.f32 %v2283, %v2285
        %v2288 = vadd.f32 %v2250, %v2286
        %v2289 = vadd.f32 %v2251, %v2287
        %v2290 = vld [vmem:[#allocation5 + $0x3] sm:$0xff]
        %v2291 = vld [vmem:[#allocation5 + $0xb] sm:$0xff]
        %v2292 = vld [vmem:[%s1939 + $0xb] sm:$0x1]
        %v2293 = vperm.slane %v2292, 0
        %v2294 = vmul.f32 %v2290, %v2293
        %v2295 = vmul.f32 %v2291, %v2293
        %v2296 = vadd.f32 %v2288, %v2294
        %v2297 = vadd.f32 %v2289, %v2295
        %v2298 = vld [vmem:[#allocation5 + $0x6] sm:$0xff]
        %v2299 = vld [vmem:[#allocation5 + $0xe] sm:$0xff]
        %v2300 = vld [vmem:[%s1939 + $0x12] sm:$0x1]
        %v2301 = vperm.slane %v2300, 0
        %v2302 = vmul.f32 %v2298, %v2301
        %v2303 = vmul.f32 %v2299, %v2301
        %v2304 = vadd.f32 %v2296, %v2302
        %v2305 = vadd.f32 %v2297, %v2303
        %v2306 = vld [vmem:[#allocation5 + $0x9] sm:$0xff]
        %v2307 = vld [vmem:[#allocation5 + $0x11] sm:$0xff]
        %v2308 = vld [vmem:[%s1939 + $0x19] sm:$0x1]
        %v2309 = vperm.slane %v2308, 0
        %v2310 = vmul.f32 %v2306, %v2309
        %v2311 = vmul.f32 %v2307, %v2309
        %v2312 = vadd.f32 %v2304, %v2310
        %v2313 = vadd.f32 %v2305, %v2311
        %v2314 = vld [vmem:[#allocation5 + $0xc] sm:$0xff]
        %v2315 = vld [vmem:[#allocation5 + $0x14] sm:$0xff]
        %v2316 = vld [vmem:[%s1939 + $0x20] sm:$0x1]
        %v2317 = vperm.slane %v2316, 0
        %v2318 = vmul.f32 %v2314, %v2317
        %v2319 = vmul.f32 %v2315, %v2317
        %v2320 = vadd.f32 %v2312, %v2318
        %v2321 = vadd.f32 %v2313, %v2319
        %v2322 = vld [vmem:[#allocation5 + $0xf] sm:$0xff]
        %v2323 = vld [vmem:[#allocation5 + $0x17] sm:$0xff]
        %v2324 = vld [vmem:[%s1939 + $0x27] sm:$0x1]
        %v2325 = vperm.slane %v2324, 0
        %v2326 = vmul.f32 %v2322, %v2325
        %v2327 = vmul.f32 %v2323, %v2325
        %v2328 = vadd.f32 %v2320, %v2326
        %v2329 = vadd.f32 %v2321, %v2327
        %v2330 = vld [vmem:[#allocation5 + $0x12] sm:$0xff]
        %v2331 = vld [vmem:[#allocation5 + $0x1a] sm:$0xff]
        %v2332 = vld [vmem:[%s1939 + $0x2e] sm:$0x1]
        %v2333 = vperm.slane %v2332, 0
        %v2334 = vmul.f32 %v2330, %v2333
        %v2335 = vmul.f32 %v2331, %v2333
        %v2336 = vadd.f32 %v2328, %v2334
        %v2337 = vadd.f32 %v2329, %v2335
        %v2338 = vld [vmem:[#allocation3] sm:$0xff]
        %v2339 = vld [vmem:[#allocation3 + $0x8] sm:$0xff]
        %v2340 = vld [vmem:[#allocation3 + $0x10] sm:$0xff]
        %v2341 = vld [vmem:[#allocation3 + $0x18] sm:$0xff]
        %v2342 = vld [vmem:[#allocation3 + $0x20] sm:$0x3]
        %2348 = vrot.lane.b32.xlu0 %v2338, 113
        %v2349 = vpop.permute.xlu0 %2348
        %2350 = vrot.lane.b32.xlu0 %v2339, 113
        %v2351 = vpop.permute.xlu0 %2350
        %2352 = vrot.lane.b32.xlu0 %v2340, 113
        %v2353 = vpop.permute.xlu0 %2352
        %2354 = vrot.lane.b32.xlu0 %v2341, 113
        %v2355 = vpop.permute.xlu0 %2354
        %2356 = vrot.lane.b32.xlu0 %v2342, 113
        %v2357 = vpop.permute.xlu0 %2356
        %2363 = vst.msk [vmem:[#allocation5] sm:$0xff] %vm580, %v2349
        %2364 = vst.msk [vmem:[#allocation5 + $0x8] sm:$0xff] %vm580, %v2351
        %2365 = vst.msk [vmem:[#allocation5 + $0x10] sm:$0xff] %vm580, %v2353
        %2366 = vst.msk [vmem:[#allocation5 + $0x18] sm:$0xff] %vm580, %v2355
        %2367 = vst.msk [vmem:[#allocation5 + $0x20] sm:$0x3] %vm881, %v2357
        %v2368 = vld [vmem:[#allocation5] sm:$0xff]
        %v2369 = vld [vmem:[#allocation5 + $0x8] sm:$0xff]
        %v2370 = vld [vmem:[%s1939 + $0x5] sm:$0x1]
        %v2371 = vperm.slane %v2370, 0
        %v2372 = vmul.f32 %v2368, %v2371
        %v2373 = vmul.f32 %v2369, %v2371
        %v2374 = vadd.f32 %v2336, %v2372
        %v2375 = vadd.f32 %v2337, %v2373
        %v2376 = vld [vmem:[#allocation5 + $0x3] sm:$0xff]
        %v2377 = vld [vmem:[#allocation5 + $0xb] sm:$0xff]
        %v2378 = vld [vmem:[%s1939 + $0xc] sm:$0x1]
        %v2379 = vperm.slane %v2378, 0
        %v2380 = vmul.f32 %v2376, %v2379
        %v2381 = vmul.f32 %v2377, %v2379
        %v2382 = vadd.f32 %v2374, %v2380
        %v2383 = vadd.f32 %v2375, %v2381
        %v2384 = vld [vmem:[#allocation5 + $0x6] sm:$0xff]
        %v2385 = vld [vmem:[#allocation5 + $0xe] sm:$0xff]
        %v2386 = vld [vmem:[%s1939 + $0x13] sm:$0x1]
        %v2387 = vperm.slane %v2386, 0
        %v2388 = vmul.f32 %v2384, %v2387
        %v2389 = vmul.f32 %v2385, %v2387
        %v2390 = vadd.f32 %v2382, %v2388
        %v2391 = vadd.f32 %v2383, %v2389
        %v2392 = vld [vmem:[#allocation5 + $0x9] sm:$0xff]
        %v2393 = vld [vmem:[#allocation5 + $0x11] sm:$0xff]
        %v2394 = vld [vmem:[%s1939 + $0x1a] sm:$0x1]
        %v2395 = vperm.slane %v2394, 0
        %v2396 = vmul.f32 %v2392, %v2395
        %v2397 = vmul.f32 %v2393, %v2395
        %v2398 = vadd.f32 %v2390, %v2396
        %v2399 = vadd.f32 %v2391, %v2397
        %v2400 = vld [vmem:[#allocation5 + $0xc] sm:$0xff]
        %v2401 = vld [vmem:[#allocation5 + $0x14] sm:$0xff]
        %v2402 = vld [vmem:[%s1939 + $0x21] sm:$0x1]
        %v2403 = vperm.slane %v2402, 0
        %v2404 = vmul.f32 %v2400, %v2403
        %v2405 = vmul.f32 %v2401, %v2403
        %v2406 = vadd.f32 %v2398, %v2404
        %v2407 = vadd.f32 %v2399, %v2405
        %v2408 = vld [vmem:[#allocation5 + $0xf] sm:$0xff]
        %v2409 = vld [vmem:[#allocation5 + $0x17] sm:$0xff]
        %v2410 = vld [vmem:[%s1939 + $0x28] sm:$0x1]
        %v2411 = vperm.slane %v2410, 0
        %v2412 = vmul.f32 %v2408, %v2411
        %v2413 = vmul.f32 %v2409, %v2411
        %v2414 = vadd.f32 %v2406, %v2412
        %v2415 = vadd.f32 %v2407, %v2413
        %v2416 = vld [vmem:[#allocation5 + $0x12] sm:$0xff]
        %v2417 = vld [vmem:[#allocation5 + $0x1a] sm:$0xff]
        %v2418 = vld [vmem:[%s1939 + $0x2f] sm:$0x1]
        %v2419 = vperm.slane %v2418, 0
        %v2420 = vmul.f32 %v2416, %v2419
        %v2421 = vmul.f32 %v2417, %v2419
        %v2422 = vadd.f32 %v2414, %v2420
        %v2423 = vadd.f32 %v2415, %v2421
        %v2424 = vld [vmem:[#allocation3] sm:$0xff]
        %v2425 = vld [vmem:[#allocation3 + $0x8] sm:$0xff]
        %v2426 = vld [vmem:[#allocation3 + $0x10] sm:$0xff]
        %v2427 = vld [vmem:[#allocation3 + $0x18] sm:$0xff]
        %v2428 = vld [vmem:[#allocation3 + $0x20] sm:$0x3]
        %2434 = vrot.lane.b32.xlu0 %v2424, 110
        %v2435 = vpop.permute.xlu0 %2434
        %2436 = vrot.lane.b32.xlu0 %v2425, 110
        %v2437 = vpop.permute.xlu0 %2436
        %2438 = vrot.lane.b32.xlu0 %v2426, 110
        %v2439 = vpop.permute.xlu0 %2438
        %2440 = vrot.lane.b32.xlu0 %v2427, 110
        %v2441 = vpop.permute.xlu0 %2440
        %2442 = vrot.lane.b32.xlu0 %v2428, 110
        %v2443 = vpop.permute.xlu0 %2442
        %2449 = vst.msk [vmem:[#allocation5] sm:$0xff] %vm580, %v2435
        %2450 = vst.msk [vmem:[#allocation5 + $0x8] sm:$0xff] %vm580, %v2437
        %2451 = vst.msk [vmem:[#allocation5 + $0x10] sm:$0xff] %vm580, %v2439
        %2452 = vst.msk [vmem:[#allocation5 + $0x18] sm:$0xff] %vm580, %v2441
        %2453 = vst.msk [vmem:[#allocation5 + $0x20] sm:$0x3] %vm881, %v2443
        %v2454 = vld [vmem:[#allocation5] sm:$0xff]
        %v2455 = vld [vmem:[#allocation5 + $0x8] sm:$0xff]
        %v2456 = vld [vmem:[%s1939 + $0x6] sm:$0x1]
        %v2457 = vperm.slane %v2456, 0
        %v2458 = vmul.f32 %v2454, %v2457
        %v2459 = vmul.f32 %v2455, %v2457
        %v2460 = vadd.f32 %v2422, %v2458
        %v2461 = vadd.f32 %v2423, %v2459
        %v2462 = vld [vmem:[#allocation5 + $0x3] sm:$0xff]
        %v2463 = vld [vmem:[#allocation5 + $0xb] sm:$0xff]
        %v2464 = vld [vmem:[%s1939 + $0xd] sm:$0x1]
        %v2465 = vperm.slane %v2464, 0
        %v2466 = vmul.f32 %v2462, %v2465
        %v2467 = vmul.f32 %v2463, %v2465
        %v2468 = vadd.f32 %v2460, %v2466
        %v2469 = vadd.f32 %v2461, %v2467
        %v2470 = vld [vmem:[#allocation5 + $0x6] sm:$0xff]
        %v2471 = vld [vmem:[#allocation5 + $0xe] sm:$0xff]
        %v2472 = vld [vmem:[%s1939 + $0x14] sm:$0x1]
        %v2473 = vperm.slane %v2472, 0
        %v2474 = vmul.f32 %v2470, %v2473
        %v2475 = vmul.f32 %v2471, %v2473
        %v2476 = vadd.f32 %v2468, %v2474
        %v2477 = vadd.f32 %v2469, %v2475
        %v2478 = vld [vmem:[#allocation5 + $0x9] sm:$0xff]
        %v2479 = vld [vmem:[#allocation5 + $0x11] sm:$0xff]
        %v2480 = vld [vmem:[%s1939 + $0x1b] sm:$0x1]
        %v2481 = vperm.slane %v2480, 0
        %v2482 = vmul.f32 %v2478, %v2481
        %v2483 = vmul.f32 %v2479, %v2481
        %v2484 = vadd.f32 %v2476, %v2482
        %v2485 = vadd.f32 %v2477, %v2483
        %v2486 = vld [vmem:[#allocation5 + $0xc] sm:$0xff]
        %v2487 = vld [vmem:[#allocation5 + $0x14] sm:$0xff]
        %v2488 = vld [vmem:[%s1939 + $0x22] sm:$0x1]
        %v2489 = vperm.slane %v2488, 0
        %v2490 = vmul.f32 %v2486, %v2489
        %v2491 = vmul.f32 %v2487, %v2489
        %v2492 = vadd.f32 %v2484, %v2490
        %v2493 = vadd.f32 %v2485, %v2491
        %v2494 = vld [vmem:[#allocation5 + $0xf] sm:$0xff]
        %v2495 = vld [vmem:[#allocation5 + $0x17] sm:$0xff]
        %v2496 = vld [vmem:[%s1939 + $0x29] sm:$0x1]
        %v2497 = vperm.slane %v2496, 0
        %v2498 = vmul.f32 %v2494, %v2497
        %v2499 = vmul.f32 %v2495, %v2497
        %v2500 = vadd.f32 %v2492, %v2498
        %v2501 = vadd.f32 %v2493, %v2499
        %v2502 = vld [vmem:[#allocation5 + $0x12] sm:$0xff]
        %v2503 = vld [vmem:[#allocation5 + $0x1a] sm:$0xff]
        %v2504 = vld [vmem:[%s1939 + $0x30] sm:$0x1]
        %v2505 = vperm.slane %v2504, 0
        %v2506 = vmul.f32 %v2502, %v2505
        %v2507 = vmul.f32 %v2503, %v2505
        %v2508 = vadd.f32 %v2500, %v2506
        %v2509 = vadd.f32 %v2501, %v2507
        %v2510 = vld [vmem:[%s4 + $0x1] sm:$0x1]
        %v2511 = vperm.slane %v2510, 0
        %v2512 = vadd.f32 %v2508, %v2511
        %v2513 = vadd.f32 %v2509, %v2511
        %s2514 = scalar_lea.vmem [#allocation4], 16
        %2515 = vst.msk [vmem:[%s2514] sm:$0xff] %vm580, %v2512
        %2516 = vst.msk [vmem:[%s2514 + $0x8] sm:$0xff] %vm580, %v2513
        %s2517 = sld [smem:[#allocation12]]
        %v2518 = vstv %s2517
        %s2519 = sld [smem:[#allocation12 + $0x1]]
        %v2520 = vstv %s2519
        %s2521 = sld [smem:[#allocation12 + $0x2]]
        %v2522 = vstv %s2521
        %s2523 = sld [smem:[#allocation12 + $0x3]]
        %v2524 = vstv %s2523
        %v2525 = vld [vmem:[#allocation4] sm:$0xff]
        %v2526 = vld [vmem:[#allocation4 + $0x8] sm:$0xff]
        %s2527 = sld [smem:[#allocation11]]
        %v2528 = vstv %s2527
        %v2529 = vmul.f32 %v2525, %v2528
        %v2530 = vmul.f32 %v2526, %v2528
        %v2531 = vadd.f32 %v2518, %v2529
        %v2532 = vadd.f32 %v2518, %v2530
        %s2533 = sld [smem:[#allocation11 + $0x1]]
        %v2534 = vstv %s2533
        %v2535 = vmul.f32 %v2525, %v2534
        %v2536 = vmul.f32 %v2526, %v2534
        %v2537 = vadd.f32 %v2520, %v2535
        %v2538 = vadd.f32 %v2520, %v2536
        %s2539 = sld [smem:[#allocation11 + $0x2]]
        %v2540 = vstv %s2539
        %v2541 = vmul.f32 %v2525, %v2540
        %v2542 = vmul.f32 %v2526, %v2540
        %v2543 = vadd.f32 %v2522, %v2541
        %v2544 = vadd.f32 %v2522, %v2542
        %s2545 = sld [smem:[#allocation11 + $0x3]]
        %v2546 = vstv %s2545
        %v2547 = vmul.f32 %v2525, %v2546
        %v2548 = vmul.f32 %v2526, %v2546
        %v2549 = vadd.f32 %v2524, %v2547
        %v2550 = vadd.f32 %v2524, %v2548
        %s2551 = sld [smem:[#allocation11 + $0x4]]
        %v2552 = vstv %s2551
        %v2553 = vmul.f32 %v2525, %v2552
        %v2554 = vmul.f32 %v2526, %v2552
        %2557 = vrot.lane.b32.xlu0 %v2553, 94
        %v2558 = vpop.permute.xlu0 %2557
        %2559 = vrot.lane.b32.xlu0 %v2554, 94
        %v2560 = vpop.permute.xlu0 %2559
        %v2563 = vadd.f32 %v2531, %v2558
        %v2564 = vadd.f32 %v2532, %v2560
        %s2565 = sld [smem:[#allocation11 + $0x5]]
        %v2566 = vstv %s2565
        %v2567 = vmul.f32 %v2525, %v2566
        %v2568 = vmul.f32 %v2526, %v2566
        %2571 = vrot.lane.b32.xlu0 %v2567, 94
        %v2572 = vpop.permute.xlu0 %2571
        %2573 = vrot.lane.b32.xlu0 %v2568, 94
        %v2574 = vpop.permute.xlu0 %2573
        %v2577 = vadd.f32 %v2537, %v2572
        %v2578 = vadd.f32 %v2538, %v2574
        %s2579 = sld [smem:[#allocation11 + $0x6]]
        %v2580 = vstv %s2579
        %v2581 = vmul.f32 %v2525, %v2580
        %v2582 = vmul.f32 %v2526, %v2580
        %2585 = vrot.lane.b32.xlu0 %v2581, 94
        %v2586 = vpop.permute.xlu0 %2585
        %2587 = vrot.lane.b32.xlu0 %v2582, 94
        %v2588 = vpop.permute.xlu0 %2587
        %v2591 = vadd.f32 %v2543, %v2586
        %v2592 = vadd.f32 %v2544, %v2588
        %s2593 = sld [smem:[#allocation11 + $0x7]]
        %v2594 = vstv %s2593
        %v2595 = vmul.f32 %v2525, %v2594
        %v2596 = vmul.f32 %v2526, %v2594
        %2599 = vrot.lane.b32.xlu0 %v2595, 94
        %v2600 = vpop.permute.xlu0 %2599
        %2601 = vrot.lane.b32.xlu0 %v2596, 94
        %v2602 = vpop.permute.xlu0 %2601
        %v2605 = vadd.f32 %v2549, %v2600
        %v2606 = vadd.f32 %v2550, %v2602
        %v2607 = vld [vmem:[%s2514] sm:$0xff]
        %v2608 = vld [vmem:[%s2514 + $0x8] sm:$0xff]
        %s2609 = sld [smem:[#allocation11 + $0x8]]
        %v2610 = vstv %s2609
        %v2611 = vmul.f32 %v2607, %v2610
        %v2612 = vmul.f32 %v2608, %v2610
        %v2613 = vadd.f32 %v2563, %v2611
        %v2614 = vadd.f32 %v2564, %v2612
        %s2615 = sld [smem:[#allocation11 + $0x9]]
        %v2616 = vstv %s2615
        %v2617 = vmul.f32 %v2607, %v2616
        %v2618 = vmul.f32 %v2608, %v2616
        %v2619 = vadd.f32 %v2577, %v2617
        %v2620 = vadd.f32 %v2578, %v2618
        %s2621 = sld [smem:[#allocation11 + $0xa]]
        %v2622 = vstv %s2621
        %v2623 = vmul.f32 %v2607, %v2622
        %v2624 = vmul.f32 %v2608, %v2622
        %v2625 = vadd.f32 %v2591, %v2623
        %v2626 = vadd.f32 %v2592, %v2624
        %s2627 = sld [smem:[#allocation11 + $0xb]]
        %v2628 = vstv %s2627
        %v2629 = vmul.f32 %v2607, %v2628
        %v2630 = vmul.f32 %v2608, %v2628
        %v2631 = vadd.f32 %v2605, %v2629
        %v2632 = vadd.f32 %v2606, %v2630
        %s2633 = sld [smem:[#allocation11 + $0xc]]
        %v2634 = vstv %s2633
        %v2635 = vmul.f32 %v2607, %v2634
        %v2636 = vmul.f32 %v2608, %v2634
        %2639 = vrot.lane.b32.xlu0 %v2635, 94
        %v2640 = vpop.permute.xlu0 %2639
        %2641 = vrot.lane.b32.xlu0 %v2636, 94
        %v2642 = vpop.permute.xlu0 %2641
        %v2645 = vadd.f32 %v2613, %v2640
        %v2646 = vadd.f32 %v2614, %v2642
        %s2647 = sld [smem:[#allocation11 + $0xd]]
        %v2648 = vstv %s2647
        %v2649 = vmul.f32 %v2607, %v2648
        %v2650 = vmul.f32 %v2608, %v2648
        %2653 = vrot.lane.b32.xlu0 %v2649, 94
        %v2654 = vpop.permute.xlu0 %2653
        %2655 = vrot.lane.b32.xlu0 %v2650, 94
        %v2656 = vpop.permute.xlu0 %2655
        %v2659 = vadd.f32 %v2619, %v2654
        %v2660 = vadd.f32 %v2620, %v2656
        %s2661 = sld [smem:[#allocation11 + $0xe]]
        %v2662 = vstv %s2661
        %v2663 = vmul.f32 %v2607, %v2662
        %v2664 = vmul.f32 %v2608, %v2662
        %2667 = vrot.lane.b32.xlu0 %v2663, 94
        %v2668 = vpop.permute.xlu0 %2667
        %2669 = vrot.lane.b32.xlu0 %v2664, 94
        %v2670 = vpop.permute.xlu0 %2669
        %v2673 = vadd.f32 %v2625, %v2668
        %v2674 = vadd.f32 %v2626, %v2670
        %s2675 = sld [smem:[#allocation11 + $0xf]]
        %v2676 = vstv %s2675
        %v2677 = vmul.f32 %v2607, %v2676
        %v2678 = vmul.f32 %v2608, %v2676
        %2681 = vrot.lane.b32.xlu0 %v2677, 94
        %v2682 = vpop.permute.xlu0 %2681
        %2683 = vrot.lane.b32.xlu0 %v2678, 94
        %v2684 = vpop.permute.xlu0 %2683
        %v2687 = vadd.f32 %v2631, %v2682
        %v2688 = vadd.f32 %v2632, %v2684
        %v2689 = vld [vmem:[#allocation2 + $0x2] sm:$0xff]
        %v2690 = vld [vmem:[#allocation2 + $0xa] sm:$0xff]
        %2693 = vrot.lane.b32.xlu0 %v2645, 9
        %v2694 = vpop.permute.xlu0 %2693
        %2695 = vrot.lane.b32.xlu0 %v2646, 9
        %v2696 = vpop.permute.xlu0 %2695
        %v2699 = vmul.f32 %v2689, %v2694
        %v2700 = vmul.f32 %v2690, %v2696
        %2702 = vrot.lane.b32.xlu0 %v2699, 110
        %v2703 = vpop.permute.xlu0 %2702
        %vm2705 = vcmask 122880
        %2706 = vst.msk [vmem:[%s377] sm:$0x1] %vm2705, %v2703
        %v2707 = vrot.slane %v2699, 5
        %v2708 = vrot.slane %v2707, 4
        %2709 = vrot.lane.b32.xlu0 %v2708, 126
        %v2710 = vpop.permute.xlu0 %2709
        %vm2712 = vcmask 254080
        %2713 = vst.msk [vmem:[%s377] sm:$0x1] %vm2712, %v2710
        %v2714 = vrot.slane %v2699, 6
        %v2715 = vrot.slane %v2714, 4
        %2716 = vrot.lane.b32.xlu0 %v2715, 14
        %v2717 = vpop.permute.xlu0 %2716
        %vm2719 = vcmask 385280
        %2720 = vst.msk [vmem:[%s377] sm:$0x1] %vm2719, %v2717
        %v2721 = vrot.slane %v2699, 7
        %v2722 = vrot.slane %v2721, 4
        %2723 = vrot.lane.b32.xlu0 %v2722, 30
        %v2724 = vpop.permute.xlu0 %2723
        %vm2726 = vcmask 516480
        %2727 = vst.msk [vmem:[%s377] sm:$0x1] %vm2726, %v2724
        %2728 = vst.sshfl [vmem:[#allocation1] sm:$0xff pattern:$0x75316420] %v2699
        %s2729 = scalar_lea.vmem [#allocation1], 1
        %v2730 = vld [vmem:[%s2729] ss:$2 sm:$0xff]
        %2731 = vrot.lane.b32.xlu0 %v2730, 46
        %v2732 = vpop.permute.xlu0 %2731
        %vm2734 = vcmask 647680
        %2735 = vst.msk [vmem:[%s377] sm:$0x1] %vm2734, %v2732
        %2736 = vst.sshfl [vmem:[#allocation1] sm:$0xff pattern:$0x75316420] %v2699
        %s2737 = scalar_lea.vmem [#allocation1], 1
        %v2738 = vld [vmem:[%s2737] ss:$2 sm:$0xff]
        %v2739 = vrot.slane %v2738, 5
        %v2740 = vrot.slane %v2739, 4
        %2741 = vrot.lane.b32.xlu0 %v2740, 62
        %v2742 = vpop.permute.xlu0 %2741
        %vm2744 = vcmask 778880
        %2745 = vst.msk [vmem:[%s377] sm:$0x1] %vm2744, %v2742
        %2746 = vst.sshfl [vmem:[#allocation1] sm:$0xff pattern:$0x75316420] %v2699
        %s2747 = scalar_lea.vmem [#allocation1], 1
        %v2748 = vld [vmem:[%s2747] ss:$2 sm:$0xff]
        %v2749 = vrot.slane %v2748, 6
        %v2750 = vrot.slane %v2749, 4
        %2751 = vrot.lane.b32.xlu0 %v2750, 78
        %v2752 = vpop.permute.xlu0 %2751
        %vm2754 = vcmask 910080
        %2755 = vst.msk [vmem:[%s377] sm:$0x1] %vm2754, %v2752
        %2756 = vst.sshfl [vmem:[#allocation1] sm:$0xff pattern:$0x75316420] %v2699
        %s2757 = scalar_lea.vmem [#allocation1], 1
        %v2758 = vld [vmem:[%s2757] ss:$2 sm:$0xff]
        %v2759 = vrot.slane %v2758, 7
        %v2760 = vrot.slane %v2759, 4
        %2761 = vrot.lane.b32.xlu0 %v2760, 94
        %v2762 = vpop.permute.xlu0 %2761
        %vm2764 = vcmask 1041280
        %2765 = vst.msk [vmem:[%s377] sm:$0x1] %vm2764, %v2762
        %2767 = vrot.lane.b32.xlu0 %v2700, 110
        %v2768 = vpop.permute.xlu0 %2767
        %2770 = vst.msk [vmem:[%s377 + $0x4] sm:$0x1] %vm2705, %v2768
        %v2771 = vrot.slane %v2700, 5
        %v2772 = vrot.slane %v2771, 4
        %2773 = vrot.lane.b32.xlu0 %v2772, 126
        %v2774 = vpop.permute.xlu0 %2773
        %2776 = vst.msk [vmem:[%s377 + $0x4] sm:$0x1] %vm2712, %v2774
        %v2777 = vrot.slane %v2700, 6
        %v2778 = vrot.slane %v2777, 4
        %2779 = vrot.lane.b32.xlu0 %v2778, 14
        %v2780 = vpop.permute.xlu0 %2779
        %2782 = vst.msk [vmem:[%s377 + $0x4] sm:$0x1] %vm2719, %v2780
        %v2783 = vrot.slane %v2700, 7
        %v2784 = vrot.slane %v2783, 4
        %2785 = vrot.lane.b32.xlu0 %v2784, 30
        %v2786 = vpop.permute.xlu0 %2785
        %2788 = vst.msk [vmem:[%s377 + $0x4] sm:$0x1] %vm2726, %v2786
        %2789 = vst.sshfl [vmem:[#allocation1] sm:$0xff pattern:$0x75316420] %v2700
        %s2790 = scalar_lea.vmem [#allocation1], 1
        %v2791 = vld [vmem:[%s2790] ss:$2 sm:$0xff]
        %2792 = vrot.lane.b32.xlu0 %v2791, 46
        %v2793 = vpop.permute.xlu0 %2792
        %2795 = vst.msk [vmem:[%s377 + $0x4] sm:$0x1] %vm2734, %v2793
        %2796 = vst.sshfl [vmem:[#allocation1] sm:$0xff pattern:$0x75316420] %v2700
        %s2797 = scalar_lea.vmem [#allocation1], 1
        %v2798 = vld [vmem:[%s2797] ss:$2 sm:$0xff]
        %v2799 = vrot.slane %v2798, 5
        %v2800 = vrot.slane %v2799, 4
        %2801 = vrot.lane.b32.xlu0 %v2800, 62
        %v2802 = vpop.permute.xlu0 %2801
        %2804 = vst.msk [vmem:[%s377 + $0x4] sm:$0x1] %vm2744, %v2802
        %2805 = vst.sshfl [vmem:[#allocation1] sm:$0xff pattern:$0x75316420] %v2700
        %s2806 = scalar_lea.vmem [#allocation1], 1
        %v2807 = vld [vmem:[%s2806] ss:$2 sm:$0xff]
        %v2808 = vrot.slane %v2807, 6
        %v2809 = vrot.slane %v2808, 4
        %2810 = vrot.lane.b32.xlu0 %v2809, 78
        %v2811 = vpop.permute.xlu0 %2810
        %2813 = vst.msk [vmem:[%s377 + $0x4] sm:$0x1] %vm2754, %v2811
        %2814 = vst.sshfl [vmem:[#allocation1] sm:$0xff pattern:$0x75316420] %v2700
        %s2815 = scalar_lea.vmem [#allocation1], 1
        %v2816 = vld [vmem:[%s2815] ss:$2 sm:$0xff]
        %v2817 = vrot.slane %v2816, 7
        %v2818 = vrot.slane %v2817, 4
        %2819 = vrot.lane.b32.xlu0 %v2818, 94
        %v2820 = vpop.permute.xlu0 %2819
        %2822 = vst.msk [vmem:[%s377 + $0x4] sm:$0x1] %vm2764, %v2820
        %v2823 = vld [vmem:[#allocation2 + $0x2] sm:$0xff]
        %v2824 = vld [vmem:[#allocation2 + $0xa] sm:$0xff]
        %2827 = vrot.lane.b32.xlu0 %v2659, 43
        %v2828 = vpop.permute.xlu0 %2827
        %2829 = vrot.lane.b32.xlu0 %v2660, 43
        %v2830 = vpop.permute.xlu0 %2829
        %v2833 = vmul.f32 %v2823, %v2828
        %v2834 = vmul.f32 %v2824, %v2830
        %2836 = vrot.lane.b32.xlu0 %v2833, 76
        %v2837 = vpop.permute.xlu0 %2836
        %2839 = vst.msk [vmem:[%s377 + $0x1] sm:$0x1] %vm2705, %v2837
        %v2840 = vrot.slane %v2833, 5
        %v2841 = vrot.slane %v2840, 4
        %2842 = vrot.lane.b32.xlu0 %v2841, 92
        %v2843 = vpop.permute.xlu0 %2842
        %2845 = vst.msk [vmem:[%s377 + $0x1] sm:$0x1] %vm2712, %v2843
        %v2846 = vrot.slane %v2833, 6
        %v2847 = vrot.slane %v2846, 4
        %2848 = vrot.lane.b32.xlu0 %v2847, 108
        %v2849 = vpop.permute.xlu0 %2848
        %2851 = vst.msk [vmem:[%s377 + $0x1] sm:$0x1] %vm2719, %v2849
        %v2852 = vrot.slane %v2833, 7
        %v2853 = vrot.slane %v2852, 4
        %2854 = vrot.lane.b32.xlu0 %v2853, 124
        %v2855 = vpop.permute.xlu0 %2854
        %2857 = vst.msk [vmem:[%s377 + $0x1] sm:$0x1] %vm2726, %v2855
        %2858 = vst.sshfl [vmem:[#allocation1] sm:$0xff pattern:$0x75316420] %v2833
        %s2859 = scalar_lea.vmem [#allocation1], 1
        %v2860 = vld [vmem:[%s2859] ss:$2 sm:$0xff]
        %2861 = vrot.lane.b32.xlu0 %v2860, 12
        %v2862 = vpop.permute.xlu0 %2861
        %2864 = vst.msk [vmem:[%s377 + $0x1] sm:$0x1] %vm2734, %v2862
        %2865 = vst.sshfl [vmem:[#allocation1] sm:$0xff pattern:$0x75316420] %v2833
        %s2866 = scalar_lea.vmem [#allocation1], 1
        %v2867 = vld [vmem:[%s2866] ss:$2 sm:$0xff]
        %v2868 = vrot.slane %v2867, 5
        %v2869 = vrot.slane %v2868, 4
        %2870 = vrot.lane.b32.xlu0 %v2869, 28
        %v2871 = vpop.permute.xlu0 %2870
        %2873 = vst.msk [vmem:[%s377 + $0x1] sm:$0x1] %vm2744, %v2871
        %2874 = vst.sshfl [vmem:[#allocation1] sm:$0xff pattern:$0x75316420] %v2833
        %s2875 = scalar_lea.vmem [#allocation1], 1
        %v2876 = vld [vmem:[%s2875] ss:$2 sm:$0xff]
        %v2877 = vrot.slane %v2876, 6
        %v2878 = vrot.slane %v2877, 4
        %2879 = vrot.lane.b32.xlu0 %v2878, 44
        %v2880 = vpop.permute.xlu0 %2879
        %2882 = vst.msk [vmem:[%s377 + $0x1] sm:$0x1] %vm2754, %v2880
        %2883 = vst.sshfl [vmem:[#allocation1] sm:$0xff pattern:$0x75316420] %v2833
        %s2884 = scalar_lea.vmem [#allocation1], 1
        %v2885 = vld [vmem:[%s2884] ss:$2 sm:$0xff]
        %v2886 = vrot.slane %v2885, 7
        %v2887 = vrot.slane %v2886, 4
        %2888 = vrot.lane.b32.xlu0 %v2887, 60
        %v2889 = vpop.permute.xlu0 %2888
        %2891 = vst.msk [vmem:[%s377 + $0x1] sm:$0x1] %vm2764, %v2889
        %2893 = vrot.lane.b32.xlu0 %v2834, 76
        %v2894 = vpop.permute.xlu0 %2893
        %2896 = vst.msk [vmem:[%s377 + $0x5] sm:$0x1] %vm2705, %v2894
        %v2897 = vrot.slane %v2834, 5
        %v2898 = vrot.slane %v2897, 4
        %2899 = vrot.lane.b32.xlu0 %v2898, 92
        %v2900 = vpop.permute.xlu0 %2899
        %2902 = vst.msk [vmem:[%s377 + $0x5] sm:$0x1] %vm2712, %v2900
        %v2903 = vrot.slane %v2834, 6
        %v2904 = vrot.slane %v2903, 4
        %2905 = vrot.lane.b32.xlu0 %v2904, 108
        %v2906 = vpop.permute.xlu0 %2905
        %2908 = vst.msk [vmem:[%s377 + $0x5] sm:$0x1] %vm2719, %v2906
        %v2909 = vrot.slane %v2834, 7
        %v2910 = vrot.slane %v2909, 4
        %2911 = vrot.lane.b32.xlu0 %v2910, 124
        %v2912 = vpop.permute.xlu0 %2911
        %2914 = vst.msk [vmem:[%s377 + $0x5] sm:$0x1] %vm2726, %v2912
        %2915 = vst.sshfl [vmem:[#allocation1] sm:$0xff pattern:$0x75316420] %v2834
        %s2916 = scalar_lea.vmem [#allocation1], 1
        %v2917 = vld [vmem:[%s2916] ss:$2 sm:$0xff]
        %2918 = vrot.lane.b32.xlu0 %v2917, 12
        %v2919 = vpop.permute.xlu0 %2918
        %2921 = vst.msk [vmem:[%s377 + $0x5] sm:$0x1] %vm2734, %v2919
        %2922 = vst.sshfl [vmem:[#allocation1] sm:$0xff pattern:$0x75316420] %v2834
        %s2923 = scalar_lea.vmem [#allocation1], 1
        %v2924 = vld [vmem:[%s2923] ss:$2 sm:$0xff]
        %v2925 = vrot.slane %v2924, 5
        %v2926 = vrot.slane %v2925, 4
        %2927 = vrot.lane.b32.xlu0 %v2926, 28
        %v2928 = vpop.permute.xlu0 %2927
        %2930 = vst.msk [vmem:[%s377 + $0x5] sm:$0x1] %vm2744, %v2928
        %2931 = vst.sshfl [vmem:[#allocation1] sm:$0xff pattern:$0x75316420] %v2834
        %s2932 = scalar_lea.vmem [#allocation1], 1
        %v2933 = vld [vmem:[%s2932] ss:$2 sm:$0xff]
        %v2934 = vrot.slane %v2933, 6
        %v2935 = vrot.slane %v2934, 4
        %2936 = vrot.lane.b32.xlu0 %v2935, 44
        %v2937 = vpop.permute.xlu0 %2936
        %2939 = vst.msk [vmem:[%s377 + $0x5] sm:$0x1] %vm2754, %v2937
        %2940 = vst.sshfl [vmem:[#allocation1] sm:$0xff pattern:$0x75316420] %v2834
        %s2941 = scalar_lea.vmem [#allocation1], 1
        %v2942 = vld [vmem:[%s2941] ss:$2 sm:$0xff]
        %v2943 = vrot.slane %v2942, 7
        %v2944 = vrot.slane %v2943, 4
        %2945 = vrot.lane.b32.xlu0 %v2944, 60
        %v2946 = vpop.permute.xlu0 %2945
        %2948 = vst.msk [vmem:[%s377 + $0x5] sm:$0x1] %vm2764, %v2946
        %v2949 = vld [vmem:[%s1461 + $0x2] sm:$0xff]
        %v2950 = vld [vmem:[%s1461 + $0xa] sm:$0xff]
        %2953 = vrot.lane.b32.xlu0 %v2673, 9
        %v2954 = vpop.permute.xlu0 %2953
        %2955 = vrot.lane.b32.xlu0 %v2674, 9
        %v2956 = vpop.permute.xlu0 %2955
        %v2959 = vmul.f32 %v2949, %v2954
        %v2960 = vmul.f32 %v2950, %v2956
        %2962 = vrot.lane.b32.xlu0 %v2959, 110
        %v2963 = vpop.permute.xlu0 %2962
        %2965 = vst.msk [vmem:[%s377 + $0x2] sm:$0x1] %vm2705, %v2963
        %v2966 = vrot.slane %v2959, 5
        %v2967 = vrot.slane %v2966, 4
        %2968 = vrot.lane.b32.xlu0 %v2967, 126
        %v2969 = vpop.permute.xlu0 %2968
        %2971 = vst.msk [vmem:[%s377 + $0x2] sm:$0x1] %vm2712, %v2969
        %v2972 = vrot.slane %v2959, 6
        %v2973 = vrot.slane %v2972, 4
        %2974 = vrot.lane.b32.xlu0 %v2973, 14
        %v2975 = vpop.permute.xlu0 %2974
        %2977 = vst.msk [vmem:[%s377 + $0x2] sm:$0x1] %vm2719, %v2975
        %v2978 = vrot.slane %v2959, 7
        %v2979 = vrot.slane %v2978, 4
        %2980 = vrot.lane.b32.xlu0 %v2979, 30
        %v2981 = vpop.permute.xlu0 %2980
        %2983 = vst.msk [vmem:[%s377 + $0x2] sm:$0x1] %vm2726, %v2981
        %2984 = vst.sshfl [vmem:[#allocation1] sm:$0xff pattern:$0x75316420] %v2959
        %s2985 = scalar_lea.vmem [#allocation1], 1
        %v2986 = vld [vmem:[%s2985] ss:$2 sm:$0xff]
        %2987 = vrot.lane.b32.xlu0 %v2986, 46
        %v2988 = vpop.permute.xlu0 %2987
        %2990 = vst.msk [vmem:[%s377 + $0x2] sm:$0x1] %vm2734, %v2988
        %2991 = vst.sshfl [vmem:[#allocation1] sm:$0xff pattern:$0x75316420] %v2959
        %s2992 = scalar_lea.vmem [#allocation1], 1
        %v2993 = vld [vmem:[%s2992] ss:$2 sm:$0xff]
        %v2994 = vrot.slane %v2993, 5
        %v2995 = vrot.slane %v2994, 4
        %2996 = vrot.lane.b32.xlu0 %v2995, 62
        %v2997 = vpop.permute.xlu0 %2996
        %2999 = vst.msk [vmem:[%s377 + $0x2] sm:$0x1] %vm2744, %v2997
        %3000 = vst.sshfl [vmem:[#allocation1] sm:$0xff pattern:$0x75316420] %v2959
        %s3001 = scalar_lea.vmem [#allocation1], 1
        %v3002 = vld [vmem:[%s3001] ss:$2 sm:$0xff]
        %v3003 = vrot.slane %v3002, 6
        %v3004 = vrot.slane %v3003, 4
        %3005 = vrot.lane.b32.xlu0 %v3004, 78
        %v3006 = vpop.permute.xlu0 %3005
        %3008 = vst.msk [vmem:[%s377 + $0x2] sm:$0x1] %vm2754, %v3006
        %3009 = vst.sshfl [vmem:[#allocation1] sm:$0xff pattern:$0x75316420] %v2959
        %s3010 = scalar_lea.vmem [#allocation1], 1
        %v3011 = vld [vmem:[%s3010] ss:$2 sm:$0xff]
        %v3012 = vrot.slane %v3011, 7
        %v3013 = vrot.slane %v3012, 4
        %3014 = vrot.lane.b32.xlu0 %v3013, 94
        %v3015 = vpop.permute.xlu0 %3014
        %3017 = vst.msk [vmem:[%s377 + $0x2] sm:$0x1] %vm2764, %v3015
        %3019 = vrot.lane.b32.xlu0 %v2960, 110
        %v3020 = vpop.permute.xlu0 %3019
        %3022 = vst.msk [vmem:[%s377 + $0x6] sm:$0x1] %vm2705, %v3020
        %v3023 = vrot.slane %v2960, 5
        %v3024 = vrot.slane %v3023, 4
        %3025 = vrot.lane.b32.xlu0 %v3024, 126
        %v3026 = vpop.permute.xlu0 %3025
        %3028 = vst.msk [vmem:[%s377 + $0x6] sm:$0x1] %vm2712, %v3026
        %v3029 = vrot.slane %v2960, 6
        %v3030 = vrot.slane %v3029, 4
        %3031 = vrot.lane.b32.xlu0 %v3030, 14
        %v3032 = vpop.permute.xlu0 %3031
        %3034 = vst.msk [vmem:[%s377 + $0x6] sm:$0x1] %vm2719, %v3032
        %v3035 = vrot.slane %v2960, 7
        %v3036 = vrot.slane %v3035, 4
        %3037 = vrot.lane.b32.xlu0 %v3036, 30
        %v3038 = vpop.permute.xlu0 %3037
        %3040 = vst.msk [vmem:[%s377 + $0x6] sm:$0x1] %vm2726, %v3038
        %3041 = vst.sshfl [vmem:[#allocation1] sm:$0xff pattern:$0x75316420] %v2960
        %s3042 = scalar_lea.vmem [#allocation1], 1
        %v3043 = vld [vmem:[%s3042] ss:$2 sm:$0xff]
        %3044 = vrot.lane.b32.xlu0 %v3043, 46
        %v3045 = vpop.permute.xlu0 %3044
        %3047 = vst.msk [vmem:[%s377 + $0x6] sm:$0x1] %vm2734, %v3045
        %3048 = vst.sshfl [vmem:[#allocation1] sm:$0xff pattern:$0x75316420] %v2960
        %s3049 = scalar_lea.vmem [#allocation1], 1
        %v3050 = vld [vmem:[%s3049] ss:$2 sm:$0xff]
        %v3051 = vrot.slane %v3050, 5
        %v3052 = vrot.slane %v3051, 4
        %3053 = vrot.lane.b32.xlu0 %v3052, 62
        %v3054 = vpop.permute.xlu0 %3053
        %3056 = vst.msk [vmem:[%s377 + $0x6] sm:$0x1] %vm2744, %v3054
        %3057 = vst.sshfl [vmem:[#allocation1] sm:$0xff pattern:$0x75316420] %v2960
        %s3058 = scalar_lea.vmem [#allocation1], 1
        %v3059 = vld [vmem:[%s3058] ss:$2 sm:$0xff]
        %v3060 = vrot.slane %v3059, 6
        %v3061 = vrot.slane %v3060, 4
        %3062 = vrot.lane.b32.xlu0 %v3061, 78
        %v3063 = vpop.permute.xlu0 %3062
        %3065 = vst.msk [vmem:[%s377 + $0x6] sm:$0x1] %vm2754, %v3063
        %3066 = vst.sshfl [vmem:[#allocation1] sm:$0xff pattern:$0x75316420] %v2960
        %s3067 = scalar_lea.vmem [#allocation1], 1
        %v3068 = vld [vmem:[%s3067] ss:$2 sm:$0xff]
        %v3069 = vrot.slane %v3068, 7
        %v3070 = vrot.slane %v3069, 4
        %3071 = vrot.lane.b32.xlu0 %v3070, 94
        %v3072 = vpop.permute.xlu0 %3071
        %3074 = vst.msk [vmem:[%s377 + $0x6] sm:$0x1] %vm2764, %v3072
        %v3075 = vld [vmem:[%s1461 + $0x2] sm:$0xff]
        %v3076 = vld [vmem:[%s1461 + $0xa] sm:$0xff]
        %3079 = vrot.lane.b32.xlu0 %v2687, 43
        %v3080 = vpop.permute.xlu0 %3079
        %3081 = vrot.lane.b32.xlu0 %v2688, 43
        %v3082 = vpop.permute.xlu0 %3081
        %v3085 = vmul.f32 %v3075, %v3080
        %v3086 = vmul.f32 %v3076, %v3082
        %3088 = vrot.lane.b32.xlu0 %v3085, 76
        %v3089 = vpop.permute.xlu0 %3088
        %3091 = vst.msk [vmem:[%s377 + $0x3] sm:$0x1] %vm2705, %v3089
        %v3092 = vrot.slane %v3085, 5
        %v3093 = vrot.slane %v3092, 4
        %3094 = vrot.lane.b32.xlu0 %v3093, 92
        %v3095 = vpop.permute.xlu0 %3094
        %3097 = vst.msk [vmem:[%s377 + $0x3] sm:$0x1] %vm2712, %v3095
        %v3098 = vrot.slane %v3085, 6
        %v3099 = vrot.slane %v3098, 4
        %3100 = vrot.lane.b32.xlu0 %v3099, 108
        %v3101 = vpop.permute.xlu0 %3100
        %3103 = vst.msk [vmem:[%s377 + $0x3] sm:$0x1] %vm2719, %v3101
        %v3104 = vrot.slane %v3085, 7
        %v3105 = vrot.slane %v3104, 4
        %3106 = vrot.lane.b32.xlu0 %v3105, 124
        %v3107 = vpop.permute.xlu0 %3106
        %3109 = vst.msk [vmem:[%s377 + $0x3] sm:$0x1] %vm2726, %v3107
        %3110 = vst.sshfl [vmem:[#allocation1] sm:$0xff pattern:$0x75316420] %v3085
        %s3111 = scalar_lea.vmem [#allocation1], 1
        %v3112 = vld [vmem:[%s3111] ss:$2 sm:$0xff]
        %3113 = vrot.lane.b32.xlu0 %v3112, 12
        %v3114 = vpop.permute.xlu0 %3113
        %3116 = vst.msk [vmem:[%s377 + $0x3] sm:$0x1] %vm2734, %v3114
        %3117 = vst.sshfl [vmem:[#allocation1] sm:$0xff pattern:$0x75316420] %v3085
        %s3118 = scalar_lea.vmem [#allocation1], 1
        %v3119 = vld [vmem:[%s3118] ss:$2 sm:$0xff]
        %v3120 = vrot.slane %v3119, 5
        %v3121 = vrot.slane %v3120, 4
        %3122 = vrot.lane.b32.xlu0 %v3121, 28
        %v3123 = vpop.permute.xlu0 %3122
        %3125 = vst.msk [vmem:[%s377 + $0x3] sm:$0x1] %vm2744, %v3123
        %3126 = vst.sshfl [vmem:[#allocation1] sm:$0xff pattern:$0x75316420] %v3085
        %s3127 = scalar_lea.vmem [#allocation1], 1
        %v3128 = vld [vmem:[%s3127] ss:$2 sm:$0xff]
        %v3129 = vrot.slane %v3128, 6
        %v3130 = vrot.slane %v3129, 4
        %3131 = vrot.lane.b32.xlu0 %v3130, 44
        %v3132 = vpop.permute.xlu0 %3131
        %3134 = vst.msk [vmem:[%s377 + $0x3] sm:$0x1] %vm2754, %v3132
        %3135 = vst.sshfl [vmem:[#allocation1] sm:$0xff pattern:$0x75316420] %v3085
        %s3136 = scalar_lea.vmem [#allocation1], 1
        %v3137 = vld [vmem:[%s3136] ss:$2 sm:$0xff]
        %v3138 = vrot.slane %v3137, 7
        %v3139 = vrot.slane %v3138, 4
        %3140 = vrot.lane.b32.xlu0 %v3139, 60
        %v3141 = vpop.permute.xlu0 %3140
        %3143 = vst.msk [vmem:[%s377 + $0x3] sm:$0x1] %vm2764, %v3141
        %3145 = vrot.lane.b32.xlu0 %v3086, 76
        %v3146 = vpop.permute.xlu0 %3145
        %3148 = vst.msk [vmem:[%s377 + $0x7] sm:$0x1] %vm2705, %v3146
        %v3149 = vrot.slane %v3086, 5
        %v3150 = vrot.slane %v3149, 4
        %3151 = vrot.lane.b32.xlu0 %v3150, 92
        %v3152 = vpop.permute.xlu0 %3151
        %3154 = vst.msk [vmem:[%s377 + $0x7] sm:$0x1] %vm2712, %v3152
        %v3155 = vrot.slane %v3086, 6
        %v3156 = vrot.slane %v3155, 4
        %3157 = vrot.lane.b32.xlu0 %v3156, 108
        %v3158 = vpop.permute.xlu0 %3157
        %3160 = vst.msk [vmem:[%s377 + $0x7] sm:$0x1] %vm2719, %v3158
        %v3161 = vrot.slane %v3086, 7
        %v3162 = vrot.slane %v3161, 4
        %3163 = vrot.lane.b32.xlu0 %v3162, 124
        %v3164 = vpop.permute.xlu0 %3163
        %3166 = vst.msk [vmem:[%s377 + $0x7] sm:$0x1] %vm2726, %v3164
        %3167 = vst.sshfl [vmem:[#allocation1] sm:$0xff pattern:$0x75316420] %v3086
        %s3168 = scalar_lea.vmem [#allocation1], 1
        %v3169 = vld [vmem:[%s3168] ss:$2 sm:$0xff]
        %3170 = vrot.lane.b32.xlu0 %v3169, 12
        %v3171 = vpop.permute.xlu0 %3170
        %3173 = vst.msk [vmem:[%s377 + $0x7] sm:$0x1] %vm2734, %v3171
        %3174 = vst.sshfl [vmem:[#allocation1] sm:$0xff pattern:$0x75316420] %v3086
        %s3175 = scalar_lea.vmem [#allocation1], 1
        %v3176 = vld [vmem:[%s3175] ss:$2 sm:$0xff]
        %v3177 = vrot.slane %v3176, 5
        %v3178 = vrot.slane %v3177, 4
        %3179 = vrot.lane.b32.xlu0 %v3178, 28
        %v3180 = vpop.permute.xlu0 %3179
        %3182 = vst.msk [vmem:[%s377 + $0x7] sm:$0x1] %vm2744, %v3180
        %3183 = vst.sshfl [vmem:[#allocation1] sm:$0xff pattern:$0x75316420] %v3086
        %s3184 = scalar_lea.vmem [#allocation1], 1
        %v3185 = vld [vmem:[%s3184] ss:$2 sm:$0xff]
        %v3186 = vrot.slane %v3185, 6
        %v3187 = vrot.slane %v3186, 4
        %3188 = vrot.lane.b32.xlu0 %v3187, 44
        %v3189 = vpop.permute.xlu0 %3188
        %3191 = vst.msk [vmem:[%s377 + $0x7] sm:$0x1] %vm2754, %v3189
        %3192 = vst.sshfl [vmem:[#allocation1] sm:$0xff pattern:$0x75316420] %v3086
        %s3193 = scalar_lea.vmem [#allocation1], 1
        %v3194 = vld [vmem:[%s3193] ss:$2 sm:$0xff]
        %v3195 = vrot.slane %v3194, 7
        %v3196 = vrot.slane %v3195, 4
        %3197 = vrot.lane.b32.xlu0 %v3196, 60
        %v3198 = vpop.permute.xlu0 %3197
        %3200 = vst.msk [vmem:[%s377 + $0x7] sm:$0x1] %vm2764, %v3198
        %s3201 = sand.u32 %s228, 1
        %s3202 = scalar_lea.sflag [#allocation7], %s3201
        %s3203 = sand.u32 %s228, 1
        %s3204 = smul.addr %s3203, 8
        %s3205 = scalar_lea.vmem [#allocation14], %s3204
        // Predicated region
        $region73: #{tpu_custom_call.1} parent=55 // pred_check
          %p3206 = pneg %p238
        $region74: #{tpu_custom_call.1} parent=55 // pred_check_branch
          %3208 = sbr.rel (%p3206) target = $region76
        $region75: #{tpu_custom_call.1} parent=55 // pred_region
          %3210 = vsyncadd %s3202, 0
          %s3211 = smul.addr %s26, 2
          %s3212 = smul.addr %s3211, 4
          %s3213 = scalar_lea.hbm %s9, %s3212
          %s3215 = sshll.u32 %s3205, 4
          %s3216 = int_to_ptr.vmem [resolvable:$true] %s3215
          %s3217 = sshll.u32 %s3213, 4
          %s3218 = int_to_ptr.hbm [resolvable:$true] %s3217
          %3220 = dma.vmem_to_hbm [thread:$0]  %s3216, 128, %s3218, %s3202
        $region76: #{tpu_custom_call.1} parent=55 // pred_fallthru
          _
      $region56: #{tpu_custom_call.1} parent=5 // pred_fallthru
        _
      %p3221 = scmp.le.s32.totalorder 2, %s21
      // Predicated region
      $region77: #{tpu_custom_call.1} parent=5 // pred_check
        %p3222 = pneg %p3221
      $region78: #{tpu_custom_call.1} parent=5 // pred_check_branch
        %3224 = sbr.rel (%p3222) target = $region80
      $region79: #{tpu_custom_call.1} parent=5 // pred_region
        %s3225 = ssub.s32 %s21, 2
        // Predicated region
        $region81: #{tpu_custom_call.1} parent=79 // pred_check
          %p3226 = pneg %p244
        $region82: #{tpu_custom_call.1} parent=79 // pred_check_branch
          %3228 = sbr.rel (%p3226) target = $region84
        $region83: #{tpu_custom_call.1} parent=79 // pred_region
          %s3229 = sand.u32 %s229, 1
          %s3230 = scalar_lea.sflag [#allocation7], %s3229
          %s3231 = sand.u32 %s229, 1
          %s3232 = smul.addr %s3231, 8
          %s3233 = scalar_lea.vmem [#allocation14], %s3232
          %3235 = dma.done %s3230, 128
        $region84: #{tpu_custom_call.1} parent=79 // pred_fallthru
          _
      $region80: #{tpu_custom_call.1} parent=5 // pred_fallthru
        _
    $region6: #{tpu_custom_call.1} parent=1 // loop_footer
      %s25 = sadd.s32 1, %s21
    $region7: #{tpu_custom_call.1} parent=1 // loop_footer_branch
      %20 = sbr.rel target = $region3
    $region8: #{tpu_custom_call.1} parent=1 // loop_exit
      _
    %3236 = vsyncpa [#allocation7], 1
    %s3237 = scalar_lea.sflag [#allocation7], 1
    %3238 = vsyncpa %s3237, 1
    %3239 = vsyncpa [#allocation8], 1
    %s3240 = scalar_lea.sflag [#allocation8], 1
    %3241 = vsyncpa %s3240, 1
    %3242 = vsyncpa [#allocation10], 1
    %3243 = vsyncpa [#allocation13], 1

</llo_original>
